<compile_context>
chip_gen: v6e
topology: v6e:2x2x1
jax: 0.10.0
libtpu: 0.0.40
codegen_flags: <defaults>
</compile_context>

<pallas_src>
from functools import partial

import jax
import jax.numpy as jnp
from jax.experimental import pallas as pl
from jax.experimental.pallas import tpu as pltpu

HALO = 3  # input-row halo per side: c1(3x3) + c2(3x3) + upsampler(3x3)


# ----------------------------------------------------------------------------
# Fused kernel (one (batch, row-tile) grid step)
# ----------------------------------------------------------------------------
def pcrn_fused_kernel(x_ref,       # (1, 1, TH+6, W, 3)  f32  input row tile + halo
                      c1_w_ref,    # (27, 64)    bf16  (x4-folded c1)
                      c1_b_ref,    # (1, 64)     f32
                      pa_w_ref,    # (16, 64, 64) bf16 (1x1 PixelAttention convs)
                      pa_b_ref,    # (16, 1, 64)  f32
                      c23_w_ref,   # (144, 64)   bf16  (c2 composed with c3[:16])
                      c3r_w_ref,   # (48, 64)    bf16  (c3[16:], pass-through ch)
                      c3_b_ref,    # (1, 64)     f32
                      up_w_ref,    # (576, 12)   bf16
                      up_b_ref,    # (1, 12)     f32
                      o_ref,       # (1, 1, TH*W, 12) f32
                      pad_ref,     # VMEM (TH+6, W+2, 64) f32  shared halo scratch
                      *, TH, W, n_pa):
    f32, bf16 = jnp.float32, jnp.bfloat16
    R1 = TH + 6      # input rows
    R2 = TH + 4      # out_fea / PixelAttention-chain rows
    R3 = TH + 2      # out_lr rows
    t = pl.program_id(1)
    last_t = pl.num_programs(1) - 1

    # Zero only the two halo COLUMNS of the shared pad scratch (interiors are fully
    # rewritten before each conv). Done every step so it stays correct when the grid
    # is sharded across TensorCores.
    pad_ref[:, 0:1, :] = jnp.zeros((R1, 1, 64), f32)
    pad_ref[:, W + 1:W + 2, :] = jnp.zeros((R1, 1, 64), f32)

    # ------------- c1: 3x3 conv, (cat-x4 folded) 3 -> 64, one K=27 matmul --------
    # Row halo comes from the input tile itself (zero rows at image borders were
    # added host-side); column halo is the zeroed scratch border.
    pad_ref[0:R1, 1:W + 1, 0:3] = x_ref[0, 0]
    taps = [pad_ref[dy:dy + R2, dx:dx + W, 0:3].reshape(R2 * W, 3)
            for dy in range(3) for dx in range(3)]
    patches = jnp.concatenate(taps, axis=-1).astype(bf16)            # (R2*W, 27)
    out_fea = jnp.dot(patches, c1_w_ref[...],
                      preferred_element_type=f32) + c1_b_ref[...]    # (R2*W, 64) f32

    # -------- p1..p16: x <- x * sigmoid(x @ W_i + b_i)  (1x1 conv chain) ---------
    # sigmoid(y) == 0.5*tanh(0.5*y) + 0.5: one EUP transcendental instead of exp+div.
    cur = out_fea
    for i in range(n_pa):
        y = jnp.dot(cur.astype(bf16), pa_w_ref[i],
                    preferred_element_type=f32) + pa_b_ref[i]
        cur = cur * (0.5 * jnp.tanh(0.5 * y) + 0.5)

    # --- c2 (partial 3x3 on first 16 ch) composed with c3 (1x1) + bias + residual -
    pad_ref[0:R2, 1:W + 1, 0:16] = cur[:, 0:16].reshape(R2, W, 16)

    # The reference network zero-pads the *activations* at the image top/bottom, so
    # out-of-image halo rows must be zero; tile-interior halos keep real values.
    @pl.when(t == 0)
    def _():
        pad_ref[0:2, 1:W + 1, 0:16] = jnp.zeros((2, W, 16), f32)

    @pl.when(t == last_t)
    def _():
        pad_ref[R2 - 2:R2, 1:W + 1, 0:16] = jnp.zeros((2, W, 16), f32)

    out_lr = out_fea[W:W + R3 * W, :] + c3_b_ref[...]                # residual + bias
    out_lr = out_lr + jnp.dot(cur[W:W + R3 * W, 16:].astype(bf16),
                              c3r_w_ref[...], preferred_element_type=f32)
    for k in range(9):                                               # per-tap matmuls
        dy, dx = k // 3, k % 3
        tap = pad_ref[dy:dy + R3, dx:dx + W, 0:16].reshape(R3 * W, 16).astype(bf16)
        out_lr = out_lr + jnp.dot(tap, c23_w_ref[16 * k:16 * (k + 1), :],
                                  preferred_element_type=f32)        # (R3*W, 64)

    # ------------ upsampler conv: 3x3, 64 -> 12, per-tap accumulation ------------
    pad_ref[0:R3, 1:W + 1, 0:64] = out_lr.reshape(R3, W, 64)

    @pl.when(t == 0)
    def _():
        pad_ref[0:1, 1:W + 1, 0:64] = jnp.zeros((1, W, 64), f32)

    @pl.when(t == last_t)
    def _():
        pad_ref[R3 - 1:R3, 1:W + 1, 0:64] = jnp.zeros((1, W, 64), f32)

    up = up_b_ref[...]
    for k in range(9):
        dy, dx = k // 3, k % 3
        tap = pad_ref[dy:dy + TH, dx:dx + W, :].reshape(TH * W, 64).astype(bf16)
        up = up + jnp.dot(tap, up_w_ref[64 * k:64 * (k + 1), :],
                          preferred_element_type=f32)                # (TH*W, 12)

    # TODO(synk): output last dim is 12 -> masked stores; repack to a lane-dense
    # slab only if the bundle dump shows it matters (output bytes are small).
    o_ref[0, 0] = up.astype(o_ref.dtype)


# ----------------------------------------------------------------------------
# Host-side exact weight foldings (done once, outside the kernel)
# ----------------------------------------------------------------------------
def prepare_params(params):
    # Fold torch.cat([x, x, x, x], dim=1) into c1: sum the four 3-channel groups.
    c1_w = params["c1_w"]                                            # (3,3,12,64) HWIO
    c1_w_eff = (c1_w[:, :, 0:3] + c1_w[:, :, 3:6]
                + c1_w[:, :, 6:9] + c1_w[:, :, 9:12])                # (3,3,3,64)
    # Compose c2 (partial 3x3, 16->16, no bias, split_cat) with c3[:16] (1x1).
    c3_w = params["c3_w"]                                            # (64_in, 64_out)
    w23 = jnp.einsum("hwim,mo->hwio", params["c2_w"], c3_w[:16, :])  # (3,3,16,64)
    return {
        "c1_w": c1_w_eff.reshape(27, 64).astype(jnp.bfloat16),
        "c1_b": params["c1_b"].astype(jnp.float32),
        "pa_w": params["pa_w"].astype(jnp.bfloat16),                 # (16,64,64)
        "pa_b": params["pa_b"].astype(jnp.float32),                  # (16,1,64)
        "c23_w": w23.reshape(9 * 16, 64).astype(jnp.bfloat16),       # (144,64)
        "c3r_w": c3_w[16:, :].astype(jnp.bfloat16),                  # (48,64)
        "c3_b": params["c3_b"].astype(jnp.float32),
        "up_w": params["up_w"].reshape(9 * 64, 12).astype(jnp.bfloat16),
        "up_b": params["up_b"].astype(jnp.float32),
    }


# ----------------------------------------------------------------------------
# Tile sizing helpers
# ----------------------------------------------------------------------------
def _round_up(v, m):
    return -(-v // m) * m


def _vmem_bytes_estimate(TH, W):
    """Rough per-grid-step VMEM footprint (lane-padded), used to size tiles."""
    r1, r2 = TH + 6, TH + 4
    pad_scratch = r1 * _round_up(W + 2, 8) * 128 * 4
    x_io = 2 * r1 * _round_up(W, 8) * 128 * 4            # double-buffered input tile
    out_io = 2 * _round_up(TH * W, 8) * 128 * 4          # double-buffered output tile
    acts = 6 * _round_up(r2 * W, 8) * 128 * 4            # out_fea/cur/out_lr + temps
    weights = 2 << 20                                    # all weights, generous
    return pad_scratch + x_io + out_io + acts + weights


def _pick_row_tile(H, W, budget_bytes=20 << 20, max_rows=128):
    """Largest row tile (divisor of H, <= max_rows) whose working set fits budget.
    TODO(synk): budget is sized for v7x's 64 MiB VMEM; could be ~2x larger on
    v5e/v6e (128 MiB parts). Column tiling for very wide images is not done."""
    best = 1
    for th in range(1, min(H, max_rows) + 1):
        if H % th == 0 and _vmem_bytes_estimate(th, W) <= budget_bytes:
            best = th
    return best


# ----------------------------------------------------------------------------
# Wrapper (layout plumbing + PixelShuffle)
# ----------------------------------------------------------------------------
def pixel_shuffle_nhwc(x, r):
    # Matches torch.nn.PixelShuffle semantics (channel index = c*r*r + i*r + j).
    N, H, W, Cr2 = x.shape
    C = Cr2 // (r * r)
    x = x.reshape(N, H, W, C, r, r)
    x = x.transpose(0, 1, 4, 2, 5, 3)            # (N, H, r, W, r, C)
    return x.reshape(N, H * r, W * r, C)


def pcrn_forward(x_nchw, prep, upscale=2, row_tile=None):
    N, _, H, W = x_nchw.shape
    c_up = 3 * upscale * upscale                 # 12
    n_pa = prep["pa_w"].shape[0]
    TH = int(row_tile) if row_tile is not None else _pick_row_tile(H, W)
    assert H % TH == 0, "row tile must divide H"
    T = H // TH
    R1 = TH + 2 * HALO

    # NCHW -> NHWC; zero row-halo at image borders; overlapping row tiles.
    # (Only the tiny 3-channel input is duplicated; 64-ch intermediates never
    # touch HBM.)
    x = jnp.transpose(x_nchw, (0, 2, 3, 1))
    xp = jnp.pad(x, ((0, 0), (HALO, HALO), (0, 0), (0, 0)))
    x_tiles = jnp.stack([xp[:, t * TH:t * TH + R1] for t in range(T)], axis=1)

    vmem_limit = int(min(64 << 20, max(32 << 20, 2 * _vmem_bytes_estimate(TH, W))))

    out_flat = pl.pallas_call(
        partial(pcrn_fused_kernel, TH=TH, W=W, n_pa=n_pa),
        out_shape=jax.ShapeDtypeStruct((N, T, TH * W, c_up), x.dtype),
        grid=(N, T),
        in_specs=[
            pl.BlockSpec((1, 1, R1, W, 3), lambda n, t: (n, t, 0, 0, 0)),
            pl.BlockSpec((27, 64), lambda n, t: (0, 0)),
            pl.BlockSpec((1, 64), lambda n, t: (0, 0)),
            pl.BlockSpec((n_pa, 64, 64), lambda n, t: (0, 0, 0)),
            pl.BlockSpec((n_pa, 1, 64), lambda n, t: (0, 0, 0)),
            pl.BlockSpec((144, 64), lambda n, t: (0, 0)),
            pl.BlockSpec((48, 64), lambda n, t: (0, 0)),
            pl.BlockSpec((1, 64), lambda n, t: (0, 0)),
            pl.BlockSpec((576, c_up), lambda n, t: (0, 0)),
            pl.BlockSpec((1, c_up), lambda n, t: (0, 0)),
        ],
        out_specs=pl.BlockSpec((1, 1, TH * W, c_up), lambda n, t: (n, t, 0, 0)),
        scratch_shapes=[pltpu.VMEM((R1, W + 2, 64), jnp.float32)],
        compiler_params=pltpu.CompilerParams(
            dimension_semantics=("parallel", "parallel"),
            vmem_limit_bytes=vmem_limit),
    )(x_tiles, prep["c1_w"], prep["c1_b"], prep["pa_w"], prep["pa_b"],
      prep["c23_w"], prep["c3r_w"], prep["c3_b"], prep["up_w"], prep["up_b"])

    up = out_flat.reshape(N, H, W, c_up)         # row tiles are consecutive rows
    out = pixel_shuffle_nhwc(up, upscale)        # (N, 2H, 2W, 3)
    return jnp.transpose(out, (0, 3, 1, 2))      # back to NCHW


# ----------------------------------------------------------------------------
# Params (random, consistent with the PyTorch module's layer shapes)
# ----------------------------------------------------------------------------
def init_params(key):
    ks = jax.random.split(key, 9)

    def rnd(k, shape, scale=0.05):
        return jax.random.normal(k, shape, jnp.float32) * scale

    return {
        "c1_w": rnd(ks[0], (3, 3, 12, 64)),      # conv_layer(12, 64, 3)  [HWIO]
        "c1_b": rnd(ks[1], (1, 64)),
        "pa_w": rnd(ks[2], (16, 64, 64)),        # 16x PixelAttention 1x1 [in, out]
        "pa_b": rnd(ks[3], (16, 1, 64)),
        "c2_w": rnd(ks[4], (3, 3, 16, 16)),      # Partial_conv3 3x3, no bias [HWIO]
        "c3_w": rnd(ks[5], (64, 64)),            # conv_layer(64, 64, 1)  [in, out]
        "c3_b": rnd(ks[6], (1, 64)),
        "up_w": rnd(ks[7], (3, 3, 64, 12)),      # conv 64 -> 3*upscale^2 [HWIO]
        "up_b": rnd(ks[8], (1, 12)),
    }


if __name__ == "__main__":
    key = jax.random.PRNGKey(0)
    k_x, k_p = jax.random.split(key)

    # x has 3 channels (the forward cats 4 copies -> 12-channel input to c1).
    x = jax.random.normal(k_x, (2, 3, 16, 16), jnp.float32)
    params = init_params(k_p)
    prep = prepare_params(params)                # one-time exact weight folding

    # row_tile=8 -> 2 row tiles per image, exercising the halo-tiling path.
    fwd = jax.jit(partial(pcrn_forward, upscale=2, row_tile=8))
    out = jax.block_until_ready(fwd(x, prep))

    assert out.shape == (2, 3, 32, 32), out.shape
    assert bool(jnp.all(jnp.isfinite(out)))
    print("KERNEL_OK")
</pallas_src>

<mosaic_0001>
module attributes {stable_mosaic.version = 11 : i64} {
  func.func @pcrn_fused_kernel(%arg0: i32, %arg1: i32, %arg2: memref<1x1x14x16x3xf32, #tpu.memory_space<vmem>>, %arg3: memref<27x64xbf16, #tpu.memory_space<vmem>>, %arg4: memref<1x64xf32, #tpu.memory_space<vmem>>, %arg5: memref<16x64x64xbf16, #tpu.memory_space<vmem>>, %arg6: memref<16x1x64xf32, #tpu.memory_space<vmem>>, %arg7: memref<144x64xbf16, #tpu.memory_space<vmem>>, %arg8: memref<48x64xbf16, #tpu.memory_space<vmem>>, %arg9: memref<1x64xf32, #tpu.memory_space<vmem>>, %arg10: memref<576x12xbf16, #tpu.memory_space<vmem>>, %arg11: memref<1x12xf32, #tpu.memory_space<vmem>>, %arg12: memref<1x1x128x12xf32, #tpu.memory_space<vmem>>, %arg13: memref<14x18x64xf32, #tpu.memory_space<vmem>>) attributes {dimension_semantics = [#tpu.dimension_semantics<parallel>, #tpu.dimension_semantics<parallel>], iteration_bounds = array<i64: 2, 2>, scalar_prefetch = 0 : i64, scratch_operands = 1 : i64, tpu.core_type = #tpu.core_type<tc>, window_params = [{transform_indices = @transform_0, window_bounds = array<i64: 1, 1, 14, 16, 3>}, {pipeline_mode = #tpu.pipeline_mode<synchronous>, transform_indices = @transform_1, window_bounds = array<i64: 27, 64>}, {pipeline_mode = #tpu.pipeline_mode<synchronous>, transform_indices = @transform_2, window_bounds = array<i64: 1, 64>}, {pipeline_mode = #tpu.pipeline_mode<synchronous>, transform_indices = @transform_3, window_bounds = array<i64: 16, 64, 64>}, {pipeline_mode = #tpu.pipeline_mode<synchronous>, transform_indices = @transform_4, window_bounds = array<i64: 16, 1, 64>}, {pipeline_mode = #tpu.pipeline_mode<synchronous>, transform_indices = @transform_5, window_bounds = array<i64: 144, 64>}, {pipeline_mode = #tpu.pipeline_mode<synchronous>, transform_indices = @transform_6, window_bounds = array<i64: 48, 64>}, {pipeline_mode = #tpu.pipeline_mode<synchronous>, transform_indices = @transform_7, window_bounds = array<i64: 1, 64>}, {pipeline_mode = #tpu.pipeline_mode<synchronous>, transform_indices = @transform_8, window_bounds = array<i64: 576, 12>}, {pipeline_mode = #tpu.pipeline_mode<synchronous>, transform_indices = @transform_9, window_bounds = array<i64: 1, 12>}, {transform_indices = @transform_10, window_bounds = array<i64: 1, 1, 128, 12>}]} {
    %cst = arith.constant 0.000000e+00 : f32
    %0 = vector.broadcast %cst : f32 to vector<14x1x64xf32>
    %c0 = arith.constant 0 : index
    %c0_0 = arith.constant 0 : index
    %c0_1 = arith.constant 0 : index
    %1 = vector.load %arg13[%c0, %c0_0, %c0_1] : memref<14x18x64xf32, #tpu.memory_space<vmem>>, vector<14x1x64xf32>
    tpu.vector_store %arg13[%c0, %c0_0, %c0_1], %0 {strides = array<i32>} : memref<14x18x64xf32, #tpu.memory_space<vmem>>, vector<14x1x64xf32>,
    %cst_2 = arith.constant 0.000000e+00 : f32
    %2 = vector.broadcast %cst_2 : f32 to vector<14x1x64xf32>
    %c0_3 = arith.constant 0 : index
    %c17 = arith.constant 17 : index
    %c0_4 = arith.constant 0 : index
    %3 = vector.load %arg13[%c0_3, %c17, %c0_4] : memref<14x18x64xf32, #tpu.memory_space<vmem>>, vector<14x1x64xf32>
    tpu.vector_store %arg13[%c0_3, %c17, %c0_4], %2 {strides = array<i32>} : memref<14x18x64xf32, #tpu.memory_space<vmem>>, vector<14x1x64xf32>,
    %c0_5 = arith.constant 0 : index
    %c0_6 = arith.constant 0 : index
    %c0_7 = arith.constant 0 : index
    %c0_8 = arith.constant 0 : index
    %c0_9 = arith.constant 0 : index
    %4 = vector.load %arg2[%c0_5, %c0_6, %c0_7, %c0_8, %c0_9] : memref<1x1x14x16x3xf32, #tpu.memory_space<vmem>>, vector<1x1x14x16x3xf32>
    %5 = vector.shape_cast %4 : vector<1x1x14x16x3xf32> to vector<14x16x3xf32>
    %c0_10 = arith.constant 0 : index
    %c1 = arith.constant 1 : index
    %c0_11 = arith.constant 0 : index
    %6 = vector.load %arg13[%c0_10, %c1, %c0_11] : memref<14x18x64xf32, #tpu.memory_space<vmem>>, vector<14x16x3xf32>
    tpu.vector_store %arg13[%c0_10, %c1, %c0_11], %5 {strides = array<i32>} : memref<14x18x64xf32, #tpu.memory_space<vmem>>, vector<14x16x3xf32>,
    %c0_12 = arith.constant 0 : index
    %c0_13 = arith.constant 0 : index
    %c0_14 = arith.constant 0 : index
    %7 = vector.load %arg13[%c0_12, %c0_13, %c0_14] : memref<14x18x64xf32, #tpu.memory_space<vmem>>, vector<12x16x3xf32>
    %8 = vector.shape_cast %7 : vector<12x16x3xf32> to vector<192x3xf32>
    %c0_15 = arith.constant 0 : index
    %c1_16 = arith.constant 1 : index
    %c0_17 = arith.constant 0 : index
    %9 = vector.load %arg13[%c0_15, %c1_16, %c0_17] : memref<14x18x64xf32, #tpu.memory_space<vmem>>, vector<12x16x3xf32>
    %10 = vector.shape_cast %9 : vector<12x16x3xf32> to vector<192x3xf32>
    %c0_18 = arith.constant 0 : index
    %c2 = arith.constant 2 : index
    %c0_19 = arith.constant 0 : index
    %11 = vector.load %arg13[%c0_18, %c2, %c0_19] : memref<14x18x64xf32, #tpu.memory_space<vmem>>, vector<12x16x3xf32>
    %12 = vector.shape_cast %11 : vector<12x16x3xf32> to vector<192x3xf32>
    %c1_20 = arith.constant 1 : index
    %c0_21 = arith.constant 0 : index
    %c0_22 = arith.constant 0 : index
    %13 = vector.load %arg13[%c1_20, %c0_21, %c0_22] : memref<14x18x64xf32, #tpu.memory_space<vmem>>, vector<12x16x3xf32>
    %14 = vector.shape_cast %13 : vector<12x16x3xf32> to vector<192x3xf32>
    %c1_23 = arith.constant 1 : index
    %c1_24 = arith.constant 1 : index
    %c0_25 = arith.constant 0 : index
    %15 = vector.load %arg13[%c1_23, %c1_24, %c0_25] : memref<14x18x64xf32, #tpu.memory_space<vmem>>, vector<12x16x3xf32>
    %16 = vector.shape_cast %15 : vector<12x16x3xf32> to vector<192x3xf32>
    %c1_26 = arith.constant 1 : index
    %c2_27 = arith.constant 2 : index
    %c0_28 = arith.constant 0 : index
    %17 = vector.load %arg13[%c1_26, %c2_27, %c0_28] : memref<14x18x64xf32, #tpu.memory_space<vmem>>, vector<12x16x3xf32>
    %18 = vector.shape_cast %17 : vector<12x16x3xf32> to vector<192x3xf32>
    %c2_29 = arith.constant 2 : index
    %c0_30 = arith.constant 0 : index
    %c0_31 = arith.constant 0 : index
    %19 = vector.load %arg13[%c2_29, %c0_30, %c0_31] : memref<14x18x64xf32, #tpu.memory_space<vmem>>, vector<12x16x3xf32>
    %20 = vector.shape_cast %19 : vector<12x16x3xf32> to vector<192x3xf32>
    %c2_32 = arith.constant 2 : index
    %c1_33 = arith.constant 1 : index
    %c0_34 = arith.constant 0 : index
    %21 = vector.load %arg13[%c2_32, %c1_33, %c0_34] : memref<14x18x64xf32, #tpu.memory_space<vmem>>, vector<12x16x3xf32>
    %22 = vector.shape_cast %21 : vector<12x16x3xf32> to vector<192x3xf32>
    %c2_35 = arith.constant 2 : index
    %c2_36 = arith.constant 2 : index
    %c0_37 = arith.constant 0 : index
    %23 = vector.load %arg13[%c2_35, %c2_36, %c0_37] : memref<14x18x64xf32, #tpu.memory_space<vmem>>, vector<12x16x3xf32>
    %24 = vector.shape_cast %23 : vector<12x16x3xf32> to vector<192x3xf32>
    %25 = tpu.concatenate %8, %10, %12, %14, %16, %18, %20, %22, %24 in 1 : vector<192x3xf32>, vector<192x3xf32>, vector<192x3xf32>, vector<192x3xf32>, vector<192x3xf32>, vector<192x3xf32>, vector<192x3xf32>, vector<192x3xf32>, vector<192x3xf32> -> vector<192x27xf32>
    %26 = arith.truncf %25 : vector<192x27xf32> to vector<192x27xbf16>
    %c0_38 = arith.constant 0 : index
    %c0_39 = arith.constant 0 : index
    %27 = vector.load %arg3[%c0_38, %c0_39] : memref<27x64xbf16, #tpu.memory_space<vmem>>, vector<27x64xbf16>
    %cst_40 = arith.constant dense<0.000000e+00> : vector<192x64xf32>
    %28 = tpu.matmul %26, %27, %cst_40 {dimension_numbers = #tpu.dot_dimension_numbers<[1], [0], [0], [1], [0, 0, 1, 1], [], []>} : vector<192x27xbf16>, vector<27x64xbf16>, vector<192x64xf32> -> vector<192x64xf32>
    %c0_41 = arith.constant 0 : index
    %c0_42 = arith.constant 0 : index
    %29 = vector.load %arg4[%c0_41, %c0_42] : memref<1x64xf32, #tpu.memory_space<vmem>>, vector<1x64xf32>
    %30 = vector.broadcast %29 : vector<1x64xf32> to vector<192x64xf32>
    %31 = arith.addf %28, %30 : vector<192x64xf32>
    %32 = arith.truncf %31 : vector<192x64xf32> to vector<192x64xbf16>
    %c0_43 = arith.constant 0 : index
    %c0_44 = arith.constant 0 : index
    %c0_45 = arith.constant 0 : index
    %33 = vector.load %arg5[%c0_43, %c0_44, %c0_45] : memref<16x64x64xbf16, #tpu.memory_space<vmem>>, vector<1x64x64xbf16>
    %34 = vector.shape_cast %33 : vector<1x64x64xbf16> to vector<64x64xbf16>
    %cst_46 = arith.constant dense<0.000000e+00> : vector<192x64xf32>
    %35 = tpu.matmul %32, %34, %cst_46 {dimension_numbers = #tpu.dot_dimension_numbers<[1], [0], [0], [1], [0, 0, 1, 1], [], []>} : vector<192x64xbf16>, vector<64x64xbf16>, vector<192x64xf32> -> vector<192x64xf32>
    %c0_47 = arith.constant 0 : index
    %c0_48 = arith.constant 0 : index
    %c0_49 = arith.constant 0 : index
    %36 = vector.load %arg6[%c0_47, %c0_48, %c0_49] : memref<16x1x64xf32, #tpu.memory_space<vmem>>, vector<1x1x64xf32>
    %37 = vector.shape_cast %36 : vector<1x1x64xf32> to vector<1x64xf32>
    %38 = vector.broadcast %37 : vector<1x64xf32> to vector<192x64xf32>
    %39 = arith.addf %35, %38 : vector<192x64xf32>
    %cst_50 = arith.constant 5.000000e-01 : f32
    %40 = vector.broadcast %cst_50 : f32 to vector<192x64xf32>
    %41 = arith.mulf %40, %39 : vector<192x64xf32>
    %42 = math.tanh %41 : vector<192x64xf32>
    %cst_51 = arith.constant 5.000000e-01 : f32
    %43 = vector.broadcast %cst_51 : f32 to vector<192x64xf32>
    %44 = arith.mulf %43, %42 : vector<192x64xf32>
    %cst_52 = arith.constant 5.000000e-01 : f32
    %45 = vector.broadcast %cst_52 : f32 to vector<192x64xf32>
    %46 = arith.addf %44, %45 : vector<192x64xf32>
    %47 = arith.mulf %31, %46 : vector<192x64xf32>
    %48 = arith.truncf %47 : vector<192x64xf32> to vector<192x64xbf16>
    %c1_53 = arith.constant 1 : index
    %c0_54 = arith.constant 0 : index
    %c0_55 = arith.constant 0 : index
    %49 = vector.load %arg5[%c1_53, %c0_54, %c0_55] : memref<16x64x64xbf16, #tpu.memory_space<vmem>>, vector<1x64x64xbf16>
    %50 = vector.shape_cast %49 : vector<1x64x64xbf16> to vector<64x64xbf16>
    %cst_56 = arith.constant dense<0.000000e+00> : vector<192x64xf32>
    %51 = tpu.matmul %48, %50, %cst_56 {dimension_numbers = #tpu.dot_dimension_numbers<[1], [0], [0], [1], [0, 0, 1, 1], [], []>} : vector<192x64xbf16>, vector<64x64xbf16>, vector<192x64xf32> -> vector<192x64xf32>
    %c1_57 = arith.constant 1 : index
    %c0_58 = arith.constant 0 : index
    %c0_59 = arith.constant 0 : index
    %52 = vector.load %arg6[%c1_57, %c0_58, %c0_59] : memref<16x1x64xf32, #tpu.memory_space<vmem>>, vector<1x1x64xf32>
    %53 = vector.shape_cast %52 : vector<1x1x64xf32> to vector<1x64xf32>
    %54 = vector.broadcast %53 : vector<1x64xf32> to vector<192x64xf32>
    %55 = arith.addf %51, %54 : vector<192x64xf32>
    %cst_60 = arith.constant 5.000000e-01 : f32
    %56 = vector.broadcast %cst_60 : f32 to vector<192x64xf32>
    %57 = arith.mulf %56, %55 : vector<192x64xf32>
    %58 = math.tanh %57 : vector<192x64xf32>
    %cst_61 = arith.constant 5.000000e-01 : f32
    %59 = vector.broadcast %cst_61 : f32 to vector<192x64xf32>
    %60 = arith.mulf %59, %58 : vector<192x64xf32>
    %cst_62 = arith.constant 5.000000e-01 : f32
    %61 = vector.broadcast %cst_62 : f32 to vector<192x64xf32>
    %62 = arith.addf %60, %61 : vector<192x64xf32>
    %63 = arith.mulf %47, %62 : vector<192x64xf32>
    %64 = arith.truncf %63 : vector<192x64xf32> to vector<192x64xbf16>
    %c2_63 = arith.constant 2 : index
    %c0_64 = arith.constant 0 : index
    %c0_65 = arith.constant 0 : index
    %65 = vector.load %arg5[%c2_63, %c0_64, %c0_65] : memref<16x64x64xbf16, #tpu.memory_space<vmem>>, vector<1x64x64xbf16>
    %66 = vector.shape_cast %65 : vector<1x64x64xbf16> to vector<64x64xbf16>
    %cst_66 = arith.constant dense<0.000000e+00> : vector<192x64xf32>
    %67 = tpu.matmul %64, %66, %cst_66 {dimension_numbers = #tpu.dot_dimension_numbers<[1], [0], [0], [1], [0, 0, 1, 1], [], []>} : vector<192x64xbf16>, vector<64x64xbf16>, vector<192x64xf32> -> vector<192x64xf32>
    %c2_67 = arith.constant 2 : index
    %c0_68 = arith.constant 0 : index
    %c0_69 = arith.constant 0 : index
    %68 = vector.load %arg6[%c2_67, %c0_68, %c0_69] : memref<16x1x64xf32, #tpu.memory_space<vmem>>, vector<1x1x64xf32>
    %69 = vector.shape_cast %68 : vector<1x1x64xf32> to vector<1x64xf32>
    %70 = vector.broadcast %69 : vector<1x64xf32> to vector<192x64xf32>
    %71 = arith.addf %67, %70 : vector<192x64xf32>
    %cst_70 = arith.constant 5.000000e-01 : f32
    %72 = vector.broadcast %cst_70 : f32 to vector<192x64xf32>
    %73 = arith.mulf %72, %71 : vector<192x64xf32>
    %74 = math.tanh %73 : vector<192x64xf32>
    %cst_71 = arith.constant 5.000000e-01 : f32
    %75 = vector.broadcast %cst_71 : f32 to vector<192x64xf32>
    %76 = arith.mulf %75, %74 : vector<192x64xf32>
    %cst_72 = arith.constant 5.000000e-01 : f32
    %77 = vector.broadcast %cst_72 : f32 to vector<192x64xf32>
    %78 = arith.addf %76, %77 : vector<192x64xf32>
    %79 = arith.mulf %63, %78 : vector<192x64xf32>
    %80 = arith.truncf %79 : vector<192x64xf32> to vector<192x64xbf16>
    %c3 = arith.constant 3 : index
    %c0_73 = arith.constant 0 : index
    %c0_74 = arith.constant 0 : index
    %81 = vector.load %arg5[%c3, %c0_73, %c0_74] : memref<16x64x64xbf16, #tpu.memory_space<vmem>>, vector<1x64x64xbf16>
    %82 = vector.shape_cast %81 : vector<1x64x64xbf16> to vector<64x64xbf16>
    %cst_75 = arith.constant dense<0.000000e+00> : vector<192x64xf32>
    %83 = tpu.matmul %80, %82, %cst_75 {dimension_numbers = #tpu.dot_dimension_numbers<[1], [0], [0], [1], [0, 0, 1, 1], [], []>} : vector<192x64xbf16>, vector<64x64xbf16>, vector<192x64xf32> -> vector<192x64xf32>
    %c3_76 = arith.constant 3 : index
    %c0_77 = arith.constant 0 : index
    %c0_78 = arith.constant 0 : index
    %84 = vector.load %arg6[%c3_76, %c0_77, %c0_78] : memref<16x1x64xf32, #tpu.memory_space<vmem>>, vector<1x1x64xf32>
    %85 = vector.shape_cast %84 : vector<1x1x64xf32> to vector<1x64xf32>
    %86 = vector.broadcast %85 : vector<1x64xf32> to vector<192x64xf32>
    %87 = arith.addf %83, %86 : vector<192x64xf32>
    %cst_79 = arith.constant 5.000000e-01 : f32
    %88 = vector.broadcast %cst_79 : f32 to vector<192x64xf32>
    %89 = arith.mulf %88, %87 : vector<192x64xf32>
    %90 = math.tanh %89 : vector<192x64xf32>
    %cst_80 = arith.constant 5.000000e-01 : f32
    %91 = vector.broadcast %cst_80 : f32 to vector<192x64xf32>
    %92 = arith.mulf %91, %90 : vector<192x64xf32>
    %cst_81 = arith.constant 5.000000e-01 : f32
    %93 = vector.broadcast %cst_81 : f32 to vector<192x64xf32>
    %94 = arith.addf %92, %93 : vector<192x64xf32>
    %95 = arith.mulf %79, %94 : vector<192x64xf32>
    %96 = arith.truncf %95 : vector<192x64xf32> to vector<192x64xbf16>
    %c4 = arith.constant 4 : index
    %c0_82 = arith.constant 0 : index
    %c0_83 = arith.constant 0 : index
    %97 = vector.load %arg5[%c4, %c0_82, %c0_83] : memref<16x64x64xbf16, #tpu.memory_space<vmem>>, vector<1x64x64xbf16>
    %98 = vector.shape_cast %97 : vector<1x64x64xbf16> to vector<64x64xbf16>
    %cst_84 = arith.constant dense<0.000000e+00> : vector<192x64xf32>
    %99 = tpu.matmul %96, %98, %cst_84 {dimension_numbers = #tpu.dot_dimension_numbers<[1], [0], [0], [1], [0, 0, 1, 1], [], []>} : vector<192x64xbf16>, vector<64x64xbf16>, vector<192x64xf32> -> vector<192x64xf32>
    %c4_85 = arith.constant 4 : index
    %c0_86 = arith.constant 0 : index
    %c0_87 = arith.constant 0 : index
    %100 = vector.load %arg6[%c4_85, %c0_86, %c0_87] : memref<16x1x64xf32, #tpu.memory_space<vmem>>, vector<1x1x64xf32>
    %101 = vector.shape_cast %100 : vector<1x1x64xf32> to vector<1x64xf32>
    %102 = vector.broadcast %101 : vector<1x64xf32> to vector<192x64xf32>
    %103 = arith.addf %99, %102 : vector<192x64xf32>
    %cst_88 = arith.constant 5.000000e-01 : f32
    %104 = vector.broadcast %cst_88 : f32 to vector<192x64xf32>
    %105 = arith.mulf %104, %103 : vector<192x64xf32>
    %106 = math.tanh %105 : vector<192x64xf32>
    %cst_89 = arith.constant 5.000000e-01 : f32
    %107 = vector.broadcast %cst_89 : f32 to vector<192x64xf32>
    %108 = arith.mulf %107, %106 : vector<192x64xf32>
    %cst_90 = arith.constant 5.000000e-01 : f32
    %109 = vector.broadcast %cst_90 : f32 to vector<192x64xf32>
    %110 = arith.addf %108, %109 : vector<192x64xf32>
    %111 = arith.mulf %95, %110 : vector<192x64xf32>
    %112 = arith.truncf %111 : vector<192x64xf32> to vector<192x64xbf16>
    %c5 = arith.constant 5 : index
    %c0_91 = arith.constant 0 : index
    %c0_92 = arith.constant 0 : index
    %113 = vector.load %arg5[%c5, %c0_91, %c0_92] : memref<16x64x64xbf16, #tpu.memory_space<vmem>>, vector<1x64x64xbf16>
    %114 = vector.shape_cast %113 : vector<1x64x64xbf16> to vector<64x64xbf16>
    %cst_93 = arith.constant dense<0.000000e+00> : vector<192x64xf32>
    %115 = tpu.matmul %112, %114, %cst_93 {dimension_numbers = #tpu.dot_dimension_numbers<[1], [0], [0], [1], [0, 0, 1, 1], [], []>} : vector<192x64xbf16>, vector<64x64xbf16>, vector<192x64xf32> -> vector<192x64xf32>
    %c5_94 = arith.constant 5 : index
    %c0_95 = arith.constant 0 : index
    %c0_96 = arith.constant 0 : index
    %116 = vector.load %arg6[%c5_94, %c0_95, %c0_96] : memref<16x1x64xf32, #tpu.memory_space<vmem>>, vector<1x1x64xf32>
    %117 = vector.shape_cast %116 : vector<1x1x64xf32> to vector<1x64xf32>
    %118 = vector.broadcast %117 : vector<1x64xf32> to vector<192x64xf32>
    %119 = arith.addf %115, %118 : vector<192x64xf32>
    %cst_97 = arith.constant 5.000000e-01 : f32
    %120 = vector.broadcast %cst_97 : f32 to vector<192x64xf32>
    %121 = arith.mulf %120, %119 : vector<192x64xf32>
    %122 = math.tanh %121 : vector<192x64xf32>
    %cst_98 = arith.constant 5.000000e-01 : f32
    %123 = vector.broadcast %cst_98 : f32 to vector<192x64xf32>
    %124 = arith.mulf %123, %122 : vector<192x64xf32>
    %cst_99 = arith.constant 5.000000e-01 : f32
    %125 = vector.broadcast %cst_99 : f32 to vector<192x64xf32>
    %126 = arith.addf %124, %125 : vector<192x64xf32>
    %127 = arith.mulf %111, %126 : vector<192x64xf32>
    %128 = arith.truncf %127 : vector<192x64xf32> to vector<192x64xbf16>
    %c6 = arith.constant 6 : index
    %c0_100 = arith.constant 0 : index
    %c0_101 = arith.constant 0 : index
    %129 = vector.load %arg5[%c6, %c0_100, %c0_101] : memref<16x64x64xbf16, #tpu.memory_space<vmem>>, vector<1x64x64xbf16>
    %130 = vector.shape_cast %129 : vector<1x64x64xbf16> to vector<64x64xbf16>
    %cst_102 = arith.constant dense<0.000000e+00> : vector<192x64xf32>
    %131 = tpu.matmul %128, %130, %cst_102 {dimension_numbers = #tpu.dot_dimension_numbers<[1], [0], [0], [1], [0, 0, 1, 1], [], []>} : vector<192x64xbf16>, vector<64x64xbf16>, vector<192x64xf32> -> vector<192x64xf32>
    %c6_103 = arith.constant 6 : index
    %c0_104 = arith.constant 0 : index
    %c0_105 = arith.constant 0 : index
    %132 = vector.load %arg6[%c6_103, %c0_104, %c0_105] : memref<16x1x64xf32, #tpu.memory_space<vmem>>, vector<1x1x64xf32>
    %133 = vector.shape_cast %132 : vector<1x1x64xf32> to vector<1x64xf32>
    %134 = vector.broadcast %133 : vector<1x64xf32> to vector<192x64xf32>
    %135 = arith.addf %131, %134 : vector<192x64xf32>
    %cst_106 = arith.constant 5.000000e-01 : f32
    %136 = vector.broadcast %cst_106 : f32 to vector<192x64xf32>
    %137 = arith.mulf %136, %135 : vector<192x64xf32>
    %138 = math.tanh %137 : vector<192x64xf32>
    %cst_107 = arith.constant 5.000000e-01 : f32
    %139 = vector.broadcast %cst_107 : f32 to vector<192x64xf32>
    %140 = arith.mulf %139, %138 : vector<192x64xf32>
    %cst_108 = arith.constant 5.000000e-01 : f32
    %141 = vector.broadcast %cst_108 : f32 to vector<192x64xf32>
    %142 = arith.addf %140, %141 : vector<192x64xf32>
    %143 = arith.mulf %127, %142 : vector<192x64xf32>
    %144 = arith.truncf %143 : vector<192x64xf32> to vector<192x64xbf16>
    %c7 = arith.constant 7 : index
    %c0_109 = arith.constant 0 : index
    %c0_110 = arith.constant 0 : index
    %145 = vector.load %arg5[%c7, %c0_109, %c0_110] : memref<16x64x64xbf16, #tpu.memory_space<vmem>>, vector<1x64x64xbf16>
    %146 = vector.shape_cast %145 : vector<1x64x64xbf16> to vector<64x64xbf16>
    %cst_111 = arith.constant dense<0.000000e+00> : vector<192x64xf32>
    %147 = tpu.matmul %144, %146, %cst_111 {dimension_numbers = #tpu.dot_dimension_numbers<[1], [0], [0], [1], [0, 0, 1, 1], [], []>} : vector<192x64xbf16>, vector<64x64xbf16>, vector<192x64xf32> -> vector<192x64xf32>
    %c7_112 = arith.constant 7 : index
    %c0_113 = arith.constant 0 : index
    %c0_114 = arith.constant 0 : index
    %148 = vector.load %arg6[%c7_112, %c0_113, %c0_114] : memref<16x1x64xf32, #tpu.memory_space<vmem>>, vector<1x1x64xf32>
    %149 = vector.shape_cast %148 : vector<1x1x64xf32> to vector<1x64xf32>
    %150 = vector.broadcast %149 : vector<1x64xf32> to vector<192x64xf32>
    %151 = arith.addf %147, %150 : vector<192x64xf32>
    %cst_115 = arith.constant 5.000000e-01 : f32
    %152 = vector.broadcast %cst_115 : f32 to vector<192x64xf32>
    %153 = arith.mulf %152, %151 : vector<192x64xf32>
    %154 = math.tanh %153 : vector<192x64xf32>
    %cst_116 = arith.constant 5.000000e-01 : f32
    %155 = vector.broadcast %cst_116 : f32 to vector<192x64xf32>
    %156 = arith.mulf %155, %154 : vector<192x64xf32>
    %cst_117 = arith.constant 5.000000e-01 : f32
    %157 = vector.broadcast %cst_117 : f32 to vector<192x64xf32>
    %158 = arith.addf %156, %157 : vector<192x64xf32>
    %159 = arith.mulf %143, %158 : vector<192x64xf32>
    %160 = arith.truncf %159 : vector<192x64xf32> to vector<192x64xbf16>
    %c8 = arith.constant 8 : index
    %c0_118 = arith.constant 0 : index
    %c0_119 = arith.constant 0 : index
    %161 = vector.load %arg5[%c8, %c0_118, %c0_119] : memref<16x64x64xbf16, #tpu.memory_space<vmem>>, vector<1x64x64xbf16>
    %162 = vector.shape_cast %161 : vector<1x64x64xbf16> to vector<64x64xbf16>
    %cst_120 = arith.constant dense<0.000000e+00> : vector<192x64xf32>
    %163 = tpu.matmul %160, %162, %cst_120 {dimension_numbers = #tpu.dot_dimension_numbers<[1], [0], [0], [1], [0, 0, 1, 1], [], []>} : vector<192x64xbf16>, vector<64x64xbf16>, vector<192x64xf32> -> vector<192x64xf32>
    %c8_121 = arith.constant 8 : index
    %c0_122 = arith.constant 0 : index
    %c0_123 = arith.constant 0 : index
    %164 = vector.load %arg6[%c8_121, %c0_122, %c0_123] : memref<16x1x64xf32, #tpu.memory_space<vmem>>, vector<1x1x64xf32>
    %165 = vector.shape_cast %164 : vector<1x1x64xf32> to vector<1x64xf32>
    %166 = vector.broadcast %165 : vector<1x64xf32> to vector<192x64xf32>
    %167 = arith.addf %163, %166 : vector<192x64xf32>
    %cst_124 = arith.constant 5.000000e-01 : f32
    %168 = vector.broadcast %cst_124 : f32 to vector<192x64xf32>
    %169 = arith.mulf %168, %167 : vector<192x64xf32>
    %170 = math.tanh %169 : vector<192x64xf32>
    %cst_125 = arith.constant 5.000000e-01 : f32
    %171 = vector.broadcast %cst_125 : f32 to vector<192x64xf32>
    %172 = arith.mulf %171, %170 : vector<192x64xf32>
    %cst_126 = arith.constant 5.000000e-01 : f32
    %173 = vector.broadcast %cst_126 : f32 to vector<192x64xf32>
    %174 = arith.addf %172, %173 : vector<192x64xf32>
    %175 = arith.mulf %159, %174 : vector<192x64xf32>
    %176 = arith.truncf %175 : vector<192x64xf32> to vector<192x64xbf16>
    %c9 = arith.constant 9 : index
    %c0_127 = arith.constant 0 : index
    %c0_128 = arith.constant 0 : index
    %177 = vector.load %arg5[%c9, %c0_127, %c0_128] : memref<16x64x64xbf16, #tpu.memory_space<vmem>>, vector<1x64x64xbf16>
    %178 = vector.shape_cast %177 : vector<1x64x64xbf16> to vector<64x64xbf16>
    %cst_129 = arith.constant dense<0.000000e+00> : vector<192x64xf32>
    %179 = tpu.matmul %176, %178, %cst_129 {dimension_numbers = #tpu.dot_dimension_numbers<[1], [0], [0], [1], [0, 0, 1, 1], [], []>} : vector<192x64xbf16>, vector<64x64xbf16>, vector<192x64xf32> -> vector<192x64xf32>
    %c9_130 = arith.constant 9 : index
    %c0_131 = arith.constant 0 : index
    %c0_132 = arith.constant 0 : index
    %180 = vector.load %arg6[%c9_130, %c0_131, %c0_132] : memref<16x1x64xf32, #tpu.memory_space<vmem>>, vector<1x1x64xf32>
    %181 = vector.shape_cast %180 : vector<1x1x64xf32> to vector<1x64xf32>
    %182 = vector.broadcast %181 : vector<1x64xf32> to vector<192x64xf32>
    %183 = arith.addf %179, %182 : vector<192x64xf32>
    %cst_133 = arith.constant 5.000000e-01 : f32
    %184 = vector.broadcast %cst_133 : f32 to vector<192x64xf32>
    %185 = arith.mulf %184, %183 : vector<192x64xf32>
    %186 = math.tanh %185 : vector<192x64xf32>
    %cst_134 = arith.constant 5.000000e-01 : f32
    %187 = vector.broadcast %cst_134 : f32 to vector<192x64xf32>
    %188 = arith.mulf %187, %186 : vector<192x64xf32>
    %cst_135 = arith.constant 5.000000e-01 : f32
    %189 = vector.broadcast %cst_135 : f32 to vector<192x64xf32>
    %190 = arith.addf %188, %189 : vector<192x64xf32>
    %191 = arith.mulf %175, %190 : vector<192x64xf32>
    %192 = arith.truncf %191 : vector<192x64xf32> to vector<192x64xbf16>
    %c10 = arith.constant 10 : index
    %c0_136 = arith.constant 0 : index
    %c0_137 = arith.constant 0 : index
    %193 = vector.load %arg5[%c10, %c0_136, %c0_137] : memref<16x64x64xbf16, #tpu.memory_space<vmem>>, vector<1x64x64xbf16>
    %194 = vector.shape_cast %193 : vector<1x64x64xbf16> to vector<64x64xbf16>
    %cst_138 = arith.constant dense<0.000000e+00> : vector<192x64xf32>
    %195 = tpu.matmul %192, %194, %cst_138 {dimension_numbers = #tpu.dot_dimension_numbers<[1], [0], [0], [1], [0, 0, 1, 1], [], []>} : vector<192x64xbf16>, vector<64x64xbf16>, vector<192x64xf32> -> vector<192x64xf32>
    %c10_139 = arith.constant 10 : index
    %c0_140 = arith.constant 0 : index
    %c0_141 = arith.constant 0 : index
    %196 = vector.load %arg6[%c10_139, %c0_140, %c0_141] : memref<16x1x64xf32, #tpu.memory_space<vmem>>, vector<1x1x64xf32>
    %197 = vector.shape_cast %196 : vector<1x1x64xf32> to vector<1x64xf32>
    %198 = vector.broadcast %197 : vector<1x64xf32> to vector<192x64xf32>
    %199 = arith.addf %195, %198 : vector<192x64xf32>
    %cst_142 = arith.constant 5.000000e-01 : f32
    %200 = vector.broadcast %cst_142 : f32 to vector<192x64xf32>
    %201 = arith.mulf %200, %199 : vector<192x64xf32>
    %202 = math.tanh %201 : vector<192x64xf32>
    %cst_143 = arith.constant 5.000000e-01 : f32
    %203 = vector.broadcast %cst_143 : f32 to vector<192x64xf32>
    %204 = arith.mulf %203, %202 : vector<192x64xf32>
    %cst_144 = arith.constant 5.000000e-01 : f32
    %205 = vector.broadcast %cst_144 : f32 to vector<192x64xf32>
    %206 = arith.addf %204, %205 : vector<192x64xf32>
    %207 = arith.mulf %191, %206 : vector<192x64xf32>
    %208 = arith.truncf %207 : vector<192x64xf32> to vector<192x64xbf16>
    %c11 = arith.constant 11 : index
    %c0_145 = arith.constant 0 : index
    %c0_146 = arith.constant 0 : index
    %209 = vector.load %arg5[%c11, %c0_145, %c0_146] : memref<16x64x64xbf16, #tpu.memory_space<vmem>>, vector<1x64x64xbf16>
    %210 = vector.shape_cast %209 : vector<1x64x64xbf16> to vector<64x64xbf16>
    %cst_147 = arith.constant dense<0.000000e+00> : vector<192x64xf32>
    %211 = tpu.matmul %208, %210, %cst_147 {dimension_numbers = #tpu.dot_dimension_numbers<[1], [0], [0], [1], [0, 0, 1, 1], [], []>} : vector<192x64xbf16>, vector<64x64xbf16>, vector<192x64xf32> -> vector<192x64xf32>
    %c11_148 = arith.constant 11 : index
    %c0_149 = arith.constant 0 : index
    %c0_150 = arith.constant 0 : index
    %212 = vector.load %arg6[%c11_148, %c0_149, %c0_150] : memref<16x1x64xf32, #tpu.memory_space<vmem>>, vector<1x1x64xf32>
    %213 = vector.shape_cast %212 : vector<1x1x64xf32> to vector<1x64xf32>
    %214 = vector.broadcast %213 : vector<1x64xf32> to vector<192x64xf32>
    %215 = arith.addf %211, %214 : vector<192x64xf32>
    %cst_151 = arith.constant 5.000000e-01 : f32
    %216 = vector.broadcast %cst_151 : f32 to vector<192x64xf32>
    %217 = arith.mulf %216, %215 : vector<192x64xf32>
    %218 = math.tanh %217 : vector<192x64xf32>
    %cst_152 = arith.constant 5.000000e-01 : f32
    %219 = vector.broadcast %cst_152 : f32 to vector<192x64xf32>
    %220 = arith.mulf %219, %218 : vector<192x64xf32>
    %cst_153 = arith.constant 5.000000e-01 : f32
    %221 = vector.broadcast %cst_153 : f32 to vector<192x64xf32>
    %222 = arith.addf %220, %221 : vector<192x64xf32>
    %223 = arith.mulf %207, %222 : vector<192x64xf32>
    %224 = arith.truncf %223 : vector<192x64xf32> to vector<192x64xbf16>
    %c12 = arith.constant 12 : index
    %c0_154 = arith.constant 0 : index
    %c0_155 = arith.constant 0 : index
    %225 = vector.load %arg5[%c12, %c0_154, %c0_155] : memref<16x64x64xbf16, #tpu.memory_space<vmem>>, vector<1x64x64xbf16>
    %226 = vector.shape_cast %225 : vector<1x64x64xbf16> to vector<64x64xbf16>
    %cst_156 = arith.constant dense<0.000000e+00> : vector<192x64xf32>
    %227 = tpu.matmul %224, %226, %cst_156 {dimension_numbers = #tpu.dot_dimension_numbers<[1], [0], [0], [1], [0, 0, 1, 1], [], []>} : vector<192x64xbf16>, vector<64x64xbf16>, vector<192x64xf32> -> vector<192x64xf32>
    %c12_157 = arith.constant 12 : index
    %c0_158 = arith.constant 0 : index
    %c0_159 = arith.constant 0 : index
    %228 = vector.load %arg6[%c12_157, %c0_158, %c0_159] : memref<16x1x64xf32, #tpu.memory_space<vmem>>, vector<1x1x64xf32>
    %229 = vector.shape_cast %228 : vector<1x1x64xf32> to vector<1x64xf32>
    %230 = vector.broadcast %229 : vector<1x64xf32> to vector<192x64xf32>
    %231 = arith.addf %227, %230 : vector<192x64xf32>
    %cst_160 = arith.constant 5.000000e-01 : f32
    %232 = vector.broadcast %cst_160 : f32 to vector<192x64xf32>
    %233 = arith.mulf %232, %231 : vector<192x64xf32>
    %234 = math.tanh %233 : vector<192x64xf32>
    %cst_161 = arith.constant 5.000000e-01 : f32
    %235 = vector.broadcast %cst_161 : f32 to vector<192x64xf32>
    %236 = arith.mulf %235, %234 : vector<192x64xf32>
    %cst_162 = arith.constant 5.000000e-01 : f32
    %237 = vector.broadcast %cst_162 : f32 to vector<192x64xf32>
    %238 = arith.addf %236, %237 : vector<192x64xf32>
    %239 = arith.mulf %223, %238 : vector<192x64xf32>
    %240 = arith.truncf %239 : vector<192x64xf32> to vector<192x64xbf16>
    %c13 = arith.constant 13 : index
    %c0_163 = arith.constant 0 : index
    %c0_164 = arith.constant 0 : index
    %241 = vector.load %arg5[%c13, %c0_163, %c0_164] : memref<16x64x64xbf16, #tpu.memory_space<vmem>>, vector<1x64x64xbf16>
    %242 = vector.shape_cast %241 : vector<1x64x64xbf16> to vector<64x64xbf16>
    %cst_165 = arith.constant dense<0.000000e+00> : vector<192x64xf32>
    %243 = tpu.matmul %240, %242, %cst_165 {dimension_numbers = #tpu.dot_dimension_numbers<[1], [0], [0], [1], [0, 0, 1, 1], [], []>} : vector<192x64xbf16>, vector<64x64xbf16>, vector<192x64xf32> -> vector<192x64xf32>
    %c13_166 = arith.constant 13 : index
    %c0_167 = arith.constant 0 : index
    %c0_168 = arith.constant 0 : index
    %244 = vector.load %arg6[%c13_166, %c0_167, %c0_168] : memref<16x1x64xf32, #tpu.memory_space<vmem>>, vector<1x1x64xf32>
    %245 = vector.shape_cast %244 : vector<1x1x64xf32> to vector<1x64xf32>
    %246 = vector.broadcast %245 : vector<1x64xf32> to vector<192x64xf32>
    %247 = arith.addf %243, %246 : vector<192x64xf32>
    %cst_169 = arith.constant 5.000000e-01 : f32
    %248 = vector.broadcast %cst_169 : f32 to vector<192x64xf32>
    %249 = arith.mulf %248, %247 : vector<192x64xf32>
    %250 = math.tanh %249 : vector<192x64xf32>
    %cst_170 = arith.constant 5.000000e-01 : f32
    %251 = vector.broadcast %cst_170 : f32 to vector<192x64xf32>
    %252 = arith.mulf %251, %250 : vector<192x64xf32>
    %cst_171 = arith.constant 5.000000e-01 : f32
    %253 = vector.broadcast %cst_171 : f32 to vector<192x64xf32>
    %254 = arith.addf %252, %253 : vector<192x64xf32>
    %255 = arith.mulf %239, %254 : vector<192x64xf32>
    %256 = arith.truncf %255 : vector<192x64xf32> to vector<192x64xbf16>
    %c14 = arith.constant 14 : index
    %c0_172 = arith.constant 0 : index
    %c0_173 = arith.constant 0 : index
    %257 = vector.load %arg5[%c14, %c0_172, %c0_173] : memref<16x64x64xbf16, #tpu.memory_space<vmem>>, vector<1x64x64xbf16>
    %258 = vector.shape_cast %257 : vector<1x64x64xbf16> to vector<64x64xbf16>
    %cst_174 = arith.constant dense<0.000000e+00> : vector<192x64xf32>
    %259 = tpu.matmul %256, %258, %cst_174 {dimension_numbers = #tpu.dot_dimension_numbers<[1], [0], [0], [1], [0, 0, 1, 1], [], []>} : vector<192x64xbf16>, vector<64x64xbf16>, vector<192x64xf32> -> vector<192x64xf32>
    %c14_175 = arith.constant 14 : index
    %c0_176 = arith.constant 0 : index
    %c0_177 = arith.constant 0 : index
    %260 = vector.load %arg6[%c14_175, %c0_176, %c0_177] : memref<16x1x64xf32, #tpu.memory_space<vmem>>, vector<1x1x64xf32>
    %261 = vector.shape_cast %260 : vector<1x1x64xf32> to vector<1x64xf32>
    %262 = vector.broadcast %261 : vector<1x64xf32> to vector<192x64xf32>
    %263 = arith.addf %259, %262 : vector<192x64xf32>
    %cst_178 = arith.constant 5.000000e-01 : f32
    %264 = vector.broadcast %cst_178 : f32 to vector<192x64xf32>
    %265 = arith.mulf %264, %263 : vector<192x64xf32>
    %266 = math.tanh %265 : vector<192x64xf32>
    %cst_179 = arith.constant 5.000000e-01 : f32
    %267 = vector.broadcast %cst_179 : f32 to vector<192x64xf32>
    %268 = arith.mulf %267, %266 : vector<192x64xf32>
    %cst_180 = arith.constant 5.000000e-01 : f32
    %269 = vector.broadcast %cst_180 : f32 to vector<192x64xf32>
    %270 = arith.addf %268, %269 : vector<192x64xf32>
    %271 = arith.mulf %255, %270 : vector<192x64xf32>
    %272 = arith.truncf %271 : vector<192x64xf32> to vector<192x64xbf16>
    %c15 = arith.constant 15 : index
    %c0_181 = arith.constant 0 : index
    %c0_182 = arith.constant 0 : index
    %273 = vector.load %arg5[%c15, %c0_181, %c0_182] : memref<16x64x64xbf16, #tpu.memory_space<vmem>>, vector<1x64x64xbf16>
    %274 = vector.shape_cast %273 : vector<1x64x64xbf16> to vector<64x64xbf16>
    %cst_183 = arith.constant dense<0.000000e+00> : vector<192x64xf32>
    %275 = tpu.matmul %272, %274, %cst_183 {dimension_numbers = #tpu.dot_dimension_numbers<[1], [0], [0], [1], [0, 0, 1, 1], [], []>} : vector<192x64xbf16>, vector<64x64xbf16>, vector<192x64xf32> -> vector<192x64xf32>
    %c15_184 = arith.constant 15 : index
    %c0_185 = arith.constant 0 : index
    %c0_186 = arith.constant 0 : index
    %276 = vector.load %arg6[%c15_184, %c0_185, %c0_186] : memref<16x1x64xf32, #tpu.memory_space<vmem>>, vector<1x1x64xf32>
    %277 = vector.shape_cast %276 : vector<1x1x64xf32> to vector<1x64xf32>
    %278 = vector.broadcast %277 : vector<1x64xf32> to vector<192x64xf32>
    %279 = arith.addf %275, %278 : vector<192x64xf32>
    %cst_187 = arith.constant 5.000000e-01 : f32
    %280 = vector.broadcast %cst_187 : f32 to vector<192x64xf32>
    %281 = arith.mulf %280, %279 : vector<192x64xf32>
    %282 = math.tanh %281 : vector<192x64xf32>
    %cst_188 = arith.constant 5.000000e-01 : f32
    %283 = vector.broadcast %cst_188 : f32 to vector<192x64xf32>
    %284 = arith.mulf %283, %282 : vector<192x64xf32>
    %cst_189 = arith.constant 5.000000e-01 : f32
    %285 = vector.broadcast %cst_189 : f32 to vector<192x64xf32>
    %286 = arith.addf %284, %285 : vector<192x64xf32>
    %287 = arith.mulf %271, %286 : vector<192x64xf32>
    %288 = vector.extract_strided_slice %287 {offsets = [0, 0], sizes = [192, 16], strides = [1, 1]} : vector<192x64xf32> to vector<192x16xf32>
    %289 = vector.shape_cast %288 : vector<192x16xf32> to vector<12x16x16xf32>
    %c0_190 = arith.constant 0 : index
    %c1_191 = arith.constant 1 : index
    %c0_192 = arith.constant 0 : index
    %290 = vector.load %arg13[%c0_190, %c1_191, %c0_192] : memref<14x18x64xf32, #tpu.memory_space<vmem>>, vector<12x16x16xf32>
    tpu.vector_store %arg13[%c0_190, %c1_191, %c0_192], %289 {strides = array<i32>} : memref<14x18x64xf32, #tpu.memory_space<vmem>>, vector<12x16x16xf32>,
    %c0_i32 = arith.constant 0 : i32
    %291 = arith.cmpi eq, %arg1, %c0_i32 : i32
    %292 = arith.extui %291 : i1 to i32
    %c0_i32_193 = arith.constant 0 : i32
    %293 = arith.cmpi ne, %292, %c0_i32_193 : i32
    scf.if %293 {
      %cst_307 = arith.constant 0.000000e+00 : f32
      %427 = vector.broadcast %cst_307 : f32 to vector<2x16x16xf32>
      %c0_308 = arith.constant 0 : index
      %c1_309 = arith.constant 1 : index
      %c0_310 = arith.constant 0 : index
      %428 = vector.load %arg13[%c0_308, %c1_309, %c0_310] : memref<14x18x64xf32, #tpu.memory_space<vmem>>, vector<2x16x16xf32>
      tpu.vector_store %arg13[%c0_308, %c1_309, %c0_310], %427 {strides = array<i32>} : memref<14x18x64xf32, #tpu.memory_space<vmem>>, vector<2x16x16xf32>,
    } else {
    }
    %c1_i32 = arith.constant 1 : i32
    %294 = arith.cmpi eq, %arg1, %c1_i32 : i32
    %295 = arith.extui %294 : i1 to i32
    %c0_i32_194 = arith.constant 0 : i32
    %296 = arith.cmpi ne, %295, %c0_i32_194 : i32
    scf.if %296 {
      %cst_307 = arith.constant 0.000000e+00 : f32
      %427 = vector.broadcast %cst_307 : f32 to vector<2x16x16xf32>
      %c10_308 = arith.constant 10 : index
      %c1_309 = arith.constant 1 : index
      %c0_310 = arith.constant 0 : index
      %428 = vector.load %arg13[%c10_308, %c1_309, %c0_310] : memref<14x18x64xf32, #tpu.memory_space<vmem>>, vector<2x16x16xf32>
      tpu.vector_store %arg13[%c10_308, %c1_309, %c0_310], %427 {strides = array<i32>} : memref<14x18x64xf32, #tpu.memory_space<vmem>>, vector<2x16x16xf32>,
    } else {
    }
    %297 = vector.extract_strided_slice %31 {offsets = [16, 0], sizes = [160, 64], strides = [1, 1]} : vector<192x64xf32> to vector<160x64xf32>
    %c0_195 = arith.constant 0 : index
    %c0_196 = arith.constant 0 : index
    %298 = vector.load %arg9[%c0_195, %c0_196] : memref<1x64xf32, #tpu.memory_space<vmem>>, vector<1x64xf32>
    %299 = vector.broadcast %298 : vector<1x64xf32> to vector<160x64xf32>
    %300 = arith.addf %297, %299 : vector<160x64xf32>
    %301 = vector.extract_strided_slice %287 {offsets = [16, 16], sizes = [160, 48], strides = [1, 1]} : vector<192x64xf32> to vector<160x48xf32>
    %302 = arith.truncf %301 : vector<160x48xf32> to vector<160x48xbf16>
    %c0_197 = arith.constant 0 : index
    %c0_198 = arith.constant 0 : index
    %303 = vector.load %arg8[%c0_197, %c0_198] : memref<48x64xbf16, #tpu.memory_space<vmem>>, vector<48x64xbf16>
    %cst_199 = arith.constant dense<0.000000e+00> : vector<160x64xf32>
    %304 = tpu.matmul %302, %303, %cst_199 {dimension_numbers = #tpu.dot_dimension_numbers<[1], [0], [0], [1], [0, 0, 1, 1], [], []>} : vector<160x48xbf16>, vector<48x64xbf16>, vector<160x64xf32> -> vector<160x64xf32>
    %305 = arith.addf %300, %304 : vector<160x64xf32>
    %c0_200 = arith.constant 0 : index
    %c0_201 = arith.constant 0 : index
    %c0_202 = arith.constant 0 : index
    %306 = vector.load %arg13[%c0_200, %c0_201, %c0_202] : memref<14x18x64xf32, #tpu.memory_space<vmem>>, vector<10x16x16xf32>
    %307 = vector.shape_cast %306 : vector<10x16x16xf32> to vector<160x16xf32>
    %308 = arith.truncf %307 : vector<160x16xf32> to vector<160x16xbf16>
    %c0_203 = arith.constant 0 : index
    %c0_204 = arith.constant 0 : index
    %309 = vector.load %arg7[%c0_203, %c0_204] : memref<144x64xbf16, #tpu.memory_space<vmem>>, vector<16x64xbf16>
    %cst_205 = arith.constant dense<0.000000e+00> : vector<160x64xf32>
    %310 = tpu.matmul %308, %309, %cst_205 {dimension_numbers = #tpu.dot_dimension_numbers<[1], [0], [0], [1], [0, 0, 1, 1], [], []>} : vector<160x16xbf16>, vector<16x64xbf16>, vector<160x64xf32> -> vector<160x64xf32>
    %311 = arith.addf %305, %310 : vector<160x64xf32>
    %c0_206 = arith.constant 0 : index
    %c1_207 = arith.constant 1 : index
    %c0_208 = arith.constant 0 : index
    %312 = vector.load %arg13[%c0_206, %c1_207, %c0_208] : memref<14x18x64xf32, #tpu.memory_space<vmem>>, vector<10x16x16xf32>
    %313 = vector.shape_cast %312 : vector<10x16x16xf32> to vector<160x16xf32>
    %314 = arith.truncf %313 : vector<160x16xf32> to vector<160x16xbf16>
    %c16 = arith.constant 16 : index
    %c0_209 = arith.constant 0 : index
    %315 = vector.load %arg7[%c16, %c0_209] : memref<144x64xbf16, #tpu.memory_space<vmem>>, vector<16x64xbf16>
    %cst_210 = arith.constant dense<0.000000e+00> : vector<160x64xf32>
    %316 = tpu.matmul %314, %315, %cst_210 {dimension_numbers = #tpu.dot_dimension_numbers<[1], [0], [0], [1], [0, 0, 1, 1], [], []>} : vector<160x16xbf16>, vector<16x64xbf16>, vector<160x64xf32> -> vector<160x64xf32>
    %317 = arith.addf %311, %316 : vector<160x64xf32>
    %c0_211 = arith.constant 0 : index
    %c2_212 = arith.constant 2 : index
    %c0_213 = arith.constant 0 : index
    %318 = vector.load %arg13[%c0_211, %c2_212, %c0_213] : memref<14x18x64xf32, #tpu.memory_space<vmem>>, vector<10x16x16xf32>
    %319 = vector.shape_cast %318 : vector<10x16x16xf32> to vector<160x16xf32>
    %320 = arith.truncf %319 : vector<160x16xf32> to vector<160x16xbf16>
    %c32 = arith.constant 32 : index
    %c0_214 = arith.constant 0 : index
    %321 = vector.load %arg7[%c32, %c0_214] : memref<144x64xbf16, #tpu.memory_space<vmem>>, vector<16x64xbf16>
    %cst_215 = arith.constant dense<0.000000e+00> : vector<160x64xf32>
    %322 = tpu.matmul %320, %321, %cst_215 {dimension_numbers = #tpu.dot_dimension_numbers<[1], [0], [0], [1], [0, 0, 1, 1], [], []>} : vector<160x16xbf16>, vector<16x64xbf16>, vector<160x64xf32> -> vector<160x64xf32>
    %323 = arith.addf %317, %322 : vector<160x64xf32>
    %c1_216 = arith.constant 1 : index
    %c0_217 = arith.constant 0 : index
    %c0_218 = arith.constant 0 : index
    %324 = vector.load %arg13[%c1_216, %c0_217, %c0_218] : memref<14x18x64xf32, #tpu.memory_space<vmem>>, vector<10x16x16xf32>
    %325 = vector.shape_cast %324 : vector<10x16x16xf32> to vector<160x16xf32>
    %326 = arith.truncf %325 : vector<160x16xf32> to vector<160x16xbf16>
    %c48 = arith.constant 48 : index
    %c0_219 = arith.constant 0 : index
    %327 = vector.load %arg7[%c48, %c0_219] : memref<144x64xbf16, #tpu.memory_space<vmem>>, vector<16x64xbf16>
    %cst_220 = arith.constant dense<0.000000e+00> : vector<160x64xf32>
    %328 = tpu.matmul %326, %327, %cst_220 {dimension_numbers = #tpu.dot_dimension_numbers<[1], [0], [0], [1], [0, 0, 1, 1], [], []>} : vector<160x16xbf16>, vector<16x64xbf16>, vector<160x64xf32> -> vector<160x64xf32>
    %329 = arith.addf %323, %328 : vector<160x64xf32>
    %c1_221 = arith.constant 1 : index
    %c1_222 = arith.constant 1 : index
    %c0_223 = arith.constant 0 : index
    %330 = vector.load %arg13[%c1_221, %c1_222, %c0_223] : memref<14x18x64xf32, #tpu.memory_space<vmem>>, vector<10x16x16xf32>
    %331 = vector.shape_cast %330 : vector<10x16x16xf32> to vector<160x16xf32>
    %332 = arith.truncf %331 : vector<160x16xf32> to vector<160x16xbf16>
    %c64 = arith.constant 64 : index
    %c0_224 = arith.constant 0 : index
    %333 = vector.load %arg7[%c64, %c0_224] : memref<144x64xbf16, #tpu.memory_space<vmem>>, vector<16x64xbf16>
    %cst_225 = arith.constant dense<0.000000e+00> : vector<160x64xf32>
    %334 = tpu.matmul %332, %333, %cst_225 {dimension_numbers = #tpu.dot_dimension_numbers<[1], [0], [0], [1], [0, 0, 1, 1], [], []>} : vector<160x16xbf16>, vector<16x64xbf16>, vector<160x64xf32> -> vector<160x64xf32>
    %335 = arith.addf %329, %334 : vector<160x64xf32>
    %c1_226 = arith.constant 1 : index
    %c2_227 = arith.constant 2 : index
    %c0_228 = arith.constant 0 : index
    %336 = vector.load %arg13[%c1_226, %c2_227, %c0_228] : memref<14x18x64xf32, #tpu.memory_space<vmem>>, vector<10x16x16xf32>
    %337 = vector.shape_cast %336 : vector<10x16x16xf32> to vector<160x16xf32>
    %338 = arith.truncf %337 : vector<160x16xf32> to vector<160x16xbf16>
    %c80 = arith.constant 80 : index
    %c0_229 = arith.constant 0 : index
    %339 = vector.load %arg7[%c80, %c0_229] : memref<144x64xbf16, #tpu.memory_space<vmem>>, vector<16x64xbf16>
    %cst_230 = arith.constant dense<0.000000e+00> : vector<160x64xf32>
    %340 = tpu.matmul %338, %339, %cst_230 {dimension_numbers = #tpu.dot_dimension_numbers<[1], [0], [0], [1], [0, 0, 1, 1], [], []>} : vector<160x16xbf16>, vector<16x64xbf16>, vector<160x64xf32> -> vector<160x64xf32>
    %341 = arith.addf %335, %340 : vector<160x64xf32>
    %c2_231 = arith.constant 2 : index
    %c0_232 = arith.constant 0 : index
    %c0_233 = arith.constant 0 : index
    %342 = vector.load %arg13[%c2_231, %c0_232, %c0_233] : memref<14x18x64xf32, #tpu.memory_space<vmem>>, vector<10x16x16xf32>
    %343 = vector.shape_cast %342 : vector<10x16x16xf32> to vector<160x16xf32>
    %344 = arith.truncf %343 : vector<160x16xf32> to vector<160x16xbf16>
    %c96 = arith.constant 96 : index
    %c0_234 = arith.constant 0 : index
    %345 = vector.load %arg7[%c96, %c0_234] : memref<144x64xbf16, #tpu.memory_space<vmem>>, vector<16x64xbf16>
    %cst_235 = arith.constant dense<0.000000e+00> : vector<160x64xf32>
    %346 = tpu.matmul %344, %345, %cst_235 {dimension_numbers = #tpu.dot_dimension_numbers<[1], [0], [0], [1], [0, 0, 1, 1], [], []>} : vector<160x16xbf16>, vector<16x64xbf16>, vector<160x64xf32> -> vector<160x64xf32>
    %347 = arith.addf %341, %346 : vector<160x64xf32>
    %c2_236 = arith.constant 2 : index
    %c1_237 = arith.constant 1 : index
    %c0_238 = arith.constant 0 : index
    %348 = vector.load %arg13[%c2_236, %c1_237, %c0_238] : memref<14x18x64xf32, #tpu.memory_space<vmem>>, vector<10x16x16xf32>
    %349 = vector.shape_cast %348 : vector<10x16x16xf32> to vector<160x16xf32>
    %350 = arith.truncf %349 : vector<160x16xf32> to vector<160x16xbf16>
    %c112 = arith.constant 112 : index
    %c0_239 = arith.constant 0 : index
    %351 = vector.load %arg7[%c112, %c0_239] : memref<144x64xbf16, #tpu.memory_space<vmem>>, vector<16x64xbf16>
    %cst_240 = arith.constant dense<0.000000e+00> : vector<160x64xf32>
    %352 = tpu.matmul %350, %351, %cst_240 {dimension_numbers = #tpu.dot_dimension_numbers<[1], [0], [0], [1], [0, 0, 1, 1], [], []>} : vector<160x16xbf16>, vector<16x64xbf16>, vector<160x64xf32> -> vector<160x64xf32>
    %353 = arith.addf %347, %352 : vector<160x64xf32>
    %c2_241 = arith.constant 2 : index
    %c2_242 = arith.constant 2 : index
    %c0_243 = arith.constant 0 : index
    %354 = vector.load %arg13[%c2_241, %c2_242, %c0_243] : memref<14x18x64xf32, #tpu.memory_space<vmem>>, vector<10x16x16xf32>
    %355 = vector.shape_cast %354 : vector<10x16x16xf32> to vector<160x16xf32>
    %356 = arith.truncf %355 : vector<160x16xf32> to vector<160x16xbf16>
    %c128 = arith.constant 128 : index
    %c0_244 = arith.constant 0 : index
    %357 = vector.load %arg7[%c128, %c0_244] : memref<144x64xbf16, #tpu.memory_space<vmem>>, vector<16x64xbf16>
    %cst_245 = arith.constant dense<0.000000e+00> : vector<160x64xf32>
    %358 = tpu.matmul %356, %357, %cst_245 {dimension_numbers = #tpu.dot_dimension_numbers<[1], [0], [0], [1], [0, 0, 1, 1], [], []>} : vector<160x16xbf16>, vector<16x64xbf16>, vector<160x64xf32> -> vector<160x64xf32>
    %359 = arith.addf %353, %358 : vector<160x64xf32>
    %360 = vector.shape_cast %359 : vector<160x64xf32> to vector<10x16x64xf32>
    %c0_246 = arith.constant 0 : index
    %c1_247 = arith.constant 1 : index
    %c0_248 = arith.constant 0 : index
    %361 = vector.load %arg13[%c0_246, %c1_247, %c0_248] : memref<14x18x64xf32, #tpu.memory_space<vmem>>, vector<10x16x64xf32>
    tpu.vector_store %arg13[%c0_246, %c1_247, %c0_248], %360 {strides = array<i32>} : memref<14x18x64xf32, #tpu.memory_space<vmem>>, vector<10x16x64xf32>,
    %c0_i32_249 = arith.constant 0 : i32
    %362 = arith.cmpi eq, %arg1, %c0_i32_249 : i32
    %363 = arith.extui %362 : i1 to i32
    %c0_i32_250 = arith.constant 0 : i32
    %364 = arith.cmpi ne, %363, %c0_i32_250 : i32
    scf.if %364 {
      %cst_307 = arith.constant 0.000000e+00 : f32
      %427 = vector.broadcast %cst_307 : f32 to vector<1x16x64xf32>
      %c0_308 = arith.constant 0 : index
      %c1_309 = arith.constant 1 : index
      %c0_310 = arith.constant 0 : index
      %428 = vector.load %arg13[%c0_308, %c1_309, %c0_310] : memref<14x18x64xf32, #tpu.memory_space<vmem>>, vector<1x16x64xf32>
      tpu.vector_store %arg13[%c0_308, %c1_309, %c0_310], %427 {strides = array<i32>} : memref<14x18x64xf32, #tpu.memory_space<vmem>>, vector<1x16x64xf32>,
    } else {
    }
    %c1_i32_251 = arith.constant 1 : i32
    %365 = arith.cmpi eq, %arg1, %c1_i32_251 : i32
    %366 = arith.extui %365 : i1 to i32
    %c0_i32_252 = arith.constant 0 : i32
    %367 = arith.cmpi ne, %366, %c0_i32_252 : i32
    scf.if %367 {
      %cst_307 = arith.constant 0.000000e+00 : f32
      %427 = vector.broadcast %cst_307 : f32 to vector<1x16x64xf32>
      %c9_308 = arith.constant 9 : index
      %c1_309 = arith.constant 1 : index
      %c0_310 = arith.constant 0 : index
      %428 = vector.load %arg13[%c9_308, %c1_309, %c0_310] : memref<14x18x64xf32, #tpu.memory_space<vmem>>, vector<1x16x64xf32>
      tpu.vector_store %arg13[%c9_308, %c1_309, %c0_310], %427 {strides = array<i32>} : memref<14x18x64xf32, #tpu.memory_space<vmem>>, vector<1x16x64xf32>,
    } else {
    }
    %c0_253 = arith.constant 0 : index
    %c0_254 = arith.constant 0 : index
    %368 = vector.load %arg11[%c0_253, %c0_254] : memref<1x12xf32, #tpu.memory_space<vmem>>, vector<1x12xf32>
    %c0_255 = arith.constant 0 : index
    %c0_256 = arith.constant 0 : index
    %c0_257 = arith.constant 0 : index
    %369 = vector.load %arg13[%c0_255, %c0_256, %c0_257] : memref<14x18x64xf32, #tpu.memory_space<vmem>>, vector<8x16x64xf32>
    %370 = vector.shape_cast %369 : vector<8x16x64xf32> to vector<128x64xf32>
    %371 = arith.truncf %370 : vector<128x64xf32> to vector<128x64xbf16>
    %c0_258 = arith.constant 0 : index
    %c0_259 = arith.constant 0 : index
    %372 = vector.load %arg10[%c0_258, %c0_259] : memref<576x12xbf16, #tpu.memory_space<vmem>>, vector<64x12xbf16>
    %cst_260 = arith.constant dense<0.000000e+00> : vector<128x12xf32>
    %373 = tpu.matmul %371, %372, %cst_260 {dimension_numbers = #tpu.dot_dimension_numbers<[1], [0], [0], [1], [0, 0, 1, 1], [], []>} : vector<128x64xbf16>, vector<64x12xbf16>, vector<128x12xf32> -> vector<128x12xf32>
    %374 = vector.broadcast %368 : vector<1x12xf32> to vector<128x12xf32>
    %375 = arith.addf %374, %373 : vector<128x12xf32>
    %c0_261 = arith.constant 0 : index
    %c1_262 = arith.constant 1 : index
    %c0_263 = arith.constant 0 : index
    %376 = vector.load %arg13[%c0_261, %c1_262, %c0_263] : memref<14x18x64xf32, #tpu.memory_space<vmem>>, vector<8x16x64xf32>
    %377 = vector.shape_cast %376 : vector<8x16x64xf32> to vector<128x64xf32>
    %378 = arith.truncf %377 : vector<128x64xf32> to vector<128x64xbf16>
    %c64_264 = arith.constant 64 : index
    %c0_265 = arith.constant 0 : index
    %379 = vector.load %arg10[%c64_264, %c0_265] : memref<576x12xbf16, #tpu.memory_space<vmem>>, vector<64x12xbf16>
    %cst_266 = arith.constant dense<0.000000e+00> : vector<128x12xf32>
    %380 = tpu.matmul %378, %379, %cst_266 {dimension_numbers = #tpu.dot_dimension_numbers<[1], [0], [0], [1], [0, 0, 1, 1], [], []>} : vector<128x64xbf16>, vector<64x12xbf16>, vector<128x12xf32> -> vector<128x12xf32>
    %381 = arith.addf %375, %380 : vector<128x12xf32>
    %c0_267 = arith.constant 0 : index
    %c2_268 = arith.constant 2 : index
    %c0_269 = arith.constant 0 : index
    %382 = vector.load %arg13[%c0_267, %c2_268, %c0_269] : memref<14x18x64xf32, #tpu.memory_space<vmem>>, vector<8x16x64xf32>
    %383 = vector.shape_cast %382 : vector<8x16x64xf32> to vector<128x64xf32>
    %384 = arith.truncf %383 : vector<128x64xf32> to vector<128x64xbf16>
    %c128_270 = arith.constant 128 : index
    %c0_271 = arith.constant 0 : index
    %385 = vector.load %arg10[%c128_270, %c0_271] : memref<576x12xbf16, #tpu.memory_space<vmem>>, vector<64x12xbf16>
    %cst_272 = arith.constant dense<0.000000e+00> : vector<128x12xf32>
    %386 = tpu.matmul %384, %385, %cst_272 {dimension_numbers = #tpu.dot_dimension_numbers<[1], [0], [0], [1], [0, 0, 1, 1], [], []>} : vector<128x64xbf16>, vector<64x12xbf16>, vector<128x12xf32> -> vector<128x12xf32>
    %387 = arith.addf %381, %386 : vector<128x12xf32>
    %c1_273 = arith.constant 1 : index
    %c0_274 = arith.constant 0 : index
    %c0_275 = arith.constant 0 : index
    %388 = vector.load %arg13[%c1_273, %c0_274, %c0_275] : memref<14x18x64xf32, #tpu.memory_space<vmem>>, vector<8x16x64xf32>
    %389 = vector.shape_cast %388 : vector<8x16x64xf32> to vector<128x64xf32>
    %390 = arith.truncf %389 : vector<128x64xf32> to vector<128x64xbf16>
    %c192 = arith.constant 192 : index
    %c0_276 = arith.constant 0 : index
    %391 = vector.load %arg10[%c192, %c0_276] : memref<576x12xbf16, #tpu.memory_space<vmem>>, vector<64x12xbf16>
    %cst_277 = arith.constant dense<0.000000e+00> : vector<128x12xf32>
    %392 = tpu.matmul %390, %391, %cst_277 {dimension_numbers = #tpu.dot_dimension_numbers<[1], [0], [0], [1], [0, 0, 1, 1], [], []>} : vector<128x64xbf16>, vector<64x12xbf16>, vector<128x12xf32> -> vector<128x12xf32>
    %393 = arith.addf %387, %392 : vector<128x12xf32>
    %c1_278 = arith.constant 1 : index
    %c1_279 = arith.constant 1 : index
    %c0_280 = arith.constant 0 : index
    %394 = vector.load %arg13[%c1_278, %c1_279, %c0_280] : memref<14x18x64xf32, #tpu.memory_space<vmem>>, vector<8x16x64xf32>
    %395 = vector.shape_cast %394 : vector<8x16x64xf32> to vector<128x64xf32>
    %396 = arith.truncf %395 : vector<128x64xf32> to vector<128x64xbf16>
    %c256 = arith.constant 256 : index
    %c0_281 = arith.constant 0 : index
    %397 = vector.load %arg10[%c256, %c0_281] : memref<576x12xbf16, #tpu.memory_space<vmem>>, vector<64x12xbf16>
    %cst_282 = arith.constant dense<0.000000e+00> : vector<128x12xf32>
    %398 = tpu.matmul %396, %397, %cst_282 {dimension_numbers = #tpu.dot_dimension_numbers<[1], [0], [0], [1], [0, 0, 1, 1], [], []>} : vector<128x64xbf16>, vector<64x12xbf16>, vector<128x12xf32> -> vector<128x12xf32>
    %399 = arith.addf %393, %398 : vector<128x12xf32>
    %c1_283 = arith.constant 1 : index
    %c2_284 = arith.constant 2 : index
    %c0_285 = arith.constant 0 : index
    %400 = vector.load %arg13[%c1_283, %c2_284, %c0_285] : memref<14x18x64xf32, #tpu.memory_space<vmem>>, vector<8x16x64xf32>
    %401 = vector.shape_cast %400 : vector<8x16x64xf32> to vector<128x64xf32>
    %402 = arith.truncf %401 : vector<128x64xf32> to vector<128x64xbf16>
    %c320 = arith.constant 320 : index
    %c0_286 = arith.constant 0 : index
    %403 = vector.load %arg10[%c320, %c0_286] : memref<576x12xbf16, #tpu.memory_space<vmem>>, vector<64x12xbf16>
    %cst_287 = arith.constant dense<0.000000e+00> : vector<128x12xf32>
    %404 = tpu.matmul %402, %403, %cst_287 {dimension_numbers = #tpu.dot_dimension_numbers<[1], [0], [0], [1], [0, 0, 1, 1], [], []>} : vector<128x64xbf16>, vector<64x12xbf16>, vector<128x12xf32> -> vector<128x12xf32>
    %405 = arith.addf %399, %404 : vector<128x12xf32>
    %c2_288 = arith.constant 2 : index
    %c0_289 = arith.constant 0 : index
    %c0_290 = arith.constant 0 : index
    %406 = vector.load %arg13[%c2_288, %c0_289, %c0_290] : memref<14x18x64xf32, #tpu.memory_space<vmem>>, vector<8x16x64xf32>
    %407 = vector.shape_cast %406 : vector<8x16x64xf32> to vector<128x64xf32>
    %408 = arith.truncf %407 : vector<128x64xf32> to vector<128x64xbf16>
    %c384 = arith.constant 384 : index
    %c0_291 = arith.constant 0 : index
    %409 = vector.load %arg10[%c384, %c0_291] : memref<576x12xbf16, #tpu.memory_space<vmem>>, vector<64x12xbf16>
    %cst_292 = arith.constant dense<0.000000e+00> : vector<128x12xf32>
    %410 = tpu.matmul %408, %409, %cst_292 {dimension_numbers = #tpu.dot_dimension_numbers<[1], [0], [0], [1], [0, 0, 1, 1], [], []>} : vector<128x64xbf16>, vector<64x12xbf16>, vector<128x12xf32> -> vector<128x12xf32>
    %411 = arith.addf %405, %410 : vector<128x12xf32>
    %c2_293 = arith.constant 2 : index
    %c1_294 = arith.constant 1 : index
    %c0_295 = arith.constant 0 : index
    %412 = vector.load %arg13[%c2_293, %c1_294, %c0_295] : memref<14x18x64xf32, #tpu.memory_space<vmem>>, vector<8x16x64xf32>
    %413 = vector.shape_cast %412 : vector<8x16x64xf32> to vector<128x64xf32>
    %414 = arith.truncf %413 : vector<128x64xf32> to vector<128x64xbf16>
    %c448 = arith.constant 448 : index
    %c0_296 = arith.constant 0 : index
    %415 = vector.load %arg10[%c448, %c0_296] : memref<576x12xbf16, #tpu.memory_space<vmem>>, vector<64x12xbf16>
    %cst_297 = arith.constant dense<0.000000e+00> : vector<128x12xf32>
    %416 = tpu.matmul %414, %415, %cst_297 {dimension_numbers = #tpu.dot_dimension_numbers<[1], [0], [0], [1], [0, 0, 1, 1], [], []>} : vector<128x64xbf16>, vector<64x12xbf16>, vector<128x12xf32> -> vector<128x12xf32>
    %417 = arith.addf %411, %416 : vector<128x12xf32>
    %c2_298 = arith.constant 2 : index
    %c2_299 = arith.constant 2 : index
    %c0_300 = arith.constant 0 : index
    %418 = vector.load %arg13[%c2_298, %c2_299, %c0_300] : memref<14x18x64xf32, #tpu.memory_space<vmem>>, vector<8x16x64xf32>
    %419 = vector.shape_cast %418 : vector<8x16x64xf32> to vector<128x64xf32>
    %420 = arith.truncf %419 : vector<128x64xf32> to vector<128x64xbf16>
    %c512 = arith.constant 512 : index
    %c0_301 = arith.constant 0 : index
    %421 = vector.load %arg10[%c512, %c0_301] : memref<576x12xbf16, #tpu.memory_space<vmem>>, vector<64x12xbf16>
    %cst_302 = arith.constant dense<0.000000e+00> : vector<128x12xf32>
    %422 = tpu.matmul %420, %421, %cst_302 {dimension_numbers = #tpu.dot_dimension_numbers<[1], [0], [0], [1], [0, 0, 1, 1], [], []>} : vector<128x64xbf16>, vector<64x12xbf16>, vector<128x12xf32> -> vector<128x12xf32>
    %423 = arith.addf %417, %422 : vector<128x12xf32>
    %c0_303 = arith.constant 0 : index
    %c0_304 = arith.constant 0 : index
    %c0_305 = arith.constant 0 : index
    %c0_306 = arith.constant 0 : index
    %424 = vector.load %arg12[%c0_303, %c0_304, %c0_305, %c0_306] : memref<1x1x128x12xf32, #tpu.memory_space<vmem>>, vector<1x1x128x12xf32>
    %425 = vector.shape_cast %424 : vector<1x1x128x12xf32> to vector<128x12xf32>
    %426 = vector.shape_cast %423 : vector<128x12xf32> to vector<1x1x128x12xf32>
    tpu.vector_store %arg12[%c0_303, %c0_304, %c0_305, %c0_306], %426 {strides = array<i32>} : memref<1x1x128x12xf32, #tpu.memory_space<vmem>>, vector<1x1x128x12xf32>,
    return
  }
  func.func @transform_0(%arg0: i32, %arg1: i32) -> (i32, i32, i32, i32, i32) {
    %c0_i32 = arith.constant 0 : i32
    %c0_i32_0 = arith.constant 0 : i32
    %c0_i32_1 = arith.constant 0 : i32
    %c0_i32_2 = arith.constant 0 : i32
    return %arg0, %arg1, %c0_i32, %c0_i32_0, %c0_i32_1 : i32, i32, i32, i32, i32
  }
  func.func @transform_1(%arg0: i32, %arg1: i32) -> (i32, i32) {
    %c0_i32 = arith.constant 0 : i32
    %c0_i32_0 = arith.constant 0 : i32
    %c0_i32_1 = arith.constant 0 : i32
    return %c0_i32, %c0_i32_0 : i32, i32
  }
  func.func @transform_2(%arg0: i32, %arg1: i32) -> (i32, i32) {
    %c0_i32 = arith.constant 0 : i32
    %c0_i32_0 = arith.constant 0 : i32
    %c0_i32_1 = arith.constant 0 : i32
    return %c0_i32, %c0_i32_0 : i32, i32
  }
  func.func @transform_3(%arg0: i32, %arg1: i32) -> (i32, i32, i32) {
    %c0_i32 = arith.constant 0 : i32
    %c0_i32_0 = arith.constant 0 : i32
    %c0_i32_1 = arith.constant 0 : i32
    %c0_i32_2 = arith.constant 0 : i32
    return %c0_i32, %c0_i32_0, %c0_i32_1 : i32, i32, i32
  }
  func.func @transform_4(%arg0: i32, %arg1: i32) -> (i32, i32, i32) {
    %c0_i32 = arith.constant 0 : i32
    %c0_i32_0 = arith.constant 0 : i32
    %c0_i32_1 = arith.constant 0 : i32
    %c0_i32_2 = arith.constant 0 : i32
    return %c0_i32, %c0_i32_0, %c0_i32_1 : i32, i32, i32
  }
  func.func @transform_5(%arg0: i32, %arg1: i32) -> (i32, i32) {
    %c0_i32 = arith.constant 0 : i32
    %c0_i32_0 = arith.constant 0 : i32
    %c0_i32_1 = arith.constant 0 : i32
    return %c0_i32, %c0_i32_0 : i32, i32
  }
  func.func @transform_6(%arg0: i32, %arg1: i32) -> (i32, i32) {
    %c0_i32 = arith.constant 0 : i32
    %c0_i32_0 = arith.constant 0 : i32
    %c0_i32_1 = arith.constant 0 : i32
    return %c0_i32, %c0_i32_0 : i32, i32
  }
  func.func @transform_7(%arg0: i32, %arg1: i32) -> (i32, i32) {
    %c0_i32 = arith.constant 0 : i32
    %c0_i32_0 = arith.constant 0 : i32
    %c0_i32_1 = arith.constant 0 : i32
    return %c0_i32, %c0_i32_0 : i32, i32
  }
  func.func @transform_8(%arg0: i32, %arg1: i32) -> (i32, i32) {
    %c0_i32 = arith.constant 0 : i32
    %c0_i32_0 = arith.constant 0 : i32
    %c0_i32_1 = arith.constant 0 : i32
    return %c0_i32, %c0_i32_0 : i32, i32
  }
  func.func @transform_9(%arg0: i32, %arg1: i32) -> (i32, i32) {
    %c0_i32 = arith.constant 0 : i32
    %c0_i32_0 = arith.constant 0 : i32
    %c0_i32_1 = arith.constant 0 : i32
    return %c0_i32, %c0_i32_0 : i32, i32
  }
  func.func @transform_10(%arg0: i32, %arg1: i32) -> (i32, i32, i32, i32) {
    %c0_i32 = arith.constant 0 : i32
    %c0_i32_0 = arith.constant 0 : i32
    %c0_i32_1 = arith.constant 0 : i32
    return %arg0, %arg1, %c0_i32, %c0_i32_0 : i32, i32, i32, i32
  }
}

</mosaic_0001>

<llo_original>
// kernel: pcrn_forward.1
$region0: #{pcrn_forward.1}
  #allocation0 [shape = 'u32[]', space=smem, size = 0x4, offset = 0x4, fixed_abs, tag = 'smem constant byte address 0x4 - core index']
  #allocation1 [shape = 'u32[144,128]{1,0:T(1,128)}', space=vmem, size = 0x12000, scoped, tag = 'internal scratch']
  #allocation2 [shape = 'f32[14,18,64]{2,1,0:T(8,128)}', space=vmem, size = 0x2a000, scoped, tag = 'scratch operand']
  %s0 = inlined_call_operand.vmem [shape: f32[2,2,14,16,3], index: 0, kind: input, shape index: {}]
  %s1 = inlined_call_operand.vmem [shape: bf16[27,64], index: 1, kind: input, shape index: {}]
  %s2 = inlined_call_operand.vmem [shape: f32[1,64], index: 2, kind: input, shape index: {}]
  %s3 = inlined_call_operand.vmem [shape: bf16[16,64,64], index: 3, kind: input, shape index: {}]
  %s4 = inlined_call_operand.vmem [shape: f32[16,1,64], index: 4, kind: input, shape index: {}]
  %s5 = inlined_call_operand.vmem [shape: bf16[144,64], index: 5, kind: input, shape index: {}]
  %s6 = inlined_call_operand.vmem [shape: bf16[48,64], index: 6, kind: input, shape index: {}]
  %s7 = inlined_call_operand.vmem [shape: f32[1,64], index: 7, kind: input, shape index: {}]
  %s8 = inlined_call_operand.vmem [shape: bf16[576,12], index: 8, kind: input, shape index: {}]
  %s9 = inlined_call_operand.vmem [shape: f32[1,12], index: 9, kind: input, shape index: {}]
  %s10 = inlined_call_operand.vmem [shape: f32[2,2,128,12], index: 10, kind: output, shape index: {}]
  %s11 = sld [smem:[#allocation0]]
  $region89: #{pcrn_forward.1} parent=0
    _
  %s13 = ssub.s32 1, %s11
  %s14 = scalar_select 0, %s13, %s11
  loop: start=0, step=1, limit=6
  $region2: #{pcrn_forward.1} parent=0 // loop_pre_header
    _
  $region3: #{pcrn_forward.1} parent=0 // loop_header
    %s16 = sphi 0, %s20
    %p17 = scmp.ge.s32.totalorder %s16, 6
    %s23 = sphi 0, %s35
    %s24 = sphi 0, %s31
    %s25 = sphi 0, %s23
    %s26 = sphi 0, %s24
    %s27 = sphi 0, %s25
    %s28 = sphi 0, %s26
    %s40 = sphi 0, %s42
    %s43 = sphi 0, %s40
    %s44 = sphi 0, %s43
    %s60 = sphi 0, %s44
    %s64 = sphi 0, %s64
    %s66 = sphi 0, %s64
    %s67 = sphi 0, %s66
    %s81 = sphi 0, %s67
    %s85 = sphi 0, %s85
    %s87 = sphi 0, %s85
    %s88 = sphi 0, %s87
    %s102 = sphi 0, %s88
    %s106 = sphi 0, %s106
    %s108 = sphi 0, %s106
    %s109 = sphi 0, %s108
    %s123 = sphi 0, %s109
    %s127 = sphi 0, %s127
    %s129 = sphi 0, %s127
    %s130 = sphi 0, %s129
    %s144 = sphi 0, %s130
    %s148 = sphi 0, %s148
    %s150 = sphi 0, %s148
    %s151 = sphi 0, %s150
    %s165 = sphi 0, %s151
    %s169 = sphi 0, %s169
    %s171 = sphi 0, %s169
    %s172 = sphi 0, %s171
    %s186 = sphi 0, %s172
    %s190 = sphi 0, %s190
    %s192 = sphi 0, %s190
    %s193 = sphi 0, %s192
    %s207 = sphi 0, %s193
    %s211 = sphi 0, %s211
    %s213 = sphi 0, %s211
    %s214 = sphi 0, %s213
    %s228 = sphi 0, %s214
    %s232 = sphi 0, %s232
    %s234 = sphi 0, %s232
    %s235 = sphi 0, %s234
    %s249 = sphi 0, %s235
    %s257 = sphi 0, %s259
    %s260 = sphi 0, %s257
    %s261 = sphi 0, %s260
    %s277 = sphi 0, %s261
  $region4: #{pcrn_forward.1} parent=0 // loop_header_branch
    %19 = sbr.rel (%p17) target = $region8
  $region5: #{pcrn_forward.1} parent=0 // loop_body
    %s21 = ssub.s32 %s16, 1
    %s22 = ssub.s32 %s16, 2
    %s29 = sadd.s32 1, %s24
    %p30 = scmp.ge.s32.totalorder %s29, 2
    %s31 = scalar_select %p30, 0, %s29
    %s32 = sadd.s32 1, %s23
    %s33 = scalar_select %p30, %s32, %s23
    %p34 = scmp.ge.s32.totalorder %s33, 2
    %s35 = scalar_select %p34, 0, %s33
    %s36 = ssub.s32 %s23, %s35
    %s37 = ssub.s32 %s24, %s31
    %s38 = sor.u32 %s36, %s37
    %p39 = scmp.eq.s32.totalorder %s38, 0
    %s41 = sadd.s32 %s40, 1
    %s42 = scalar_select %p39, %s40, %s41
    %p45 = pneg %p39
    %p46 = scmp.eq.s32.totalorder %s16, 3
    %p47 = por %p45, %p46
    %p48 = scmp.ne.s32.totalorder %s40, %s43
    %p49 = scmp.eq.s32.totalorder %s16, 0
    %p50 = por %p48, %p49
    %p51 = scmp.ne.s32.totalorder %s40, %s43
    %p52 = scmp.eq.s32.totalorder %s21, 3
    %p53 = por %p51, %p52
    %p54 = scmp.ne.s32.totalorder %s43, %s44
    %p55 = scmp.eq.s32.totalorder %s21, 0
    %p56 = por %p54, %p55
    %p57 = scmp.ne.s32.totalorder %s43, %s44
    %p58 = scmp.eq.s32.totalorder %s22, 3
    %p59 = por %p57, %p58
    %p61 = scmp.ne.s32.totalorder %s44, %s60
    %p62 = scmp.eq.s32.totalorder %s22, 0
    %p63 = por %p61, %p62
    %s65 = sadd.s32 %s64, 1
    %p68 = scmp.eq.s32.totalorder %s16, 3
    %p69 = scmp.ne.s32.totalorder %s64, %s66
    %p70 = scmp.eq.s32.totalorder %s16, 0
    %p71 = por %p69, %p70
    %p72 = scmp.ne.s32.totalorder %s64, %s66
    %p73 = scmp.eq.s32.totalorder %s21, 3
    %p74 = por %p72, %p73
    %p75 = scmp.ne.s32.totalorder %s66, %s67
    %p76 = scmp.eq.s32.totalorder %s21, 0
    %p77 = por %p75, %p76
    %p78 = scmp.ne.s32.totalorder %s66, %s67
    %p79 = scmp.eq.s32.totalorder %s22, 3
    %p80 = por %p78, %p79
    %p82 = scmp.ne.s32.totalorder %s67, %s81
    %p83 = scmp.eq.s32.totalorder %s22, 0
    %p84 = por %p82, %p83
    %s86 = sadd.s32 %s85, 1
    %p89 = scmp.eq.s32.totalorder %s16, 3
    %p90 = scmp.ne.s32.totalorder %s85, %s87
    %p91 = scmp.eq.s32.totalorder %s16, 0
    %p92 = por %p90, %p91
    %p93 = scmp.ne.s32.totalorder %s85, %s87
    %p94 = scmp.eq.s32.totalorder %s21, 3
    %p95 = por %p93, %p94
    %p96 = scmp.ne.s32.totalorder %s87, %s88
    %p97 = scmp.eq.s32.totalorder %s21, 0
    %p98 = por %p96, %p97
    %p99 = scmp.ne.s32.totalorder %s87, %s88
    %p100 = scmp.eq.s32.totalorder %s22, 3
    %p101 = por %p99, %p100
    %p103 = scmp.ne.s32.totalorder %s88, %s102
    %p104 = scmp.eq.s32.totalorder %s22, 0
    %p105 = por %p103, %p104
    %s107 = sadd.s32 %s106, 1
    %p110 = scmp.eq.s32.totalorder %s16, 3
    %p111 = scmp.ne.s32.totalorder %s106, %s108
    %p112 = scmp.eq.s32.totalorder %s16, 0
    %p113 = por %p111, %p112
    %p114 = scmp.ne.s32.totalorder %s106, %s108
    %p115 = scmp.eq.s32.totalorder %s21, 3
    %p116 = por %p114, %p115
    %p117 = scmp.ne.s32.totalorder %s108, %s109
    %p118 = scmp.eq.s32.totalorder %s21, 0
    %p119 = por %p117, %p118
    %p120 = scmp.ne.s32.totalorder %s108, %s109
    %p121 = scmp.eq.s32.totalorder %s22, 3
    %p122 = por %p120, %p121
    %p124 = scmp.ne.s32.totalorder %s109, %s123
    %p125 = scmp.eq.s32.totalorder %s22, 0
    %p126 = por %p124, %p125
    %s128 = sadd.s32 %s127, 1
    %p131 = scmp.eq.s32.totalorder %s16, 3
    %p132 = scmp.ne.s32.totalorder %s127, %s129
    %p133 = scmp.eq.s32.totalorder %s16, 0
    %p134 = por %p132, %p133
    %p135 = scmp.ne.s32.totalorder %s127, %s129
    %p136 = scmp.eq.s32.totalorder %s21, 3
    %p137 = por %p135, %p136
    %p138 = scmp.ne.s32.totalorder %s129, %s130
    %p139 = scmp.eq.s32.totalorder %s21, 0
    %p140 = por %p138, %p139
    %p141 = scmp.ne.s32.totalorder %s129, %s130
    %p142 = scmp.eq.s32.totalorder %s22, 3
    %p143 = por %p141, %p142
    %p145 = scmp.ne.s32.totalorder %s130, %s144
    %p146 = scmp.eq.s32.totalorder %s22, 0
    %p147 = por %p145, %p146
    %s149 = sadd.s32 %s148, 1
    %p152 = scmp.eq.s32.totalorder %s16, 3
    %p153 = scmp.ne.s32.totalorder %s148, %s150
    %p154 = scmp.eq.s32.totalorder %s16, 0
    %p155 = por %p153, %p154
    %p156 = scmp.ne.s32.totalorder %s148, %s150
    %p157 = scmp.eq.s32.totalorder %s21, 3
    %p158 = por %p156, %p157
    %p159 = scmp.ne.s32.totalorder %s150, %s151
    %p160 = scmp.eq.s32.totalorder %s21, 0
    %p161 = por %p159, %p160
    %p162 = scmp.ne.s32.totalorder %s150, %s151
    %p163 = scmp.eq.s32.totalorder %s22, 3
    %p164 = por %p162, %p163
    %p166 = scmp.ne.s32.totalorder %s151, %s165
    %p167 = scmp.eq.s32.totalorder %s22, 0
    %p168 = por %p166, %p167
    %s170 = sadd.s32 %s169, 1
    %p173 = scmp.eq.s32.totalorder %s16, 3
    %p174 = scmp.ne.s32.totalorder %s169, %s171
    %p175 = scmp.eq.s32.totalorder %s16, 0
    %p176 = por %p174, %p175
    %p177 = scmp.ne.s32.totalorder %s169, %s171
    %p178 = scmp.eq.s32.totalorder %s21, 3
    %p179 = por %p177, %p178
    %p180 = scmp.ne.s32.totalorder %s171, %s172
    %p181 = scmp.eq.s32.totalorder %s21, 0
    %p182 = por %p180, %p181
    %p183 = scmp.ne.s32.totalorder %s171, %s172
    %p184 = scmp.eq.s32.totalorder %s22, 3
    %p185 = por %p183, %p184
    %p187 = scmp.ne.s32.totalorder %s172, %s186
    %p188 = scmp.eq.s32.totalorder %s22, 0
    %p189 = por %p187, %p188
    %s191 = sadd.s32 %s190, 1
    %p194 = scmp.eq.s32.totalorder %s16, 3
    %p195 = scmp.ne.s32.totalorder %s190, %s192
    %p196 = scmp.eq.s32.totalorder %s16, 0
    %p197 = por %p195, %p196
    %p198 = scmp.ne.s32.totalorder %s190, %s192
    %p199 = scmp.eq.s32.totalorder %s21, 3
    %p200 = por %p198, %p199
    %p201 = scmp.ne.s32.totalorder %s192, %s193
    %p202 = scmp.eq.s32.totalorder %s21, 0
    %p203 = por %p201, %p202
    %p204 = scmp.ne.s32.totalorder %s192, %s193
    %p205 = scmp.eq.s32.totalorder %s22, 3
    %p206 = por %p204, %p205
    %p208 = scmp.ne.s32.totalorder %s193, %s207
    %p209 = scmp.eq.s32.totalorder %s22, 0
    %p210 = por %p208, %p209
    %s212 = sadd.s32 %s211, 1
    %p215 = scmp.eq.s32.totalorder %s16, 3
    %p216 = scmp.ne.s32.totalorder %s211, %s213
    %p217 = scmp.eq.s32.totalorder %s16, 0
    %p218 = por %p216, %p217
    %p219 = scmp.ne.s32.totalorder %s211, %s213
    %p220 = scmp.eq.s32.totalorder %s21, 3
    %p221 = por %p219, %p220
    %p222 = scmp.ne.s32.totalorder %s213, %s214
    %p223 = scmp.eq.s32.totalorder %s21, 0
    %p224 = por %p222, %p223
    %p225 = scmp.ne.s32.totalorder %s213, %s214
    %p226 = scmp.eq.s32.totalorder %s22, 3
    %p227 = por %p225, %p226
    %p229 = scmp.ne.s32.totalorder %s214, %s228
    %p230 = scmp.eq.s32.totalorder %s22, 0
    %p231 = por %p229, %p230
    %s233 = sadd.s32 %s232, 1
    %p236 = scmp.eq.s32.totalorder %s16, 3
    %p237 = scmp.ne.s32.totalorder %s232, %s234
    %p238 = scmp.eq.s32.totalorder %s16, 0
    %p239 = por %p237, %p238
    %p240 = scmp.ne.s32.totalorder %s232, %s234
    %p241 = scmp.eq.s32.totalorder %s21, 3
    %p242 = por %p240, %p241
    %p243 = scmp.ne.s32.totalorder %s234, %s235
    %p244 = scmp.eq.s32.totalorder %s21, 0
    %p245 = por %p243, %p244
    %p246 = scmp.ne.s32.totalorder %s234, %s235
    %p247 = scmp.eq.s32.totalorder %s22, 3
    %p248 = por %p246, %p247
    %p250 = scmp.ne.s32.totalorder %s235, %s249
    %p251 = scmp.eq.s32.totalorder %s22, 0
    %p252 = por %p250, %p251
    %s253 = ssub.s32 %s23, %s35
    %s254 = ssub.s32 %s24, %s31
    %s255 = sor.u32 %s253, %s254
    %p256 = scmp.eq.s32.totalorder %s255, 0
    %s258 = sadd.s32 %s257, 1
    %s259 = scalar_select %p256, %s257, %s258
    %p262 = pneg %p256
    %p263 = scmp.eq.s32.totalorder %s16, 3
    %p264 = por %p262, %p263
    %p265 = scmp.ne.s32.totalorder %s257, %s260
    %p266 = scmp.eq.s32.totalorder %s16, 0
    %p267 = por %p265, %p266
    %p268 = scmp.ne.s32.totalorder %s257, %s260
    %p269 = scmp.eq.s32.totalorder %s21, 3
    %p270 = por %p268, %p269
    %p271 = scmp.ne.s32.totalorder %s260, %s261
    %p272 = scmp.eq.s32.totalorder %s21, 0
    %p273 = por %p271, %p272
    %p274 = scmp.ne.s32.totalorder %s260, %s261
    %p275 = scmp.eq.s32.totalorder %s22, 3
    %p276 = por %p274, %p275
    %p278 = scmp.ne.s32.totalorder %s261, %s277
    %p279 = scmp.eq.s32.totalorder %s22, 0
    %p280 = por %p278, %p279
    %p281 = scmp.le.s32.totalorder 1, %s16
    %p282 = scmp.lt.s32.totalorder %s16, 5
    %p283 = pnand %p281, %p282
    %p284 = pneg %p283
    // Predicated region
    $region9: #{pcrn_forward.1} parent=5 // pred_check
      _
    $region10: #{pcrn_forward.1} parent=5 // pred_check_branch
      %286 = sbr.rel (%p283) target = $region12
    $region11: #{pcrn_forward.1} parent=5 // pred_region
      %s287 = ssub.s32 %s16, 1
      // Predicated region
      $region13: #{pcrn_forward.1} parent=11 // pred_check
        %p288 = pneg %p77
      $region14: #{pcrn_forward.1} parent=11 // pred_check_branch
        %290 = sbr.rel (%p288) target = $region16
      $region15: #{pcrn_forward.1} parent=11 // pred_region
        _
      $region16: #{pcrn_forward.1} parent=11 // pred_fallthru
        _
      // Predicated region
      $region17: #{pcrn_forward.1} parent=11 // pred_check
        %p291 = pneg %p98
      $region18: #{pcrn_forward.1} parent=11 // pred_check_branch
        %293 = sbr.rel (%p291) target = $region20
      $region19: #{pcrn_forward.1} parent=11 // pred_region
        _
      $region20: #{pcrn_forward.1} parent=11 // pred_fallthru
        _
      // Predicated region
      $region21: #{pcrn_forward.1} parent=11 // pred_check
        %p294 = pneg %p119
      $region22: #{pcrn_forward.1} parent=11 // pred_check_branch
        %296 = sbr.rel (%p294) target = $region24
      $region23: #{pcrn_forward.1} parent=11 // pred_region
        _
      $region24: #{pcrn_forward.1} parent=11 // pred_fallthru
        _
      // Predicated region
      $region25: #{pcrn_forward.1} parent=11 // pred_check
        %p297 = pneg %p140
      $region26: #{pcrn_forward.1} parent=11 // pred_check_branch
        %299 = sbr.rel (%p297) target = $region28
      $region27: #{pcrn_forward.1} parent=11 // pred_region
        _
      $region28: #{pcrn_forward.1} parent=11 // pred_fallthru
        _
      // Predicated region
      $region29: #{pcrn_forward.1} parent=11 // pred_check
        %p300 = pneg %p161
      $region30: #{pcrn_forward.1} parent=11 // pred_check_branch
        %302 = sbr.rel (%p300) target = $region32
      $region31: #{pcrn_forward.1} parent=11 // pred_region
        _
      $region32: #{pcrn_forward.1} parent=11 // pred_fallthru
        _
      // Predicated region
      $region33: #{pcrn_forward.1} parent=11 // pred_check
        %p303 = pneg %p182
      $region34: #{pcrn_forward.1} parent=11 // pred_check_branch
        %305 = sbr.rel (%p303) target = $region36
      $region35: #{pcrn_forward.1} parent=11 // pred_region
        _
      $region36: #{pcrn_forward.1} parent=11 // pred_fallthru
        _
      // Predicated region
      $region37: #{pcrn_forward.1} parent=11 // pred_check
        %p306 = pneg %p203
      $region38: #{pcrn_forward.1} parent=11 // pred_check_branch
        %308 = sbr.rel (%p306) target = $region40
      $region39: #{pcrn_forward.1} parent=11 // pred_region
        _
      $region40: #{pcrn_forward.1} parent=11 // pred_fallthru
        _
      // Predicated region
      $region41: #{pcrn_forward.1} parent=11 // pred_check
        %p309 = pneg %p224
      $region42: #{pcrn_forward.1} parent=11 // pred_check_branch
        %311 = sbr.rel (%p309) target = $region44
      $region43: #{pcrn_forward.1} parent=11 // pred_region
        _
      $region44: #{pcrn_forward.1} parent=11 // pred_fallthru
        _
      // Predicated region
      $region45: #{pcrn_forward.1} parent=11 // pred_check
        %p312 = pneg %p245
      $region46: #{pcrn_forward.1} parent=11 // pred_check_branch
        %314 = sbr.rel (%p312) target = $region48
      $region47: #{pcrn_forward.1} parent=11 // pred_region
        _
      $region48: #{pcrn_forward.1} parent=11 // pred_fallthru
        _
    $region12: #{pcrn_forward.1} parent=5 // pred_fallthru
      _
    %p315 = scmp.lt.s32.totalorder %s16, 4
    // Predicated region
    $region49: #{pcrn_forward.1} parent=5 // pred_check
      %p316 = pneg %p315
    $region50: #{pcrn_forward.1} parent=5 // pred_check_branch
      %318 = sbr.rel (%p316) target = $region52
    $region51: #{pcrn_forward.1} parent=5 // pred_region
      // Predicated region
      $region53: #{pcrn_forward.1} parent=51 // pred_check
        %p319 = pneg %p50
      $region54: #{pcrn_forward.1} parent=51 // pred_check_branch
        %321 = sbr.rel (%p319) target = $region56
      $region55: #{pcrn_forward.1} parent=51 // pred_region
        %p322 = scmp.lt.s32.totalorder %s23, 1
        %s323 = scalar_select %p322, %s23, 1
        %p324 = scmp.lt.s32.totalorder %s24, 1
        %s325 = scalar_select %p324, %s24, 1
        %s326 = smul.addr %s325, 28
        %s327 = smul.addr %s323, 56
        %s328 = sadd.s32 %s326, %s327
        %s329 = smul.addr %s328, 8
        %s330 = scalar_lea.vmem %s0, %s329
      $region56: #{pcrn_forward.1} parent=51 // pred_fallthru
        _
    $region52: #{pcrn_forward.1} parent=5 // pred_fallthru
      _
    %p331 = scmp.le.s32.totalorder 1, %s16
    %p332 = scmp.lt.s32.totalorder %s16, 5
    %p333 = pnand %p331, %p332
    %p334 = pneg %p333
    // Predicated region
    $region57: #{pcrn_forward.1} parent=5 // pred_check
      _
    $region58: #{pcrn_forward.1} parent=5 // pred_check_branch
      %336 = sbr.rel (%p333) target = $region60
    $region59: #{pcrn_forward.1} parent=5 // pred_region
      %s337 = ssub.s32 %s16, 1
      %p338 = scmp.lt.s32.totalorder %s25, 1
      %s339 = scalar_select %p338, %s25, 1
      %p340 = scmp.lt.s32.totalorder %s26, 1
      %s341 = scalar_select %p340, %s26, 1
      %s342 = smul.addr %s341, 28
      %s343 = smul.addr %s339, 56
      %s344 = sadd.s32 %s342, %s343
      %s345 = smul.addr %s344, 8
      %s346 = scalar_lea.vmem %s0, %s345
      %p347 = pneg %p56
      %p348 = pneg %p53
      %p349 = pneg %p77
      %p350 = pneg %p74
      %p351 = pneg %p98
      %p352 = pneg %p95
      %p353 = pneg %p119
      %p354 = pneg %p116
      %p355 = pneg %p140
      %p356 = pneg %p137
      %p357 = pneg %p161
      %p358 = pneg %p158
      %p359 = pneg %p182
      %p360 = pneg %p179
      %p361 = pneg %p203
      %p362 = pneg %p200
      %p363 = pneg %p224
      %p364 = pneg %p221
      %p365 = pneg %p245
      %p366 = pneg %p242
      %p367 = pneg %p273
      %p368 = pneg %p270
      %p369 = scmp.lt.s32.totalorder %s25, 1
      %s370 = scalar_select %p369, %s25, 1
      %p371 = scmp.lt.s32.totalorder %s26, 1
      %s372 = scalar_select %p371, %s26, 1
      %s373 = smul.addr %s372, 16
      %s374 = smul.addr %s370, 32
      %s375 = sadd.s32 %s373, %s374
      %s376 = smul.addr %s375, 8
      %s377 = scalar_lea.vmem %s10, %s376
      %p378 = scmp.lt.s32.totalorder %s25, 1
      %s379 = scalar_select %p378, %s25, 1
      %p380 = scmp.lt.s32.totalorder %s26, 1
      %s381 = scalar_select %p380, %s26, 1
      %s382 = smul.addr %s381, 28
      %s383 = smul.addr %s379, 56
      %s384 = sadd.s32 %s382, %s383
      %s385 = smul.addr %s384, 8
      %s386 = scalar_lea.vmem %s0, %s385
      %p387 = scmp.lt.s32.totalorder %s25, 1
      %s388 = scalar_select %p387, %s25, 1
      %p389 = scmp.lt.s32.totalorder %s26, 1
      %s390 = scalar_select %p389, %s26, 1
      %s391 = smul.addr %s390, 16
      %s392 = smul.addr %s388, 32
      %s393 = sadd.s32 %s391, %s392
      %s394 = smul.addr %s393, 8
      %s395 = scalar_lea.vmem %s10, %s394
      %vm397 = vcmask 516096
      %398 = vst.msk [vmem:[#allocation2] sm:$0x1] %vm397, 0.0
      %399 = vst.msk [vmem:[#allocation2 + $0x18] sm:$0x1] %vm397, 0.0
      %400 = vst.msk [vmem:[#allocation2 + $0x30] sm:$0x1] %vm397, 0.0
      %401 = vst.msk [vmem:[#allocation2 + $0x48] sm:$0x1] %vm397, 0.0
      %402 = vst.msk [vmem:[#allocation2 + $0x60] sm:$0x1] %vm397, 0.0
      %403 = vst.msk [vmem:[#allocation2 + $0x78] sm:$0x1] %vm397, 0.0
      %404 = vst.msk [vmem:[#allocation2 + $0x90] sm:$0x1] %vm397, 0.0
      %405 = vst.msk [vmem:[#allocation2 + $0xa8] sm:$0x1] %vm397, 0.0
      %406 = vst.msk [vmem:[#allocation2 + $0xc0] sm:$0x1] %vm397, 0.0
      %407 = vst.msk [vmem:[#allocation2 + $0xd8] sm:$0x1] %vm397, 0.0
      %408 = vst.msk [vmem:[#allocation2 + $0xf0] sm:$0x1] %vm397, 0.0
      %409 = vst.msk [vmem:[#allocation2 + $0x108] sm:$0x1] %vm397, 0.0
      %410 = vst.msk [vmem:[#allocation2 + $0x120] sm:$0x1] %vm397, 0.0
      %411 = vst.msk [vmem:[#allocation2 + $0x138] sm:$0x1] %vm397, 0.0
      %412 = vst.msk [vmem:[#allocation2 + $0x11] sm:$0x1] %vm397, 0.0
      %413 = vst.msk [vmem:[#allocation2 + $0x29] sm:$0x1] %vm397, 0.0
      %414 = vst.msk [vmem:[#allocation2 + $0x41] sm:$0x1] %vm397, 0.0
      %415 = vst.msk [vmem:[#allocation2 + $0x59] sm:$0x1] %vm397, 0.0
      %416 = vst.msk [vmem:[#allocation2 + $0x71] sm:$0x1] %vm397, 0.0
      %417 = vst.msk [vmem:[#allocation2 + $0x89] sm:$0x1] %vm397, 0.0
      %418 = vst.msk [vmem:[#allocation2 + $0xa1] sm:$0x1] %vm397, 0.0
      %419 = vst.msk [vmem:[#allocation2 + $0xb9] sm:$0x1] %vm397, 0.0
      %420 = vst.msk [vmem:[#allocation2 + $0xd1] sm:$0x1] %vm397, 0.0
      %421 = vst.msk [vmem:[#allocation2 + $0xe9] sm:$0x1] %vm397, 0.0
      %422 = vst.msk [vmem:[#allocation2 + $0x101] sm:$0x1] %vm397, 0.0
      %423 = vst.msk [vmem:[#allocation2 + $0x119] sm:$0x1] %vm397, 0.0
      %424 = vst.msk [vmem:[#allocation2 + $0x131] sm:$0x1] %vm397, 0.0
      %425 = vst.msk [vmem:[#allocation2 + $0x149] sm:$0x1] %vm397, 0.0
      %v426 = vld [vmem:[%s386] sm:$0xff]
      %v427 = vld [vmem:[%s386 + $0x8] sm:$0xff]
      %v428 = vld [vmem:[%s386 + $0x10] sm:$0xff]
      %v429 = vld [vmem:[%s386 + $0x18] sm:$0xff]
      %v430 = vld [vmem:[%s386 + $0x20] sm:$0xff]
      %v431 = vld [vmem:[%s386 + $0x28] sm:$0xff]
      %v432 = vld [vmem:[%s386 + $0x30] sm:$0xff]
      %v433 = vld [vmem:[%s386 + $0x38] sm:$0xff]
      %v434 = vld [vmem:[%s386 + $0x40] sm:$0xff]
      %v435 = vld [vmem:[%s386 + $0x48] sm:$0xff]
      %v436 = vld [vmem:[%s386 + $0x50] sm:$0xff]
      %v437 = vld [vmem:[%s386 + $0x58] sm:$0xff]
      %v438 = vld [vmem:[%s386 + $0x60] sm:$0xff]
      %v439 = vld [vmem:[%s386 + $0x68] sm:$0xff]
      %v440 = vld [vmem:[%s386 + $0x70] sm:$0xff]
      %v441 = vld [vmem:[%s386 + $0x78] sm:$0xff]
      %v442 = vld [vmem:[%s386 + $0x80] sm:$0xff]
      %v443 = vld [vmem:[%s386 + $0x88] sm:$0xff]
      %v444 = vld [vmem:[%s386 + $0x90] sm:$0xff]
      %v445 = vld [vmem:[%s386 + $0x98] sm:$0xff]
      %v446 = vld [vmem:[%s386 + $0xa0] sm:$0xff]
      %v447 = vld [vmem:[%s386 + $0xa8] sm:$0xff]
      %v448 = vld [vmem:[%s386 + $0xb0] sm:$0xff]
      %v449 = vld [vmem:[%s386 + $0xb8] sm:$0xff]
      %v450 = vld [vmem:[%s386 + $0xc0] sm:$0xff]
      %v451 = vld [vmem:[%s386 + $0xc8] sm:$0xff]
      %v452 = vld [vmem:[%s386 + $0xd0] sm:$0xff]
      %v453 = vld [vmem:[%s386 + $0xd8] sm:$0xff]
      %vm454 = vcmask 23552
      %455 = vst.msk [vmem:[#allocation2 + $0x1] sm:$0xff] %vm454, %v426
      %456 = vst.msk [vmem:[#allocation2 + $0x9] sm:$0xff] %vm454, %v427
      %457 = vst.msk [vmem:[#allocation2 + $0x19] sm:$0xff] %vm454, %v428
      %458 = vst.msk [vmem:[#allocation2 + $0x21] sm:$0xff] %vm454, %v429
      %459 = vst.msk [vmem:[#allocation2 + $0x31] sm:$0xff] %vm454, %v430
      %460 = vst.msk [vmem:[#allocation2 + $0x39] sm:$0xff] %vm454, %v431
      %461 = vst.msk [vmem:[#allocation2 + $0x49] sm:$0xff] %vm454, %v432
      %462 = vst.msk [vmem:[#allocation2 + $0x51] sm:$0xff] %vm454, %v433
      %463 = vst.msk [vmem:[#allocation2 + $0x61] sm:$0xff] %vm454, %v434
      %464 = vst.msk [vmem:[#allocation2 + $0x69] sm:$0xff] %vm454, %v435
      %465 = vst.msk [vmem:[#allocation2 + $0x79] sm:$0xff] %vm454, %v436
      %466 = vst.msk [vmem:[#allocation2 + $0x81] sm:$0xff] %vm454, %v437
      %467 = vst.msk [vmem:[#allocation2 + $0x91] sm:$0xff] %vm454, %v438
      %468 = vst.msk [vmem:[#allocation2 + $0x99] sm:$0xff] %vm454, %v439
      %469 = vst.msk [vmem:[#allocation2 + $0xa9] sm:$0xff] %vm454, %v440
      %470 = vst.msk [vmem:[#allocation2 + $0xb1] sm:$0xff] %vm454, %v441
      %471 = vst.msk [vmem:[#allocation2 + $0xc1] sm:$0xff] %vm454, %v442
      %472 = vst.msk [vmem:[#allocation2 + $0xc9] sm:$0xff] %vm454, %v443
      %473 = vst.msk [vmem:[#allocation2 + $0xd9] sm:$0xff] %vm454, %v444
      %474 = vst.msk [vmem:[#allocation2 + $0xe1] sm:$0xff] %vm454, %v445
      %475 = vst.msk [vmem:[#allocation2 + $0xf1] sm:$0xff] %vm454, %v446
      %476 = vst.msk [vmem:[#allocation2 + $0xf9] sm:$0xff] %vm454, %v447
      %477 = vst.msk [vmem:[#allocation2 + $0x109] sm:$0xff] %vm454, %v448
      %478 = vst.msk [vmem:[#allocation2 + $0x111] sm:$0xff] %vm454, %v449
      %479 = vst.msk [vmem:[#allocation2 + $0x121] sm:$0xff] %vm454, %v450
      %480 = vst.msk [vmem:[#allocation2 + $0x129] sm:$0xff] %vm454, %v451
      %481 = vst.msk [vmem:[#allocation2 + $0x139] sm:$0xff] %vm454, %v452
      %482 = vst.msk [vmem:[#allocation2 + $0x141] sm:$0xff] %vm454, %v453
      %v483 = vld [vmem:[#allocation2] sm:$0xff]
      %v484 = vld [vmem:[#allocation2 + $0x8] sm:$0xff]
      %v485 = vld [vmem:[#allocation2 + $0x18] sm:$0xff]
      %v486 = vld [vmem:[#allocation2 + $0x20] sm:$0xff]
      %v487 = vld [vmem:[#allocation2 + $0x30] sm:$0xff]
      %v488 = vld [vmem:[#allocation2 + $0x38] sm:$0xff]
      %v489 = vld [vmem:[#allocation2 + $0x48] sm:$0xff]
      %v490 = vld [vmem:[#allocation2 + $0x50] sm:$0xff]
      %v491 = vld [vmem:[#allocation2 + $0x60] sm:$0xff]
      %v492 = vld [vmem:[#allocation2 + $0x68] sm:$0xff]
      %v493 = vld [vmem:[#allocation2 + $0x78] sm:$0xff]
      %v494 = vld [vmem:[#allocation2 + $0x80] sm:$0xff]
      %v495 = vld [vmem:[#allocation2 + $0x90] sm:$0xff]
      %v496 = vld [vmem:[#allocation2 + $0x98] sm:$0xff]
      %v497 = vld [vmem:[#allocation2 + $0xa8] sm:$0xff]
      %v498 = vld [vmem:[#allocation2 + $0xb0] sm:$0xff]
      %v499 = vld [vmem:[#allocation2 + $0xc0] sm:$0xff]
      %v500 = vld [vmem:[#allocation2 + $0xc8] sm:$0xff]
      %v501 = vld [vmem:[#allocation2 + $0xd8] sm:$0xff]
      %v502 = vld [vmem:[#allocation2 + $0xe0] sm:$0xff]
      %v503 = vld [vmem:[#allocation2 + $0xf0] sm:$0xff]
      %v504 = vld [vmem:[#allocation2 + $0xf8] sm:$0xff]
      %v505 = vld [vmem:[#allocation2 + $0x108] sm:$0xff]
      %v506 = vld [vmem:[#allocation2 + $0x110] sm:$0xff]
      %v507 = vld [vmem:[#allocation2 + $0x1] sm:$0xff]
      %v508 = vld [vmem:[#allocation2 + $0x9] sm:$0xff]
      %v509 = vld [vmem:[#allocation2 + $0x19] sm:$0xff]
      %v510 = vld [vmem:[#allocation2 + $0x21] sm:$0xff]
      %v511 = vld [vmem:[#allocation2 + $0x31] sm:$0xff]
      %v512 = vld [vmem:[#allocation2 + $0x39] sm:$0xff]
      %v513 = vld [vmem:[#allocation2 + $0x49] sm:$0xff]
      %v514 = vld [vmem:[#allocation2 + $0x51] sm:$0xff]
      %v515 = vld [vmem:[#allocation2 + $0x61] sm:$0xff]
      %v516 = vld [vmem:[#allocation2 + $0x69] sm:$0xff]
      %v517 = vld [vmem:[#allocation2 + $0x79] sm:$0xff]
      %v518 = vld [vmem:[#allocation2 + $0x81] sm:$0xff]
      %v519 = vld [vmem:[#allocation2 + $0x91] sm:$0xff]
      %v520 = vld [vmem:[#allocation2 + $0x99] sm:$0xff]
      %v521 = vld [vmem:[#allocation2 + $0xa9] sm:$0xff]
      %v522 = vld [vmem:[#allocation2 + $0xb1] sm:$0xff]
      %v523 = vld [vmem:[#allocation2 + $0xc1] sm:$0xff]
      %v524 = vld [vmem:[#allocation2 + $0xc9] sm:$0xff]
      %v525 = vld [vmem:[#allocation2 + $0xd9] sm:$0xff]
      %v526 = vld [vmem:[#allocation2 + $0xe1] sm:$0xff]
      %v527 = vld [vmem:[#allocation2 + $0xf1] sm:$0xff]
      %v528 = vld [vmem:[#allocation2 + $0xf9] sm:$0xff]
      %v529 = vld [vmem:[#allocation2 + $0x109] sm:$0xff]
      %v530 = vld [vmem:[#allocation2 + $0x111] sm:$0xff]
      %v531 = vld [vmem:[#allocation2 + $0x2] sm:$0xff]
      %v532 = vld [vmem:[#allocation2 + $0xa] sm:$0xff]
      %v533 = vld [vmem:[#allocation2 + $0x1a] sm:$0xff]
      %v534 = vld [vmem:[#allocation2 + $0x22] sm:$0xff]
      %v535 = vld [vmem:[#allocation2 + $0x32] sm:$0xff]
      %v536 = vld [vmem:[#allocation2 + $0x3a] sm:$0xff]
      %v537 = vld [vmem:[#allocation2 + $0x4a] sm:$0xff]
      %v538 = vld [vmem:[#allocation2 + $0x52] sm:$0xff]
      %v539 = vld [vmem:[#allocation2 + $0x62] sm:$0xff]
      %v540 = vld [vmem:[#allocation2 + $0x6a] sm:$0xff]
      %v541 = vld [vmem:[#allocation2 + $0x7a] sm:$0xff]
      %v542 = vld [vmem:[#allocation2 + $0x82] sm:$0xff]
      %v543 = vld [vmem:[#allocation2 + $0x92] sm:$0xff]
      %v544 = vld [vmem:[#allocation2 + $0x9a] sm:$0xff]
      %v545 = vld [vmem:[#allocation2 + $0xaa] sm:$0xff]
      %v546 = vld [vmem:[#allocation2 + $0xb2] sm:$0xff]
      %v547 = vld [vmem:[#allocation2 + $0xc2] sm:$0xff]
      %v548 = vld [vmem:[#allocation2 + $0xca] sm:$0xff]
      %v549 = vld [vmem:[#allocation2 + $0xda] sm:$0xff]
      %v550 = vld [vmem:[#allocation2 + $0xe2] sm:$0xff]
      %v551 = vld [vmem:[#allocation2 + $0xf2] sm:$0xff]
      %v552 = vld [vmem:[#allocation2 + $0xfa] sm:$0xff]
      %v553 = vld [vmem:[#allocation2 + $0x10a] sm:$0xff]
      %v554 = vld [vmem:[#allocation2 + $0x112] sm:$0xff]
      %s555 = scalar_lea.vmem [#allocation2], 24
      %v556 = vld [vmem:[%s555] sm:$0xff]
      %v557 = vld [vmem:[%s555 + $0x8] sm:$0xff]
      %v558 = vld [vmem:[%s555 + $0x18] sm:$0xff]
      %v559 = vld [vmem:[%s555 + $0x20] sm:$0xff]
      %v560 = vld [vmem:[%s555 + $0x30] sm:$0xff]
      %v561 = vld [vmem:[%s555 + $0x38] sm:$0xff]
      %v562 = vld [vmem:[%s555 + $0x48] sm:$0xff]
      %v563 = vld [vmem:[%s555 + $0x50] sm:$0xff]
      %v564 = vld [vmem:[%s555 + $0x60] sm:$0xff]
      %v565 = vld [vmem:[%s555 + $0x68] sm:$0xff]
      %v566 = vld [vmem:[%s555 + $0x78] sm:$0xff]
      %v567 = vld [vmem:[%s555 + $0x80] sm:$0xff]
      %v568 = vld [vmem:[%s555 + $0x90] sm:$0xff]
      %v569 = vld [vmem:[%s555 + $0x98] sm:$0xff]
      %v570 = vld [vmem:[%s555 + $0xa8] sm:$0xff]
      %v571 = vld [vmem:[%s555 + $0xb0] sm:$0xff]
      %v572 = vld [vmem:[%s555 + $0xc0] sm:$0xff]
      %v573 = vld [vmem:[%s555 + $0xc8] sm:$0xff]
      %v574 = vld [vmem:[%s555 + $0xd8] sm:$0xff]
      %v575 = vld [vmem:[%s555 + $0xe0] sm:$0xff]
      %v576 = vld [vmem:[%s555 + $0xf0] sm:$0xff]
      %v577 = vld [vmem:[%s555 + $0xf8] sm:$0xff]
      %v578 = vld [vmem:[%s555 + $0x108] sm:$0xff]
      %v579 = vld [vmem:[%s555 + $0x110] sm:$0xff]
      %v580 = vld [vmem:[%s555 + $0x1] sm:$0xff]
      %v581 = vld [vmem:[%s555 + $0x9] sm:$0xff]
      %v582 = vld [vmem:[%s555 + $0x19] sm:$0xff]
      %v583 = vld [vmem:[%s555 + $0x21] sm:$0xff]
      %v584 = vld [vmem:[%s555 + $0x31] sm:$0xff]
      %v585 = vld [vmem:[%s555 + $0x39] sm:$0xff]
      %v586 = vld [vmem:[%s555 + $0x49] sm:$0xff]
      %v587 = vld [vmem:[%s555 + $0x51] sm:$0xff]
      %v588 = vld [vmem:[%s555 + $0x61] sm:$0xff]
      %v589 = vld [vmem:[%s555 + $0x69] sm:$0xff]
      %v590 = vld [vmem:[%s555 + $0x79] sm:$0xff]
      %v591 = vld [vmem:[%s555 + $0x81] sm:$0xff]
      %v592 = vld [vmem:[%s555 + $0x91] sm:$0xff]
      %v593 = vld [vmem:[%s555 + $0x99] sm:$0xff]
      %v594 = vld [vmem:[%s555 + $0xa9] sm:$0xff]
      %v595 = vld [vmem:[%s555 + $0xb1] sm:$0xff]
      %v596 = vld [vmem:[%s555 + $0xc1] sm:$0xff]
      %v597 = vld [vmem:[%s555 + $0xc9] sm:$0xff]
      %v598 = vld [vmem:[%s555 + $0xd9] sm:$0xff]
      %v599 = vld [vmem:[%s555 + $0xe1] sm:$0xff]
      %v600 = vld [vmem:[%s555 + $0xf1] sm:$0xff]
      %v601 = vld [vmem:[%s555 + $0xf9] sm:$0xff]
      %v602 = vld [vmem:[%s555 + $0x109] sm:$0xff]
      %v603 = vld [vmem:[%s555 + $0x111] sm:$0xff]
      %v604 = vld [vmem:[%s555 + $0x2] sm:$0xff]
      %v605 = vld [vmem:[%s555 + $0xa] sm:$0xff]
      %v606 = vld [vmem:[%s555 + $0x1a] sm:$0xff]
      %v607 = vld [vmem:[%s555 + $0x22] sm:$0xff]
      %v608 = vld [vmem:[%s555 + $0x32] sm:$0xff]
      %v609 = vld [vmem:[%s555 + $0x3a] sm:$0xff]
      %v610 = vld [vmem:[%s555 + $0x4a] sm:$0xff]
      %v611 = vld [vmem:[%s555 + $0x52] sm:$0xff]
      %v612 = vld [vmem:[%s555 + $0x62] sm:$0xff]
      %v613 = vld [vmem:[%s555 + $0x6a] sm:$0xff]
      %v614 = vld [vmem:[%s555 + $0x7a] sm:$0xff]
      %v615 = vld [vmem:[%s555 + $0x82] sm:$0xff]
      %v616 = vld [vmem:[%s555 + $0x92] sm:$0xff]
      %v617 = vld [vmem:[%s555 + $0x9a] sm:$0xff]
      %v618 = vld [vmem:[%s555 + $0xaa] sm:$0xff]
      %v619 = vld [vmem:[%s555 + $0xb2] sm:$0xff]
      %v620 = vld [vmem:[%s555 + $0xc2] sm:$0xff]
      %v621 = vld [vmem:[%s555 + $0xca] sm:$0xff]
      %v622 = vld [vmem:[%s555 + $0xda] sm:$0xff]
      %v623 = vld [vmem:[%s555 + $0xe2] sm:$0xff]
      %v624 = vld [vmem:[%s555 + $0xf2] sm:$0xff]
      %v625 = vld [vmem:[%s555 + $0xfa] sm:$0xff]
      %v626 = vld [vmem:[%s555 + $0x10a] sm:$0xff]
      %v627 = vld [vmem:[%s555 + $0x112] sm:$0xff]
      %s628 = scalar_lea.vmem [#allocation2], 48
      %v629 = vld [vmem:[%s628] sm:$0xff]
      %v630 = vld [vmem:[%s628 + $0x8] sm:$0xff]
      %v631 = vld [vmem:[%s628 + $0x18] sm:$0xff]
      %v632 = vld [vmem:[%s628 + $0x20] sm:$0xff]
      %v633 = vld [vmem:[%s628 + $0x30] sm:$0xff]
      %v634 = vld [vmem:[%s628 + $0x38] sm:$0xff]
      %v635 = vld [vmem:[%s628 + $0x48] sm:$0xff]
      %v636 = vld [vmem:[%s628 + $0x50] sm:$0xff]
      %v637 = vld [vmem:[%s628 + $0x60] sm:$0xff]
      %v638 = vld [vmem:[%s628 + $0x68] sm:$0xff]
      %v639 = vld [vmem:[%s628 + $0x78] sm:$0xff]
      %v640 = vld [vmem:[%s628 + $0x80] sm:$0xff]
      %v641 = vld [vmem:[%s628 + $0x90] sm:$0xff]
      %v642 = vld [vmem:[%s628 + $0x98] sm:$0xff]
      %v643 = vld [vmem:[%s628 + $0xa8] sm:$0xff]
      %v644 = vld [vmem:[%s628 + $0xb0] sm:$0xff]
      %v645 = vld [vmem:[%s628 + $0xc0] sm:$0xff]
      %v646 = vld [vmem:[%s628 + $0xc8] sm:$0xff]
      %v647 = vld [vmem:[%s628 + $0xd8] sm:$0xff]
      %v648 = vld [vmem:[%s628 + $0xe0] sm:$0xff]
      %v649 = vld [vmem:[%s628 + $0xf0] sm:$0xff]
      %v650 = vld [vmem:[%s628 + $0xf8] sm:$0xff]
      %v651 = vld [vmem:[%s628 + $0x108] sm:$0xff]
      %v652 = vld [vmem:[%s628 + $0x110] sm:$0xff]
      %v653 = vld [vmem:[%s628 + $0x1] sm:$0xff]
      %v654 = vld [vmem:[%s628 + $0x9] sm:$0xff]
      %v655 = vld [vmem:[%s628 + $0x19] sm:$0xff]
      %v656 = vld [vmem:[%s628 + $0x21] sm:$0xff]
      %v657 = vld [vmem:[%s628 + $0x31] sm:$0xff]
      %v658 = vld [vmem:[%s628 + $0x39] sm:$0xff]
      %v659 = vld [vmem:[%s628 + $0x49] sm:$0xff]
      %v660 = vld [vmem:[%s628 + $0x51] sm:$0xff]
      %v661 = vld [vmem:[%s628 + $0x61] sm:$0xff]
      %v662 = vld [vmem:[%s628 + $0x69] sm:$0xff]
      %v663 = vld [vmem:[%s628 + $0x79] sm:$0xff]
      %v664 = vld [vmem:[%s628 + $0x81] sm:$0xff]
      %v665 = vld [vmem:[%s628 + $0x91] sm:$0xff]
      %v666 = vld [vmem:[%s628 + $0x99] sm:$0xff]
      %v667 = vld [vmem:[%s628 + $0xa9] sm:$0xff]
      %v668 = vld [vmem:[%s628 + $0xb1] sm:$0xff]
      %v669 = vld [vmem:[%s628 + $0xc1] sm:$0xff]
      %v670 = vld [vmem:[%s628 + $0xc9] sm:$0xff]
      %v671 = vld [vmem:[%s628 + $0xd9] sm:$0xff]
      %v672 = vld [vmem:[%s628 + $0xe1] sm:$0xff]
      %v673 = vld [vmem:[%s628 + $0xf1] sm:$0xff]
      %v674 = vld [vmem:[%s628 + $0xf9] sm:$0xff]
      %v675 = vld [vmem:[%s628 + $0x109] sm:$0xff]
      %v676 = vld [vmem:[%s628 + $0x111] sm:$0xff]
      %v677 = vld [vmem:[%s628 + $0x2] sm:$0xff]
      %v678 = vld [vmem:[%s628 + $0xa] sm:$0xff]
      %v679 = vld [vmem:[%s628 + $0x1a] sm:$0xff]
      %v680 = vld [vmem:[%s628 + $0x22] sm:$0xff]
      %v681 = vld [vmem:[%s628 + $0x32] sm:$0xff]
      %v682 = vld [vmem:[%s628 + $0x3a] sm:$0xff]
      %v683 = vld [vmem:[%s628 + $0x4a] sm:$0xff]
      %v684 = vld [vmem:[%s628 + $0x52] sm:$0xff]
      %v685 = vld [vmem:[%s628 + $0x62] sm:$0xff]
      %v686 = vld [vmem:[%s628 + $0x6a] sm:$0xff]
      %v687 = vld [vmem:[%s628 + $0x7a] sm:$0xff]
      %v688 = vld [vmem:[%s628 + $0x82] sm:$0xff]
      %v689 = vld [vmem:[%s628 + $0x92] sm:$0xff]
      %v690 = vld [vmem:[%s628 + $0x9a] sm:$0xff]
      %v691 = vld [vmem:[%s628 + $0xaa] sm:$0xff]
      %v692 = vld [vmem:[%s628 + $0xb2] sm:$0xff]
      %v693 = vld [vmem:[%s628 + $0xc2] sm:$0xff]
      %v694 = vld [vmem:[%s628 + $0xca] sm:$0xff]
      %v695 = vld [vmem:[%s628 + $0xda] sm:$0xff]
      %v696 = vld [vmem:[%s628 + $0xe2] sm:$0xff]
      %v697 = vld [vmem:[%s628 + $0xf2] sm:$0xff]
      %v698 = vld [vmem:[%s628 + $0xfa] sm:$0xff]
      %v699 = vld [vmem:[%s628 + $0x10a] sm:$0xff]
      %v700 = vld [vmem:[%s628 + $0x112] sm:$0xff]
      %725 = vrot.lane.b32.xlu0 %v507, 3
      %v726 = vpop.permute.xlu0 %725
      %727 = vrot.lane.b32.xlu0 %v508, 3
      %v728 = vpop.permute.xlu0 %727
      %729 = vrot.lane.b32.xlu0 %v509, 3
      %v730 = vpop.permute.xlu0 %729
      %731 = vrot.lane.b32.xlu0 %v510, 3
      %v732 = vpop.permute.xlu0 %731
      %733 = vrot.lane.b32.xlu0 %v511, 3
      %v734 = vpop.permute.xlu0 %733
      %735 = vrot.lane.b32.xlu0 %v512, 3
      %v736 = vpop.permute.xlu0 %735
      %737 = vrot.lane.b32.xlu0 %v513, 3
      %v738 = vpop.permute.xlu0 %737
      %739 = vrot.lane.b32.xlu0 %v514, 3
      %v740 = vpop.permute.xlu0 %739
      %741 = vrot.lane.b32.xlu0 %v515, 3
      %v742 = vpop.permute.xlu0 %741
      %743 = vrot.lane.b32.xlu0 %v516, 3
      %v744 = vpop.permute.xlu0 %743
      %745 = vrot.lane.b32.xlu0 %v517, 3
      %v746 = vpop.permute.xlu0 %745
      %747 = vrot.lane.b32.xlu0 %v518, 3
      %v748 = vpop.permute.xlu0 %747
      %749 = vrot.lane.b32.xlu0 %v519, 3
      %v750 = vpop.permute.xlu0 %749
      %751 = vrot.lane.b32.xlu0 %v520, 3
      %v752 = vpop.permute.xlu0 %751
      %753 = vrot.lane.b32.xlu0 %v521, 3
      %v754 = vpop.permute.xlu0 %753
      %755 = vrot.lane.b32.xlu0 %v522, 3
      %v756 = vpop.permute.xlu0 %755
      %757 = vrot.lane.b32.xlu0 %v523, 3
      %v758 = vpop.permute.xlu0 %757
      %759 = vrot.lane.b32.xlu0 %v524, 3
      %v760 = vpop.permute.xlu0 %759
      %761 = vrot.lane.b32.xlu0 %v525, 3
      %v762 = vpop.permute.xlu0 %761
      %763 = vrot.lane.b32.xlu0 %v526, 3
      %v764 = vpop.permute.xlu0 %763
      %765 = vrot.lane.b32.xlu0 %v527, 3
      %v766 = vpop.permute.xlu0 %765
      %767 = vrot.lane.b32.xlu0 %v528, 3
      %v768 = vpop.permute.xlu0 %767
      %769 = vrot.lane.b32.xlu0 %v529, 3
      %v770 = vpop.permute.xlu0 %769
      %771 = vrot.lane.b32.xlu0 %v530, 3
      %v772 = vpop.permute.xlu0 %771
      %821 = vrot.lane.b32.xlu0 %v531, 6
      %v822 = vpop.permute.xlu0 %821
      %823 = vrot.lane.b32.xlu0 %v532, 6
      %v824 = vpop.permute.xlu0 %823
      %825 = vrot.lane.b32.xlu0 %v533, 6
      %v826 = vpop.permute.xlu0 %825
      %827 = vrot.lane.b32.xlu0 %v534, 6
      %v828 = vpop.permute.xlu0 %827
      %829 = vrot.lane.b32.xlu0 %v535, 6
      %v830 = vpop.permute.xlu0 %829
      %831 = vrot.lane.b32.xlu0 %v536, 6
      %v832 = vpop.permute.xlu0 %831
      %833 = vrot.lane.b32.xlu0 %v537, 6
      %v834 = vpop.permute.xlu0 %833
      %835 = vrot.lane.b32.xlu0 %v538, 6
      %v836 = vpop.permute.xlu0 %835
      %837 = vrot.lane.b32.xlu0 %v539, 6
      %v838 = vpop.permute.xlu0 %837
      %839 = vrot.lane.b32.xlu0 %v540, 6
      %v840 = vpop.permute.xlu0 %839
      %841 = vrot.lane.b32.xlu0 %v541, 6
      %v842 = vpop.permute.xlu0 %841
      %843 = vrot.lane.b32.xlu0 %v542, 6
      %v844 = vpop.permute.xlu0 %843
      %845 = vrot.lane.b32.xlu0 %v543, 6
      %v846 = vpop.permute.xlu0 %845
      %847 = vrot.lane.b32.xlu0 %v544, 6
      %v848 = vpop.permute.xlu0 %847
      %849 = vrot.lane.b32.xlu0 %v545, 6
      %v850 = vpop.permute.xlu0 %849
      %851 = vrot.lane.b32.xlu0 %v546, 6
      %v852 = vpop.permute.xlu0 %851
      %853 = vrot.lane.b32.xlu0 %v547, 6
      %v854 = vpop.permute.xlu0 %853
      %855 = vrot.lane.b32.xlu0 %v548, 6
      %v856 = vpop.permute.xlu0 %855
      %857 = vrot.lane.b32.xlu0 %v549, 6
      %v858 = vpop.permute.xlu0 %857
      %859 = vrot.lane.b32.xlu0 %v550, 6
      %v860 = vpop.permute.xlu0 %859
      %861 = vrot.lane.b32.xlu0 %v551, 6
      %v862 = vpop.permute.xlu0 %861
      %863 = vrot.lane.b32.xlu0 %v552, 6
      %v864 = vpop.permute.xlu0 %863
      %865 = vrot.lane.b32.xlu0 %v553, 6
      %v866 = vpop.permute.xlu0 %865
      %867 = vrot.lane.b32.xlu0 %v554, 6
      %v868 = vpop.permute.xlu0 %867
      %917 = vrot.lane.b32.xlu0 %v556, 9
      %v918 = vpop.permute.xlu0 %917
      %919 = vrot.lane.b32.xlu0 %v557, 9
      %v920 = vpop.permute.xlu0 %919
      %921 = vrot.lane.b32.xlu0 %v558, 9
      %v922 = vpop.permute.xlu0 %921
      %923 = vrot.lane.b32.xlu0 %v559, 9
      %v924 = vpop.permute.xlu0 %923
      %925 = vrot.lane.b32.xlu0 %v560, 9
      %v926 = vpop.permute.xlu0 %925
      %927 = vrot.lane.b32.xlu0 %v561, 9
      %v928 = vpop.permute.xlu0 %927
      %929 = vrot.lane.b32.xlu0 %v562, 9
      %v930 = vpop.permute.xlu0 %929
      %931 = vrot.lane.b32.xlu0 %v563, 9
      %v932 = vpop.permute.xlu0 %931
      %933 = vrot.lane.b32.xlu0 %v564, 9
      %v934 = vpop.permute.xlu0 %933
      %935 = vrot.lane.b32.xlu0 %v565, 9
      %v936 = vpop.permute.xlu0 %935
      %937 = vrot.lane.b32.xlu0 %v566, 9
      %v938 = vpop.permute.xlu0 %937
      %939 = vrot.lane.b32.xlu0 %v567, 9
      %v940 = vpop.permute.xlu0 %939
      %941 = vrot.lane.b32.xlu0 %v568, 9
      %v942 = vpop.permute.xlu0 %941
      %943 = vrot.lane.b32.xlu0 %v569, 9
      %v944 = vpop.permute.xlu0 %943
      %945 = vrot.lane.b32.xlu0 %v570, 9
      %v946 = vpop.permute.xlu0 %945
      %947 = vrot.lane.b32.xlu0 %v571, 9
      %v948 = vpop.permute.xlu0 %947
      %949 = vrot.lane.b32.xlu0 %v572, 9
      %v950 = vpop.permute.xlu0 %949
      %951 = vrot.lane.b32.xlu0 %v573, 9
      %v952 = vpop.permute.xlu0 %951
      %953 = vrot.lane.b32.xlu0 %v574, 9
      %v954 = vpop.permute.xlu0 %953
      %955 = vrot.lane.b32.xlu0 %v575, 9
      %v956 = vpop.permute.xlu0 %955
      %957 = vrot.lane.b32.xlu0 %v576, 9
      %v958 = vpop.permute.xlu0 %957
      %959 = vrot.lane.b32.xlu0 %v577, 9
      %v960 = vpop.permute.xlu0 %959
      %961 = vrot.lane.b32.xlu0 %v578, 9
      %v962 = vpop.permute.xlu0 %961
      %963 = vrot.lane.b32.xlu0 %v579, 9
      %v964 = vpop.permute.xlu0 %963
      %1013 = vrot.lane.b32.xlu0 %v580, 12
      %v1014 = vpop.permute.xlu0 %1013
      %1015 = vrot.lane.b32.xlu0 %v581, 12
      %v1016 = vpop.permute.xlu0 %1015
      %1017 = vrot.lane.b32.xlu0 %v582, 12
      %v1018 = vpop.permute.xlu0 %1017
      %1019 = vrot.lane.b32.xlu0 %v583, 12
      %v1020 = vpop.permute.xlu0 %1019
      %1021 = vrot.lane.b32.xlu0 %v584, 12
      %v1022 = vpop.permute.xlu0 %1021
      %1023 = vrot.lane.b32.xlu0 %v585, 12
      %v1024 = vpop.permute.xlu0 %1023
      %1025 = vrot.lane.b32.xlu0 %v586, 12
      %v1026 = vpop.permute.xlu0 %1025
      %1027 = vrot.lane.b32.xlu0 %v587, 12
      %v1028 = vpop.permute.xlu0 %1027
      %1029 = vrot.lane.b32.xlu0 %v588, 12
      %v1030 = vpop.permute.xlu0 %1029
      %1031 = vrot.lane.b32.xlu0 %v589, 12
      %v1032 = vpop.permute.xlu0 %1031
      %1033 = vrot.lane.b32.xlu0 %v590, 12
      %v1034 = vpop.permute.xlu0 %1033
      %1035 = vrot.lane.b32.xlu0 %v591, 12
      %v1036 = vpop.permute.xlu0 %1035
      %1037 = vrot.lane.b32.xlu0 %v592, 12
      %v1038 = vpop.permute.xlu0 %1037
      %1039 = vrot.lane.b32.xlu0 %v593, 12
      %v1040 = vpop.permute.xlu0 %1039
      %1041 = vrot.lane.b32.xlu0 %v594, 12
      %v1042 = vpop.permute.xlu0 %1041
      %1043 = vrot.lane.b32.xlu0 %v595, 12
      %v1044 = vpop.permute.xlu0 %1043
      %1045 = vrot.lane.b32.xlu0 %v596, 12
      %v1046 = vpop.permute.xlu0 %1045
      %1047 = vrot.lane.b32.xlu0 %v597, 12
      %v1048 = vpop.permute.xlu0 %1047
      %1049 = vrot.lane.b32.xlu0 %v598, 12
      %v1050 = vpop.permute.xlu0 %1049
      %1051 = vrot.lane.b32.xlu0 %v599, 12
      %v1052 = vpop.permute.xlu0 %1051
      %1053 = vrot.lane.b32.xlu0 %v600, 12
      %v1054 = vpop.permute.xlu0 %1053
      %1055 = vrot.lane.b32.xlu0 %v601, 12
      %v1056 = vpop.permute.xlu0 %1055
      %1057 = vrot.lane.b32.xlu0 %v602, 12
      %v1058 = vpop.permute.xlu0 %1057
      %1059 = vrot.lane.b32.xlu0 %v603, 12
      %v1060 = vpop.permute.xlu0 %1059
      %1109 = vrot.lane.b32.xlu0 %v604, 15
      %v1110 = vpop.permute.xlu0 %1109
      %1111 = vrot.lane.b32.xlu0 %v605, 15
      %v1112 = vpop.permute.xlu0 %1111
      %1113 = vrot.lane.b32.xlu0 %v606, 15
      %v1114 = vpop.permute.xlu0 %1113
      %1115 = vrot.lane.b32.xlu0 %v607, 15
      %v1116 = vpop.permute.xlu0 %1115
      %1117 = vrot.lane.b32.xlu0 %v608, 15
      %v1118 = vpop.permute.xlu0 %1117
      %1119 = vrot.lane.b32.xlu0 %v609, 15
      %v1120 = vpop.permute.xlu0 %1119
      %1121 = vrot.lane.b32.xlu0 %v610, 15
      %v1122 = vpop.permute.xlu0 %1121
      %1123 = vrot.lane.b32.xlu0 %v611, 15
      %v1124 = vpop.permute.xlu0 %1123
      %1125 = vrot.lane.b32.xlu0 %v612, 15
      %v1126 = vpop.permute.xlu0 %1125
      %1127 = vrot.lane.b32.xlu0 %v613, 15
      %v1128 = vpop.permute.xlu0 %1127
      %1129 = vrot.lane.b32.xlu0 %v614, 15
      %v1130 = vpop.permute.xlu0 %1129
      %1131 = vrot.lane.b32.xlu0 %v615, 15
      %v1132 = vpop.permute.xlu0 %1131
      %1133 = vrot.lane.b32.xlu0 %v616, 15
      %v1134 = vpop.permute.xlu0 %1133
      %1135 = vrot.lane.b32.xlu0 %v617, 15
      %v1136 = vpop.permute.xlu0 %1135
      %1137 = vrot.lane.b32.xlu0 %v618, 15
      %v1138 = vpop.permute.xlu0 %1137
      %1139 = vrot.lane.b32.xlu0 %v619, 15
      %v1140 = vpop.permute.xlu0 %1139
      %1141 = vrot.lane.b32.xlu0 %v620, 15
      %v1142 = vpop.permute.xlu0 %1141
      %1143 = vrot.lane.b32.xlu0 %v621, 15
      %v1144 = vpop.permute.xlu0 %1143
      %1145 = vrot.lane.b32.xlu0 %v622, 15
      %v1146 = vpop.permute.xlu0 %1145
      %1147 = vrot.lane.b32.xlu0 %v623, 15
      %v1148 = vpop.permute.xlu0 %1147
      %1149 = vrot.lane.b32.xlu0 %v624, 15
      %v1150 = vpop.permute.xlu0 %1149
      %1151 = vrot.lane.b32.xlu0 %v625, 15
      %v1152 = vpop.permute.xlu0 %1151
      %1153 = vrot.lane.b32.xlu0 %v626, 15
      %v1154 = vpop.permute.xlu0 %1153
      %1155 = vrot.lane.b32.xlu0 %v627, 15
      %v1156 = vpop.permute.xlu0 %1155
      %1205 = vrot.lane.b32.xlu0 %v629, 18
      %v1206 = vpop.permute.xlu0 %1205
      %1207 = vrot.lane.b32.xlu0 %v630, 18
      %v1208 = vpop.permute.xlu0 %1207
      %1209 = vrot.lane.b32.xlu0 %v631, 18
      %v1210 = vpop.permute.xlu0 %1209
      %1211 = vrot.lane.b32.xlu0 %v632, 18
      %v1212 = vpop.permute.xlu0 %1211
      %1213 = vrot.lane.b32.xlu0 %v633, 18
      %v1214 = vpop.permute.xlu0 %1213
      %1215 = vrot.lane.b32.xlu0 %v634, 18
      %v1216 = vpop.permute.xlu0 %1215
      %1217 = vrot.lane.b32.xlu0 %v635, 18
      %v1218 = vpop.permute.xlu0 %1217
      %1219 = vrot.lane.b32.xlu0 %v636, 18
      %v1220 = vpop.permute.xlu0 %1219
      %1221 = vrot.lane.b32.xlu0 %v637, 18
      %v1222 = vpop.permute.xlu0 %1221
      %1223 = vrot.lane.b32.xlu0 %v638, 18
      %v1224 = vpop.permute.xlu0 %1223
      %1225 = vrot.lane.b32.xlu0 %v639, 18
      %v1226 = vpop.permute.xlu0 %1225
      %1227 = vrot.lane.b32.xlu0 %v640, 18
      %v1228 = vpop.permute.xlu0 %1227
      %1229 = vrot.lane.b32.xlu0 %v641, 18
      %v1230 = vpop.permute.xlu0 %1229
      %1231 = vrot.lane.b32.xlu0 %v642, 18
      %v1232 = vpop.permute.xlu0 %1231
      %1233 = vrot.lane.b32.xlu0 %v643, 18
      %v1234 = vpop.permute.xlu0 %1233
      %1235 = vrot.lane.b32.xlu0 %v644, 18
      %v1236 = vpop.permute.xlu0 %1235
      %1237 = vrot.lane.b32.xlu0 %v645, 18
      %v1238 = vpop.permute.xlu0 %1237
      %1239 = vrot.lane.b32.xlu0 %v646, 18
      %v1240 = vpop.permute.xlu0 %1239
      %1241 = vrot.lane.b32.xlu0 %v647, 18
      %v1242 = vpop.permute.xlu0 %1241
      %1243 = vrot.lane.b32.xlu0 %v648, 18
      %v1244 = vpop.permute.xlu0 %1243
      %1245 = vrot.lane.b32.xlu0 %v649, 18
      %v1246 = vpop.permute.xlu0 %1245
      %1247 = vrot.lane.b32.xlu0 %v650, 18
      %v1248 = vpop.permute.xlu0 %1247
      %1249 = vrot.lane.b32.xlu0 %v651, 18
      %v1250 = vpop.permute.xlu0 %1249
      %1251 = vrot.lane.b32.xlu0 %v652, 18
      %v1252 = vpop.permute.xlu0 %1251
      %1301 = vrot.lane.b32.xlu0 %v653, 21
      %v1302 = vpop.permute.xlu0 %1301
      %1303 = vrot.lane.b32.xlu0 %v654, 21
      %v1304 = vpop.permute.xlu0 %1303
      %1305 = vrot.lane.b32.xlu0 %v655, 21
      %v1306 = vpop.permute.xlu0 %1305
      %1307 = vrot.lane.b32.xlu0 %v656, 21
      %v1308 = vpop.permute.xlu0 %1307
      %1309 = vrot.lane.b32.xlu0 %v657, 21
      %v1310 = vpop.permute.xlu0 %1309
      %1311 = vrot.lane.b32.xlu0 %v658, 21
      %v1312 = vpop.permute.xlu0 %1311
      %1313 = vrot.lane.b32.xlu0 %v659, 21
      %v1314 = vpop.permute.xlu0 %1313
      %1315 = vrot.lane.b32.xlu0 %v660, 21
      %v1316 = vpop.permute.xlu0 %1315
      %1317 = vrot.lane.b32.xlu0 %v661, 21
      %v1318 = vpop.permute.xlu0 %1317
      %1319 = vrot.lane.b32.xlu0 %v662, 21
      %v1320 = vpop.permute.xlu0 %1319
      %1321 = vrot.lane.b32.xlu0 %v663, 21
      %v1322 = vpop.permute.xlu0 %1321
      %1323 = vrot.lane.b32.xlu0 %v664, 21
      %v1324 = vpop.permute.xlu0 %1323
      %1325 = vrot.lane.b32.xlu0 %v665, 21
      %v1326 = vpop.permute.xlu0 %1325
      %1327 = vrot.lane.b32.xlu0 %v666, 21
      %v1328 = vpop.permute.xlu0 %1327
      %1329 = vrot.lane.b32.xlu0 %v667, 21
      %v1330 = vpop.permute.xlu0 %1329
      %1331 = vrot.lane.b32.xlu0 %v668, 21
      %v1332 = vpop.permute.xlu0 %1331
      %1333 = vrot.lane.b32.xlu0 %v669, 21
      %v1334 = vpop.permute.xlu0 %1333
      %1335 = vrot.lane.b32.xlu0 %v670, 21
      %v1336 = vpop.permute.xlu0 %1335
      %1337 = vrot.lane.b32.xlu0 %v671, 21
      %v1338 = vpop.permute.xlu0 %1337
      %1339 = vrot.lane.b32.xlu0 %v672, 21
      %v1340 = vpop.permute.xlu0 %1339
      %1341 = vrot.lane.b32.xlu0 %v673, 21
      %v1342 = vpop.permute.xlu0 %1341
      %1343 = vrot.lane.b32.xlu0 %v674, 21
      %v1344 = vpop.permute.xlu0 %1343
      %1345 = vrot.lane.b32.xlu0 %v675, 21
      %v1346 = vpop.permute.xlu0 %1345
      %1347 = vrot.lane.b32.xlu0 %v676, 21
      %v1348 = vpop.permute.xlu0 %1347
      %1397 = vrot.lane.b32.xlu0 %v677, 24
      %v1398 = vpop.permute.xlu0 %1397
      %1399 = vrot.lane.b32.xlu0 %v678, 24
      %v1400 = vpop.permute.xlu0 %1399
      %1401 = vrot.lane.b32.xlu0 %v679, 24
      %v1402 = vpop.permute.xlu0 %1401
      %1403 = vrot.lane.b32.xlu0 %v680, 24
      %v1404 = vpop.permute.xlu0 %1403
      %1405 = vrot.lane.b32.xlu0 %v681, 24
      %v1406 = vpop.permute.xlu0 %1405
      %1407 = vrot.lane.b32.xlu0 %v682, 24
      %v1408 = vpop.permute.xlu0 %1407
      %1409 = vrot.lane.b32.xlu0 %v683, 24
      %v1410 = vpop.permute.xlu0 %1409
      %1411 = vrot.lane.b32.xlu0 %v684, 24
      %v1412 = vpop.permute.xlu0 %1411
      %1413 = vrot.lane.b32.xlu0 %v685, 24
      %v1414 = vpop.permute.xlu0 %1413
      %1415 = vrot.lane.b32.xlu0 %v686, 24
      %v1416 = vpop.permute.xlu0 %1415
      %1417 = vrot.lane.b32.xlu0 %v687, 24
      %v1418 = vpop.permute.xlu0 %1417
      %1419 = vrot.lane.b32.xlu0 %v688, 24
      %v1420 = vpop.permute.xlu0 %1419
      %1421 = vrot.lane.b32.xlu0 %v689, 24
      %v1422 = vpop.permute.xlu0 %1421
      %1423 = vrot.lane.b32.xlu0 %v690, 24
      %v1424 = vpop.permute.xlu0 %1423
      %1425 = vrot.lane.b32.xlu0 %v691, 24
      %v1426 = vpop.permute.xlu0 %1425
      %1427 = vrot.lane.b32.xlu0 %v692, 24
      %v1428 = vpop.permute.xlu0 %1427
      %1429 = vrot.lane.b32.xlu0 %v693, 24
      %v1430 = vpop.permute.xlu0 %1429
      %1431 = vrot.lane.b32.xlu0 %v694, 24
      %v1432 = vpop.permute.xlu0 %1431
      %1433 = vrot.lane.b32.xlu0 %v695, 24
      %v1434 = vpop.permute.xlu0 %1433
      %1435 = vrot.lane.b32.xlu0 %v696, 24
      %v1436 = vpop.permute.xlu0 %1435
      %1437 = vrot.lane.b32.xlu0 %v697, 24
      %v1438 = vpop.permute.xlu0 %1437
      %1439 = vrot.lane.b32.xlu0 %v698, 24
      %v1440 = vpop.permute.xlu0 %1439
      %1441 = vrot.lane.b32.xlu0 %v699, 24
      %v1442 = vpop.permute.xlu0 %1441
      %1443 = vrot.lane.b32.xlu0 %v700, 24
      %v1444 = vpop.permute.xlu0 %1443
      %v1469 = vsel %vm454, %v483, %v726
      %v1470 = vsel %vm454, %v484, %v728
      %v1471 = vsel %vm454, %v485, %v730
      %v1472 = vsel %vm454, %v486, %v732
      %v1473 = vsel %vm454, %v487, %v734
      %v1474 = vsel %vm454, %v488, %v736
      %v1475 = vsel %vm454, %v489, %v738
      %v1476 = vsel %vm454, %v490, %v740
      %v1477 = vsel %vm454, %v491, %v742
      %v1478 = vsel %vm454, %v492, %v744
      %v1479 = vsel %vm454, %v493, %v746
      %v1480 = vsel %vm454, %v494, %v748
      %v1481 = vsel %vm454, %v495, %v750
      %v1482 = vsel %vm454, %v496, %v752
      %v1483 = vsel %vm454, %v497, %v754
      %v1484 = vsel %vm454, %v498, %v756
      %v1485 = vsel %vm454, %v499, %v758
      %v1486 = vsel %vm454, %v500, %v760
      %v1487 = vsel %vm454, %v501, %v762
      %v1488 = vsel %vm454, %v502, %v764
      %v1489 = vsel %vm454, %v503, %v766
      %v1490 = vsel %vm454, %v504, %v768
      %v1491 = vsel %vm454, %v505, %v770
      %v1492 = vsel %vm454, %v506, %v772
      %vm1493 = vcmask 48128
      %v1494 = vsel %vm1493, %v1469, %v822
      %v1495 = vsel %vm1493, %v1470, %v824
      %v1496 = vsel %vm1493, %v1471, %v826
      %v1497 = vsel %vm1493, %v1472, %v828
      %v1498 = vsel %vm1493, %v1473, %v830
      %v1499 = vsel %vm1493, %v1474, %v832
      %v1500 = vsel %vm1493, %v1475, %v834
      %v1501 = vsel %vm1493, %v1476, %v836
      %v1502 = vsel %vm1493, %v1477, %v838
      %v1503 = vsel %vm1493, %v1478, %v840
      %v1504 = vsel %vm1493, %v1479, %v842
      %v1505 = vsel %vm1493, %v1480, %v844
      %v1506 = vsel %vm1493, %v1481, %v846
      %v1507 = vsel %vm1493, %v1482, %v848
      %v1508 = vsel %vm1493, %v1483, %v850
      %v1509 = vsel %vm1493, %v1484, %v852
      %v1510 = vsel %vm1493, %v1485, %v854
      %v1511 = vsel %vm1493, %v1486, %v856
      %v1512 = vsel %vm1493, %v1487, %v858
      %v1513 = vsel %vm1493, %v1488, %v860
      %v1514 = vsel %vm1493, %v1489, %v862
      %v1515 = vsel %vm1493, %v1490, %v864
      %v1516 = vsel %vm1493, %v1491, %v866
      %v1517 = vsel %vm1493, %v1492, %v868
      %vm1518 = vcmask 72704
      %v1519 = vsel %vm1518, %v1494, %v918
      %v1520 = vsel %vm1518, %v1495, %v920
      %v1521 = vsel %vm1518, %v1496, %v922
      %v1522 = vsel %vm1518, %v1497, %v924
      %v1523 = vsel %vm1518, %v1498, %v926
      %v1524 = vsel %vm1518, %v1499, %v928
      %v1525 = vsel %vm1518, %v1500, %v930
      %v1526 = vsel %vm1518, %v1501, %v932
      %v1527 = vsel %vm1518, %v1502, %v934
      %v1528 = vsel %vm1518, %v1503, %v936
      %v1529 = vsel %vm1518, %v1504, %v938
      %v1530 = vsel %vm1518, %v1505, %v940
      %v1531 = vsel %vm1518, %v1506, %v942
      %v1532 = vsel %vm1518, %v1507, %v944
      %v1533 = vsel %vm1518, %v1508, %v946
      %v1534 = vsel %vm1518, %v1509, %v948
      %v1535 = vsel %vm1518, %v1510, %v950
      %v1536 = vsel %vm1518, %v1511, %v952
      %v1537 = vsel %vm1518, %v1512, %v954
      %v1538 = vsel %vm1518, %v1513, %v956
      %v1539 = vsel %vm1518, %v1514, %v958
      %v1540 = vsel %vm1518, %v1515, %v960
      %v1541 = vsel %vm1518, %v1516, %v962
      %v1542 = vsel %vm1518, %v1517, %v964
      %vm1543 = vcmask 97280
      %v1544 = vsel %vm1543, %v1519, %v1014
      %v1545 = vsel %vm1543, %v1520, %v1016
      %v1546 = vsel %vm1543, %v1521, %v1018
      %v1547 = vsel %vm1543, %v1522, %v1020
      %v1548 = vsel %vm1543, %v1523, %v1022
      %v1549 = vsel %vm1543, %v1524, %v1024
      %v1550 = vsel %vm1543, %v1525, %v1026
      %v1551 = vsel %vm1543, %v1526, %v1028
      %v1552 = vsel %vm1543, %v1527, %v1030
      %v1553 = vsel %vm1543, %v1528, %v1032
      %v1554 = vsel %vm1543, %v1529, %v1034
      %v1555 = vsel %vm1543, %v1530, %v1036
      %v1556 = vsel %vm1543, %v1531, %v1038
      %v1557 = vsel %vm1543, %v1532, %v1040
      %v1558 = vsel %vm1543, %v1533, %v1042
      %v1559 = vsel %vm1543, %v1534, %v1044
      %v1560 = vsel %vm1543, %v1535, %v1046
      %v1561 = vsel %vm1543, %v1536, %v1048
      %v1562 = vsel %vm1543, %v1537, %v1050
      %v1563 = vsel %vm1543, %v1538, %v1052
      %v1564 = vsel %vm1543, %v1539, %v1054
      %v1565 = vsel %vm1543, %v1540, %v1056
      %v1566 = vsel %vm1543, %v1541, %v1058
      %v1567 = vsel %vm1543, %v1542, %v1060
      %vm1568 = vcmask 121856
      %v1569 = vsel %vm1568, %v1544, %v1110
      %v1570 = vsel %vm1568, %v1545, %v1112
      %v1571 = vsel %vm1568, %v1546, %v1114
      %v1572 = vsel %vm1568, %v1547, %v1116
      %v1573 = vsel %vm1568, %v1548, %v1118
      %v1574 = vsel %vm1568, %v1549, %v1120
      %v1575 = vsel %vm1568, %v1550, %v1122
      %v1576 = vsel %vm1568, %v1551, %v1124
      %v1577 = vsel %vm1568, %v1552, %v1126
      %v1578 = vsel %vm1568, %v1553, %v1128
      %v1579 = vsel %vm1568, %v1554, %v1130
      %v1580 = vsel %vm1568, %v1555, %v1132
      %v1581 = vsel %vm1568, %v1556, %v1134
      %v1582 = vsel %vm1568, %v1557, %v1136
      %v1583 = vsel %vm1568, %v1558, %v1138
      %v1584 = vsel %vm1568, %v1559, %v1140
      %v1585 = vsel %vm1568, %v1560, %v1142
      %v1586 = vsel %vm1568, %v1561, %v1144
      %v1587 = vsel %vm1568, %v1562, %v1146
      %v1588 = vsel %vm1568, %v1563, %v1148
      %v1589 = vsel %vm1568, %v1564, %v1150
      %v1590 = vsel %vm1568, %v1565, %v1152
      %v1591 = vsel %vm1568, %v1566, %v1154
      %v1592 = vsel %vm1568, %v1567, %v1156
      %vm1593 = vcmask 146432
      %v1594 = vsel %vm1593, %v1569, %v1206
      %v1595 = vsel %vm1593, %v1570, %v1208
      %v1596 = vsel %vm1593, %v1571, %v1210
      %v1597 = vsel %vm1593, %v1572, %v1212
      %v1598 = vsel %vm1593, %v1573, %v1214
      %v1599 = vsel %vm1593, %v1574, %v1216
      %v1600 = vsel %vm1593, %v1575, %v1218
      %v1601 = vsel %vm1593, %v1576, %v1220
      %v1602 = vsel %vm1593, %v1577, %v1222
      %v1603 = vsel %vm1593, %v1578, %v1224
      %v1604 = vsel %vm1593, %v1579, %v1226
      %v1605 = vsel %vm1593, %v1580, %v1228
      %v1606 = vsel %vm1593, %v1581, %v1230
      %v1607 = vsel %vm1593, %v1582, %v1232
      %v1608 = vsel %vm1593, %v1583, %v1234
      %v1609 = vsel %vm1593, %v1584, %v1236
      %v1610 = vsel %vm1593, %v1585, %v1238
      %v1611 = vsel %vm1593, %v1586, %v1240
      %v1612 = vsel %vm1593, %v1587, %v1242
      %v1613 = vsel %vm1593, %v1588, %v1244
      %v1614 = vsel %vm1593, %v1589, %v1246
      %v1615 = vsel %vm1593, %v1590, %v1248
      %v1616 = vsel %vm1593, %v1591, %v1250
      %v1617 = vsel %vm1593, %v1592, %v1252
      %vm1618 = vcmask 171008
      %v1619 = vsel %vm1618, %v1594, %v1302
      %v1620 = vsel %vm1618, %v1595, %v1304
      %v1621 = vsel %vm1618, %v1596, %v1306
      %v1622 = vsel %vm1618, %v1597, %v1308
      %v1623 = vsel %vm1618, %v1598, %v1310
      %v1624 = vsel %vm1618, %v1599, %v1312
      %v1625 = vsel %vm1618, %v1600, %v1314
      %v1626 = vsel %vm1618, %v1601, %v1316
      %v1627 = vsel %vm1618, %v1602, %v1318
      %v1628 = vsel %vm1618, %v1603, %v1320
      %v1629 = vsel %vm1618, %v1604, %v1322
      %v1630 = vsel %vm1618, %v1605, %v1324
      %v1631 = vsel %vm1618, %v1606, %v1326
      %v1632 = vsel %vm1618, %v1607, %v1328
      %v1633 = vsel %vm1618, %v1608, %v1330
      %v1634 = vsel %vm1618, %v1609, %v1332
      %v1635 = vsel %vm1618, %v1610, %v1334
      %v1636 = vsel %vm1618, %v1611, %v1336
      %v1637 = vsel %vm1618, %v1612, %v1338
      %v1638 = vsel %vm1618, %v1613, %v1340
      %v1639 = vsel %vm1618, %v1614, %v1342
      %v1640 = vsel %vm1618, %v1615, %v1344
      %v1641 = vsel %vm1618, %v1616, %v1346
      %v1642 = vsel %vm1618, %v1617, %v1348
      %vm1643 = vcmask 195584
      %v1644 = vsel %vm1643, %v1619, %v1398
      %v1645 = vsel %vm1643, %v1620, %v1400
      %v1646 = vsel %vm1643, %v1621, %v1402
      %v1647 = vsel %vm1643, %v1622, %v1404
      %v1648 = vsel %vm1643, %v1623, %v1406
      %v1649 = vsel %vm1643, %v1624, %v1408
      %v1650 = vsel %vm1643, %v1625, %v1410
      %v1651 = vsel %vm1643, %v1626, %v1412
      %v1652 = vsel %vm1643, %v1627, %v1414
      %v1653 = vsel %vm1643, %v1628, %v1416
      %v1654 = vsel %vm1643, %v1629, %v1418
      %v1655 = vsel %vm1643, %v1630, %v1420
      %v1656 = vsel %vm1643, %v1631, %v1422
      %v1657 = vsel %vm1643, %v1632, %v1424
      %v1658 = vsel %vm1643, %v1633, %v1426
      %v1659 = vsel %vm1643, %v1634, %v1428
      %v1660 = vsel %vm1643, %v1635, %v1430
      %v1661 = vsel %vm1643, %v1636, %v1432
      %v1662 = vsel %vm1643, %v1637, %v1434
      %v1663 = vsel %vm1643, %v1638, %v1436
      %v1664 = vsel %vm1643, %v1639, %v1438
      %v1665 = vsel %vm1643, %v1640, %v1440
      %v1666 = vsel %vm1643, %v1641, %v1442
      %v1667 = vsel %vm1643, %v1642, %v1444
      %v1668 = vpack.c.bf16 %v1645, %v1644
      %v1669 = vpack.c.bf16 %v1647, %v1646
      %v1670 = vpack.c.bf16 %v1649, %v1648
      %v1671 = vpack.c.bf16 %v1651, %v1650
      %v1672 = vpack.c.bf16 %v1653, %v1652
      %v1673 = vpack.c.bf16 %v1655, %v1654
      %v1674 = vpack.c.bf16 %v1657, %v1656
      %v1675 = vpack.c.bf16 %v1659, %v1658
      %v1676 = vpack.c.bf16 %v1661, %v1660
      %v1677 = vpack.c.bf16 %v1663, %v1662
      %v1678 = vpack.c.bf16 %v1665, %v1664
      %v1679 = vpack.c.bf16 %v1667, %v1666
      %v1680 = vld [vmem:[%s1] sm:$0xf]
      %v1681 = vld [vmem:[%s1 + $0x4] sm:$0xf]
      %v1682 = vld [vmem:[%s1 + $0x8] sm:$0xf]
      %v1683 = vld [vmem:[%s1 + $0xc] sm:$0x3]
      %v1684 = vld [vmem:[%s2] sm:$0x1]
      %v1686 = vlaneseq
      %v1687 = vshrl.u32 %v1686, 7
      %v1688 = vsub.s32 0, %v1687
      %v1689 = vrot.slane %v1684, %v1688
      %v1695 = vunpack.c.l.b16 %v1680
      %v1696 = vunpack.c.l.b16 %v1681
      %v1697 = vunpack.c.l.b16 %v1682
      %v1698 = vunpack.c.l.b16 %v1683
      %v1699 = vpack.c.b16 %v1696, %v1695
      %v1700 = vpack.c.b16 %v1698, %v1697
      %vm1702 = vcmask 220160
      %v1704 = vsel %vm1702, %v1668, 0
      %v1707 = vsel %vm1702, %v1669, 0
      %v1710 = vsel %vm1702, %v1670, 0
      %v1713 = vsel %vm1702, %v1671, 0
      %v1716 = vsel %vm1702, %v1672, 0
      %v1719 = vsel %vm1702, %v1673, 0
      %v1722 = vsel %vm1702, %v1674, 0
      %v1725 = vsel %vm1702, %v1675, 0
      %v1728 = vsel %vm1702, %v1676, 0
      %v1731 = vsel %vm1702, %v1677, 0
      %v1734 = vsel %vm1702, %v1678, 0
      %v1737 = vsel %vm1702, %v1679, 0
      %vm1739 = vcmask 1044480
      %vm1740 = vcmask 1045504
      %v1741 = vsel %vm1739, 4294967295, 65535
      %v1742 = vsel %vm1740, %v1741, 0
      %v1744 = vand.u32 %v1700, %v1742
      %1746 = vmatprep.subr.bf16.mxu0 0
      %1747 = vmatpush1.bf16.msra.mxu0 0
      %1748 = vmatprep.subr.bf16.mxu0 0
      %1749 = vmatpush1.bf16.msra.mxu0 0
      %1750 = vmatprep.subr.bf16.mxu0 0
      %1751 = vmatpush1.bf16.msra.mxu0 0
      %1752 = vmatprep.subr.bf16.mxu0 0
      %1753 = vmatpush1.bf16.msra.mxu0 0
      %1754 = vmatprep.subr.bf16.mxu0 0
      %1755 = vmatpush1.bf16.msra.mxu0 0
      %1756 = vmatprep.subr.bf16.mxu0 0
      %1757 = vmatpush1.bf16.msra.mxu0 0
      %1758 = vmatprep.subr.bf16.mxu0 0
      %1759 = vmatpush1.bf16.msra.mxu0 %v1744
      %1760 = vmatprep.subr.bf16.mxu0 0
      %1761 = vmatpush1.bf16.msra.mxu0 %v1699
      %1762 = vmatprep.subr.bf16.mxu0 0
      %1763 = vmatpush2.bf16.msra.mxu0 0
      %1764 = vmatprep.subr.bf16.mxu0 0
      %1765 = vmatpush2.bf16.msra.mxu0 0
      %1766 = vmatprep.subr.bf16.mxu0 0
      %1767 = vmatpush2.bf16.msra.mxu0 0
      %1768 = vmatprep.subr.bf16.mxu0 0
      %1769 = vmatpush2.bf16.msra.mxu0 0
      %1770 = vmatprep.subr.bf16.mxu0 0
      %1771 = vmatpush2.bf16.msra.mxu0 0
      %1772 = vmatprep.subr.bf16.mxu0 0
      %1773 = vmatpush2.bf16.msra.mxu0 0
      %1774 = vmatprep.subr.bf16.mxu0 0
      %1775 = vmatpush2.bf16.msra.mxu0 0
      %1776 = vmatprep.subr.bf16.mxu0 0
      %1777 = vmatpush2.bf16.msra.mxu0 0
      %1778 = vmatprep.mubr.bf16.mxu0 0
      %1779 = vmatmul.mubr.bf16.gmra.mxu0 %v1704
      %v1780 = vpop.f32.mrf.mxu0
      %v1781 = vadd.f32 %v1689, %v1780
      %v1782 = vpop.f32.mrf.mxu0
      %v1783 = vpop.f32.mrf.mxu0
      %v1784 = vadd.f32 %v1689, %v1783
      %v1785 = vpop.f32.mrf.mxu0
      %1786 = vmatprep.mubr.bf16.mxu0 0
      %1787 = vmatmul.mubr.bf16.gmra.mxu0 %v1707
      %v1788 = vpop.f32.mrf.mxu0
      %v1789 = vadd.f32 %v1689, %v1788
      %v1790 = vpop.f32.mrf.mxu0
      %v1791 = vpop.f32.mrf.mxu0
      %v1792 = vadd.f32 %v1689, %v1791
      %v1793 = vpop.f32.mrf.mxu0
      %1794 = vmatprep.mubr.bf16.mxu0 0
      %1795 = vmatmul.mubr.bf16.gmra.mxu0 %v1710
      %v1796 = vpop.f32.mrf.mxu0
      %v1797 = vadd.f32 %v1689, %v1796
      %v1798 = vpop.f32.mrf.mxu0
      %v1799 = vpop.f32.mrf.mxu0
      %v1800 = vadd.f32 %v1689, %v1799
      %v1801 = vpop.f32.mrf.mxu0
      %1802 = vmatprep.mubr.bf16.mxu0 0
      %1803 = vmatmul.mubr.bf16.gmra.mxu0 %v1713
      %v1804 = vpop.f32.mrf.mxu0
      %v1805 = vadd.f32 %v1689, %v1804
      %v1806 = vpop.f32.mrf.mxu0
      %v1807 = vpop.f32.mrf.mxu0
      %v1808 = vadd.f32 %v1689, %v1807
      %v1809 = vpop.f32.mrf.mxu0
      %1810 = vmatprep.mubr.bf16.mxu0 0
      %1811 = vmatmul.mubr.bf16.gmra.mxu0 %v1716
      %v1812 = vpop.f32.mrf.mxu0
      %v1813 = vadd.f32 %v1689, %v1812
      %v1814 = vpop.f32.mrf.mxu0
      %v1815 = vpop.f32.mrf.mxu0
      %v1816 = vadd.f32 %v1689, %v1815
      %v1817 = vpop.f32.mrf.mxu0
      %1818 = vmatprep.mubr.bf16.mxu0 0
      %1819 = vmatmul.mubr.bf16.gmra.mxu0 %v1719
      %v1820 = vpop.f32.mrf.mxu0
      %v1821 = vadd.f32 %v1689, %v1820
      %v1822 = vpop.f32.mrf.mxu0
      %v1823 = vpop.f32.mrf.mxu0
      %v1824 = vadd.f32 %v1689, %v1823
      %v1825 = vpop.f32.mrf.mxu0
      %1826 = vmatprep.mubr.bf16.mxu0 0
      %1827 = vmatmul.mubr.bf16.gmra.mxu0 %v1722
      %v1828 = vpop.f32.mrf.mxu0
      %v1829 = vadd.f32 %v1689, %v1828
      %v1830 = vpop.f32.mrf.mxu0
      %v1831 = vpop.f32.mrf.mxu0
      %v1832 = vadd.f32 %v1689, %v1831
      %v1833 = vpop.f32.mrf.mxu0
      %1834 = vmatprep.mubr.bf16.mxu0 0
      %1835 = vmatmul.mubr.bf16.gmra.mxu0 %v1725
      %v1836 = vpop.f32.mrf.mxu0
      %v1837 = vadd.f32 %v1689, %v1836
      %v1838 = vpop.f32.mrf.mxu0
      %v1839 = vpop.f32.mrf.mxu0
      %v1840 = vadd.f32 %v1689, %v1839
      %v1841 = vpop.f32.mrf.mxu0
      %1842 = vmatprep.mubr.bf16.mxu0 0
      %1843 = vmatmul.mubr.bf16.gmra.mxu0 %v1728
      %v1844 = vpop.f32.mrf.mxu0
      %v1845 = vadd.f32 %v1689, %v1844
      %v1846 = vpop.f32.mrf.mxu0
      %v1847 = vpop.f32.mrf.mxu0
      %v1848 = vadd.f32 %v1689, %v1847
      %v1849 = vpop.f32.mrf.mxu0
      %1850 = vmatprep.mubr.bf16.mxu0 0
      %1851 = vmatmul.mubr.bf16.gmra.mxu0 %v1731
      %v1852 = vpop.f32.mrf.mxu0
      %v1853 = vadd.f32 %v1689, %v1852
      %v1854 = vpop.f32.mrf.mxu0
      %v1855 = vpop.f32.mrf.mxu0
      %v1856 = vadd.f32 %v1689, %v1855
      %v1857 = vpop.f32.mrf.mxu0
      %1858 = vmatprep.mubr.bf16.mxu0 0
      %1859 = vmatmul.mubr.bf16.gmra.mxu0 %v1734
      %v1860 = vpop.f32.mrf.mxu0
      %v1861 = vadd.f32 %v1689, %v1860
      %v1862 = vpop.f32.mrf.mxu0
      %v1863 = vpop.f32.mrf.mxu0
      %v1864 = vadd.f32 %v1689, %v1863
      %v1865 = vpop.f32.mrf.mxu0
      %1866 = vmatprep.mubr.bf16.mxu0 0
      %1867 = vmatmul.mubr.bf16.gmra.mxu0 %v1737
      %v1868 = vpop.f32.mrf.mxu0
      %v1869 = vadd.f32 %v1689, %v1868
      %v1870 = vpop.f32.mrf.mxu0
      %v1871 = vpop.f32.mrf.mxu0
      %v1872 = vadd.f32 %v1689, %v1871
      %v1873 = vpop.f32.mrf.mxu0
      %1874 = vdwg.mxu0
      %v1875 = vpack.c.bf16 %v1784, %v1781
      %v1876 = vpack.c.bf16 %v1792, %v1789
      %v1877 = vpack.c.bf16 %v1800, %v1797
      %v1878 = vpack.c.bf16 %v1808, %v1805
      %v1879 = vpack.c.bf16 %v1816, %v1813
      %v1880 = vpack.c.bf16 %v1824, %v1821
      %v1881 = vpack.c.bf16 %v1832, %v1829
      %v1882 = vpack.c.bf16 %v1840, %v1837
      %v1883 = vpack.c.bf16 %v1848, %v1845
      %v1884 = vpack.c.bf16 %v1856, %v1853
      %v1885 = vpack.c.bf16 %v1864, %v1861
      %v1886 = vpack.c.bf16 %v1872, %v1869
      %v1887 = vld [vmem:[%s3] sm:$0xf]
      %v1888 = vld [vmem:[%s3 + $0x4] sm:$0xf]
      %v1889 = vld [vmem:[%s3 + $0x8] sm:$0xf]
      %v1890 = vld [vmem:[%s3 + $0xc] sm:$0xf]
      %v1891 = vld [vmem:[%s3 + $0x10] sm:$0xf]
      %v1892 = vld [vmem:[%s3 + $0x14] sm:$0xf]
      %v1893 = vld [vmem:[%s3 + $0x18] sm:$0xf]
      %v1894 = vld [vmem:[%s3 + $0x1c] sm:$0xf]
      %v1895 = vld [vmem:[%s4] sm:$0x1]
      %v1897 = vlaneseq
      %v1898 = vshrl.u32 %v1897, 7
      %v1899 = vsub.s32 0, %v1898
      %v1900 = vrot.slane %v1895, %v1899
      %v1910 = vunpack.c.l.b16 %v1887
      %v1911 = vunpack.c.l.b16 %v1888
      %v1912 = vunpack.c.l.b16 %v1889
      %v1913 = vunpack.c.l.b16 %v1890
      %v1914 = vunpack.c.l.b16 %v1891
      %v1915 = vunpack.c.l.b16 %v1892
      %v1916 = vunpack.c.l.b16 %v1893
      %v1917 = vunpack.c.l.b16 %v1894
      %v1918 = vpack.c.b16 %v1911, %v1910
      %v1919 = vpack.c.b16 %v1913, %v1912
      %v1920 = vpack.c.b16 %v1915, %v1914
      %v1921 = vpack.c.b16 %v1917, %v1916
      %vm1926 = vcmask 523264
      %v1928 = vsel %vm1926, %v1875, 0
      %v1931 = vsel %vm1926, %v1876, 0
      %v1934 = vsel %vm1926, %v1877, 0
      %v1937 = vsel %vm1926, %v1878, 0
      %v1940 = vsel %vm1926, %v1879, 0
      %v1943 = vsel %vm1926, %v1880, 0
      %v1946 = vsel %vm1926, %v1881, 0
      %v1949 = vsel %vm1926, %v1882, 0
      %v1952 = vsel %vm1926, %v1883, 0
      %v1955 = vsel %vm1926, %v1884, 0
      %v1958 = vsel %vm1926, %v1885, 0
      %v1961 = vsel %vm1926, %v1886, 0
      %1963 = vmatprep.subr.bf16.mxu0 0
      %1964 = vmatpush1.bf16.msra.mxu0 0
      %1965 = vmatprep.subr.bf16.mxu0 0
      %1966 = vmatpush1.bf16.msra.mxu0 0
      %1967 = vmatprep.subr.bf16.mxu0 0
      %1968 = vmatpush1.bf16.msra.mxu0 0
      %1969 = vmatprep.subr.bf16.mxu0 0
      %1970 = vmatpush1.bf16.msra.mxu0 0
      %1971 = vmatprep.subr.bf16.mxu0 0
      %1972 = vmatpush1.bf16.msra.mxu0 %v1921
      %1973 = vmatprep.subr.bf16.mxu0 0
      %1974 = vmatpush1.bf16.msra.mxu0 %v1920
      %1975 = vmatprep.subr.bf16.mxu0 0
      %1976 = vmatpush1.bf16.msra.mxu0 %v1919
      %1977 = vmatprep.subr.bf16.mxu0 0
      %1978 = vmatpush1.bf16.msra.mxu0 %v1918
      %1979 = vmatprep.subr.bf16.mxu0 0
      %1980 = vmatpush2.bf16.msra.mxu0 0
      %1981 = vmatprep.subr.bf16.mxu0 0
      %1982 = vmatpush2.bf16.msra.mxu0 0
      %1983 = vmatprep.subr.bf16.mxu0 0
      %1984 = vmatpush2.bf16.msra.mxu0 0
      %1985 = vmatprep.subr.bf16.mxu0 0
      %1986 = vmatpush2.bf16.msra.mxu0 0
      %1987 = vmatprep.subr.bf16.mxu0 0
      %1988 = vmatpush2.bf16.msra.mxu0 0
      %1989 = vmatprep.subr.bf16.mxu0 0
      %1990 = vmatpush2.bf16.msra.mxu0 0
      %1991 = vmatprep.subr.bf16.mxu0 0
      %1992 = vmatpush2.bf16.msra.mxu0 0
      %1993 = vmatprep.subr.bf16.mxu0 0
      %1994 = vmatpush2.bf16.msra.mxu0 0
      %1995 = vmatprep.mubr.bf16.mxu0 0
      %1996 = vmatmul.mubr.bf16.gmra.mxu0 %v1928
      %v1997 = vpop.f32.mrf.mxu0
      %v1998 = vadd.f32 %v1900, %v1997
      %v1999 = vpop.f32.mrf.mxu0
      %v2000 = vpop.f32.mrf.mxu0
      %v2001 = vadd.f32 %v1900, %v2000
      %v2002 = vpop.f32.mrf.mxu0
      %2003 = vmatprep.mubr.bf16.mxu0 0
      %2004 = vmatmul.mubr.bf16.gmra.mxu0 %v1931
      %v2005 = vpop.f32.mrf.mxu0
      %v2006 = vadd.f32 %v1900, %v2005
      %v2007 = vpop.f32.mrf.mxu0
      %v2008 = vpop.f32.mrf.mxu0
      %v2009 = vadd.f32 %v1900, %v2008
      %v2010 = vpop.f32.mrf.mxu0
      %2011 = vmatprep.mubr.bf16.mxu0 0
      %2012 = vmatmul.mubr.bf16.gmra.mxu0 %v1934
      %v2013 = vpop.f32.mrf.mxu0
      %v2014 = vadd.f32 %v1900, %v2013
      %v2015 = vpop.f32.mrf.mxu0
      %v2016 = vpop.f32.mrf.mxu0
      %v2017 = vadd.f32 %v1900, %v2016
      %v2018 = vpop.f32.mrf.mxu0
      %2019 = vmatprep.mubr.bf16.mxu0 0
      %2020 = vmatmul.mubr.bf16.gmra.mxu0 %v1937
      %v2021 = vpop.f32.mrf.mxu0
      %v2022 = vadd.f32 %v1900, %v2021
      %v2023 = vpop.f32.mrf.mxu0
      %v2024 = vpop.f32.mrf.mxu0
      %v2025 = vadd.f32 %v1900, %v2024
      %v2026 = vpop.f32.mrf.mxu0
      %2027 = vmatprep.mubr.bf16.mxu0 0
      %2028 = vmatmul.mubr.bf16.gmra.mxu0 %v1940
      %v2029 = vpop.f32.mrf.mxu0
      %v2030 = vadd.f32 %v1900, %v2029
      %v2031 = vpop.f32.mrf.mxu0
      %v2032 = vpop.f32.mrf.mxu0
      %v2033 = vadd.f32 %v1900, %v2032
      %v2034 = vpop.f32.mrf.mxu0
      %2035 = vmatprep.mubr.bf16.mxu0 0
      %2036 = vmatmul.mubr.bf16.gmra.mxu0 %v1943
      %v2037 = vpop.f32.mrf.mxu0
      %v2038 = vadd.f32 %v1900, %v2037
      %v2039 = vpop.f32.mrf.mxu0
      %v2040 = vpop.f32.mrf.mxu0
      %v2041 = vadd.f32 %v1900, %v2040
      %v2042 = vpop.f32.mrf.mxu0
      %2043 = vmatprep.mubr.bf16.mxu0 0
      %2044 = vmatmul.mubr.bf16.gmra.mxu0 %v1946
      %v2045 = vpop.f32.mrf.mxu0
      %v2046 = vadd.f32 %v1900, %v2045
      %v2047 = vpop.f32.mrf.mxu0
      %v2048 = vpop.f32.mrf.mxu0
      %v2049 = vadd.f32 %v1900, %v2048
      %v2050 = vpop.f32.mrf.mxu0
      %2051 = vmatprep.mubr.bf16.mxu0 0
      %2052 = vmatmul.mubr.bf16.gmra.mxu0 %v1949
      %v2053 = vpop.f32.mrf.mxu0
      %v2054 = vadd.f32 %v1900, %v2053
      %v2055 = vpop.f32.mrf.mxu0
      %v2056 = vpop.f32.mrf.mxu0
      %v2057 = vadd.f32 %v1900, %v2056
      %v2058 = vpop.f32.mrf.mxu0
      %2059 = vmatprep.mubr.bf16.mxu0 0
      %2060 = vmatmul.mubr.bf16.gmra.mxu0 %v1952
      %v2061 = vpop.f32.mrf.mxu0
      %v2062 = vadd.f32 %v1900, %v2061
      %v2063 = vpop.f32.mrf.mxu0
      %v2064 = vpop.f32.mrf.mxu0
      %v2065 = vadd.f32 %v1900, %v2064
      %v2066 = vpop.f32.mrf.mxu0
      %2067 = vmatprep.mubr.bf16.mxu0 0
      %2068 = vmatmul.mubr.bf16.gmra.mxu0 %v1955
      %v2069 = vpop.f32.mrf.mxu0
      %v2070 = vadd.f32 %v1900, %v2069
      %v2071 = vpop.f32.mrf.mxu0
      %v2072 = vpop.f32.mrf.mxu0
      %v2073 = vadd.f32 %v1900, %v2072
      %v2074 = vpop.f32.mrf.mxu0
      %2075 = vmatprep.mubr.bf16.mxu0 0
      %2076 = vmatmul.mubr.bf16.gmra.mxu0 %v1958
      %v2077 = vpop.f32.mrf.mxu0
      %v2078 = vadd.f32 %v1900, %v2077
      %v2079 = vpop.f32.mrf.mxu0
      %v2080 = vpop.f32.mrf.mxu0
      %v2081 = vadd.f32 %v1900, %v2080
      %v2082 = vpop.f32.mrf.mxu0
      %2083 = vmatprep.mubr.bf16.mxu0 0
      %2084 = vmatmul.mubr.bf16.gmra.mxu0 %v1961
      %v2085 = vpop.f32.mrf.mxu0
      %v2086 = vadd.f32 %v1900, %v2085
      %v2087 = vpop.f32.mrf.mxu0
      %v2088 = vpop.f32.mrf.mxu0
      %v2089 = vadd.f32 %v1900, %v2088
      %v2090 = vpop.f32.mrf.mxu0
      %2091 = vdwg.mxu0
      %v2092 = vmul.f32 %v1998, 0.5
      %v2093 = vmul.f32 %v2001, 0.5
      %v2094 = vmul.f32 %v2006, 0.5
      %v2095 = vmul.f32 %v2009, 0.5
      %v2096 = vmul.f32 %v2014, 0.5
      %v2097 = vmul.f32 %v2017, 0.5
      %v2098 = vmul.f32 %v2022, 0.5
      %v2099 = vmul.f32 %v2025, 0.5
      %v2100 = vmul.f32 %v2030, 0.5
      %v2101 = vmul.f32 %v2033, 0.5
      %v2102 = vmul.f32 %v2038, 0.5
      %v2103 = vmul.f32 %v2041, 0.5
      %v2104 = vmul.f32 %v2046, 0.5
      %v2105 = vmul.f32 %v2049, 0.5
      %v2106 = vmul.f32 %v2054, 0.5
      %v2107 = vmul.f32 %v2057, 0.5
      %v2108 = vmul.f32 %v2062, 0.5
      %v2109 = vmul.f32 %v2065, 0.5
      %v2110 = vmul.f32 %v2070, 0.5
      %v2111 = vmul.f32 %v2073, 0.5
      %v2112 = vmul.f32 %v2078, 0.5
      %v2113 = vmul.f32 %v2081, 0.5
      %v2114 = vmul.f32 %v2086, 0.5
      %v2115 = vmul.f32 %v2089, 0.5
      %v2116 = vtanh.pop %v2092
      %v2117 = vtanh.pop %v2093
      %v2118 = vtanh.pop %v2094
      %v2119 = vtanh.pop %v2095
      %v2120 = vtanh.pop %v2096
      %v2121 = vtanh.pop %v2097
      %v2122 = vtanh.pop %v2098
      %v2123 = vtanh.pop %v2099
      %v2124 = vtanh.pop %v2100
      %v2125 = vtanh.pop %v2101
      %v2126 = vtanh.pop %v2102
      %v2127 = vtanh.pop %v2103
      %v2128 = vtanh.pop %v2104
      %v2129 = vtanh.pop %v2105
      %v2130 = vtanh.pop %v2106
      %v2131 = vtanh.pop %v2107
      %v2132 = vtanh.pop %v2108
      %v2133 = vtanh.pop %v2109
      %v2134 = vtanh.pop %v2110
      %v2135 = vtanh.pop %v2111
      %v2136 = vtanh.pop %v2112
      %v2137 = vtanh.pop %v2113
      %v2138 = vtanh.pop %v2114
      %v2139 = vtanh.pop %v2115
      %v2140 = vmul.f32 %v2116, 0.5
      %v2141 = vmul.f32 %v2117, 0.5
      %v2142 = vmul.f32 %v2118, 0.5
      %v2143 = vmul.f32 %v2119, 0.5
      %v2144 = vmul.f32 %v2120, 0.5
      %v2145 = vmul.f32 %v2121, 0.5
      %v2146 = vmul.f32 %v2122, 0.5
      %v2147 = vmul.f32 %v2123, 0.5
      %v2148 = vmul.f32 %v2124, 0.5
      %v2149 = vmul.f32 %v2125, 0.5
      %v2150 = vmul.f32 %v2126, 0.5
      %v2151 = vmul.f32 %v2127, 0.5
      %v2152 = vmul.f32 %v2128, 0.5
      %v2153 = vmul.f32 %v2129, 0.5
      %v2154 = vmul.f32 %v2130, 0.5
      %v2155 = vmul.f32 %v2131, 0.5
      %v2156 = vmul.f32 %v2132, 0.5
      %v2157 = vmul.f32 %v2133, 0.5
      %v2158 = vmul.f32 %v2134, 0.5
      %v2159 = vmul.f32 %v2135, 0.5
      %v2160 = vmul.f32 %v2136, 0.5
      %v2161 = vmul.f32 %v2137, 0.5
      %v2162 = vmul.f32 %v2138, 0.5
      %v2163 = vmul.f32 %v2139, 0.5
      %v2164 = vadd.f32 %v2140, 0.5
      %v2165 = vadd.f32 %v2141, 0.5
      %v2166 = vadd.f32 %v2142, 0.5
      %v2167 = vadd.f32 %v2143, 0.5
      %v2168 = vadd.f32 %v2144, 0.5
      %v2169 = vadd.f32 %v2145, 0.5
      %v2170 = vadd.f32 %v2146, 0.5
      %v2171 = vadd.f32 %v2147, 0.5
      %v2172 = vadd.f32 %v2148, 0.5
      %v2173 = vadd.f32 %v2149, 0.5
      %v2174 = vadd.f32 %v2150, 0.5
      %v2175 = vadd.f32 %v2151, 0.5
      %v2176 = vadd.f32 %v2152, 0.5
      %v2177 = vadd.f32 %v2153, 0.5
      %v2178 = vadd.f32 %v2154, 0.5
      %v2179 = vadd.f32 %v2155, 0.5
      %v2180 = vadd.f32 %v2156, 0.5
      %v2181 = vadd.f32 %v2157, 0.5
      %v2182 = vadd.f32 %v2158, 0.5
      %v2183 = vadd.f32 %v2159, 0.5
      %v2184 = vadd.f32 %v2160, 0.5
      %v2185 = vadd.f32 %v2161, 0.5
      %v2186 = vadd.f32 %v2162, 0.5
      %v2187 = vadd.f32 %v2163, 0.5
      %v2188 = vmul.f32 %v1781, %v2164
      %v2189 = vmul.f32 %v1784, %v2165
      %v2190 = vmul.f32 %v1789, %v2166
      %v2191 = vmul.f32 %v1792, %v2167
      %v2192 = vmul.f32 %v1797, %v2168
      %v2193 = vmul.f32 %v1800, %v2169
      %v2194 = vmul.f32 %v1805, %v2170
      %v2195 = vmul.f32 %v1808, %v2171
      %v2196 = vmul.f32 %v1813, %v2172
      %v2197 = vmul.f32 %v1816, %v2173
      %v2198 = vmul.f32 %v1821, %v2174
      %v2199 = vmul.f32 %v1824, %v2175
      %v2200 = vmul.f32 %v1829, %v2176
      %v2201 = vmul.f32 %v1832, %v2177
      %v2202 = vmul.f32 %v1837, %v2178
      %v2203 = vmul.f32 %v1840, %v2179
      %v2204 = vmul.f32 %v1845, %v2180
      %v2205 = vmul.f32 %v1848, %v2181
      %v2206 = vmul.f32 %v1853, %v2182
      %v2207 = vmul.f32 %v1856, %v2183
      %v2208 = vmul.f32 %v1861, %v2184
      %v2209 = vmul.f32 %v1864, %v2185
      %v2210 = vmul.f32 %v1869, %v2186
      %v2211 = vmul.f32 %v1872, %v2187
      %v2212 = vpack.c.bf16 %v2189, %v2188
      %v2213 = vpack.c.bf16 %v2191, %v2190
      %v2214 = vpack.c.bf16 %v2193, %v2192
      %v2215 = vpack.c.bf16 %v2195, %v2194
      %v2216 = vpack.c.bf16 %v2197, %v2196
      %v2217 = vpack.c.bf16 %v2199, %v2198
      %v2218 = vpack.c.bf16 %v2201, %v2200
      %v2219 = vpack.c.bf16 %v2203, %v2202
      %v2220 = vpack.c.bf16 %v2205, %v2204
      %v2221 = vpack.c.bf16 %v2207, %v2206
      %v2222 = vpack.c.bf16 %v2209, %v2208
      %v2223 = vpack.c.bf16 %v2211, %v2210
      %s2224 = scalar_lea.vmem %s3, 32
      %v2225 = vld [vmem:[%s2224] sm:$0xf]
      %v2226 = vld [vmem:[%s2224 + $0x4] sm:$0xf]
      %v2227 = vld [vmem:[%s2224 + $0x8] sm:$0xf]
      %v2228 = vld [vmem:[%s2224 + $0xc] sm:$0xf]
      %v2229 = vld [vmem:[%s2224 + $0x10] sm:$0xf]
      %v2230 = vld [vmem:[%s2224 + $0x14] sm:$0xf]
      %v2231 = vld [vmem:[%s2224 + $0x18] sm:$0xf]
      %v2232 = vld [vmem:[%s2224 + $0x1c] sm:$0xf]
      %s2233 = scalar_lea.vmem %s4, 1
      %v2234 = vld [vmem:[%s2233] sm:$0x1]
      %v2236 = vlaneseq
      %v2237 = vshrl.u32 %v2236, 7
      %v2238 = vsub.s32 0, %v2237
      %v2239 = vrot.slane %v2234, %v2238
      %v2249 = vunpack.c.l.b16 %v2225
      %v2250 = vunpack.c.l.b16 %v2226
      %v2251 = vunpack.c.l.b16 %v2227
      %v2252 = vunpack.c.l.b16 %v2228
      %v2253 = vunpack.c.l.b16 %v2229
      %v2254 = vunpack.c.l.b16 %v2230
      %v2255 = vunpack.c.l.b16 %v2231
      %v2256 = vunpack.c.l.b16 %v2232
      %v2257 = vpack.c.b16 %v2250, %v2249
      %v2258 = vpack.c.b16 %v2252, %v2251
      %v2259 = vpack.c.b16 %v2254, %v2253
      %v2260 = vpack.c.b16 %v2256, %v2255
      %v2266 = vsel %vm1926, %v2212, 0
      %v2269 = vsel %vm1926, %v2213, 0
      %v2272 = vsel %vm1926, %v2214, 0
      %v2275 = vsel %vm1926, %v2215, 0
      %v2278 = vsel %vm1926, %v2216, 0
      %v2281 = vsel %vm1926, %v2217, 0
      %v2284 = vsel %vm1926, %v2218, 0
      %v2287 = vsel %vm1926, %v2219, 0
      %v2290 = vsel %vm1926, %v2220, 0
      %v2293 = vsel %vm1926, %v2221, 0
      %v2296 = vsel %vm1926, %v2222, 0
      %v2299 = vsel %vm1926, %v2223, 0
      %2301 = vmatprep.subr.bf16.mxu0 0
      %2302 = vmatpush1.bf16.msra.mxu0 0
      %2303 = vmatprep.subr.bf16.mxu0 0
      %2304 = vmatpush1.bf16.msra.mxu0 0
      %2305 = vmatprep.subr.bf16.mxu0 0
      %2306 = vmatpush1.bf16.msra.mxu0 0
      %2307 = vmatprep.subr.bf16.mxu0 0
      %2308 = vmatpush1.bf16.msra.mxu0 0
      %2309 = vmatprep.subr.bf16.mxu0 0
      %2310 = vmatpush1.bf16.msra.mxu0 %v2260
      %2311 = vmatprep.subr.bf16.mxu0 0
      %2312 = vmatpush1.bf16.msra.mxu0 %v2259
      %2313 = vmatprep.subr.bf16.mxu0 0
      %2314 = vmatpush1.bf16.msra.mxu0 %v2258
      %2315 = vmatprep.subr.bf16.mxu0 0
      %2316 = vmatpush1.bf16.msra.mxu0 %v2257
      %2317 = vmatprep.subr.bf16.mxu0 0
      %2318 = vmatpush2.bf16.msra.mxu0 0
      %2319 = vmatprep.subr.bf16.mxu0 0
      %2320 = vmatpush2.bf16.msra.mxu0 0
      %2321 = vmatprep.subr.bf16.mxu0 0
      %2322 = vmatpush2.bf16.msra.mxu0 0
      %2323 = vmatprep.subr.bf16.mxu0 0
      %2324 = vmatpush2.bf16.msra.mxu0 0
      %2325 = vmatprep.subr.bf16.mxu0 0
      %2326 = vmatpush2.bf16.msra.mxu0 0
      %2327 = vmatprep.subr.bf16.mxu0 0
      %2328 = vmatpush2.bf16.msra.mxu0 0
      %2329 = vmatprep.subr.bf16.mxu0 0
      %2330 = vmatpush2.bf16.msra.mxu0 0
      %2331 = vmatprep.subr.bf16.mxu0 0
      %2332 = vmatpush2.bf16.msra.mxu0 0
      %2333 = vmatprep.mubr.bf16.mxu0 0
      %2334 = vmatmul.mubr.bf16.gmra.mxu0 %v2266
      %v2335 = vpop.f32.mrf.mxu0
      %v2336 = vadd.f32 %v2239, %v2335
      %v2337 = vpop.f32.mrf.mxu0
      %v2338 = vpop.f32.mrf.mxu0
      %v2339 = vadd.f32 %v2239, %v2338
      %v2340 = vpop.f32.mrf.mxu0
      %2341 = vmatprep.mubr.bf16.mxu0 0
      %2342 = vmatmul.mubr.bf16.gmra.mxu0 %v2269
      %v2343 = vpop.f32.mrf.mxu0
      %v2344 = vadd.f32 %v2239, %v2343
      %v2345 = vpop.f32.mrf.mxu0
      %v2346 = vpop.f32.mrf.mxu0
      %v2347 = vadd.f32 %v2239, %v2346
      %v2348 = vpop.f32.mrf.mxu0
      %2349 = vmatprep.mubr.bf16.mxu0 0
      %2350 = vmatmul.mubr.bf16.gmra.mxu0 %v2272
      %v2351 = vpop.f32.mrf.mxu0
      %v2352 = vadd.f32 %v2239, %v2351
      %v2353 = vpop.f32.mrf.mxu0
      %v2354 = vpop.f32.mrf.mxu0
      %v2355 = vadd.f32 %v2239, %v2354
      %v2356 = vpop.f32.mrf.mxu0
      %2357 = vmatprep.mubr.bf16.mxu0 0
      %2358 = vmatmul.mubr.bf16.gmra.mxu0 %v2275
      %v2359 = vpop.f32.mrf.mxu0
      %v2360 = vadd.f32 %v2239, %v2359
      %v2361 = vpop.f32.mrf.mxu0
      %v2362 = vpop.f32.mrf.mxu0
      %v2363 = vadd.f32 %v2239, %v2362
      %v2364 = vpop.f32.mrf.mxu0
      %2365 = vmatprep.mubr.bf16.mxu0 0
      %2366 = vmatmul.mubr.bf16.gmra.mxu0 %v2278
      %v2367 = vpop.f32.mrf.mxu0
      %v2368 = vadd.f32 %v2239, %v2367
      %v2369 = vpop.f32.mrf.mxu0
      %v2370 = vpop.f32.mrf.mxu0
      %v2371 = vadd.f32 %v2239, %v2370
      %v2372 = vpop.f32.mrf.mxu0
      %2373 = vmatprep.mubr.bf16.mxu0 0
      %2374 = vmatmul.mubr.bf16.gmra.mxu0 %v2281
      %v2375 = vpop.f32.mrf.mxu0
      %v2376 = vadd.f32 %v2239, %v2375
      %v2377 = vpop.f32.mrf.mxu0
      %v2378 = vpop.f32.mrf.mxu0
      %v2379 = vadd.f32 %v2239, %v2378
      %v2380 = vpop.f32.mrf.mxu0
      %2381 = vmatprep.mubr.bf16.mxu0 0
      %2382 = vmatmul.mubr.bf16.gmra.mxu0 %v2284
      %v2383 = vpop.f32.mrf.mxu0
      %v2384 = vadd.f32 %v2239, %v2383
      %v2385 = vpop.f32.mrf.mxu0
      %v2386 = vpop.f32.mrf.mxu0
      %v2387 = vadd.f32 %v2239, %v2386
      %v2388 = vpop.f32.mrf.mxu0
      %2389 = vmatprep.mubr.bf16.mxu0 0
      %2390 = vmatmul.mubr.bf16.gmra.mxu0 %v2287
      %v2391 = vpop.f32.mrf.mxu0
      %v2392 = vadd.f32 %v2239, %v2391
      %v2393 = vpop.f32.mrf.mxu0
      %v2394 = vpop.f32.mrf.mxu0
      %v2395 = vadd.f32 %v2239, %v2394
      %v2396 = vpop.f32.mrf.mxu0
      %2397 = vmatprep.mubr.bf16.mxu0 0
      %2398 = vmatmul.mubr.bf16.gmra.mxu0 %v2290
      %v2399 = vpop.f32.mrf.mxu0
      %v2400 = vadd.f32 %v2239, %v2399
      %v2401 = vpop.f32.mrf.mxu0
      %v2402 = vpop.f32.mrf.mxu0
      %v2403 = vadd.f32 %v2239, %v2402
      %v2404 = vpop.f32.mrf.mxu0
      %2405 = vmatprep.mubr.bf16.mxu0 0
      %2406 = vmatmul.mubr.bf16.gmra.mxu0 %v2293
      %v2407 = vpop.f32.mrf.mxu0
      %v2408 = vadd.f32 %v2239, %v2407
      %v2409 = vpop.f32.mrf.mxu0
      %v2410 = vpop.f32.mrf.mxu0
      %v2411 = vadd.f32 %v2239, %v2410
      %v2412 = vpop.f32.mrf.mxu0
      %2413 = vmatprep.mubr.bf16.mxu0 0
      %2414 = vmatmul.mubr.bf16.gmra.mxu0 %v2296
      %v2415 = vpop.f32.mrf.mxu0
      %v2416 = vadd.f32 %v2239, %v2415
      %v2417 = vpop.f32.mrf.mxu0
      %v2418 = vpop.f32.mrf.mxu0
      %v2419 = vadd.f32 %v2239, %v2418
      %v2420 = vpop.f32.mrf.mxu0
      %2421 = vmatprep.mubr.bf16.mxu0 0
      %2422 = vmatmul.mubr.bf16.gmra.mxu0 %v2299
      %v2423 = vpop.f32.mrf.mxu0
      %v2424 = vadd.f32 %v2239, %v2423
      %v2425 = vpop.f32.mrf.mxu0
      %v2426 = vpop.f32.mrf.mxu0
      %v2427 = vadd.f32 %v2239, %v2426
      %v2428 = vpop.f32.mrf.mxu0
      %2429 = vdwg.mxu0
      %v2430 = vmul.f32 %v2336, 0.5
      %v2431 = vmul.f32 %v2339, 0.5
      %v2432 = vmul.f32 %v2344, 0.5
      %v2433 = vmul.f32 %v2347, 0.5
      %v2434 = vmul.f32 %v2352, 0.5
      %v2435 = vmul.f32 %v2355, 0.5
      %v2436 = vmul.f32 %v2360, 0.5
      %v2437 = vmul.f32 %v2363, 0.5
      %v2438 = vmul.f32 %v2368, 0.5
      %v2439 = vmul.f32 %v2371, 0.5
      %v2440 = vmul.f32 %v2376, 0.5
      %v2441 = vmul.f32 %v2379, 0.5
      %v2442 = vmul.f32 %v2384, 0.5
      %v2443 = vmul.f32 %v2387, 0.5
      %v2444 = vmul.f32 %v2392, 0.5
      %v2445 = vmul.f32 %v2395, 0.5
      %v2446 = vmul.f32 %v2400, 0.5
      %v2447 = vmul.f32 %v2403, 0.5
      %v2448 = vmul.f32 %v2408, 0.5
      %v2449 = vmul.f32 %v2411, 0.5
      %v2450 = vmul.f32 %v2416, 0.5
      %v2451 = vmul.f32 %v2419, 0.5
      %v2452 = vmul.f32 %v2424, 0.5
      %v2453 = vmul.f32 %v2427, 0.5
      %v2454 = vtanh.pop %v2430
      %v2455 = vtanh.pop %v2431
      %v2456 = vtanh.pop %v2432
      %v2457 = vtanh.pop %v2433
      %v2458 = vtanh.pop %v2434
      %v2459 = vtanh.pop %v2435
      %v2460 = vtanh.pop %v2436
      %v2461 = vtanh.pop %v2437
      %v2462 = vtanh.pop %v2438
      %v2463 = vtanh.pop %v2439
      %v2464 = vtanh.pop %v2440
      %v2465 = vtanh.pop %v2441
      %v2466 = vtanh.pop %v2442
      %v2467 = vtanh.pop %v2443
      %v2468 = vtanh.pop %v2444
      %v2469 = vtanh.pop %v2445
      %v2470 = vtanh.pop %v2446
      %v2471 = vtanh.pop %v2447
      %v2472 = vtanh.pop %v2448
      %v2473 = vtanh.pop %v2449
      %v2474 = vtanh.pop %v2450
      %v2475 = vtanh.pop %v2451
      %v2476 = vtanh.pop %v2452
      %v2477 = vtanh.pop %v2453
      %v2478 = vmul.f32 %v2454, 0.5
      %v2479 = vmul.f32 %v2455, 0.5
      %v2480 = vmul.f32 %v2456, 0.5
      %v2481 = vmul.f32 %v2457, 0.5
      %v2482 = vmul.f32 %v2458, 0.5
      %v2483 = vmul.f32 %v2459, 0.5
      %v2484 = vmul.f32 %v2460, 0.5
      %v2485 = vmul.f32 %v2461, 0.5
      %v2486 = vmul.f32 %v2462, 0.5
      %v2487 = vmul.f32 %v2463, 0.5
      %v2488 = vmul.f32 %v2464, 0.5
      %v2489 = vmul.f32 %v2465, 0.5
      %v2490 = vmul.f32 %v2466, 0.5
      %v2491 = vmul.f32 %v2467, 0.5
      %v2492 = vmul.f32 %v2468, 0.5
      %v2493 = vmul.f32 %v2469, 0.5
      %v2494 = vmul.f32 %v2470, 0.5
      %v2495 = vmul.f32 %v2471, 0.5
      %v2496 = vmul.f32 %v2472, 0.5
      %v2497 = vmul.f32 %v2473, 0.5
      %v2498 = vmul.f32 %v2474, 0.5
      %v2499 = vmul.f32 %v2475, 0.5
      %v2500 = vmul.f32 %v2476, 0.5
      %v2501 = vmul.f32 %v2477, 0.5
      %v2502 = vadd.f32 %v2478, 0.5
      %v2503 = vadd.f32 %v2479, 0.5
      %v2504 = vadd.f32 %v2480, 0.5
      %v2505 = vadd.f32 %v2481, 0.5
      %v2506 = vadd.f32 %v2482, 0.5
      %v2507 = vadd.f32 %v2483, 0.5
      %v2508 = vadd.f32 %v2484, 0.5
      %v2509 = vadd.f32 %v2485, 0.5
      %v2510 = vadd.f32 %v2486, 0.5
      %v2511 = vadd.f32 %v2487, 0.5
      %v2512 = vadd.f32 %v2488, 0.5
      %v2513 = vadd.f32 %v2489, 0.5
      %v2514 = vadd.f32 %v2490, 0.5
      %v2515 = vadd.f32 %v2491, 0.5
      %v2516 = vadd.f32 %v2492, 0.5
      %v2517 = vadd.f32 %v2493, 0.5
      %v2518 = vadd.f32 %v2494, 0.5
      %v2519 = vadd.f32 %v2495, 0.5
      %v2520 = vadd.f32 %v2496, 0.5
      %v2521 = vadd.f32 %v2497, 0.5
      %v2522 = vadd.f32 %v2498, 0.5
      %v2523 = vadd.f32 %v2499, 0.5
      %v2524 = vadd.f32 %v2500, 0.5
      %v2525 = vadd.f32 %v2501, 0.5
      %v2526 = vmul.f32 %v2188, %v2502
      %v2527 = vmul.f32 %v2189, %v2503
      %v2528 = vmul.f32 %v2190, %v2504
      %v2529 = vmul.f32 %v2191, %v2505
      %v2530 = vmul.f32 %v2192, %v2506
      %v2531 = vmul.f32 %v2193, %v2507
      %v2532 = vmul.f32 %v2194, %v2508
      %v2533 = vmul.f32 %v2195, %v2509
      %v2534 = vmul.f32 %v2196, %v2510
      %v2535 = vmul.f32 %v2197, %v2511
      %v2536 = vmul.f32 %v2198, %v2512
      %v2537 = vmul.f32 %v2199, %v2513
      %v2538 = vmul.f32 %v2200, %v2514
      %v2539 = vmul.f32 %v2201, %v2515
      %v2540 = vmul.f32 %v2202, %v2516
      %v2541 = vmul.f32 %v2203, %v2517
      %v2542 = vmul.f32 %v2204, %v2518
      %v2543 = vmul.f32 %v2205, %v2519
      %v2544 = vmul.f32 %v2206, %v2520
      %v2545 = vmul.f32 %v2207, %v2521
      %v2546 = vmul.f32 %v2208, %v2522
      %v2547 = vmul.f32 %v2209, %v2523
      %v2548 = vmul.f32 %v2210, %v2524
      %v2549 = vmul.f32 %v2211, %v2525
      %v2550 = vpack.c.bf16 %v2527, %v2526
      %v2551 = vpack.c.bf16 %v2529, %v2528
      %v2552 = vpack.c.bf16 %v2531, %v2530
      %v2553 = vpack.c.bf16 %v2533, %v2532
      %v2554 = vpack.c.bf16 %v2535, %v2534
      %v2555 = vpack.c.bf16 %v2537, %v2536
      %v2556 = vpack.c.bf16 %v2539, %v2538
      %v2557 = vpack.c.bf16 %v2541, %v2540
      %v2558 = vpack.c.bf16 %v2543, %v2542
      %v2559 = vpack.c.bf16 %v2545, %v2544
      %v2560 = vpack.c.bf16 %v2547, %v2546
      %v2561 = vpack.c.bf16 %v2549, %v2548
      %s2562 = scalar_lea.vmem %s3, 64
      %v2563 = vld [vmem:[%s2562] sm:$0xf]
      %v2564 = vld [vmem:[%s2562 + $0x4] sm:$0xf]
      %v2565 = vld [vmem:[%s2562 + $0x8] sm:$0xf]
      %v2566 = vld [vmem:[%s2562 + $0xc] sm:$0xf]
      %v2567 = vld [vmem:[%s2562 + $0x10] sm:$0xf]
      %v2568 = vld [vmem:[%s2562 + $0x14] sm:$0xf]
      %v2569 = vld [vmem:[%s2562 + $0x18] sm:$0xf]
      %v2570 = vld [vmem:[%s2562 + $0x1c] sm:$0xf]
      %s2571 = scalar_lea.vmem %s4, 2
      %v2572 = vld [vmem:[%s2571] sm:$0x1]
      %v2574 = vlaneseq
      %v2575 = vshrl.u32 %v2574, 7
      %v2576 = vsub.s32 0, %v2575
      %v2577 = vrot.slane %v2572, %v2576
      %v2587 = vunpack.c.l.b16 %v2563
      %v2588 = vunpack.c.l.b16 %v2564
      %v2589 = vunpack.c.l.b16 %v2565
      %v2590 = vunpack.c.l.b16 %v2566
      %v2591 = vunpack.c.l.b16 %v2567
      %v2592 = vunpack.c.l.b16 %v2568
      %v2593 = vunpack.c.l.b16 %v2569
      %v2594 = vunpack.c.l.b16 %v2570
      %v2595 = vpack.c.b16 %v2588, %v2587
      %v2596 = vpack.c.b16 %v2590, %v2589
      %v2597 = vpack.c.b16 %v2592, %v2591
      %v2598 = vpack.c.b16 %v2594, %v2593
      %v2604 = vsel %vm1926, %v2550, 0
      %v2607 = vsel %vm1926, %v2551, 0
      %v2610 = vsel %vm1926, %v2552, 0
      %v2613 = vsel %vm1926, %v2553, 0
      %v2616 = vsel %vm1926, %v2554, 0
      %v2619 = vsel %vm1926, %v2555, 0
      %v2622 = vsel %vm1926, %v2556, 0
      %v2625 = vsel %vm1926, %v2557, 0
      %v2628 = vsel %vm1926, %v2558, 0
      %v2631 = vsel %vm1926, %v2559, 0
      %v2634 = vsel %vm1926, %v2560, 0
      %v2637 = vsel %vm1926, %v2561, 0
      %2639 = vmatprep.subr.bf16.mxu0 0
      %2640 = vmatpush1.bf16.msra.mxu0 0
      %2641 = vmatprep.subr.bf16.mxu0 0
      %2642 = vmatpush1.bf16.msra.mxu0 0
      %2643 = vmatprep.subr.bf16.mxu0 0
      %2644 = vmatpush1.bf16.msra.mxu0 0
      %2645 = vmatprep.subr.bf16.mxu0 0
      %2646 = vmatpush1.bf16.msra.mxu0 0
      %2647 = vmatprep.subr.bf16.mxu0 0
      %2648 = vmatpush1.bf16.msra.mxu0 %v2598
      %2649 = vmatprep.subr.bf16.mxu0 0
      %2650 = vmatpush1.bf16.msra.mxu0 %v2597
      %2651 = vmatprep.subr.bf16.mxu0 0
      %2652 = vmatpush1.bf16.msra.mxu0 %v2596
      %2653 = vmatprep.subr.bf16.mxu0 0
      %2654 = vmatpush1.bf16.msra.mxu0 %v2595
      %2655 = vmatprep.subr.bf16.mxu0 0
      %2656 = vmatpush2.bf16.msra.mxu0 0
      %2657 = vmatprep.subr.bf16.mxu0 0
      %2658 = vmatpush2.bf16.msra.mxu0 0
      %2659 = vmatprep.subr.bf16.mxu0 0
      %2660 = vmatpush2.bf16.msra.mxu0 0
      %2661 = vmatprep.subr.bf16.mxu0 0
      %2662 = vmatpush2.bf16.msra.mxu0 0
      %2663 = vmatprep.subr.bf16.mxu0 0
      %2664 = vmatpush2.bf16.msra.mxu0 0
      %2665 = vmatprep.subr.bf16.mxu0 0
      %2666 = vmatpush2.bf16.msra.mxu0 0
      %2667 = vmatprep.subr.bf16.mxu0 0
      %2668 = vmatpush2.bf16.msra.mxu0 0
      %2669 = vmatprep.subr.bf16.mxu0 0
      %2670 = vmatpush2.bf16.msra.mxu0 0
      %2671 = vmatprep.mubr.bf16.mxu0 0
      %2672 = vmatmul.mubr.bf16.gmra.mxu0 %v2604
      %v2673 = vpop.f32.mrf.mxu0
      %v2674 = vadd.f32 %v2577, %v2673
      %v2675 = vpop.f32.mrf.mxu0
      %v2676 = vpop.f32.mrf.mxu0
      %v2677 = vadd.f32 %v2577, %v2676
      %v2678 = vpop.f32.mrf.mxu0
      %2679 = vmatprep.mubr.bf16.mxu0 0
      %2680 = vmatmul.mubr.bf16.gmra.mxu0 %v2607
      %v2681 = vpop.f32.mrf.mxu0
      %v2682 = vadd.f32 %v2577, %v2681
      %v2683 = vpop.f32.mrf.mxu0
      %v2684 = vpop.f32.mrf.mxu0
      %v2685 = vadd.f32 %v2577, %v2684
      %v2686 = vpop.f32.mrf.mxu0
      %2687 = vmatprep.mubr.bf16.mxu0 0
      %2688 = vmatmul.mubr.bf16.gmra.mxu0 %v2610
      %v2689 = vpop.f32.mrf.mxu0
      %v2690 = vadd.f32 %v2577, %v2689
      %v2691 = vpop.f32.mrf.mxu0
      %v2692 = vpop.f32.mrf.mxu0
      %v2693 = vadd.f32 %v2577, %v2692
      %v2694 = vpop.f32.mrf.mxu0
      %2695 = vmatprep.mubr.bf16.mxu0 0
      %2696 = vmatmul.mubr.bf16.gmra.mxu0 %v2613
      %v2697 = vpop.f32.mrf.mxu0
      %v2698 = vadd.f32 %v2577, %v2697
      %v2699 = vpop.f32.mrf.mxu0
      %v2700 = vpop.f32.mrf.mxu0
      %v2701 = vadd.f32 %v2577, %v2700
      %v2702 = vpop.f32.mrf.mxu0
      %2703 = vmatprep.mubr.bf16.mxu0 0
      %2704 = vmatmul.mubr.bf16.gmra.mxu0 %v2616
      %v2705 = vpop.f32.mrf.mxu0
      %v2706 = vadd.f32 %v2577, %v2705
      %v2707 = vpop.f32.mrf.mxu0
      %v2708 = vpop.f32.mrf.mxu0
      %v2709 = vadd.f32 %v2577, %v2708
      %v2710 = vpop.f32.mrf.mxu0
      %2711 = vmatprep.mubr.bf16.mxu0 0
      %2712 = vmatmul.mubr.bf16.gmra.mxu0 %v2619
      %v2713 = vpop.f32.mrf.mxu0
      %v2714 = vadd.f32 %v2577, %v2713
      %v2715 = vpop.f32.mrf.mxu0
      %v2716 = vpop.f32.mrf.mxu0
      %v2717 = vadd.f32 %v2577, %v2716
      %v2718 = vpop.f32.mrf.mxu0
      %2719 = vmatprep.mubr.bf16.mxu0 0
      %2720 = vmatmul.mubr.bf16.gmra.mxu0 %v2622
      %v2721 = vpop.f32.mrf.mxu0
      %v2722 = vadd.f32 %v2577, %v2721
      %v2723 = vpop.f32.mrf.mxu0
      %v2724 = vpop.f32.mrf.mxu0
      %v2725 = vadd.f32 %v2577, %v2724
      %v2726 = vpop.f32.mrf.mxu0
      %2727 = vmatprep.mubr.bf16.mxu0 0
      %2728 = vmatmul.mubr.bf16.gmra.mxu0 %v2625
      %v2729 = vpop.f32.mrf.mxu0
      %v2730 = vadd.f32 %v2577, %v2729
      %v2731 = vpop.f32.mrf.mxu0
      %v2732 = vpop.f32.mrf.mxu0
      %v2733 = vadd.f32 %v2577, %v2732
      %v2734 = vpop.f32.mrf.mxu0
      %2735 = vmatprep.mubr.bf16.mxu0 0
      %2736 = vmatmul.mubr.bf16.gmra.mxu0 %v2628
      %v2737 = vpop.f32.mrf.mxu0
      %v2738 = vadd.f32 %v2577, %v2737
      %v2739 = vpop.f32.mrf.mxu0
      %v2740 = vpop.f32.mrf.mxu0
      %v2741 = vadd.f32 %v2577, %v2740
      %v2742 = vpop.f32.mrf.mxu0
      %2743 = vmatprep.mubr.bf16.mxu0 0
      %2744 = vmatmul.mubr.bf16.gmra.mxu0 %v2631
      %v2745 = vpop.f32.mrf.mxu0
      %v2746 = vadd.f32 %v2577, %v2745
      %v2747 = vpop.f32.mrf.mxu0
      %v2748 = vpop.f32.mrf.mxu0
      %v2749 = vadd.f32 %v2577, %v2748
      %v2750 = vpop.f32.mrf.mxu0
      %2751 = vmatprep.mubr.bf16.mxu0 0
      %2752 = vmatmul.mubr.bf16.gmra.mxu0 %v2634
      %v2753 = vpop.f32.mrf.mxu0
      %v2754 = vadd.f32 %v2577, %v2753
      %v2755 = vpop.f32.mrf.mxu0
      %v2756 = vpop.f32.mrf.mxu0
      %v2757 = vadd.f32 %v2577, %v2756
      %v2758 = vpop.f32.mrf.mxu0
      %2759 = vmatprep.mubr.bf16.mxu0 0
      %2760 = vmatmul.mubr.bf16.gmra.mxu0 %v2637
      %v2761 = vpop.f32.mrf.mxu0
      %v2762 = vadd.f32 %v2577, %v2761
      %v2763 = vpop.f32.mrf.mxu0
      %v2764 = vpop.f32.mrf.mxu0
      %v2765 = vadd.f32 %v2577, %v2764
      %v2766 = vpop.f32.mrf.mxu0
      %2767 = vdwg.mxu0
      %v2768 = vmul.f32 %v2674, 0.5
      %v2769 = vmul.f32 %v2677, 0.5
      %v2770 = vmul.f32 %v2682, 0.5
      %v2771 = vmul.f32 %v2685, 0.5
      %v2772 = vmul.f32 %v2690, 0.5
      %v2773 = vmul.f32 %v2693, 0.5
      %v2774 = vmul.f32 %v2698, 0.5
      %v2775 = vmul.f32 %v2701, 0.5
      %v2776 = vmul.f32 %v2706, 0.5
      %v2777 = vmul.f32 %v2709, 0.5
      %v2778 = vmul.f32 %v2714, 0.5
      %v2779 = vmul.f32 %v2717, 0.5
      %v2780 = vmul.f32 %v2722, 0.5
      %v2781 = vmul.f32 %v2725, 0.5
      %v2782 = vmul.f32 %v2730, 0.5
      %v2783 = vmul.f32 %v2733, 0.5
      %v2784 = vmul.f32 %v2738, 0.5
      %v2785 = vmul.f32 %v2741, 0.5
      %v2786 = vmul.f32 %v2746, 0.5
      %v2787 = vmul.f32 %v2749, 0.5
      %v2788 = vmul.f32 %v2754, 0.5
      %v2789 = vmul.f32 %v2757, 0.5
      %v2790 = vmul.f32 %v2762, 0.5
      %v2791 = vmul.f32 %v2765, 0.5
      %v2792 = vtanh.pop %v2768
      %v2793 = vtanh.pop %v2769
      %v2794 = vtanh.pop %v2770
      %v2795 = vtanh.pop %v2771
      %v2796 = vtanh.pop %v2772
      %v2797 = vtanh.pop %v2773
      %v2798 = vtanh.pop %v2774
      %v2799 = vtanh.pop %v2775
      %v2800 = vtanh.pop %v2776
      %v2801 = vtanh.pop %v2777
      %v2802 = vtanh.pop %v2778
      %v2803 = vtanh.pop %v2779
      %v2804 = vtanh.pop %v2780
      %v2805 = vtanh.pop %v2781
      %v2806 = vtanh.pop %v2782
      %v2807 = vtanh.pop %v2783
      %v2808 = vtanh.pop %v2784
      %v2809 = vtanh.pop %v2785
      %v2810 = vtanh.pop %v2786
      %v2811 = vtanh.pop %v2787
      %v2812 = vtanh.pop %v2788
      %v2813 = vtanh.pop %v2789
      %v2814 = vtanh.pop %v2790
      %v2815 = vtanh.pop %v2791
      %v2816 = vmul.f32 %v2792, 0.5
      %v2817 = vmul.f32 %v2793, 0.5
      %v2818 = vmul.f32 %v2794, 0.5
      %v2819 = vmul.f32 %v2795, 0.5
      %v2820 = vmul.f32 %v2796, 0.5
      %v2821 = vmul.f32 %v2797, 0.5
      %v2822 = vmul.f32 %v2798, 0.5
      %v2823 = vmul.f32 %v2799, 0.5
      %v2824 = vmul.f32 %v2800, 0.5
      %v2825 = vmul.f32 %v2801, 0.5
      %v2826 = vmul.f32 %v2802, 0.5
      %v2827 = vmul.f32 %v2803, 0.5
      %v2828 = vmul.f32 %v2804, 0.5
      %v2829 = vmul.f32 %v2805, 0.5
      %v2830 = vmul.f32 %v2806, 0.5
      %v2831 = vmul.f32 %v2807, 0.5
      %v2832 = vmul.f32 %v2808, 0.5
      %v2833 = vmul.f32 %v2809, 0.5
      %v2834 = vmul.f32 %v2810, 0.5
      %v2835 = vmul.f32 %v2811, 0.5
      %v2836 = vmul.f32 %v2812, 0.5
      %v2837 = vmul.f32 %v2813, 0.5
      %v2838 = vmul.f32 %v2814, 0.5
      %v2839 = vmul.f32 %v2815, 0.5
      %v2840 = vadd.f32 %v2816, 0.5
      %v2841 = vadd.f32 %v2817, 0.5
      %v2842 = vadd.f32 %v2818, 0.5
      %v2843 = vadd.f32 %v2819, 0.5
      %v2844 = vadd.f32 %v2820, 0.5
      %v2845 = vadd.f32 %v2821, 0.5
      %v2846 = vadd.f32 %v2822, 0.5
      %v2847 = vadd.f32 %v2823, 0.5
      %v2848 = vadd.f32 %v2824, 0.5
      %v2849 = vadd.f32 %v2825, 0.5
      %v2850 = vadd.f32 %v2826, 0.5
      %v2851 = vadd.f32 %v2827, 0.5
      %v2852 = vadd.f32 %v2828, 0.5
      %v2853 = vadd.f32 %v2829, 0.5
      %v2854 = vadd.f32 %v2830, 0.5
      %v2855 = vadd.f32 %v2831, 0.5
      %v2856 = vadd.f32 %v2832, 0.5
      %v2857 = vadd.f32 %v2833, 0.5
      %v2858 = vadd.f32 %v2834, 0.5
      %v2859 = vadd.f32 %v2835, 0.5
      %v2860 = vadd.f32 %v2836, 0.5
      %v2861 = vadd.f32 %v2837, 0.5
      %v2862 = vadd.f32 %v2838, 0.5
      %v2863 = vadd.f32 %v2839, 0.5
      %v2864 = vmul.f32 %v2526, %v2840
      %v2865 = vmul.f32 %v2527, %v2841
      %v2866 = vmul.f32 %v2528, %v2842
      %v2867 = vmul.f32 %v2529, %v2843
      %v2868 = vmul.f32 %v2530, %v2844
      %v2869 = vmul.f32 %v2531, %v2845
      %v2870 = vmul.f32 %v2532, %v2846
      %v2871 = vmul.f32 %v2533, %v2847
      %v2872 = vmul.f32 %v2534, %v2848
      %v2873 = vmul.f32 %v2535, %v2849
      %v2874 = vmul.f32 %v2536, %v2850
      %v2875 = vmul.f32 %v2537, %v2851
      %v2876 = vmul.f32 %v2538, %v2852
      %v2877 = vmul.f32 %v2539, %v2853
      %v2878 = vmul.f32 %v2540, %v2854
      %v2879 = vmul.f32 %v2541, %v2855
      %v2880 = vmul.f32 %v2542, %v2856
      %v2881 = vmul.f32 %v2543, %v2857
      %v2882 = vmul.f32 %v2544, %v2858
      %v2883 = vmul.f32 %v2545, %v2859
      %v2884 = vmul.f32 %v2546, %v2860
      %v2885 = vmul.f32 %v2547, %v2861
      %v2886 = vmul.f32 %v2548, %v2862
      %v2887 = vmul.f32 %v2549, %v2863
      %v2888 = vpack.c.bf16 %v2865, %v2864
      %v2889 = vpack.c.bf16 %v2867, %v2866
      %v2890 = vpack.c.bf16 %v2869, %v2868
      %v2891 = vpack.c.bf16 %v2871, %v2870
      %v2892 = vpack.c.bf16 %v2873, %v2872
      %v2893 = vpack.c.bf16 %v2875, %v2874
      %v2894 = vpack.c.bf16 %v2877, %v2876
      %v2895 = vpack.c.bf16 %v2879, %v2878
      %v2896 = vpack.c.bf16 %v2881, %v2880
      %v2897 = vpack.c.bf16 %v2883, %v2882
      %v2898 = vpack.c.bf16 %v2885, %v2884
      %v2899 = vpack.c.bf16 %v2887, %v2886
      %s2900 = scalar_lea.vmem %s3, 96
      %v2901 = vld [vmem:[%s2900] sm:$0xf]
      %v2902 = vld [vmem:[%s2900 + $0x4] sm:$0xf]
      %v2903 = vld [vmem:[%s2900 + $0x8] sm:$0xf]
      %v2904 = vld [vmem:[%s2900 + $0xc] sm:$0xf]
      %v2905 = vld [vmem:[%s2900 + $0x10] sm:$0xf]
      %v2906 = vld [vmem:[%s2900 + $0x14] sm:$0xf]
      %v2907 = vld [vmem:[%s2900 + $0x18] sm:$0xf]
      %v2908 = vld [vmem:[%s2900 + $0x1c] sm:$0xf]
      %s2909 = scalar_lea.vmem %s4, 3
      %v2910 = vld [vmem:[%s2909] sm:$0x1]
      %v2912 = vlaneseq
      %v2913 = vshrl.u32 %v2912, 7
      %v2914 = vsub.s32 0, %v2913
      %v2915 = vrot.slane %v2910, %v2914
      %v2925 = vunpack.c.l.b16 %v2901
      %v2926 = vunpack.c.l.b16 %v2902
      %v2927 = vunpack.c.l.b16 %v2903
      %v2928 = vunpack.c.l.b16 %v2904
      %v2929 = vunpack.c.l.b16 %v2905
      %v2930 = vunpack.c.l.b16 %v2906
      %v2931 = vunpack.c.l.b16 %v2907
      %v2932 = vunpack.c.l.b16 %v2908
      %v2933 = vpack.c.b16 %v2926, %v2925
      %v2934 = vpack.c.b16 %v2928, %v2927
      %v2935 = vpack.c.b16 %v2930, %v2929
      %v2936 = vpack.c.b16 %v2932, %v2931
      %v2942 = vsel %vm1926, %v2888, 0
      %v2945 = vsel %vm1926, %v2889, 0
      %v2948 = vsel %vm1926, %v2890, 0
      %v2951 = vsel %vm1926, %v2891, 0
      %v2954 = vsel %vm1926, %v2892, 0
      %v2957 = vsel %vm1926, %v2893, 0
      %v2960 = vsel %vm1926, %v2894, 0
      %v2963 = vsel %vm1926, %v2895, 0
      %v2966 = vsel %vm1926, %v2896, 0
      %v2969 = vsel %vm1926, %v2897, 0
      %v2972 = vsel %vm1926, %v2898, 0
      %v2975 = vsel %vm1926, %v2899, 0
      %2977 = vmatprep.subr.bf16.mxu0 0
      %2978 = vmatpush1.bf16.msra.mxu0 0
      %2979 = vmatprep.subr.bf16.mxu0 0
      %2980 = vmatpush1.bf16.msra.mxu0 0
      %2981 = vmatprep.subr.bf16.mxu0 0
      %2982 = vmatpush1.bf16.msra.mxu0 0
      %2983 = vmatprep.subr.bf16.mxu0 0
      %2984 = vmatpush1.bf16.msra.mxu0 0
      %2985 = vmatprep.subr.bf16.mxu0 0
      %2986 = vmatpush1.bf16.msra.mxu0 %v2936
      %2987 = vmatprep.subr.bf16.mxu0 0
      %2988 = vmatpush1.bf16.msra.mxu0 %v2935
      %2989 = vmatprep.subr.bf16.mxu0 0
      %2990 = vmatpush1.bf16.msra.mxu0 %v2934
      %2991 = vmatprep.subr.bf16.mxu0 0
      %2992 = vmatpush1.bf16.msra.mxu0 %v2933
      %2993 = vmatprep.subr.bf16.mxu0 0
      %2994 = vmatpush2.bf16.msra.mxu0 0
      %2995 = vmatprep.subr.bf16.mxu0 0
      %2996 = vmatpush2.bf16.msra.mxu0 0
      %2997 = vmatprep.subr.bf16.mxu0 0
      %2998 = vmatpush2.bf16.msra.mxu0 0
      %2999 = vmatprep.subr.bf16.mxu0 0
      %3000 = vmatpush2.bf16.msra.mxu0 0
      %3001 = vmatprep.subr.bf16.mxu0 0
      %3002 = vmatpush2.bf16.msra.mxu0 0
      %3003 = vmatprep.subr.bf16.mxu0 0
      %3004 = vmatpush2.bf16.msra.mxu0 0
      %3005 = vmatprep.subr.bf16.mxu0 0
      %3006 = vmatpush2.bf16.msra.mxu0 0
      %3007 = vmatprep.subr.bf16.mxu0 0
      %3008 = vmatpush2.bf16.msra.mxu0 0
      %3009 = vmatprep.mubr.bf16.mxu0 0
      %3010 = vmatmul.mubr.bf16.gmra.mxu0 %v2942
      %v3011 = vpop.f32.mrf.mxu0
      %v3012 = vadd.f32 %v2915, %v3011
      %v3013 = vpop.f32.mrf.mxu0
      %v3014 = vpop.f32.mrf.mxu0
      %v3015 = vadd.f32 %v2915, %v3014
      %v3016 = vpop.f32.mrf.mxu0
      %3017 = vmatprep.mubr.bf16.mxu0 0
      %3018 = vmatmul.mubr.bf16.gmra.mxu0 %v2945
      %v3019 = vpop.f32.mrf.mxu0
      %v3020 = vadd.f32 %v2915, %v3019
      %v3021 = vpop.f32.mrf.mxu0
      %v3022 = vpop.f32.mrf.mxu0
      %v3023 = vadd.f32 %v2915, %v3022
      %v3024 = vpop.f32.mrf.mxu0
      %3025 = vmatprep.mubr.bf16.mxu0 0
      %3026 = vmatmul.mubr.bf16.gmra.mxu0 %v2948
      %v3027 = vpop.f32.mrf.mxu0
      %v3028 = vadd.f32 %v2915, %v3027
      %v3029 = vpop.f32.mrf.mxu0
      %v3030 = vpop.f32.mrf.mxu0
      %v3031 = vadd.f32 %v2915, %v3030
      %v3032 = vpop.f32.mrf.mxu0
      %3033 = vmatprep.mubr.bf16.mxu0 0
      %3034 = vmatmul.mubr.bf16.gmra.mxu0 %v2951
      %v3035 = vpop.f32.mrf.mxu0
      %v3036 = vadd.f32 %v2915, %v3035
      %v3037 = vpop.f32.mrf.mxu0
      %v3038 = vpop.f32.mrf.mxu0
      %v3039 = vadd.f32 %v2915, %v3038
      %v3040 = vpop.f32.mrf.mxu0
      %3041 = vmatprep.mubr.bf16.mxu0 0
      %3042 = vmatmul.mubr.bf16.gmra.mxu0 %v2954
      %v3043 = vpop.f32.mrf.mxu0
      %v3044 = vadd.f32 %v2915, %v3043
      %v3045 = vpop.f32.mrf.mxu0
      %v3046 = vpop.f32.mrf.mxu0
      %v3047 = vadd.f32 %v2915, %v3046
      %v3048 = vpop.f32.mrf.mxu0
      %3049 = vmatprep.mubr.bf16.mxu0 0
      %3050 = vmatmul.mubr.bf16.gmra.mxu0 %v2957
      %v3051 = vpop.f32.mrf.mxu0
      %v3052 = vadd.f32 %v2915, %v3051
      %v3053 = vpop.f32.mrf.mxu0
      %v3054 = vpop.f32.mrf.mxu0
      %v3055 = vadd.f32 %v2915, %v3054
      %v3056 = vpop.f32.mrf.mxu0
      %3057 = vmatprep.mubr.bf16.mxu0 0
      %3058 = vmatmul.mubr.bf16.gmra.mxu0 %v2960
      %v3059 = vpop.f32.mrf.mxu0
      %v3060 = vadd.f32 %v2915, %v3059
      %v3061 = vpop.f32.mrf.mxu0
      %v3062 = vpop.f32.mrf.mxu0
      %v3063 = vadd.f32 %v2915, %v3062
      %v3064 = vpop.f32.mrf.mxu0
      %3065 = vmatprep.mubr.bf16.mxu0 0
      %3066 = vmatmul.mubr.bf16.gmra.mxu0 %v2963
      %v3067 = vpop.f32.mrf.mxu0
      %v3068 = vadd.f32 %v2915, %v3067
      %v3069 = vpop.f32.mrf.mxu0
      %v3070 = vpop.f32.mrf.mxu0
      %v3071 = vadd.f32 %v2915, %v3070
      %v3072 = vpop.f32.mrf.mxu0
      %3073 = vmatprep.mubr.bf16.mxu0 0
      %3074 = vmatmul.mubr.bf16.gmra.mxu0 %v2966
      %v3075 = vpop.f32.mrf.mxu0
      %v3076 = vadd.f32 %v2915, %v3075
      %v3077 = vpop.f32.mrf.mxu0
      %v3078 = vpop.f32.mrf.mxu0
      %v3079 = vadd.f32 %v2915, %v3078
      %v3080 = vpop.f32.mrf.mxu0
      %3081 = vmatprep.mubr.bf16.mxu0 0
      %3082 = vmatmul.mubr.bf16.gmra.mxu0 %v2969
      %v3083 = vpop.f32.mrf.mxu0
      %v3084 = vadd.f32 %v2915, %v3083
      %v3085 = vpop.f32.mrf.mxu0
      %v3086 = vpop.f32.mrf.mxu0
      %v3087 = vadd.f32 %v2915, %v3086
      %v3088 = vpop.f32.mrf.mxu0
      %3089 = vmatprep.mubr.bf16.mxu0 0
      %3090 = vmatmul.mubr.bf16.gmra.mxu0 %v2972
      %v3091 = vpop.f32.mrf.mxu0
      %v3092 = vadd.f32 %v2915, %v3091
      %v3093 = vpop.f32.mrf.mxu0
      %v3094 = vpop.f32.mrf.mxu0
      %v3095 = vadd.f32 %v2915, %v3094
      %v3096 = vpop.f32.mrf.mxu0
      %3097 = vmatprep.mubr.bf16.mxu0 0
      %3098 = vmatmul.mubr.bf16.gmra.mxu0 %v2975
      %v3099 = vpop.f32.mrf.mxu0
      %v3100 = vadd.f32 %v2915, %v3099
      %v3101 = vpop.f32.mrf.mxu0
      %v3102 = vpop.f32.mrf.mxu0
      %v3103 = vadd.f32 %v2915, %v3102
      %v3104 = vpop.f32.mrf.mxu0
      %3105 = vdwg.mxu0
      %v3106 = vmul.f32 %v3012, 0.5
      %v3107 = vmul.f32 %v3015, 0.5
      %v3108 = vmul.f32 %v3020, 0.5
      %v3109 = vmul.f32 %v3023, 0.5
      %v3110 = vmul.f32 %v3028, 0.5
      %v3111 = vmul.f32 %v3031, 0.5
      %v3112 = vmul.f32 %v3036, 0.5
      %v3113 = vmul.f32 %v3039, 0.5
      %v3114 = vmul.f32 %v3044, 0.5
      %v3115 = vmul.f32 %v3047, 0.5
      %v3116 = vmul.f32 %v3052, 0.5
      %v3117 = vmul.f32 %v3055, 0.5
      %v3118 = vmul.f32 %v3060, 0.5
      %v3119 = vmul.f32 %v3063, 0.5
      %v3120 = vmul.f32 %v3068, 0.5
      %v3121 = vmul.f32 %v3071, 0.5
      %v3122 = vmul.f32 %v3076, 0.5
      %v3123 = vmul.f32 %v3079, 0.5
      %v3124 = vmul.f32 %v3084, 0.5
      %v3125 = vmul.f32 %v3087, 0.5
      %v3126 = vmul.f32 %v3092, 0.5
      %v3127 = vmul.f32 %v3095, 0.5
      %v3128 = vmul.f32 %v3100, 0.5
      %v3129 = vmul.f32 %v3103, 0.5
      %v3130 = vtanh.pop %v3106
      %v3131 = vtanh.pop %v3107
      %v3132 = vtanh.pop %v3108
      %v3133 = vtanh.pop %v3109
      %v3134 = vtanh.pop %v3110
      %v3135 = vtanh.pop %v3111
      %v3136 = vtanh.pop %v3112
      %v3137 = vtanh.pop %v3113
      %v3138 = vtanh.pop %v3114
      %v3139 = vtanh.pop %v3115
      %v3140 = vtanh.pop %v3116
      %v3141 = vtanh.pop %v3117
      %v3142 = vtanh.pop %v3118
      %v3143 = vtanh.pop %v3119
      %v3144 = vtanh.pop %v3120
      %v3145 = vtanh.pop %v3121
      %v3146 = vtanh.pop %v3122
      %v3147 = vtanh.pop %v3123
      %v3148 = vtanh.pop %v3124
      %v3149 = vtanh.pop %v3125
      %v3150 = vtanh.pop %v3126
      %v3151 = vtanh.pop %v3127
      %v3152 = vtanh.pop %v3128
      %v3153 = vtanh.pop %v3129
      %v3154 = vmul.f32 %v3130, 0.5
      %v3155 = vmul.f32 %v3131, 0.5
      %v3156 = vmul.f32 %v3132, 0.5
      %v3157 = vmul.f32 %v3133, 0.5
      %v3158 = vmul.f32 %v3134, 0.5
      %v3159 = vmul.f32 %v3135, 0.5
      %v3160 = vmul.f32 %v3136, 0.5
      %v3161 = vmul.f32 %v3137, 0.5
      %v3162 = vmul.f32 %v3138, 0.5
      %v3163 = vmul.f32 %v3139, 0.5
      %v3164 = vmul.f32 %v3140, 0.5
      %v3165 = vmul.f32 %v3141, 0.5
      %v3166 = vmul.f32 %v3142, 0.5
      %v3167 = vmul.f32 %v3143, 0.5
      %v3168 = vmul.f32 %v3144, 0.5
      %v3169 = vmul.f32 %v3145, 0.5
      %v3170 = vmul.f32 %v3146, 0.5
      %v3171 = vmul.f32 %v3147, 0.5
      %v3172 = vmul.f32 %v3148, 0.5
      %v3173 = vmul.f32 %v3149, 0.5
      %v3174 = vmul.f32 %v3150, 0.5
      %v3175 = vmul.f32 %v3151, 0.5
      %v3176 = vmul.f32 %v3152, 0.5
      %v3177 = vmul.f32 %v3153, 0.5
      %v3178 = vadd.f32 %v3154, 0.5
      %v3179 = vadd.f32 %v3155, 0.5
      %v3180 = vadd.f32 %v3156, 0.5
      %v3181 = vadd.f32 %v3157, 0.5
      %v3182 = vadd.f32 %v3158, 0.5
      %v3183 = vadd.f32 %v3159, 0.5
      %v3184 = vadd.f32 %v3160, 0.5
      %v3185 = vadd.f32 %v3161, 0.5
      %v3186 = vadd.f32 %v3162, 0.5
      %v3187 = vadd.f32 %v3163, 0.5
      %v3188 = vadd.f32 %v3164, 0.5
      %v3189 = vadd.f32 %v3165, 0.5
      %v3190 = vadd.f32 %v3166, 0.5
      %v3191 = vadd.f32 %v3167, 0.5
      %v3192 = vadd.f32 %v3168, 0.5
      %v3193 = vadd.f32 %v3169, 0.5
      %v3194 = vadd.f32 %v3170, 0.5
      %v3195 = vadd.f32 %v3171, 0.5
      %v3196 = vadd.f32 %v3172, 0.5
      %v3197 = vadd.f32 %v3173, 0.5
      %v3198 = vadd.f32 %v3174, 0.5
      %v3199 = vadd.f32 %v3175, 0.5
      %v3200 = vadd.f32 %v3176, 0.5
      %v3201 = vadd.f32 %v3177, 0.5
      %v3202 = vmul.f32 %v2864, %v3178
      %v3203 = vmul.f32 %v2865, %v3179
      %v3204 = vmul.f32 %v2866, %v3180
      %v3205 = vmul.f32 %v2867, %v3181
      %v3206 = vmul.f32 %v2868, %v3182
      %v3207 = vmul.f32 %v2869, %v3183
      %v3208 = vmul.f32 %v2870, %v3184
      %v3209 = vmul.f32 %v2871, %v3185
      %v3210 = vmul.f32 %v2872, %v3186
      %v3211 = vmul.f32 %v2873, %v3187
      %v3212 = vmul.f32 %v2874, %v3188
      %v3213 = vmul.f32 %v2875, %v3189
      %v3214 = vmul.f32 %v2876, %v3190
      %v3215 = vmul.f32 %v2877, %v3191
      %v3216 = vmul.f32 %v2878, %v3192
      %v3217 = vmul.f32 %v2879, %v3193
      %v3218 = vmul.f32 %v2880, %v3194
      %v3219 = vmul.f32 %v2881, %v3195
      %v3220 = vmul.f32 %v2882, %v3196
      %v3221 = vmul.f32 %v2883, %v3197
      %v3222 = vmul.f32 %v2884, %v3198
      %v3223 = vmul.f32 %v2885, %v3199
      %v3224 = vmul.f32 %v2886, %v3200
      %v3225 = vmul.f32 %v2887, %v3201
      %v3226 = vpack.c.bf16 %v3203, %v3202
      %v3227 = vpack.c.bf16 %v3205, %v3204
      %v3228 = vpack.c.bf16 %v3207, %v3206
      %v3229 = vpack.c.bf16 %v3209, %v3208
      %v3230 = vpack.c.bf16 %v3211, %v3210
      %v3231 = vpack.c.bf16 %v3213, %v3212
      %v3232 = vpack.c.bf16 %v3215, %v3214
      %v3233 = vpack.c.bf16 %v3217, %v3216
      %v3234 = vpack.c.bf16 %v3219, %v3218
      %v3235 = vpack.c.bf16 %v3221, %v3220
      %v3236 = vpack.c.bf16 %v3223, %v3222
      %v3237 = vpack.c.bf16 %v3225, %v3224
      %s3238 = scalar_lea.vmem %s3, 128
      %v3239 = vld [vmem:[%s3238] sm:$0xf]
      %v3240 = vld [vmem:[%s3238 + $0x4] sm:$0xf]
      %v3241 = vld [vmem:[%s3238 + $0x8] sm:$0xf]
      %v3242 = vld [vmem:[%s3238 + $0xc] sm:$0xf]
      %v3243 = vld [vmem:[%s3238 + $0x10] sm:$0xf]
      %v3244 = vld [vmem:[%s3238 + $0x14] sm:$0xf]
      %v3245 = vld [vmem:[%s3238 + $0x18] sm:$0xf]
      %v3246 = vld [vmem:[%s3238 + $0x1c] sm:$0xf]
      %s3247 = scalar_lea.vmem %s4, 4
      %v3248 = vld [vmem:[%s3247] sm:$0x1]
      %v3250 = vlaneseq
      %v3251 = vshrl.u32 %v3250, 7
      %v3252 = vsub.s32 0, %v3251
      %v3253 = vrot.slane %v3248, %v3252
      %v3263 = vunpack.c.l.b16 %v3239
      %v3264 = vunpack.c.l.b16 %v3240
      %v3265 = vunpack.c.l.b16 %v3241
      %v3266 = vunpack.c.l.b16 %v3242
      %v3267 = vunpack.c.l.b16 %v3243
      %v3268 = vunpack.c.l.b16 %v3244
      %v3269 = vunpack.c.l.b16 %v3245
      %v3270 = vunpack.c.l.b16 %v3246
      %v3271 = vpack.c.b16 %v3264, %v3263
      %v3272 = vpack.c.b16 %v3266, %v3265
      %v3273 = vpack.c.b16 %v3268, %v3267
      %v3274 = vpack.c.b16 %v3270, %v3269
      %v3280 = vsel %vm1926, %v3226, 0
      %v3283 = vsel %vm1926, %v3227, 0
      %v3286 = vsel %vm1926, %v3228, 0
      %v3289 = vsel %vm1926, %v3229, 0
      %v3292 = vsel %vm1926, %v3230, 0
      %v3295 = vsel %vm1926, %v3231, 0
      %v3298 = vsel %vm1926, %v3232, 0
      %v3301 = vsel %vm1926, %v3233, 0
      %v3304 = vsel %vm1926, %v3234, 0
      %v3307 = vsel %vm1926, %v3235, 0
      %v3310 = vsel %vm1926, %v3236, 0
      %v3313 = vsel %vm1926, %v3237, 0
      %3315 = vmatprep.subr.bf16.mxu0 0
      %3316 = vmatpush1.bf16.msra.mxu0 0
      %3317 = vmatprep.subr.bf16.mxu0 0
      %3318 = vmatpush1.bf16.msra.mxu0 0
      %3319 = vmatprep.subr.bf16.mxu0 0
      %3320 = vmatpush1.bf16.msra.mxu0 0
      %3321 = vmatprep.subr.bf16.mxu0 0
      %3322 = vmatpush1.bf16.msra.mxu0 0
      %3323 = vmatprep.subr.bf16.mxu0 0
      %3324 = vmatpush1.bf16.msra.mxu0 %v3274
      %3325 = vmatprep.subr.bf16.mxu0 0
      %3326 = vmatpush1.bf16.msra.mxu0 %v3273
      %3327 = vmatprep.subr.bf16.mxu0 0
      %3328 = vmatpush1.bf16.msra.mxu0 %v3272
      %3329 = vmatprep.subr.bf16.mxu0 0
      %3330 = vmatpush1.bf16.msra.mxu0 %v3271
      %3331 = vmatprep.subr.bf16.mxu0 0
      %3332 = vmatpush2.bf16.msra.mxu0 0
      %3333 = vmatprep.subr.bf16.mxu0 0
      %3334 = vmatpush2.bf16.msra.mxu0 0
      %3335 = vmatprep.subr.bf16.mxu0 0
      %3336 = vmatpush2.bf16.msra.mxu0 0
      %3337 = vmatprep.subr.bf16.mxu0 0
      %3338 = vmatpush2.bf16.msra.mxu0 0
      %3339 = vmatprep.subr.bf16.mxu0 0
      %3340 = vmatpush2.bf16.msra.mxu0 0
      %3341 = vmatprep.subr.bf16.mxu0 0
      %3342 = vmatpush2.bf16.msra.mxu0 0
      %3343 = vmatprep.subr.bf16.mxu0 0
      %3344 = vmatpush2.bf16.msra.mxu0 0
      %3345 = vmatprep.subr.bf16.mxu0 0
      %3346 = vmatpush2.bf16.msra.mxu0 0
      %3347 = vmatprep.mubr.bf16.mxu0 0
      %3348 = vmatmul.mubr.bf16.gmra.mxu0 %v3280
      %v3349 = vpop.f32.mrf.mxu0
      %v3350 = vadd.f32 %v3253, %v3349
      %v3351 = vpop.f32.mrf.mxu0
      %v3352 = vpop.f32.mrf.mxu0
      %v3353 = vadd.f32 %v3253, %v3352
      %v3354 = vpop.f32.mrf.mxu0
      %3355 = vmatprep.mubr.bf16.mxu0 0
      %3356 = vmatmul.mubr.bf16.gmra.mxu0 %v3283
      %v3357 = vpop.f32.mrf.mxu0
      %v3358 = vadd.f32 %v3253, %v3357
      %v3359 = vpop.f32.mrf.mxu0
      %v3360 = vpop.f32.mrf.mxu0
      %v3361 = vadd.f32 %v3253, %v3360
      %v3362 = vpop.f32.mrf.mxu0
      %3363 = vmatprep.mubr.bf16.mxu0 0
      %3364 = vmatmul.mubr.bf16.gmra.mxu0 %v3286
      %v3365 = vpop.f32.mrf.mxu0
      %v3366 = vadd.f32 %v3253, %v3365
      %v3367 = vpop.f32.mrf.mxu0
      %v3368 = vpop.f32.mrf.mxu0
      %v3369 = vadd.f32 %v3253, %v3368
      %v3370 = vpop.f32.mrf.mxu0
      %3371 = vmatprep.mubr.bf16.mxu0 0
      %3372 = vmatmul.mubr.bf16.gmra.mxu0 %v3289
      %v3373 = vpop.f32.mrf.mxu0
      %v3374 = vadd.f32 %v3253, %v3373
      %v3375 = vpop.f32.mrf.mxu0
      %v3376 = vpop.f32.mrf.mxu0
      %v3377 = vadd.f32 %v3253, %v3376
      %v3378 = vpop.f32.mrf.mxu0
      %3379 = vmatprep.mubr.bf16.mxu0 0
      %3380 = vmatmul.mubr.bf16.gmra.mxu0 %v3292
      %v3381 = vpop.f32.mrf.mxu0
      %v3382 = vadd.f32 %v3253, %v3381
      %v3383 = vpop.f32.mrf.mxu0
      %v3384 = vpop.f32.mrf.mxu0
      %v3385 = vadd.f32 %v3253, %v3384
      %v3386 = vpop.f32.mrf.mxu0
      %3387 = vmatprep.mubr.bf16.mxu0 0
      %3388 = vmatmul.mubr.bf16.gmra.mxu0 %v3295
      %v3389 = vpop.f32.mrf.mxu0
      %v3390 = vadd.f32 %v3253, %v3389
      %v3391 = vpop.f32.mrf.mxu0
      %v3392 = vpop.f32.mrf.mxu0
      %v3393 = vadd.f32 %v3253, %v3392
      %v3394 = vpop.f32.mrf.mxu0
      %3395 = vmatprep.mubr.bf16.mxu0 0
      %3396 = vmatmul.mubr.bf16.gmra.mxu0 %v3298
      %v3397 = vpop.f32.mrf.mxu0
      %v3398 = vadd.f32 %v3253, %v3397
      %v3399 = vpop.f32.mrf.mxu0
      %v3400 = vpop.f32.mrf.mxu0
      %v3401 = vadd.f32 %v3253, %v3400
      %v3402 = vpop.f32.mrf.mxu0
      %3403 = vmatprep.mubr.bf16.mxu0 0
      %3404 = vmatmul.mubr.bf16.gmra.mxu0 %v3301
      %v3405 = vpop.f32.mrf.mxu0
      %v3406 = vadd.f32 %v3253, %v3405
      %v3407 = vpop.f32.mrf.mxu0
      %v3408 = vpop.f32.mrf.mxu0
      %v3409 = vadd.f32 %v3253, %v3408
      %v3410 = vpop.f32.mrf.mxu0
      %3411 = vmatprep.mubr.bf16.mxu0 0
      %3412 = vmatmul.mubr.bf16.gmra.mxu0 %v3304
      %v3413 = vpop.f32.mrf.mxu0
      %v3414 = vadd.f32 %v3253, %v3413
      %v3415 = vpop.f32.mrf.mxu0
      %v3416 = vpop.f32.mrf.mxu0
      %v3417 = vadd.f32 %v3253, %v3416
      %v3418 = vpop.f32.mrf.mxu0
      %3419 = vmatprep.mubr.bf16.mxu0 0
      %3420 = vmatmul.mubr.bf16.gmra.mxu0 %v3307
      %v3421 = vpop.f32.mrf.mxu0
      %v3422 = vadd.f32 %v3253, %v3421
      %v3423 = vpop.f32.mrf.mxu0
      %v3424 = vpop.f32.mrf.mxu0
      %v3425 = vadd.f32 %v3253, %v3424
      %v3426 = vpop.f32.mrf.mxu0
      %3427 = vmatprep.mubr.bf16.mxu0 0
      %3428 = vmatmul.mubr.bf16.gmra.mxu0 %v3310
      %v3429 = vpop.f32.mrf.mxu0
      %v3430 = vadd.f32 %v3253, %v3429
      %v3431 = vpop.f32.mrf.mxu0
      %v3432 = vpop.f32.mrf.mxu0
      %v3433 = vadd.f32 %v3253, %v3432
      %v3434 = vpop.f32.mrf.mxu0
      %3435 = vmatprep.mubr.bf16.mxu0 0
      %3436 = vmatmul.mubr.bf16.gmra.mxu0 %v3313
      %v3437 = vpop.f32.mrf.mxu0
      %v3438 = vadd.f32 %v3253, %v3437
      %v3439 = vpop.f32.mrf.mxu0
      %v3440 = vpop.f32.mrf.mxu0
      %v3441 = vadd.f32 %v3253, %v3440
      %v3442 = vpop.f32.mrf.mxu0
      %3443 = vdwg.mxu0
      %v3444 = vmul.f32 %v3350, 0.5
      %v3445 = vmul.f32 %v3353, 0.5
      %v3446 = vmul.f32 %v3358, 0.5
      %v3447 = vmul.f32 %v3361, 0.5
      %v3448 = vmul.f32 %v3366, 0.5
      %v3449 = vmul.f32 %v3369, 0.5
      %v3450 = vmul.f32 %v3374, 0.5
      %v3451 = vmul.f32 %v3377, 0.5
      %v3452 = vmul.f32 %v3382, 0.5
      %v3453 = vmul.f32 %v3385, 0.5
      %v3454 = vmul.f32 %v3390, 0.5
      %v3455 = vmul.f32 %v3393, 0.5
      %v3456 = vmul.f32 %v3398, 0.5
      %v3457 = vmul.f32 %v3401, 0.5
      %v3458 = vmul.f32 %v3406, 0.5
      %v3459 = vmul.f32 %v3409, 0.5
      %v3460 = vmul.f32 %v3414, 0.5
      %v3461 = vmul.f32 %v3417, 0.5
      %v3462 = vmul.f32 %v3422, 0.5
      %v3463 = vmul.f32 %v3425, 0.5
      %v3464 = vmul.f32 %v3430, 0.5
      %v3465 = vmul.f32 %v3433, 0.5
      %v3466 = vmul.f32 %v3438, 0.5
      %v3467 = vmul.f32 %v3441, 0.5
      %v3468 = vtanh.pop %v3444
      %v3469 = vtanh.pop %v3445
      %v3470 = vtanh.pop %v3446
      %v3471 = vtanh.pop %v3447
      %v3472 = vtanh.pop %v3448
      %v3473 = vtanh.pop %v3449
      %v3474 = vtanh.pop %v3450
      %v3475 = vtanh.pop %v3451
      %v3476 = vtanh.pop %v3452
      %v3477 = vtanh.pop %v3453
      %v3478 = vtanh.pop %v3454
      %v3479 = vtanh.pop %v3455
      %v3480 = vtanh.pop %v3456
      %v3481 = vtanh.pop %v3457
      %v3482 = vtanh.pop %v3458
      %v3483 = vtanh.pop %v3459
      %v3484 = vtanh.pop %v3460
      %v3485 = vtanh.pop %v3461
      %v3486 = vtanh.pop %v3462
      %v3487 = vtanh.pop %v3463
      %v3488 = vtanh.pop %v3464
      %v3489 = vtanh.pop %v3465
      %v3490 = vtanh.pop %v3466
      %v3491 = vtanh.pop %v3467
      %v3492 = vmul.f32 %v3468, 0.5
      %v3493 = vmul.f32 %v3469, 0.5
      %v3494 = vmul.f32 %v3470, 0.5
      %v3495 = vmul.f32 %v3471, 0.5
      %v3496 = vmul.f32 %v3472, 0.5
      %v3497 = vmul.f32 %v3473, 0.5
      %v3498 = vmul.f32 %v3474, 0.5
      %v3499 = vmul.f32 %v3475, 0.5
      %v3500 = vmul.f32 %v3476, 0.5
      %v3501 = vmul.f32 %v3477, 0.5
      %v3502 = vmul.f32 %v3478, 0.5
      %v3503 = vmul.f32 %v3479, 0.5
      %v3504 = vmul.f32 %v3480, 0.5
      %v3505 = vmul.f32 %v3481, 0.5
      %v3506 = vmul.f32 %v3482, 0.5
      %v3507 = vmul.f32 %v3483, 0.5
      %v3508 = vmul.f32 %v3484, 0.5
      %v3509 = vmul.f32 %v3485, 0.5
      %v3510 = vmul.f32 %v3486, 0.5
      %v3511 = vmul.f32 %v3487, 0.5
      %v3512 = vmul.f32 %v3488, 0.5
      %v3513 = vmul.f32 %v3489, 0.5
      %v3514 = vmul.f32 %v3490, 0.5
      %v3515 = vmul.f32 %v3491, 0.5
      %v3516 = vadd.f32 %v3492, 0.5
      %v3517 = vadd.f32 %v3493, 0.5
      %v3518 = vadd.f32 %v3494, 0.5
      %v3519 = vadd.f32 %v3495, 0.5
      %v3520 = vadd.f32 %v3496, 0.5
      %v3521 = vadd.f32 %v3497, 0.5
      %v3522 = vadd.f32 %v3498, 0.5
      %v3523 = vadd.f32 %v3499, 0.5
      %v3524 = vadd.f32 %v3500, 0.5
      %v3525 = vadd.f32 %v3501, 0.5
      %v3526 = vadd.f32 %v3502, 0.5
      %v3527 = vadd.f32 %v3503, 0.5
      %v3528 = vadd.f32 %v3504, 0.5
      %v3529 = vadd.f32 %v3505, 0.5
      %v3530 = vadd.f32 %v3506, 0.5
      %v3531 = vadd.f32 %v3507, 0.5
      %v3532 = vadd.f32 %v3508, 0.5
      %v3533 = vadd.f32 %v3509, 0.5
      %v3534 = vadd.f32 %v3510, 0.5
      %v3535 = vadd.f32 %v3511, 0.5
      %v3536 = vadd.f32 %v3512, 0.5
      %v3537 = vadd.f32 %v3513, 0.5
      %v3538 = vadd.f32 %v3514, 0.5
      %v3539 = vadd.f32 %v3515, 0.5
      %v3540 = vmul.f32 %v3202, %v3516
      %v3541 = vmul.f32 %v3203, %v3517
      %v3542 = vmul.f32 %v3204, %v3518
      %v3543 = vmul.f32 %v3205, %v3519
      %v3544 = vmul.f32 %v3206, %v3520
      %v3545 = vmul.f32 %v3207, %v3521
      %v3546 = vmul.f32 %v3208, %v3522
      %v3547 = vmul.f32 %v3209, %v3523
      %v3548 = vmul.f32 %v3210, %v3524
      %v3549 = vmul.f32 %v3211, %v3525
      %v3550 = vmul.f32 %v3212, %v3526
      %v3551 = vmul.f32 %v3213, %v3527
      %v3552 = vmul.f32 %v3214, %v3528
      %v3553 = vmul.f32 %v3215, %v3529
      %v3554 = vmul.f32 %v3216, %v3530
      %v3555 = vmul.f32 %v3217, %v3531
      %v3556 = vmul.f32 %v3218, %v3532
      %v3557 = vmul.f32 %v3219, %v3533
      %v3558 = vmul.f32 %v3220, %v3534
      %v3559 = vmul.f32 %v3221, %v3535
      %v3560 = vmul.f32 %v3222, %v3536
      %v3561 = vmul.f32 %v3223, %v3537
      %v3562 = vmul.f32 %v3224, %v3538
      %v3563 = vmul.f32 %v3225, %v3539
      %v3564 = vpack.c.bf16 %v3541, %v3540
      %v3565 = vpack.c.bf16 %v3543, %v3542
      %v3566 = vpack.c.bf16 %v3545, %v3544
      %v3567 = vpack.c.bf16 %v3547, %v3546
      %v3568 = vpack.c.bf16 %v3549, %v3548
      %v3569 = vpack.c.bf16 %v3551, %v3550
      %v3570 = vpack.c.bf16 %v3553, %v3552
      %v3571 = vpack.c.bf16 %v3555, %v3554
      %v3572 = vpack.c.bf16 %v3557, %v3556
      %v3573 = vpack.c.bf16 %v3559, %v3558
      %v3574 = vpack.c.bf16 %v3561, %v3560
      %v3575 = vpack.c.bf16 %v3563, %v3562
      %s3576 = scalar_lea.vmem %s3, 160
      %v3577 = vld [vmem:[%s3576] sm:$0xf]
      %v3578 = vld [vmem:[%s3576 + $0x4] sm:$0xf]
      %v3579 = vld [vmem:[%s3576 + $0x8] sm:$0xf]
      %v3580 = vld [vmem:[%s3576 + $0xc] sm:$0xf]
      %v3581 = vld [vmem:[%s3576 + $0x10] sm:$0xf]
      %v3582 = vld [vmem:[%s3576 + $0x14] sm:$0xf]
      %v3583 = vld [vmem:[%s3576 + $0x18] sm:$0xf]
      %v3584 = vld [vmem:[%s3576 + $0x1c] sm:$0xf]
      %s3585 = scalar_lea.vmem %s4, 5
      %v3586 = vld [vmem:[%s3585] sm:$0x1]
      %v3588 = vlaneseq
      %v3589 = vshrl.u32 %v3588, 7
      %v3590 = vsub.s32 0, %v3589
      %v3591 = vrot.slane %v3586, %v3590
      %v3601 = vunpack.c.l.b16 %v3577
      %v3602 = vunpack.c.l.b16 %v3578
      %v3603 = vunpack.c.l.b16 %v3579
      %v3604 = vunpack.c.l.b16 %v3580
      %v3605 = vunpack.c.l.b16 %v3581
      %v3606 = vunpack.c.l.b16 %v3582
      %v3607 = vunpack.c.l.b16 %v3583
      %v3608 = vunpack.c.l.b16 %v3584
      %v3609 = vpack.c.b16 %v3602, %v3601
      %v3610 = vpack.c.b16 %v3604, %v3603
      %v3611 = vpack.c.b16 %v3606, %v3605
      %v3612 = vpack.c.b16 %v3608, %v3607
      %v3618 = vsel %vm1926, %v3564, 0
      %v3621 = vsel %vm1926, %v3565, 0
      %v3624 = vsel %vm1926, %v3566, 0
      %v3627 = vsel %vm1926, %v3567, 0
      %v3630 = vsel %vm1926, %v3568, 0
      %v3633 = vsel %vm1926, %v3569, 0
      %v3636 = vsel %vm1926, %v3570, 0
      %v3639 = vsel %vm1926, %v3571, 0
      %v3642 = vsel %vm1926, %v3572, 0
      %v3645 = vsel %vm1926, %v3573, 0
      %v3648 = vsel %vm1926, %v3574, 0
      %v3651 = vsel %vm1926, %v3575, 0
      %3653 = vmatprep.subr.bf16.mxu0 0
      %3654 = vmatpush1.bf16.msra.mxu0 0
      %3655 = vmatprep.subr.bf16.mxu0 0
      %3656 = vmatpush1.bf16.msra.mxu0 0
      %3657 = vmatprep.subr.bf16.mxu0 0
      %3658 = vmatpush1.bf16.msra.mxu0 0
      %3659 = vmatprep.subr.bf16.mxu0 0
      %3660 = vmatpush1.bf16.msra.mxu0 0
      %3661 = vmatprep.subr.bf16.mxu0 0
      %3662 = vmatpush1.bf16.msra.mxu0 %v3612
      %3663 = vmatprep.subr.bf16.mxu0 0
      %3664 = vmatpush1.bf16.msra.mxu0 %v3611
      %3665 = vmatprep.subr.bf16.mxu0 0
      %3666 = vmatpush1.bf16.msra.mxu0 %v3610
      %3667 = vmatprep.subr.bf16.mxu0 0
      %3668 = vmatpush1.bf16.msra.mxu0 %v3609
      %3669 = vmatprep.subr.bf16.mxu0 0
      %3670 = vmatpush2.bf16.msra.mxu0 0
      %3671 = vmatprep.subr.bf16.mxu0 0
      %3672 = vmatpush2.bf16.msra.mxu0 0
      %3673 = vmatprep.subr.bf16.mxu0 0
      %3674 = vmatpush2.bf16.msra.mxu0 0
      %3675 = vmatprep.subr.bf16.mxu0 0
      %3676 = vmatpush2.bf16.msra.mxu0 0
      %3677 = vmatprep.subr.bf16.mxu0 0
      %3678 = vmatpush2.bf16.msra.mxu0 0
      %3679 = vmatprep.subr.bf16.mxu0 0
      %3680 = vmatpush2.bf16.msra.mxu0 0
      %3681 = vmatprep.subr.bf16.mxu0 0
      %3682 = vmatpush2.bf16.msra.mxu0 0
      %3683 = vmatprep.subr.bf16.mxu0 0
      %3684 = vmatpush2.bf16.msra.mxu0 0
      %3685 = vmatprep.mubr.bf16.mxu0 0
      %3686 = vmatmul.mubr.bf16.gmra.mxu0 %v3618
      %v3687 = vpop.f32.mrf.mxu0
      %v3688 = vadd.f32 %v3591, %v3687
      %v3689 = vpop.f32.mrf.mxu0
      %v3690 = vpop.f32.mrf.mxu0
      %v3691 = vadd.f32 %v3591, %v3690
      %v3692 = vpop.f32.mrf.mxu0
      %3693 = vmatprep.mubr.bf16.mxu0 0
      %3694 = vmatmul.mubr.bf16.gmra.mxu0 %v3621
      %v3695 = vpop.f32.mrf.mxu0
      %v3696 = vadd.f32 %v3591, %v3695
      %v3697 = vpop.f32.mrf.mxu0
      %v3698 = vpop.f32.mrf.mxu0
      %v3699 = vadd.f32 %v3591, %v3698
      %v3700 = vpop.f32.mrf.mxu0
      %3701 = vmatprep.mubr.bf16.mxu0 0
      %3702 = vmatmul.mubr.bf16.gmra.mxu0 %v3624
      %v3703 = vpop.f32.mrf.mxu0
      %v3704 = vadd.f32 %v3591, %v3703
      %v3705 = vpop.f32.mrf.mxu0
      %v3706 = vpop.f32.mrf.mxu0
      %v3707 = vadd.f32 %v3591, %v3706
      %v3708 = vpop.f32.mrf.mxu0
      %3709 = vmatprep.mubr.bf16.mxu0 0
      %3710 = vmatmul.mubr.bf16.gmra.mxu0 %v3627
      %v3711 = vpop.f32.mrf.mxu0
      %v3712 = vadd.f32 %v3591, %v3711
      %v3713 = vpop.f32.mrf.mxu0
      %v3714 = vpop.f32.mrf.mxu0
      %v3715 = vadd.f32 %v3591, %v3714
      %v3716 = vpop.f32.mrf.mxu0
      %3717 = vmatprep.mubr.bf16.mxu0 0
      %3718 = vmatmul.mubr.bf16.gmra.mxu0 %v3630
      %v3719 = vpop.f32.mrf.mxu0
      %v3720 = vadd.f32 %v3591, %v3719
      %v3721 = vpop.f32.mrf.mxu0
      %v3722 = vpop.f32.mrf.mxu0
      %v3723 = vadd.f32 %v3591, %v3722
      %v3724 = vpop.f32.mrf.mxu0
      %3725 = vmatprep.mubr.bf16.mxu0 0
      %3726 = vmatmul.mubr.bf16.gmra.mxu0 %v3633
      %v3727 = vpop.f32.mrf.mxu0
      %v3728 = vadd.f32 %v3591, %v3727
      %v3729 = vpop.f32.mrf.mxu0
      %v3730 = vpop.f32.mrf.mxu0
      %v3731 = vadd.f32 %v3591, %v3730
      %v3732 = vpop.f32.mrf.mxu0
      %3733 = vmatprep.mubr.bf16.mxu0 0
      %3734 = vmatmul.mubr.bf16.gmra.mxu0 %v3636
      %v3735 = vpop.f32.mrf.mxu0
      %v3736 = vadd.f32 %v3591, %v3735
      %v3737 = vpop.f32.mrf.mxu0
      %v3738 = vpop.f32.mrf.mxu0
      %v3739 = vadd.f32 %v3591, %v3738
      %v3740 = vpop.f32.mrf.mxu0
      %3741 = vmatprep.mubr.bf16.mxu0 0
      %3742 = vmatmul.mubr.bf16.gmra.mxu0 %v3639
      %v3743 = vpop.f32.mrf.mxu0
      %v3744 = vadd.f32 %v3591, %v3743
      %v3745 = vpop.f32.mrf.mxu0
      %v3746 = vpop.f32.mrf.mxu0
      %v3747 = vadd.f32 %v3591, %v3746
      %v3748 = vpop.f32.mrf.mxu0
      %3749 = vmatprep.mubr.bf16.mxu0 0
      %3750 = vmatmul.mubr.bf16.gmra.mxu0 %v3642
      %v3751 = vpop.f32.mrf.mxu0
      %v3752 = vadd.f32 %v3591, %v3751
      %v3753 = vpop.f32.mrf.mxu0
      %v3754 = vpop.f32.mrf.mxu0
      %v3755 = vadd.f32 %v3591, %v3754
      %v3756 = vpop.f32.mrf.mxu0
      %3757 = vmatprep.mubr.bf16.mxu0 0
      %3758 = vmatmul.mubr.bf16.gmra.mxu0 %v3645
      %v3759 = vpop.f32.mrf.mxu0
      %v3760 = vadd.f32 %v3591, %v3759
      %v3761 = vpop.f32.mrf.mxu0
      %v3762 = vpop.f32.mrf.mxu0
      %v3763 = vadd.f32 %v3591, %v3762
      %v3764 = vpop.f32.mrf.mxu0
      %3765 = vmatprep.mubr.bf16.mxu0 0
      %3766 = vmatmul.mubr.bf16.gmra.mxu0 %v3648
      %v3767 = vpop.f32.mrf.mxu0
      %v3768 = vadd.f32 %v3591, %v3767
      %v3769 = vpop.f32.mrf.mxu0
      %v3770 = vpop.f32.mrf.mxu0
      %v3771 = vadd.f32 %v3591, %v3770
      %v3772 = vpop.f32.mrf.mxu0
      %3773 = vmatprep.mubr.bf16.mxu0 0
      %3774 = vmatmul.mubr.bf16.gmra.mxu0 %v3651
      %v3775 = vpop.f32.mrf.mxu0
      %v3776 = vadd.f32 %v3591, %v3775
      %v3777 = vpop.f32.mrf.mxu0
      %v3778 = vpop.f32.mrf.mxu0
      %v3779 = vadd.f32 %v3591, %v3778
      %v3780 = vpop.f32.mrf.mxu0
      %3781 = vdwg.mxu0
      %v3782 = vmul.f32 %v3688, 0.5
      %v3783 = vmul.f32 %v3691, 0.5
      %v3784 = vmul.f32 %v3696, 0.5
      %v3785 = vmul.f32 %v3699, 0.5
      %v3786 = vmul.f32 %v3704, 0.5
      %v3787 = vmul.f32 %v3707, 0.5
      %v3788 = vmul.f32 %v3712, 0.5
      %v3789 = vmul.f32 %v3715, 0.5
      %v3790 = vmul.f32 %v3720, 0.5
      %v3791 = vmul.f32 %v3723, 0.5
      %v3792 = vmul.f32 %v3728, 0.5
      %v3793 = vmul.f32 %v3731, 0.5
      %v3794 = vmul.f32 %v3736, 0.5
      %v3795 = vmul.f32 %v3739, 0.5
      %v3796 = vmul.f32 %v3744, 0.5
      %v3797 = vmul.f32 %v3747, 0.5
      %v3798 = vmul.f32 %v3752, 0.5
      %v3799 = vmul.f32 %v3755, 0.5
      %v3800 = vmul.f32 %v3760, 0.5
      %v3801 = vmul.f32 %v3763, 0.5
      %v3802 = vmul.f32 %v3768, 0.5
      %v3803 = vmul.f32 %v3771, 0.5
      %v3804 = vmul.f32 %v3776, 0.5
      %v3805 = vmul.f32 %v3779, 0.5
      %v3806 = vtanh.pop %v3782
      %v3807 = vtanh.pop %v3783
      %v3808 = vtanh.pop %v3784
      %v3809 = vtanh.pop %v3785
      %v3810 = vtanh.pop %v3786
      %v3811 = vtanh.pop %v3787
      %v3812 = vtanh.pop %v3788
      %v3813 = vtanh.pop %v3789
      %v3814 = vtanh.pop %v3790
      %v3815 = vtanh.pop %v3791
      %v3816 = vtanh.pop %v3792
      %v3817 = vtanh.pop %v3793
      %v3818 = vtanh.pop %v3794
      %v3819 = vtanh.pop %v3795
      %v3820 = vtanh.pop %v3796
      %v3821 = vtanh.pop %v3797
      %v3822 = vtanh.pop %v3798
      %v3823 = vtanh.pop %v3799
      %v3824 = vtanh.pop %v3800
      %v3825 = vtanh.pop %v3801
      %v3826 = vtanh.pop %v3802
      %v3827 = vtanh.pop %v3803
      %v3828 = vtanh.pop %v3804
      %v3829 = vtanh.pop %v3805
      %v3830 = vmul.f32 %v3806, 0.5
      %v3831 = vmul.f32 %v3807, 0.5
      %v3832 = vmul.f32 %v3808, 0.5
      %v3833 = vmul.f32 %v3809, 0.5
      %v3834 = vmul.f32 %v3810, 0.5
      %v3835 = vmul.f32 %v3811, 0.5
      %v3836 = vmul.f32 %v3812, 0.5
      %v3837 = vmul.f32 %v3813, 0.5
      %v3838 = vmul.f32 %v3814, 0.5
      %v3839 = vmul.f32 %v3815, 0.5
      %v3840 = vmul.f32 %v3816, 0.5
      %v3841 = vmul.f32 %v3817, 0.5
      %v3842 = vmul.f32 %v3818, 0.5
      %v3843 = vmul.f32 %v3819, 0.5
      %v3844 = vmul.f32 %v3820, 0.5
      %v3845 = vmul.f32 %v3821, 0.5
      %v3846 = vmul.f32 %v3822, 0.5
      %v3847 = vmul.f32 %v3823, 0.5
      %v3848 = vmul.f32 %v3824, 0.5
      %v3849 = vmul.f32 %v3825, 0.5
      %v3850 = vmul.f32 %v3826, 0.5
      %v3851 = vmul.f32 %v3827, 0.5
      %v3852 = vmul.f32 %v3828, 0.5
      %v3853 = vmul.f32 %v3829, 0.5
      %v3854 = vadd.f32 %v3830, 0.5
      %v3855 = vadd.f32 %v3831, 0.5
      %v3856 = vadd.f32 %v3832, 0.5
      %v3857 = vadd.f32 %v3833, 0.5
      %v3858 = vadd.f32 %v3834, 0.5
      %v3859 = vadd.f32 %v3835, 0.5
      %v3860 = vadd.f32 %v3836, 0.5
      %v3861 = vadd.f32 %v3837, 0.5
      %v3862 = vadd.f32 %v3838, 0.5
      %v3863 = vadd.f32 %v3839, 0.5
      %v3864 = vadd.f32 %v3840, 0.5
      %v3865 = vadd.f32 %v3841, 0.5
      %v3866 = vadd.f32 %v3842, 0.5
      %v3867 = vadd.f32 %v3843, 0.5
      %v3868 = vadd.f32 %v3844, 0.5
      %v3869 = vadd.f32 %v3845, 0.5
      %v3870 = vadd.f32 %v3846, 0.5
      %v3871 = vadd.f32 %v3847, 0.5
      %v3872 = vadd.f32 %v3848, 0.5
      %v3873 = vadd.f32 %v3849, 0.5
      %v3874 = vadd.f32 %v3850, 0.5
      %v3875 = vadd.f32 %v3851, 0.5
      %v3876 = vadd.f32 %v3852, 0.5
      %v3877 = vadd.f32 %v3853, 0.5
      %v3878 = vmul.f32 %v3540, %v3854
      %v3879 = vmul.f32 %v3541, %v3855
      %v3880 = vmul.f32 %v3542, %v3856
      %v3881 = vmul.f32 %v3543, %v3857
      %v3882 = vmul.f32 %v3544, %v3858
      %v3883 = vmul.f32 %v3545, %v3859
      %v3884 = vmul.f32 %v3546, %v3860
      %v3885 = vmul.f32 %v3547, %v3861
      %v3886 = vmul.f32 %v3548, %v3862
      %v3887 = vmul.f32 %v3549, %v3863
      %v3888 = vmul.f32 %v3550, %v3864
      %v3889 = vmul.f32 %v3551, %v3865
      %v3890 = vmul.f32 %v3552, %v3866
      %v3891 = vmul.f32 %v3553, %v3867
      %v3892 = vmul.f32 %v3554, %v3868
      %v3893 = vmul.f32 %v3555, %v3869
      %v3894 = vmul.f32 %v3556, %v3870
      %v3895 = vmul.f32 %v3557, %v3871
      %v3896 = vmul.f32 %v3558, %v3872
      %v3897 = vmul.f32 %v3559, %v3873
      %v3898 = vmul.f32 %v3560, %v3874
      %v3899 = vmul.f32 %v3561, %v3875
      %v3900 = vmul.f32 %v3562, %v3876
      %v3901 = vmul.f32 %v3563, %v3877
      %v3902 = vpack.c.bf16 %v3879, %v3878
      %v3903 = vpack.c.bf16 %v3881, %v3880
      %v3904 = vpack.c.bf16 %v3883, %v3882
      %v3905 = vpack.c.bf16 %v3885, %v3884
      %v3906 = vpack.c.bf16 %v3887, %v3886
      %v3907 = vpack.c.bf16 %v3889, %v3888
      %v3908 = vpack.c.bf16 %v3891, %v3890
      %v3909 = vpack.c.bf16 %v3893, %v3892
      %v3910 = vpack.c.bf16 %v3895, %v3894
      %v3911 = vpack.c.bf16 %v3897, %v3896
      %v3912 = vpack.c.bf16 %v3899, %v3898
      %v3913 = vpack.c.bf16 %v3901, %v3900
      %s3914 = scalar_lea.vmem %s3, 192
      %v3915 = vld [vmem:[%s3914] sm:$0xf]
      %v3916 = vld [vmem:[%s3914 + $0x4] sm:$0xf]
      %v3917 = vld [vmem:[%s3914 + $0x8] sm:$0xf]
      %v3918 = vld [vmem:[%s3914 + $0xc] sm:$0xf]
      %v3919 = vld [vmem:[%s3914 + $0x10] sm:$0xf]
      %v3920 = vld [vmem:[%s3914 + $0x14] sm:$0xf]
      %v3921 = vld [vmem:[%s3914 + $0x18] sm:$0xf]
      %v3922 = vld [vmem:[%s3914 + $0x1c] sm:$0xf]
      %s3923 = scalar_lea.vmem %s4, 6
      %v3924 = vld [vmem:[%s3923] sm:$0x1]
      %v3926 = vlaneseq
      %v3927 = vshrl.u32 %v3926, 7
      %v3928 = vsub.s32 0, %v3927
      %v3929 = vrot.slane %v3924, %v3928
      %v3939 = vunpack.c.l.b16 %v3915
      %v3940 = vunpack.c.l.b16 %v3916
      %v3941 = vunpack.c.l.b16 %v3917
      %v3942 = vunpack.c.l.b16 %v3918
      %v3943 = vunpack.c.l.b16 %v3919
      %v3944 = vunpack.c.l.b16 %v3920
      %v3945 = vunpack.c.l.b16 %v3921
      %v3946 = vunpack.c.l.b16 %v3922
      %v3947 = vpack.c.b16 %v3940, %v3939
      %v3948 = vpack.c.b16 %v3942, %v3941
      %v3949 = vpack.c.b16 %v3944, %v3943
      %v3950 = vpack.c.b16 %v3946, %v3945
      %v3956 = vsel %vm1926, %v3902, 0
      %v3959 = vsel %vm1926, %v3903, 0
      %v3962 = vsel %vm1926, %v3904, 0
      %v3965 = vsel %vm1926, %v3905, 0
      %v3968 = vsel %vm1926, %v3906, 0
      %v3971 = vsel %vm1926, %v3907, 0
      %v3974 = vsel %vm1926, %v3908, 0
      %v3977 = vsel %vm1926, %v3909, 0
      %v3980 = vsel %vm1926, %v3910, 0
      %v3983 = vsel %vm1926, %v3911, 0
      %v3986 = vsel %vm1926, %v3912, 0
      %v3989 = vsel %vm1926, %v3913, 0
      %3991 = vmatprep.subr.bf16.mxu0 0
      %3992 = vmatpush1.bf16.msra.mxu0 0
      %3993 = vmatprep.subr.bf16.mxu0 0
      %3994 = vmatpush1.bf16.msra.mxu0 0
      %3995 = vmatprep.subr.bf16.mxu0 0
      %3996 = vmatpush1.bf16.msra.mxu0 0
      %3997 = vmatprep.subr.bf16.mxu0 0
      %3998 = vmatpush1.bf16.msra.mxu0 0
      %3999 = vmatprep.subr.bf16.mxu0 0
      %4000 = vmatpush1.bf16.msra.mxu0 %v3950
      %4001 = vmatprep.subr.bf16.mxu0 0
      %4002 = vmatpush1.bf16.msra.mxu0 %v3949
      %4003 = vmatprep.subr.bf16.mxu0 0
      %4004 = vmatpush1.bf16.msra.mxu0 %v3948
      %4005 = vmatprep.subr.bf16.mxu0 0
      %4006 = vmatpush1.bf16.msra.mxu0 %v3947
      %4007 = vmatprep.subr.bf16.mxu0 0
      %4008 = vmatpush2.bf16.msra.mxu0 0
      %4009 = vmatprep.subr.bf16.mxu0 0
      %4010 = vmatpush2.bf16.msra.mxu0 0
      %4011 = vmatprep.subr.bf16.mxu0 0
      %4012 = vmatpush2.bf16.msra.mxu0 0
      %4013 = vmatprep.subr.bf16.mxu0 0
      %4014 = vmatpush2.bf16.msra.mxu0 0
      %4015 = vmatprep.subr.bf16.mxu0 0
      %4016 = vmatpush2.bf16.msra.mxu0 0
      %4017 = vmatprep.subr.bf16.mxu0 0
      %4018 = vmatpush2.bf16.msra.mxu0 0
      %4019 = vmatprep.subr.bf16.mxu0 0
      %4020 = vmatpush2.bf16.msra.mxu0 0
      %4021 = vmatprep.subr.bf16.mxu0 0
      %4022 = vmatpush2.bf16.msra.mxu0 0
      %4023 = vmatprep.mubr.bf16.mxu0 0
      %4024 = vmatmul.mubr.bf16.gmra.mxu0 %v3956
      %v4025 = vpop.f32.mrf.mxu0
      %v4026 = vadd.f32 %v3929, %v4025
      %v4027 = vpop.f32.mrf.mxu0
      %v4028 = vpop.f32.mrf.mxu0
      %v4029 = vadd.f32 %v3929, %v4028
      %v4030 = vpop.f32.mrf.mxu0
      %4031 = vmatprep.mubr.bf16.mxu0 0
      %4032 = vmatmul.mubr.bf16.gmra.mxu0 %v3959
      %v4033 = vpop.f32.mrf.mxu0
      %v4034 = vadd.f32 %v3929, %v4033
      %v4035 = vpop.f32.mrf.mxu0
      %v4036 = vpop.f32.mrf.mxu0
      %v4037 = vadd.f32 %v3929, %v4036
      %v4038 = vpop.f32.mrf.mxu0
      %4039 = vmatprep.mubr.bf16.mxu0 0
      %4040 = vmatmul.mubr.bf16.gmra.mxu0 %v3962
      %v4041 = vpop.f32.mrf.mxu0
      %v4042 = vadd.f32 %v3929, %v4041
      %v4043 = vpop.f32.mrf.mxu0
      %v4044 = vpop.f32.mrf.mxu0
      %v4045 = vadd.f32 %v3929, %v4044
      %v4046 = vpop.f32.mrf.mxu0
      %4047 = vmatprep.mubr.bf16.mxu0 0
      %4048 = vmatmul.mubr.bf16.gmra.mxu0 %v3965
      %v4049 = vpop.f32.mrf.mxu0
      %v4050 = vadd.f32 %v3929, %v4049
      %v4051 = vpop.f32.mrf.mxu0
      %v4052 = vpop.f32.mrf.mxu0
      %v4053 = vadd.f32 %v3929, %v4052
      %v4054 = vpop.f32.mrf.mxu0
      %4055 = vmatprep.mubr.bf16.mxu0 0
      %4056 = vmatmul.mubr.bf16.gmra.mxu0 %v3968
      %v4057 = vpop.f32.mrf.mxu0
      %v4058 = vadd.f32 %v3929, %v4057
      %v4059 = vpop.f32.mrf.mxu0
      %v4060 = vpop.f32.mrf.mxu0
      %v4061 = vadd.f32 %v3929, %v4060
      %v4062 = vpop.f32.mrf.mxu0
      %4063 = vmatprep.mubr.bf16.mxu0 0
      %4064 = vmatmul.mubr.bf16.gmra.mxu0 %v3971
      %v4065 = vpop.f32.mrf.mxu0
      %v4066 = vadd.f32 %v3929, %v4065
      %v4067 = vpop.f32.mrf.mxu0
      %v4068 = vpop.f32.mrf.mxu0
      %v4069 = vadd.f32 %v3929, %v4068
      %v4070 = vpop.f32.mrf.mxu0
      %4071 = vmatprep.mubr.bf16.mxu0 0
      %4072 = vmatmul.mubr.bf16.gmra.mxu0 %v3974
      %v4073 = vpop.f32.mrf.mxu0
      %v4074 = vadd.f32 %v3929, %v4073
      %v4075 = vpop.f32.mrf.mxu0
      %v4076 = vpop.f32.mrf.mxu0
      %v4077 = vadd.f32 %v3929, %v4076
      %v4078 = vpop.f32.mrf.mxu0
      %4079 = vmatprep.mubr.bf16.mxu0 0
      %4080 = vmatmul.mubr.bf16.gmra.mxu0 %v3977
      %v4081 = vpop.f32.mrf.mxu0
      %v4082 = vadd.f32 %v3929, %v4081
      %v4083 = vpop.f32.mrf.mxu0
      %v4084 = vpop.f32.mrf.mxu0
      %v4085 = vadd.f32 %v3929, %v4084
      %v4086 = vpop.f32.mrf.mxu0
      %4087 = vmatprep.mubr.bf16.mxu0 0
      %4088 = vmatmul.mubr.bf16.gmra.mxu0 %v3980
      %v4089 = vpop.f32.mrf.mxu0
      %v4090 = vadd.f32 %v3929, %v4089
      %v4091 = vpop.f32.mrf.mxu0
      %v4092 = vpop.f32.mrf.mxu0
      %v4093 = vadd.f32 %v3929, %v4092
      %v4094 = vpop.f32.mrf.mxu0
      %4095 = vmatprep.mubr.bf16.mxu0 0
      %4096 = vmatmul.mubr.bf16.gmra.mxu0 %v3983
      %v4097 = vpop.f32.mrf.mxu0
      %v4098 = vadd.f32 %v3929, %v4097
      %v4099 = vpop.f32.mrf.mxu0
      %v4100 = vpop.f32.mrf.mxu0
      %v4101 = vadd.f32 %v3929, %v4100
      %v4102 = vpop.f32.mrf.mxu0
      %4103 = vmatprep.mubr.bf16.mxu0 0
      %4104 = vmatmul.mubr.bf16.gmra.mxu0 %v3986
      %v4105 = vpop.f32.mrf.mxu0
      %v4106 = vadd.f32 %v3929, %v4105
      %v4107 = vpop.f32.mrf.mxu0
      %v4108 = vpop.f32.mrf.mxu0
      %v4109 = vadd.f32 %v3929, %v4108
      %v4110 = vpop.f32.mrf.mxu0
      %4111 = vmatprep.mubr.bf16.mxu0 0
      %4112 = vmatmul.mubr.bf16.gmra.mxu0 %v3989
      %v4113 = vpop.f32.mrf.mxu0
      %v4114 = vadd.f32 %v3929, %v4113
      %v4115 = vpop.f32.mrf.mxu0
      %v4116 = vpop.f32.mrf.mxu0
      %v4117 = vadd.f32 %v3929, %v4116
      %v4118 = vpop.f32.mrf.mxu0
      %4119 = vdwg.mxu0
      %v4120 = vmul.f32 %v4026, 0.5
      %v4121 = vmul.f32 %v4029, 0.5
      %v4122 = vmul.f32 %v4034, 0.5
      %v4123 = vmul.f32 %v4037, 0.5
      %v4124 = vmul.f32 %v4042, 0.5
      %v4125 = vmul.f32 %v4045, 0.5
      %v4126 = vmul.f32 %v4050, 0.5
      %v4127 = vmul.f32 %v4053, 0.5
      %v4128 = vmul.f32 %v4058, 0.5
      %v4129 = vmul.f32 %v4061, 0.5
      %v4130 = vmul.f32 %v4066, 0.5
      %v4131 = vmul.f32 %v4069, 0.5
      %v4132 = vmul.f32 %v4074, 0.5
      %v4133 = vmul.f32 %v4077, 0.5
      %v4134 = vmul.f32 %v4082, 0.5
      %v4135 = vmul.f32 %v4085, 0.5
      %v4136 = vmul.f32 %v4090, 0.5
      %v4137 = vmul.f32 %v4093, 0.5
      %v4138 = vmul.f32 %v4098, 0.5
      %v4139 = vmul.f32 %v4101, 0.5
      %v4140 = vmul.f32 %v4106, 0.5
      %v4141 = vmul.f32 %v4109, 0.5
      %v4142 = vmul.f32 %v4114, 0.5
      %v4143 = vmul.f32 %v4117, 0.5
      %v4144 = vtanh.pop %v4120
      %v4145 = vtanh.pop %v4121
      %v4146 = vtanh.pop %v4122
      %v4147 = vtanh.pop %v4123
      %v4148 = vtanh.pop %v4124
      %v4149 = vtanh.pop %v4125
      %v4150 = vtanh.pop %v4126
      %v4151 = vtanh.pop %v4127
      %v4152 = vtanh.pop %v4128
      %v4153 = vtanh.pop %v4129
      %v4154 = vtanh.pop %v4130
      %v4155 = vtanh.pop %v4131
      %v4156 = vtanh.pop %v4132
      %v4157 = vtanh.pop %v4133
      %v4158 = vtanh.pop %v4134
      %v4159 = vtanh.pop %v4135
      %v4160 = vtanh.pop %v4136
      %v4161 = vtanh.pop %v4137
      %v4162 = vtanh.pop %v4138
      %v4163 = vtanh.pop %v4139
      %v4164 = vtanh.pop %v4140
      %v4165 = vtanh.pop %v4141
      %v4166 = vtanh.pop %v4142
      %v4167 = vtanh.pop %v4143
      %v4168 = vmul.f32 %v4144, 0.5
      %v4169 = vmul.f32 %v4145, 0.5
      %v4170 = vmul.f32 %v4146, 0.5
      %v4171 = vmul.f32 %v4147, 0.5
      %v4172 = vmul.f32 %v4148, 0.5
      %v4173 = vmul.f32 %v4149, 0.5
      %v4174 = vmul.f32 %v4150, 0.5
      %v4175 = vmul.f32 %v4151, 0.5
      %v4176 = vmul.f32 %v4152, 0.5
      %v4177 = vmul.f32 %v4153, 0.5
      %v4178 = vmul.f32 %v4154, 0.5
      %v4179 = vmul.f32 %v4155, 0.5
      %v4180 = vmul.f32 %v4156, 0.5
      %v4181 = vmul.f32 %v4157, 0.5
      %v4182 = vmul.f32 %v4158, 0.5
      %v4183 = vmul.f32 %v4159, 0.5
      %v4184 = vmul.f32 %v4160, 0.5
      %v4185 = vmul.f32 %v4161, 0.5
      %v4186 = vmul.f32 %v4162, 0.5
      %v4187 = vmul.f32 %v4163, 0.5
      %v4188 = vmul.f32 %v4164, 0.5
      %v4189 = vmul.f32 %v4165, 0.5
      %v4190 = vmul.f32 %v4166, 0.5
      %v4191 = vmul.f32 %v4167, 0.5
      %v4192 = vadd.f32 %v4168, 0.5
      %v4193 = vadd.f32 %v4169, 0.5
      %v4194 = vadd.f32 %v4170, 0.5
      %v4195 = vadd.f32 %v4171, 0.5
      %v4196 = vadd.f32 %v4172, 0.5
      %v4197 = vadd.f32 %v4173, 0.5
      %v4198 = vadd.f32 %v4174, 0.5
      %v4199 = vadd.f32 %v4175, 0.5
      %v4200 = vadd.f32 %v4176, 0.5
      %v4201 = vadd.f32 %v4177, 0.5
      %v4202 = vadd.f32 %v4178, 0.5
      %v4203 = vadd.f32 %v4179, 0.5
      %v4204 = vadd.f32 %v4180, 0.5
      %v4205 = vadd.f32 %v4181, 0.5
      %v4206 = vadd.f32 %v4182, 0.5
      %v4207 = vadd.f32 %v4183, 0.5
      %v4208 = vadd.f32 %v4184, 0.5
      %v4209 = vadd.f32 %v4185, 0.5
      %v4210 = vadd.f32 %v4186, 0.5
      %v4211 = vadd.f32 %v4187, 0.5
      %v4212 = vadd.f32 %v4188, 0.5
      %v4213 = vadd.f32 %v4189, 0.5
      %v4214 = vadd.f32 %v4190, 0.5
      %v4215 = vadd.f32 %v4191, 0.5
      %v4216 = vmul.f32 %v3878, %v4192
      %v4217 = vmul.f32 %v3879, %v4193
      %v4218 = vmul.f32 %v3880, %v4194
      %v4219 = vmul.f32 %v3881, %v4195
      %v4220 = vmul.f32 %v3882, %v4196
      %v4221 = vmul.f32 %v3883, %v4197
      %v4222 = vmul.f32 %v3884, %v4198
      %v4223 = vmul.f32 %v3885, %v4199
      %v4224 = vmul.f32 %v3886, %v4200
      %v4225 = vmul.f32 %v3887, %v4201
      %v4226 = vmul.f32 %v3888, %v4202
      %v4227 = vmul.f32 %v3889, %v4203
      %v4228 = vmul.f32 %v3890, %v4204
      %v4229 = vmul.f32 %v3891, %v4205
      %v4230 = vmul.f32 %v3892, %v4206
      %v4231 = vmul.f32 %v3893, %v4207
      %v4232 = vmul.f32 %v3894, %v4208
      %v4233 = vmul.f32 %v3895, %v4209
      %v4234 = vmul.f32 %v3896, %v4210
      %v4235 = vmul.f32 %v3897, %v4211
      %v4236 = vmul.f32 %v3898, %v4212
      %v4237 = vmul.f32 %v3899, %v4213
      %v4238 = vmul.f32 %v3900, %v4214
      %v4239 = vmul.f32 %v3901, %v4215
      %v4240 = vpack.c.bf16 %v4217, %v4216
      %v4241 = vpack.c.bf16 %v4219, %v4218
      %v4242 = vpack.c.bf16 %v4221, %v4220
      %v4243 = vpack.c.bf16 %v4223, %v4222
      %v4244 = vpack.c.bf16 %v4225, %v4224
      %v4245 = vpack.c.bf16 %v4227, %v4226
      %v4246 = vpack.c.bf16 %v4229, %v4228
      %v4247 = vpack.c.bf16 %v4231, %v4230
      %v4248 = vpack.c.bf16 %v4233, %v4232
      %v4249 = vpack.c.bf16 %v4235, %v4234
      %v4250 = vpack.c.bf16 %v4237, %v4236
      %v4251 = vpack.c.bf16 %v4239, %v4238
      %s4252 = scalar_lea.vmem %s3, 224
      %v4253 = vld [vmem:[%s4252] sm:$0xf]
      %v4254 = vld [vmem:[%s4252 + $0x4] sm:$0xf]
      %v4255 = vld [vmem:[%s4252 + $0x8] sm:$0xf]
      %v4256 = vld [vmem:[%s4252 + $0xc] sm:$0xf]
      %v4257 = vld [vmem:[%s4252 + $0x10] sm:$0xf]
      %v4258 = vld [vmem:[%s4252 + $0x14] sm:$0xf]
      %v4259 = vld [vmem:[%s4252 + $0x18] sm:$0xf]
      %v4260 = vld [vmem:[%s4252 + $0x1c] sm:$0xf]
      %s4261 = scalar_lea.vmem %s4, 7
      %v4262 = vld [vmem:[%s4261] sm:$0x1]
      %v4264 = vlaneseq
      %v4265 = vshrl.u32 %v4264, 7
      %v4266 = vsub.s32 0, %v4265
      %v4267 = vrot.slane %v4262, %v4266
      %v4277 = vunpack.c.l.b16 %v4253
      %v4278 = vunpack.c.l.b16 %v4254
      %v4279 = vunpack.c.l.b16 %v4255
      %v4280 = vunpack.c.l.b16 %v4256
      %v4281 = vunpack.c.l.b16 %v4257
      %v4282 = vunpack.c.l.b16 %v4258
      %v4283 = vunpack.c.l.b16 %v4259
      %v4284 = vunpack.c.l.b16 %v4260
      %v4285 = vpack.c.b16 %v4278, %v4277
      %v4286 = vpack.c.b16 %v4280, %v4279
      %v4287 = vpack.c.b16 %v4282, %v4281
      %v4288 = vpack.c.b16 %v4284, %v4283
      %v4294 = vsel %vm1926, %v4240, 0
      %v4297 = vsel %vm1926, %v4241, 0
      %v4300 = vsel %vm1926, %v4242, 0
      %v4303 = vsel %vm1926, %v4243, 0
      %v4306 = vsel %vm1926, %v4244, 0
      %v4309 = vsel %vm1926, %v4245, 0
      %v4312 = vsel %vm1926, %v4246, 0
      %v4315 = vsel %vm1926, %v4247, 0
      %v4318 = vsel %vm1926, %v4248, 0
      %v4321 = vsel %vm1926, %v4249, 0
      %v4324 = vsel %vm1926, %v4250, 0
      %v4327 = vsel %vm1926, %v4251, 0
      %4329 = vmatprep.subr.bf16.mxu0 0
      %4330 = vmatpush1.bf16.msra.mxu0 0
      %4331 = vmatprep.subr.bf16.mxu0 0
      %4332 = vmatpush1.bf16.msra.mxu0 0
      %4333 = vmatprep.subr.bf16.mxu0 0
      %4334 = vmatpush1.bf16.msra.mxu0 0
      %4335 = vmatprep.subr.bf16.mxu0 0
      %4336 = vmatpush1.bf16.msra.mxu0 0
      %4337 = vmatprep.subr.bf16.mxu0 0
      %4338 = vmatpush1.bf16.msra.mxu0 %v4288
      %4339 = vmatprep.subr.bf16.mxu0 0
      %4340 = vmatpush1.bf16.msra.mxu0 %v4287
      %4341 = vmatprep.subr.bf16.mxu0 0
      %4342 = vmatpush1.bf16.msra.mxu0 %v4286
      %4343 = vmatprep.subr.bf16.mxu0 0
      %4344 = vmatpush1.bf16.msra.mxu0 %v4285
      %4345 = vmatprep.subr.bf16.mxu0 0
      %4346 = vmatpush2.bf16.msra.mxu0 0
      %4347 = vmatprep.subr.bf16.mxu0 0
      %4348 = vmatpush2.bf16.msra.mxu0 0
      %4349 = vmatprep.subr.bf16.mxu0 0
      %4350 = vmatpush2.bf16.msra.mxu0 0
      %4351 = vmatprep.subr.bf16.mxu0 0
      %4352 = vmatpush2.bf16.msra.mxu0 0
      %4353 = vmatprep.subr.bf16.mxu0 0
      %4354 = vmatpush2.bf16.msra.mxu0 0
      %4355 = vmatprep.subr.bf16.mxu0 0
      %4356 = vmatpush2.bf16.msra.mxu0 0
      %4357 = vmatprep.subr.bf16.mxu0 0
      %4358 = vmatpush2.bf16.msra.mxu0 0
      %4359 = vmatprep.subr.bf16.mxu0 0
      %4360 = vmatpush2.bf16.msra.mxu0 0
      %4361 = vmatprep.mubr.bf16.mxu0 0
      %4362 = vmatmul.mubr.bf16.gmra.mxu0 %v4294
      %v4363 = vpop.f32.mrf.mxu0
      %v4364 = vadd.f32 %v4267, %v4363
      %v4365 = vpop.f32.mrf.mxu0
      %v4366 = vpop.f32.mrf.mxu0
      %v4367 = vadd.f32 %v4267, %v4366
      %v4368 = vpop.f32.mrf.mxu0
      %4369 = vmatprep.mubr.bf16.mxu0 0
      %4370 = vmatmul.mubr.bf16.gmra.mxu0 %v4297
      %v4371 = vpop.f32.mrf.mxu0
      %v4372 = vadd.f32 %v4267, %v4371
      %v4373 = vpop.f32.mrf.mxu0
      %v4374 = vpop.f32.mrf.mxu0
      %v4375 = vadd.f32 %v4267, %v4374
      %v4376 = vpop.f32.mrf.mxu0
      %4377 = vmatprep.mubr.bf16.mxu0 0
      %4378 = vmatmul.mubr.bf16.gmra.mxu0 %v4300
      %v4379 = vpop.f32.mrf.mxu0
      %v4380 = vadd.f32 %v4267, %v4379
      %v4381 = vpop.f32.mrf.mxu0
      %v4382 = vpop.f32.mrf.mxu0
      %v4383 = vadd.f32 %v4267, %v4382
      %v4384 = vpop.f32.mrf.mxu0
      %4385 = vmatprep.mubr.bf16.mxu0 0
      %4386 = vmatmul.mubr.bf16.gmra.mxu0 %v4303
      %v4387 = vpop.f32.mrf.mxu0
      %v4388 = vadd.f32 %v4267, %v4387
      %v4389 = vpop.f32.mrf.mxu0
      %v4390 = vpop.f32.mrf.mxu0
      %v4391 = vadd.f32 %v4267, %v4390
      %v4392 = vpop.f32.mrf.mxu0
      %4393 = vmatprep.mubr.bf16.mxu0 0
      %4394 = vmatmul.mubr.bf16.gmra.mxu0 %v4306
      %v4395 = vpop.f32.mrf.mxu0
      %v4396 = vadd.f32 %v4267, %v4395
      %v4397 = vpop.f32.mrf.mxu0
      %v4398 = vpop.f32.mrf.mxu0
      %v4399 = vadd.f32 %v4267, %v4398
      %v4400 = vpop.f32.mrf.mxu0
      %4401 = vmatprep.mubr.bf16.mxu0 0
      %4402 = vmatmul.mubr.bf16.gmra.mxu0 %v4309
      %v4403 = vpop.f32.mrf.mxu0
      %v4404 = vadd.f32 %v4267, %v4403
      %v4405 = vpop.f32.mrf.mxu0
      %v4406 = vpop.f32.mrf.mxu0
      %v4407 = vadd.f32 %v4267, %v4406
      %v4408 = vpop.f32.mrf.mxu0
      %4409 = vmatprep.mubr.bf16.mxu0 0
      %4410 = vmatmul.mubr.bf16.gmra.mxu0 %v4312
      %v4411 = vpop.f32.mrf.mxu0
      %v4412 = vadd.f32 %v4267, %v4411
      %v4413 = vpop.f32.mrf.mxu0
      %v4414 = vpop.f32.mrf.mxu0
      %v4415 = vadd.f32 %v4267, %v4414
      %v4416 = vpop.f32.mrf.mxu0
      %4417 = vmatprep.mubr.bf16.mxu0 0
      %4418 = vmatmul.mubr.bf16.gmra.mxu0 %v4315
      %v4419 = vpop.f32.mrf.mxu0
      %v4420 = vadd.f32 %v4267, %v4419
      %v4421 = vpop.f32.mrf.mxu0
      %v4422 = vpop.f32.mrf.mxu0
      %v4423 = vadd.f32 %v4267, %v4422
      %v4424 = vpop.f32.mrf.mxu0
      %4425 = vmatprep.mubr.bf16.mxu0 0
      %4426 = vmatmul.mubr.bf16.gmra.mxu0 %v4318
      %v4427 = vpop.f32.mrf.mxu0
      %v4428 = vadd.f32 %v4267, %v4427
      %v4429 = vpop.f32.mrf.mxu0
      %v4430 = vpop.f32.mrf.mxu0
      %v4431 = vadd.f32 %v4267, %v4430
      %v4432 = vpop.f32.mrf.mxu0
      %4433 = vmatprep.mubr.bf16.mxu0 0
      %4434 = vmatmul.mubr.bf16.gmra.mxu0 %v4321
      %v4435 = vpop.f32.mrf.mxu0
      %v4436 = vadd.f32 %v4267, %v4435
      %v4437 = vpop.f32.mrf.mxu0
      %v4438 = vpop.f32.mrf.mxu0
      %v4439 = vadd.f32 %v4267, %v4438
      %v4440 = vpop.f32.mrf.mxu0
      %4441 = vmatprep.mubr.bf16.mxu0 0
      %4442 = vmatmul.mubr.bf16.gmra.mxu0 %v4324
      %v4443 = vpop.f32.mrf.mxu0
      %v4444 = vadd.f32 %v4267, %v4443
      %v4445 = vpop.f32.mrf.mxu0
      %v4446 = vpop.f32.mrf.mxu0
      %v4447 = vadd.f32 %v4267, %v4446
      %v4448 = vpop.f32.mrf.mxu0
      %4449 = vmatprep.mubr.bf16.mxu0 0
      %4450 = vmatmul.mubr.bf16.gmra.mxu0 %v4327
      %v4451 = vpop.f32.mrf.mxu0
      %v4452 = vadd.f32 %v4267, %v4451
      %v4453 = vpop.f32.mrf.mxu0
      %v4454 = vpop.f32.mrf.mxu0
      %v4455 = vadd.f32 %v4267, %v4454
      %v4456 = vpop.f32.mrf.mxu0
      %4457 = vdwg.mxu0
      %v4458 = vmul.f32 %v4364, 0.5
      %v4459 = vmul.f32 %v4367, 0.5
      %v4460 = vmul.f32 %v4372, 0.5
      %v4461 = vmul.f32 %v4375, 0.5
      %v4462 = vmul.f32 %v4380, 0.5
      %v4463 = vmul.f32 %v4383, 0.5
      %v4464 = vmul.f32 %v4388, 0.5
      %v4465 = vmul.f32 %v4391, 0.5
      %v4466 = vmul.f32 %v4396, 0.5
      %v4467 = vmul.f32 %v4399, 0.5
      %v4468 = vmul.f32 %v4404, 0.5
      %v4469 = vmul.f32 %v4407, 0.5
      %v4470 = vmul.f32 %v4412, 0.5
      %v4471 = vmul.f32 %v4415, 0.5
      %v4472 = vmul.f32 %v4420, 0.5
      %v4473 = vmul.f32 %v4423, 0.5
      %v4474 = vmul.f32 %v4428, 0.5
      %v4475 = vmul.f32 %v4431, 0.5
      %v4476 = vmul.f32 %v4436, 0.5
      %v4477 = vmul.f32 %v4439, 0.5
      %v4478 = vmul.f32 %v4444, 0.5
      %v4479 = vmul.f32 %v4447, 0.5
      %v4480 = vmul.f32 %v4452, 0.5
      %v4481 = vmul.f32 %v4455, 0.5
      %v4482 = vtanh.pop %v4458
      %v4483 = vtanh.pop %v4459
      %v4484 = vtanh.pop %v4460
      %v4485 = vtanh.pop %v4461
      %v4486 = vtanh.pop %v4462
      %v4487 = vtanh.pop %v4463
      %v4488 = vtanh.pop %v4464
      %v4489 = vtanh.pop %v4465
      %v4490 = vtanh.pop %v4466
      %v4491 = vtanh.pop %v4467
      %v4492 = vtanh.pop %v4468
      %v4493 = vtanh.pop %v4469
      %v4494 = vtanh.pop %v4470
      %v4495 = vtanh.pop %v4471
      %v4496 = vtanh.pop %v4472
      %v4497 = vtanh.pop %v4473
      %v4498 = vtanh.pop %v4474
      %v4499 = vtanh.pop %v4475
      %v4500 = vtanh.pop %v4476
      %v4501 = vtanh.pop %v4477
      %v4502 = vtanh.pop %v4478
      %v4503 = vtanh.pop %v4479
      %v4504 = vtanh.pop %v4480
      %v4505 = vtanh.pop %v4481
      %v4506 = vmul.f32 %v4482, 0.5
      %v4507 = vmul.f32 %v4483, 0.5
      %v4508 = vmul.f32 %v4484, 0.5
      %v4509 = vmul.f32 %v4485, 0.5
      %v4510 = vmul.f32 %v4486, 0.5
      %v4511 = vmul.f32 %v4487, 0.5
      %v4512 = vmul.f32 %v4488, 0.5
      %v4513 = vmul.f32 %v4489, 0.5
      %v4514 = vmul.f32 %v4490, 0.5
      %v4515 = vmul.f32 %v4491, 0.5
      %v4516 = vmul.f32 %v4492, 0.5
      %v4517 = vmul.f32 %v4493, 0.5
      %v4518 = vmul.f32 %v4494, 0.5
      %v4519 = vmul.f32 %v4495, 0.5
      %v4520 = vmul.f32 %v4496, 0.5
      %v4521 = vmul.f32 %v4497, 0.5
      %v4522 = vmul.f32 %v4498, 0.5
      %v4523 = vmul.f32 %v4499, 0.5
      %v4524 = vmul.f32 %v4500, 0.5
      %v4525 = vmul.f32 %v4501, 0.5
      %v4526 = vmul.f32 %v4502, 0.5
      %v4527 = vmul.f32 %v4503, 0.5
      %v4528 = vmul.f32 %v4504, 0.5
      %v4529 = vmul.f32 %v4505, 0.5
      %v4530 = vadd.f32 %v4506, 0.5
      %v4531 = vadd.f32 %v4507, 0.5
      %v4532 = vadd.f32 %v4508, 0.5
      %v4533 = vadd.f32 %v4509, 0.5
      %v4534 = vadd.f32 %v4510, 0.5
      %v4535 = vadd.f32 %v4511, 0.5
      %v4536 = vadd.f32 %v4512, 0.5
      %v4537 = vadd.f32 %v4513, 0.5
      %v4538 = vadd.f32 %v4514, 0.5
      %v4539 = vadd.f32 %v4515, 0.5
      %v4540 = vadd.f32 %v4516, 0.5
      %v4541 = vadd.f32 %v4517, 0.5
      %v4542 = vadd.f32 %v4518, 0.5
      %v4543 = vadd.f32 %v4519, 0.5
      %v4544 = vadd.f32 %v4520, 0.5
      %v4545 = vadd.f32 %v4521, 0.5
      %v4546 = vadd.f32 %v4522, 0.5
      %v4547 = vadd.f32 %v4523, 0.5
      %v4548 = vadd.f32 %v4524, 0.5
      %v4549 = vadd.f32 %v4525, 0.5
      %v4550 = vadd.f32 %v4526, 0.5
      %v4551 = vadd.f32 %v4527, 0.5
      %v4552 = vadd.f32 %v4528, 0.5
      %v4553 = vadd.f32 %v4529, 0.5
      %v4554 = vmul.f32 %v4216, %v4530
      %v4555 = vmul.f32 %v4217, %v4531
      %v4556 = vmul.f32 %v4218, %v4532
      %v4557 = vmul.f32 %v4219, %v4533
      %v4558 = vmul.f32 %v4220, %v4534
      %v4559 = vmul.f32 %v4221, %v4535
      %v4560 = vmul.f32 %v4222, %v4536
      %v4561 = vmul.f32 %v4223, %v4537
      %v4562 = vmul.f32 %v4224, %v4538
      %v4563 = vmul.f32 %v4225, %v4539
      %v4564 = vmul.f32 %v4226, %v4540
      %v4565 = vmul.f32 %v4227, %v4541
      %v4566 = vmul.f32 %v4228, %v4542
      %v4567 = vmul.f32 %v4229, %v4543
      %v4568 = vmul.f32 %v4230, %v4544
      %v4569 = vmul.f32 %v4231, %v4545
      %v4570 = vmul.f32 %v4232, %v4546
      %v4571 = vmul.f32 %v4233, %v4547
      %v4572 = vmul.f32 %v4234, %v4548
      %v4573 = vmul.f32 %v4235, %v4549
      %v4574 = vmul.f32 %v4236, %v4550
      %v4575 = vmul.f32 %v4237, %v4551
      %v4576 = vmul.f32 %v4238, %v4552
      %v4577 = vmul.f32 %v4239, %v4553
      %v4578 = vpack.c.bf16 %v4555, %v4554
      %v4579 = vpack.c.bf16 %v4557, %v4556
      %v4580 = vpack.c.bf16 %v4559, %v4558
      %v4581 = vpack.c.bf16 %v4561, %v4560
      %v4582 = vpack.c.bf16 %v4563, %v4562
      %v4583 = vpack.c.bf16 %v4565, %v4564
      %v4584 = vpack.c.bf16 %v4567, %v4566
      %v4585 = vpack.c.bf16 %v4569, %v4568
      %v4586 = vpack.c.bf16 %v4571, %v4570
      %v4587 = vpack.c.bf16 %v4573, %v4572
      %v4588 = vpack.c.bf16 %v4575, %v4574
      %v4589 = vpack.c.bf16 %v4577, %v4576
      %s4590 = scalar_lea.vmem %s3, 256
      %v4591 = vld [vmem:[%s4590] sm:$0xf]
      %v4592 = vld [vmem:[%s4590 + $0x4] sm:$0xf]
      %v4593 = vld [vmem:[%s4590 + $0x8] sm:$0xf]
      %v4594 = vld [vmem:[%s4590 + $0xc] sm:$0xf]
      %v4595 = vld [vmem:[%s4590 + $0x10] sm:$0xf]
      %v4596 = vld [vmem:[%s4590 + $0x14] sm:$0xf]
      %v4597 = vld [vmem:[%s4590 + $0x18] sm:$0xf]
      %v4598 = vld [vmem:[%s4590 + $0x1c] sm:$0xf]
      %s4599 = scalar_lea.vmem %s4, 8
      %v4600 = vld [vmem:[%s4599] sm:$0x1]
      %v4602 = vlaneseq
      %v4603 = vshrl.u32 %v4602, 7
      %v4604 = vsub.s32 0, %v4603
      %v4605 = vrot.slane %v4600, %v4604
      %v4615 = vunpack.c.l.b16 %v4591
      %v4616 = vunpack.c.l.b16 %v4592
      %v4617 = vunpack.c.l.b16 %v4593
      %v4618 = vunpack.c.l.b16 %v4594
      %v4619 = vunpack.c.l.b16 %v4595
      %v4620 = vunpack.c.l.b16 %v4596
      %v4621 = vunpack.c.l.b16 %v4597
      %v4622 = vunpack.c.l.b16 %v4598
      %v4623 = vpack.c.b16 %v4616, %v4615
      %v4624 = vpack.c.b16 %v4618, %v4617
      %v4625 = vpack.c.b16 %v4620, %v4619
      %v4626 = vpack.c.b16 %v4622, %v4621
      %v4632 = vsel %vm1926, %v4578, 0
      %v4635 = vsel %vm1926, %v4579, 0
      %v4638 = vsel %vm1926, %v4580, 0
      %v4641 = vsel %vm1926, %v4581, 0
      %v4644 = vsel %vm1926, %v4582, 0
      %v4647 = vsel %vm1926, %v4583, 0
      %v4650 = vsel %vm1926, %v4584, 0
      %v4653 = vsel %vm1926, %v4585, 0
      %v4656 = vsel %vm1926, %v4586, 0
      %v4659 = vsel %vm1926, %v4587, 0
      %v4662 = vsel %vm1926, %v4588, 0
      %v4665 = vsel %vm1926, %v4589, 0
      %4667 = vmatprep.subr.bf16.mxu0 0
      %4668 = vmatpush1.bf16.msra.mxu0 0
      %4669 = vmatprep.subr.bf16.mxu0 0
      %4670 = vmatpush1.bf16.msra.mxu0 0
      %4671 = vmatprep.subr.bf16.mxu0 0
      %4672 = vmatpush1.bf16.msra.mxu0 0
      %4673 = vmatprep.subr.bf16.mxu0 0
      %4674 = vmatpush1.bf16.msra.mxu0 0
      %4675 = vmatprep.subr.bf16.mxu0 0
      %4676 = vmatpush1.bf16.msra.mxu0 %v4626
      %4677 = vmatprep.subr.bf16.mxu0 0
      %4678 = vmatpush1.bf16.msra.mxu0 %v4625
      %4679 = vmatprep.subr.bf16.mxu0 0
      %4680 = vmatpush1.bf16.msra.mxu0 %v4624
      %4681 = vmatprep.subr.bf16.mxu0 0
      %4682 = vmatpush1.bf16.msra.mxu0 %v4623
      %4683 = vmatprep.subr.bf16.mxu0 0
      %4684 = vmatpush2.bf16.msra.mxu0 0
      %4685 = vmatprep.subr.bf16.mxu0 0
      %4686 = vmatpush2.bf16.msra.mxu0 0
      %4687 = vmatprep.subr.bf16.mxu0 0
      %4688 = vmatpush2.bf16.msra.mxu0 0
      %4689 = vmatprep.subr.bf16.mxu0 0
      %4690 = vmatpush2.bf16.msra.mxu0 0
      %4691 = vmatprep.subr.bf16.mxu0 0
      %4692 = vmatpush2.bf16.msra.mxu0 0
      %4693 = vmatprep.subr.bf16.mxu0 0
      %4694 = vmatpush2.bf16.msra.mxu0 0
      %4695 = vmatprep.subr.bf16.mxu0 0
      %4696 = vmatpush2.bf16.msra.mxu0 0
      %4697 = vmatprep.subr.bf16.mxu0 0
      %4698 = vmatpush2.bf16.msra.mxu0 0
      %4699 = vmatprep.mubr.bf16.mxu0 0
      %4700 = vmatmul.mubr.bf16.gmra.mxu0 %v4632
      %v4701 = vpop.f32.mrf.mxu0
      %v4702 = vadd.f32 %v4605, %v4701
      %v4703 = vpop.f32.mrf.mxu0
      %v4704 = vpop.f32.mrf.mxu0
      %v4705 = vadd.f32 %v4605, %v4704
      %v4706 = vpop.f32.mrf.mxu0
      %4707 = vmatprep.mubr.bf16.mxu0 0
      %4708 = vmatmul.mubr.bf16.gmra.mxu0 %v4635
      %v4709 = vpop.f32.mrf.mxu0
      %v4710 = vadd.f32 %v4605, %v4709
      %v4711 = vpop.f32.mrf.mxu0
      %v4712 = vpop.f32.mrf.mxu0
      %v4713 = vadd.f32 %v4605, %v4712
      %v4714 = vpop.f32.mrf.mxu0
      %4715 = vmatprep.mubr.bf16.mxu0 0
      %4716 = vmatmul.mubr.bf16.gmra.mxu0 %v4638
      %v4717 = vpop.f32.mrf.mxu0
      %v4718 = vadd.f32 %v4605, %v4717
      %v4719 = vpop.f32.mrf.mxu0
      %v4720 = vpop.f32.mrf.mxu0
      %v4721 = vadd.f32 %v4605, %v4720
      %v4722 = vpop.f32.mrf.mxu0
      %4723 = vmatprep.mubr.bf16.mxu0 0
      %4724 = vmatmul.mubr.bf16.gmra.mxu0 %v4641
      %v4725 = vpop.f32.mrf.mxu0
      %v4726 = vadd.f32 %v4605, %v4725
      %v4727 = vpop.f32.mrf.mxu0
      %v4728 = vpop.f32.mrf.mxu0
      %v4729 = vadd.f32 %v4605, %v4728
      %v4730 = vpop.f32.mrf.mxu0
      %4731 = vmatprep.mubr.bf16.mxu0 0
      %4732 = vmatmul.mubr.bf16.gmra.mxu0 %v4644
      %v4733 = vpop.f32.mrf.mxu0
      %v4734 = vadd.f32 %v4605, %v4733
      %v4735 = vpop.f32.mrf.mxu0
      %v4736 = vpop.f32.mrf.mxu0
      %v4737 = vadd.f32 %v4605, %v4736
      %v4738 = vpop.f32.mrf.mxu0
      %4739 = vmatprep.mubr.bf16.mxu0 0
      %4740 = vmatmul.mubr.bf16.gmra.mxu0 %v4647
      %v4741 = vpop.f32.mrf.mxu0
      %v4742 = vadd.f32 %v4605, %v4741
      %v4743 = vpop.f32.mrf.mxu0
      %v4744 = vpop.f32.mrf.mxu0
      %v4745 = vadd.f32 %v4605, %v4744
      %v4746 = vpop.f32.mrf.mxu0
      %4747 = vmatprep.mubr.bf16.mxu0 0
      %4748 = vmatmul.mubr.bf16.gmra.mxu0 %v4650
      %v4749 = vpop.f32.mrf.mxu0
      %v4750 = vadd.f32 %v4605, %v4749
      %v4751 = vpop.f32.mrf.mxu0
      %v4752 = vpop.f32.mrf.mxu0
      %v4753 = vadd.f32 %v4605, %v4752
      %v4754 = vpop.f32.mrf.mxu0
      %4755 = vmatprep.mubr.bf16.mxu0 0
      %4756 = vmatmul.mubr.bf16.gmra.mxu0 %v4653
      %v4757 = vpop.f32.mrf.mxu0
      %v4758 = vadd.f32 %v4605, %v4757
      %v4759 = vpop.f32.mrf.mxu0
      %v4760 = vpop.f32.mrf.mxu0
      %v4761 = vadd.f32 %v4605, %v4760
      %v4762 = vpop.f32.mrf.mxu0
      %4763 = vmatprep.mubr.bf16.mxu0 0
      %4764 = vmatmul.mubr.bf16.gmra.mxu0 %v4656
      %v4765 = vpop.f32.mrf.mxu0
      %v4766 = vadd.f32 %v4605, %v4765
      %v4767 = vpop.f32.mrf.mxu0
      %v4768 = vpop.f32.mrf.mxu0
      %v4769 = vadd.f32 %v4605, %v4768
      %v4770 = vpop.f32.mrf.mxu0
      %4771 = vmatprep.mubr.bf16.mxu0 0
      %4772 = vmatmul.mubr.bf16.gmra.mxu0 %v4659
      %v4773 = vpop.f32.mrf.mxu0
      %v4774 = vadd.f32 %v4605, %v4773
      %v4775 = vpop.f32.mrf.mxu0
      %v4776 = vpop.f32.mrf.mxu0
      %v4777 = vadd.f32 %v4605, %v4776
      %v4778 = vpop.f32.mrf.mxu0
      %4779 = vmatprep.mubr.bf16.mxu0 0
      %4780 = vmatmul.mubr.bf16.gmra.mxu0 %v4662
      %v4781 = vpop.f32.mrf.mxu0
      %v4782 = vadd.f32 %v4605, %v4781
      %v4783 = vpop.f32.mrf.mxu0
      %v4784 = vpop.f32.mrf.mxu0
      %v4785 = vadd.f32 %v4605, %v4784
      %v4786 = vpop.f32.mrf.mxu0
      %4787 = vmatprep.mubr.bf16.mxu0 0
      %4788 = vmatmul.mubr.bf16.gmra.mxu0 %v4665
      %v4789 = vpop.f32.mrf.mxu0
      %v4790 = vadd.f32 %v4605, %v4789
      %v4791 = vpop.f32.mrf.mxu0
      %v4792 = vpop.f32.mrf.mxu0
      %v4793 = vadd.f32 %v4605, %v4792
      %v4794 = vpop.f32.mrf.mxu0
      %4795 = vdwg.mxu0
      %v4796 = vmul.f32 %v4702, 0.5
      %v4797 = vmul.f32 %v4705, 0.5
      %v4798 = vmul.f32 %v4710, 0.5
      %v4799 = vmul.f32 %v4713, 0.5
      %v4800 = vmul.f32 %v4718, 0.5
      %v4801 = vmul.f32 %v4721, 0.5
      %v4802 = vmul.f32 %v4726, 0.5
      %v4803 = vmul.f32 %v4729, 0.5
      %v4804 = vmul.f32 %v4734, 0.5
      %v4805 = vmul.f32 %v4737, 0.5
      %v4806 = vmul.f32 %v4742, 0.5
      %v4807 = vmul.f32 %v4745, 0.5
      %v4808 = vmul.f32 %v4750, 0.5
      %v4809 = vmul.f32 %v4753, 0.5
      %v4810 = vmul.f32 %v4758, 0.5
      %v4811 = vmul.f32 %v4761, 0.5
      %v4812 = vmul.f32 %v4766, 0.5
      %v4813 = vmul.f32 %v4769, 0.5
      %v4814 = vmul.f32 %v4774, 0.5
      %v4815 = vmul.f32 %v4777, 0.5
      %v4816 = vmul.f32 %v4782, 0.5
      %v4817 = vmul.f32 %v4785, 0.5
      %v4818 = vmul.f32 %v4790, 0.5
      %v4819 = vmul.f32 %v4793, 0.5
      %v4820 = vtanh.pop %v4796
      %v4821 = vtanh.pop %v4797
      %v4822 = vtanh.pop %v4798
      %v4823 = vtanh.pop %v4799
      %v4824 = vtanh.pop %v4800
      %v4825 = vtanh.pop %v4801
      %v4826 = vtanh.pop %v4802
      %v4827 = vtanh.pop %v4803
      %v4828 = vtanh.pop %v4804
      %v4829 = vtanh.pop %v4805
      %v4830 = vtanh.pop %v4806
      %v4831 = vtanh.pop %v4807
      %v4832 = vtanh.pop %v4808
      %v4833 = vtanh.pop %v4809
      %v4834 = vtanh.pop %v4810
      %v4835 = vtanh.pop %v4811
      %v4836 = vtanh.pop %v4812
      %v4837 = vtanh.pop %v4813
      %v4838 = vtanh.pop %v4814
      %v4839 = vtanh.pop %v4815
      %v4840 = vtanh.pop %v4816
      %v4841 = vtanh.pop %v4817
      %v4842 = vtanh.pop %v4818
      %v4843 = vtanh.pop %v4819
      %v4844 = vmul.f32 %v4820, 0.5
      %v4845 = vmul.f32 %v4821, 0.5
      %v4846 = vmul.f32 %v4822, 0.5
      %v4847 = vmul.f32 %v4823, 0.5
      %v4848 = vmul.f32 %v4824, 0.5
      %v4849 = vmul.f32 %v4825, 0.5
      %v4850 = vmul.f32 %v4826, 0.5
      %v4851 = vmul.f32 %v4827, 0.5
      %v4852 = vmul.f32 %v4828, 0.5
      %v4853 = vmul.f32 %v4829, 0.5
      %v4854 = vmul.f32 %v4830, 0.5
      %v4855 = vmul.f32 %v4831, 0.5
      %v4856 = vmul.f32 %v4832, 0.5
      %v4857 = vmul.f32 %v4833, 0.5
      %v4858 = vmul.f32 %v4834, 0.5
      %v4859 = vmul.f32 %v4835, 0.5
      %v4860 = vmul.f32 %v4836, 0.5
      %v4861 = vmul.f32 %v4837, 0.5
      %v4862 = vmul.f32 %v4838, 0.5
      %v4863 = vmul.f32 %v4839, 0.5
      %v4864 = vmul.f32 %v4840, 0.5
      %v4865 = vmul.f32 %v4841, 0.5
      %v4866 = vmul.f32 %v4842, 0.5
      %v4867 = vmul.f32 %v4843, 0.5
      %v4868 = vadd.f32 %v4844, 0.5
      %v4869 = vadd.f32 %v4845, 0.5
      %v4870 = vadd.f32 %v4846, 0.5
      %v4871 = vadd.f32 %v4847, 0.5
      %v4872 = vadd.f32 %v4848, 0.5
      %v4873 = vadd.f32 %v4849, 0.5
      %v4874 = vadd.f32 %v4850, 0.5
      %v4875 = vadd.f32 %v4851, 0.5
      %v4876 = vadd.f32 %v4852, 0.5
      %v4877 = vadd.f32 %v4853, 0.5
      %v4878 = vadd.f32 %v4854, 0.5
      %v4879 = vadd.f32 %v4855, 0.5
      %v4880 = vadd.f32 %v4856, 0.5
      %v4881 = vadd.f32 %v4857, 0.5
      %v4882 = vadd.f32 %v4858, 0.5
      %v4883 = vadd.f32 %v4859, 0.5
      %v4884 = vadd.f32 %v4860, 0.5
      %v4885 = vadd.f32 %v4861, 0.5
      %v4886 = vadd.f32 %v4862, 0.5
      %v4887 = vadd.f32 %v4863, 0.5
      %v4888 = vadd.f32 %v4864, 0.5
      %v4889 = vadd.f32 %v4865, 0.5
      %v4890 = vadd.f32 %v4866, 0.5
      %v4891 = vadd.f32 %v4867, 0.5
      %v4892 = vmul.f32 %v4554, %v4868
      %v4893 = vmul.f32 %v4555, %v4869
      %v4894 = vmul.f32 %v4556, %v4870
      %v4895 = vmul.f32 %v4557, %v4871
      %v4896 = vmul.f32 %v4558, %v4872
      %v4897 = vmul.f32 %v4559, %v4873
      %v4898 = vmul.f32 %v4560, %v4874
      %v4899 = vmul.f32 %v4561, %v4875
      %v4900 = vmul.f32 %v4562, %v4876
      %v4901 = vmul.f32 %v4563, %v4877
      %v4902 = vmul.f32 %v4564, %v4878
      %v4903 = vmul.f32 %v4565, %v4879
      %v4904 = vmul.f32 %v4566, %v4880
      %v4905 = vmul.f32 %v4567, %v4881
      %v4906 = vmul.f32 %v4568, %v4882
      %v4907 = vmul.f32 %v4569, %v4883
      %v4908 = vmul.f32 %v4570, %v4884
      %v4909 = vmul.f32 %v4571, %v4885
      %v4910 = vmul.f32 %v4572, %v4886
      %v4911 = vmul.f32 %v4573, %v4887
      %v4912 = vmul.f32 %v4574, %v4888
      %v4913 = vmul.f32 %v4575, %v4889
      %v4914 = vmul.f32 %v4576, %v4890
      %v4915 = vmul.f32 %v4577, %v4891
      %v4916 = vpack.c.bf16 %v4893, %v4892
      %v4917 = vpack.c.bf16 %v4895, %v4894
      %v4918 = vpack.c.bf16 %v4897, %v4896
      %v4919 = vpack.c.bf16 %v4899, %v4898
      %v4920 = vpack.c.bf16 %v4901, %v4900
      %v4921 = vpack.c.bf16 %v4903, %v4902
      %v4922 = vpack.c.bf16 %v4905, %v4904
      %v4923 = vpack.c.bf16 %v4907, %v4906
      %v4924 = vpack.c.bf16 %v4909, %v4908
      %v4925 = vpack.c.bf16 %v4911, %v4910
      %v4926 = vpack.c.bf16 %v4913, %v4912
      %v4927 = vpack.c.bf16 %v4915, %v4914
      %s4928 = scalar_lea.vmem %s3, 288
      %v4929 = vld [vmem:[%s4928] sm:$0xf]
      %v4930 = vld [vmem:[%s4928 + $0x4] sm:$0xf]
      %v4931 = vld [vmem:[%s4928 + $0x8] sm:$0xf]
      %v4932 = vld [vmem:[%s4928 + $0xc] sm:$0xf]
      %v4933 = vld [vmem:[%s4928 + $0x10] sm:$0xf]
      %v4934 = vld [vmem:[%s4928 + $0x14] sm:$0xf]
      %v4935 = vld [vmem:[%s4928 + $0x18] sm:$0xf]
      %v4936 = vld [vmem:[%s4928 + $0x1c] sm:$0xf]
      %s4937 = scalar_lea.vmem %s4, 9
      %v4938 = vld [vmem:[%s4937] sm:$0x1]
      %v4940 = vlaneseq
      %v4941 = vshrl.u32 %v4940, 7
      %v4942 = vsub.s32 0, %v4941
      %v4943 = vrot.slane %v4938, %v4942
      %v4953 = vunpack.c.l.b16 %v4929
      %v4954 = vunpack.c.l.b16 %v4930
      %v4955 = vunpack.c.l.b16 %v4931
      %v4956 = vunpack.c.l.b16 %v4932
      %v4957 = vunpack.c.l.b16 %v4933
      %v4958 = vunpack.c.l.b16 %v4934
      %v4959 = vunpack.c.l.b16 %v4935
      %v4960 = vunpack.c.l.b16 %v4936
      %v4961 = vpack.c.b16 %v4954, %v4953
      %v4962 = vpack.c.b16 %v4956, %v4955
      %v4963 = vpack.c.b16 %v4958, %v4957
      %v4964 = vpack.c.b16 %v4960, %v4959
      %v4970 = vsel %vm1926, %v4916, 0
      %v4973 = vsel %vm1926, %v4917, 0
      %v4976 = vsel %vm1926, %v4918, 0
      %v4979 = vsel %vm1926, %v4919, 0
      %v4982 = vsel %vm1926, %v4920, 0
      %v4985 = vsel %vm1926, %v4921, 0
      %v4988 = vsel %vm1926, %v4922, 0
      %v4991 = vsel %vm1926, %v4923, 0
      %v4994 = vsel %vm1926, %v4924, 0
      %v4997 = vsel %vm1926, %v4925, 0
      %v5000 = vsel %vm1926, %v4926, 0
      %v5003 = vsel %vm1926, %v4927, 0
      %5005 = vmatprep.subr.bf16.mxu0 0
      %5006 = vmatpush1.bf16.msra.mxu0 0
      %5007 = vmatprep.subr.bf16.mxu0 0
      %5008 = vmatpush1.bf16.msra.mxu0 0
      %5009 = vmatprep.subr.bf16.mxu0 0
      %5010 = vmatpush1.bf16.msra.mxu0 0
      %5011 = vmatprep.subr.bf16.mxu0 0
      %5012 = vmatpush1.bf16.msra.mxu0 0
      %5013 = vmatprep.subr.bf16.mxu0 0
      %5014 = vmatpush1.bf16.msra.mxu0 %v4964
      %5015 = vmatprep.subr.bf16.mxu0 0
      %5016 = vmatpush1.bf16.msra.mxu0 %v4963
      %5017 = vmatprep.subr.bf16.mxu0 0
      %5018 = vmatpush1.bf16.msra.mxu0 %v4962
      %5019 = vmatprep.subr.bf16.mxu0 0
      %5020 = vmatpush1.bf16.msra.mxu0 %v4961
      %5021 = vmatprep.subr.bf16.mxu0 0
      %5022 = vmatpush2.bf16.msra.mxu0 0
      %5023 = vmatprep.subr.bf16.mxu0 0
      %5024 = vmatpush2.bf16.msra.mxu0 0
      %5025 = vmatprep.subr.bf16.mxu0 0
      %5026 = vmatpush2.bf16.msra.mxu0 0
      %5027 = vmatprep.subr.bf16.mxu0 0
      %5028 = vmatpush2.bf16.msra.mxu0 0
      %5029 = vmatprep.subr.bf16.mxu0 0
      %5030 = vmatpush2.bf16.msra.mxu0 0
      %5031 = vmatprep.subr.bf16.mxu0 0
      %5032 = vmatpush2.bf16.msra.mxu0 0
      %5033 = vmatprep.subr.bf16.mxu0 0
      %5034 = vmatpush2.bf16.msra.mxu0 0
      %5035 = vmatprep.subr.bf16.mxu0 0
      %5036 = vmatpush2.bf16.msra.mxu0 0
      %5037 = vmatprep.mubr.bf16.mxu0 0
      %5038 = vmatmul.mubr.bf16.gmra.mxu0 %v4970
      %v5039 = vpop.f32.mrf.mxu0
      %v5040 = vadd.f32 %v4943, %v5039
      %v5041 = vpop.f32.mrf.mxu0
      %v5042 = vpop.f32.mrf.mxu0
      %v5043 = vadd.f32 %v4943, %v5042
      %v5044 = vpop.f32.mrf.mxu0
      %5045 = vmatprep.mubr.bf16.mxu0 0
      %5046 = vmatmul.mubr.bf16.gmra.mxu0 %v4973
      %v5047 = vpop.f32.mrf.mxu0
      %v5048 = vadd.f32 %v4943, %v5047
      %v5049 = vpop.f32.mrf.mxu0
      %v5050 = vpop.f32.mrf.mxu0
      %v5051 = vadd.f32 %v4943, %v5050
      %v5052 = vpop.f32.mrf.mxu0
      %5053 = vmatprep.mubr.bf16.mxu0 0
      %5054 = vmatmul.mubr.bf16.gmra.mxu0 %v4976
      %v5055 = vpop.f32.mrf.mxu0
      %v5056 = vadd.f32 %v4943, %v5055
      %v5057 = vpop.f32.mrf.mxu0
      %v5058 = vpop.f32.mrf.mxu0
      %v5059 = vadd.f32 %v4943, %v5058
      %v5060 = vpop.f32.mrf.mxu0
      %5061 = vmatprep.mubr.bf16.mxu0 0
      %5062 = vmatmul.mubr.bf16.gmra.mxu0 %v4979
      %v5063 = vpop.f32.mrf.mxu0
      %v5064 = vadd.f32 %v4943, %v5063
      %v5065 = vpop.f32.mrf.mxu0
      %v5066 = vpop.f32.mrf.mxu0
      %v5067 = vadd.f32 %v4943, %v5066
      %v5068 = vpop.f32.mrf.mxu0
      %5069 = vmatprep.mubr.bf16.mxu0 0
      %5070 = vmatmul.mubr.bf16.gmra.mxu0 %v4982
      %v5071 = vpop.f32.mrf.mxu0
      %v5072 = vadd.f32 %v4943, %v5071
      %v5073 = vpop.f32.mrf.mxu0
      %v5074 = vpop.f32.mrf.mxu0
      %v5075 = vadd.f32 %v4943, %v5074
      %v5076 = vpop.f32.mrf.mxu0
      %5077 = vmatprep.mubr.bf16.mxu0 0
      %5078 = vmatmul.mubr.bf16.gmra.mxu0 %v4985
      %v5079 = vpop.f32.mrf.mxu0
      %v5080 = vadd.f32 %v4943, %v5079
      %v5081 = vpop.f32.mrf.mxu0
      %v5082 = vpop.f32.mrf.mxu0
      %v5083 = vadd.f32 %v4943, %v5082
      %v5084 = vpop.f32.mrf.mxu0
      %5085 = vmatprep.mubr.bf16.mxu0 0
      %5086 = vmatmul.mubr.bf16.gmra.mxu0 %v4988
      %v5087 = vpop.f32.mrf.mxu0
      %v5088 = vadd.f32 %v4943, %v5087
      %v5089 = vpop.f32.mrf.mxu0
      %v5090 = vpop.f32.mrf.mxu0
      %v5091 = vadd.f32 %v4943, %v5090
      %v5092 = vpop.f32.mrf.mxu0
      %5093 = vmatprep.mubr.bf16.mxu0 0
      %5094 = vmatmul.mubr.bf16.gmra.mxu0 %v4991
      %v5095 = vpop.f32.mrf.mxu0
      %v5096 = vadd.f32 %v4943, %v5095
      %v5097 = vpop.f32.mrf.mxu0
      %v5098 = vpop.f32.mrf.mxu0
      %v5099 = vadd.f32 %v4943, %v5098
      %v5100 = vpop.f32.mrf.mxu0
      %5101 = vmatprep.mubr.bf16.mxu0 0
      %5102 = vmatmul.mubr.bf16.gmra.mxu0 %v4994
      %v5103 = vpop.f32.mrf.mxu0
      %v5104 = vadd.f32 %v4943, %v5103
      %v5105 = vpop.f32.mrf.mxu0
      %v5106 = vpop.f32.mrf.mxu0
      %v5107 = vadd.f32 %v4943, %v5106
      %v5108 = vpop.f32.mrf.mxu0
      %5109 = vmatprep.mubr.bf16.mxu0 0
      %5110 = vmatmul.mubr.bf16.gmra.mxu0 %v4997
      %v5111 = vpop.f32.mrf.mxu0
      %v5112 = vadd.f32 %v4943, %v5111
      %v5113 = vpop.f32.mrf.mxu0
      %v5114 = vpop.f32.mrf.mxu0
      %v5115 = vadd.f32 %v4943, %v5114
      %v5116 = vpop.f32.mrf.mxu0
      %5117 = vmatprep.mubr.bf16.mxu0 0
      %5118 = vmatmul.mubr.bf16.gmra.mxu0 %v5000
      %v5119 = vpop.f32.mrf.mxu0
      %v5120 = vadd.f32 %v4943, %v5119
      %v5121 = vpop.f32.mrf.mxu0
      %v5122 = vpop.f32.mrf.mxu0
      %v5123 = vadd.f32 %v4943, %v5122
      %v5124 = vpop.f32.mrf.mxu0
      %5125 = vmatprep.mubr.bf16.mxu0 0
      %5126 = vmatmul.mubr.bf16.gmra.mxu0 %v5003
      %v5127 = vpop.f32.mrf.mxu0
      %v5128 = vadd.f32 %v4943, %v5127
      %v5129 = vpop.f32.mrf.mxu0
      %v5130 = vpop.f32.mrf.mxu0
      %v5131 = vadd.f32 %v4943, %v5130
      %v5132 = vpop.f32.mrf.mxu0
      %5133 = vdwg.mxu0
      %v5134 = vmul.f32 %v5040, 0.5
      %v5135 = vmul.f32 %v5043, 0.5
      %v5136 = vmul.f32 %v5048, 0.5
      %v5137 = vmul.f32 %v5051, 0.5
      %v5138 = vmul.f32 %v5056, 0.5
      %v5139 = vmul.f32 %v5059, 0.5
      %v5140 = vmul.f32 %v5064, 0.5
      %v5141 = vmul.f32 %v5067, 0.5
      %v5142 = vmul.f32 %v5072, 0.5
      %v5143 = vmul.f32 %v5075, 0.5
      %v5144 = vmul.f32 %v5080, 0.5
      %v5145 = vmul.f32 %v5083, 0.5
      %v5146 = vmul.f32 %v5088, 0.5
      %v5147 = vmul.f32 %v5091, 0.5
      %v5148 = vmul.f32 %v5096, 0.5
      %v5149 = vmul.f32 %v5099, 0.5
      %v5150 = vmul.f32 %v5104, 0.5
      %v5151 = vmul.f32 %v5107, 0.5
      %v5152 = vmul.f32 %v5112, 0.5
      %v5153 = vmul.f32 %v5115, 0.5
      %v5154 = vmul.f32 %v5120, 0.5
      %v5155 = vmul.f32 %v5123, 0.5
      %v5156 = vmul.f32 %v5128, 0.5
      %v5157 = vmul.f32 %v5131, 0.5
      %v5158 = vtanh.pop %v5134
      %v5159 = vtanh.pop %v5135
      %v5160 = vtanh.pop %v5136
      %v5161 = vtanh.pop %v5137
      %v5162 = vtanh.pop %v5138
      %v5163 = vtanh.pop %v5139
      %v5164 = vtanh.pop %v5140
      %v5165 = vtanh.pop %v5141
      %v5166 = vtanh.pop %v5142
      %v5167 = vtanh.pop %v5143
      %v5168 = vtanh.pop %v5144
      %v5169 = vtanh.pop %v5145
      %v5170 = vtanh.pop %v5146
      %v5171 = vtanh.pop %v5147
      %v5172 = vtanh.pop %v5148
      %v5173 = vtanh.pop %v5149
      %v5174 = vtanh.pop %v5150
      %v5175 = vtanh.pop %v5151
      %v5176 = vtanh.pop %v5152
      %v5177 = vtanh.pop %v5153
      %v5178 = vtanh.pop %v5154
      %v5179 = vtanh.pop %v5155
      %v5180 = vtanh.pop %v5156
      %v5181 = vtanh.pop %v5157
      %v5182 = vmul.f32 %v5158, 0.5
      %v5183 = vmul.f32 %v5159, 0.5
      %v5184 = vmul.f32 %v5160, 0.5
      %v5185 = vmul.f32 %v5161, 0.5
      %v5186 = vmul.f32 %v5162, 0.5
      %v5187 = vmul.f32 %v5163, 0.5
      %v5188 = vmul.f32 %v5164, 0.5
      %v5189 = vmul.f32 %v5165, 0.5
      %v5190 = vmul.f32 %v5166, 0.5
      %v5191 = vmul.f32 %v5167, 0.5
      %v5192 = vmul.f32 %v5168, 0.5
      %v5193 = vmul.f32 %v5169, 0.5
      %v5194 = vmul.f32 %v5170, 0.5
      %v5195 = vmul.f32 %v5171, 0.5
      %v5196 = vmul.f32 %v5172, 0.5
      %v5197 = vmul.f32 %v5173, 0.5
      %v5198 = vmul.f32 %v5174, 0.5
      %v5199 = vmul.f32 %v5175, 0.5
      %v5200 = vmul.f32 %v5176, 0.5
      %v5201 = vmul.f32 %v5177, 0.5
      %v5202 = vmul.f32 %v5178, 0.5
      %v5203 = vmul.f32 %v5179, 0.5
      %v5204 = vmul.f32 %v5180, 0.5
      %v5205 = vmul.f32 %v5181, 0.5
      %v5206 = vadd.f32 %v5182, 0.5
      %v5207 = vadd.f32 %v5183, 0.5
      %v5208 = vadd.f32 %v5184, 0.5
      %v5209 = vadd.f32 %v5185, 0.5
      %v5210 = vadd.f32 %v5186, 0.5
      %v5211 = vadd.f32 %v5187, 0.5
      %v5212 = vadd.f32 %v5188, 0.5
      %v5213 = vadd.f32 %v5189, 0.5
      %v5214 = vadd.f32 %v5190, 0.5
      %v5215 = vadd.f32 %v5191, 0.5
      %v5216 = vadd.f32 %v5192, 0.5
      %v5217 = vadd.f32 %v5193, 0.5
      %v5218 = vadd.f32 %v5194, 0.5
      %v5219 = vadd.f32 %v5195, 0.5
      %v5220 = vadd.f32 %v5196, 0.5
      %v5221 = vadd.f32 %v5197, 0.5
      %v5222 = vadd.f32 %v5198, 0.5
      %v5223 = vadd.f32 %v5199, 0.5
      %v5224 = vadd.f32 %v5200, 0.5
      %v5225 = vadd.f32 %v5201, 0.5
      %v5226 = vadd.f32 %v5202, 0.5
      %v5227 = vadd.f32 %v5203, 0.5
      %v5228 = vadd.f32 %v5204, 0.5
      %v5229 = vadd.f32 %v5205, 0.5
      %v5230 = vmul.f32 %v4892, %v5206
      %v5231 = vmul.f32 %v4893, %v5207
      %v5232 = vmul.f32 %v4894, %v5208
      %v5233 = vmul.f32 %v4895, %v5209
      %v5234 = vmul.f32 %v4896, %v5210
      %v5235 = vmul.f32 %v4897, %v5211
      %v5236 = vmul.f32 %v4898, %v5212
      %v5237 = vmul.f32 %v4899, %v5213
      %v5238 = vmul.f32 %v4900, %v5214
      %v5239 = vmul.f32 %v4901, %v5215
      %v5240 = vmul.f32 %v4902, %v5216
      %v5241 = vmul.f32 %v4903, %v5217
      %v5242 = vmul.f32 %v4904, %v5218
      %v5243 = vmul.f32 %v4905, %v5219
      %v5244 = vmul.f32 %v4906, %v5220
      %v5245 = vmul.f32 %v4907, %v5221
      %v5246 = vmul.f32 %v4908, %v5222
      %v5247 = vmul.f32 %v4909, %v5223
      %v5248 = vmul.f32 %v4910, %v5224
      %v5249 = vmul.f32 %v4911, %v5225
      %v5250 = vmul.f32 %v4912, %v5226
      %v5251 = vmul.f32 %v4913, %v5227
      %v5252 = vmul.f32 %v4914, %v5228
      %v5253 = vmul.f32 %v4915, %v5229
      %v5254 = vpack.c.bf16 %v5231, %v5230
      %v5255 = vpack.c.bf16 %v5233, %v5232
      %v5256 = vpack.c.bf16 %v5235, %v5234
      %v5257 = vpack.c.bf16 %v5237, %v5236
      %v5258 = vpack.c.bf16 %v5239, %v5238
      %v5259 = vpack.c.bf16 %v5241, %v5240
      %v5260 = vpack.c.bf16 %v5243, %v5242
      %v5261 = vpack.c.bf16 %v5245, %v5244
      %v5262 = vpack.c.bf16 %v5247, %v5246
      %v5263 = vpack.c.bf16 %v5249, %v5248
      %v5264 = vpack.c.bf16 %v5251, %v5250
      %v5265 = vpack.c.bf16 %v5253, %v5252
      %s5266 = scalar_lea.vmem %s3, 320
      %v5267 = vld [vmem:[%s5266] sm:$0xf]
      %v5268 = vld [vmem:[%s5266 + $0x4] sm:$0xf]
      %v5269 = vld [vmem:[%s5266 + $0x8] sm:$0xf]
      %v5270 = vld [vmem:[%s5266 + $0xc] sm:$0xf]
      %v5271 = vld [vmem:[%s5266 + $0x10] sm:$0xf]
      %v5272 = vld [vmem:[%s5266 + $0x14] sm:$0xf]
      %v5273 = vld [vmem:[%s5266 + $0x18] sm:$0xf]
      %v5274 = vld [vmem:[%s5266 + $0x1c] sm:$0xf]
      %s5275 = scalar_lea.vmem %s4, 10
      %v5276 = vld [vmem:[%s5275] sm:$0x1]
      %v5278 = vlaneseq
      %v5279 = vshrl.u32 %v5278, 7
      %v5280 = vsub.s32 0, %v5279
      %v5281 = vrot.slane %v5276, %v5280
      %v5291 = vunpack.c.l.b16 %v5267
      %v5292 = vunpack.c.l.b16 %v5268
      %v5293 = vunpack.c.l.b16 %v5269
      %v5294 = vunpack.c.l.b16 %v5270
      %v5295 = vunpack.c.l.b16 %v5271
      %v5296 = vunpack.c.l.b16 %v5272
      %v5297 = vunpack.c.l.b16 %v5273
      %v5298 = vunpack.c.l.b16 %v5274
      %v5299 = vpack.c.b16 %v5292, %v5291
      %v5300 = vpack.c.b16 %v5294, %v5293
      %v5301 = vpack.c.b16 %v5296, %v5295
      %v5302 = vpack.c.b16 %v5298, %v5297
      %v5308 = vsel %vm1926, %v5254, 0
      %v5311 = vsel %vm1926, %v5255, 0
      %v5314 = vsel %vm1926, %v5256, 0
      %v5317 = vsel %vm1926, %v5257, 0
      %v5320 = vsel %vm1926, %v5258, 0
      %v5323 = vsel %vm1926, %v5259, 0
      %v5326 = vsel %vm1926, %v5260, 0
      %v5329 = vsel %vm1926, %v5261, 0
      %v5332 = vsel %vm1926, %v5262, 0
      %v5335 = vsel %vm1926, %v5263, 0
      %v5338 = vsel %vm1926, %v5264, 0
      %v5341 = vsel %vm1926, %v5265, 0
      %5343 = vmatprep.subr.bf16.mxu0 0
      %5344 = vmatpush1.bf16.msra.mxu0 0
      %5345 = vmatprep.subr.bf16.mxu0 0
      %5346 = vmatpush1.bf16.msra.mxu0 0
      %5347 = vmatprep.subr.bf16.mxu0 0
      %5348 = vmatpush1.bf16.msra.mxu0 0
      %5349 = vmatprep.subr.bf16.mxu0 0
      %5350 = vmatpush1.bf16.msra.mxu0 0
      %5351 = vmatprep.subr.bf16.mxu0 0
      %5352 = vmatpush1.bf16.msra.mxu0 %v5302
      %5353 = vmatprep.subr.bf16.mxu0 0
      %5354 = vmatpush1.bf16.msra.mxu0 %v5301
      %5355 = vmatprep.subr.bf16.mxu0 0
      %5356 = vmatpush1.bf16.msra.mxu0 %v5300
      %5357 = vmatprep.subr.bf16.mxu0 0
      %5358 = vmatpush1.bf16.msra.mxu0 %v5299
      %5359 = vmatprep.subr.bf16.mxu0 0
      %5360 = vmatpush2.bf16.msra.mxu0 0
      %5361 = vmatprep.subr.bf16.mxu0 0
      %5362 = vmatpush2.bf16.msra.mxu0 0
      %5363 = vmatprep.subr.bf16.mxu0 0
      %5364 = vmatpush2.bf16.msra.mxu0 0
      %5365 = vmatprep.subr.bf16.mxu0 0
      %5366 = vmatpush2.bf16.msra.mxu0 0
      %5367 = vmatprep.subr.bf16.mxu0 0
      %5368 = vmatpush2.bf16.msra.mxu0 0
      %5369 = vmatprep.subr.bf16.mxu0 0
      %5370 = vmatpush2.bf16.msra.mxu0 0
      %5371 = vmatprep.subr.bf16.mxu0 0
      %5372 = vmatpush2.bf16.msra.mxu0 0
      %5373 = vmatprep.subr.bf16.mxu0 0
      %5374 = vmatpush2.bf16.msra.mxu0 0
      %5375 = vmatprep.mubr.bf16.mxu0 0
      %5376 = vmatmul.mubr.bf16.gmra.mxu0 %v5308
      %v5377 = vpop.f32.mrf.mxu0
      %v5378 = vadd.f32 %v5281, %v5377
      %v5379 = vpop.f32.mrf.mxu0
      %v5380 = vpop.f32.mrf.mxu0
      %v5381 = vadd.f32 %v5281, %v5380
      %v5382 = vpop.f32.mrf.mxu0
      %5383 = vmatprep.mubr.bf16.mxu0 0
      %5384 = vmatmul.mubr.bf16.gmra.mxu0 %v5311
      %v5385 = vpop.f32.mrf.mxu0
      %v5386 = vadd.f32 %v5281, %v5385
      %v5387 = vpop.f32.mrf.mxu0
      %v5388 = vpop.f32.mrf.mxu0
      %v5389 = vadd.f32 %v5281, %v5388
      %v5390 = vpop.f32.mrf.mxu0
      %5391 = vmatprep.mubr.bf16.mxu0 0
      %5392 = vmatmul.mubr.bf16.gmra.mxu0 %v5314
      %v5393 = vpop.f32.mrf.mxu0
      %v5394 = vadd.f32 %v5281, %v5393
      %v5395 = vpop.f32.mrf.mxu0
      %v5396 = vpop.f32.mrf.mxu0
      %v5397 = vadd.f32 %v5281, %v5396
      %v5398 = vpop.f32.mrf.mxu0
      %5399 = vmatprep.mubr.bf16.mxu0 0
      %5400 = vmatmul.mubr.bf16.gmra.mxu0 %v5317
      %v5401 = vpop.f32.mrf.mxu0
      %v5402 = vadd.f32 %v5281, %v5401
      %v5403 = vpop.f32.mrf.mxu0
      %v5404 = vpop.f32.mrf.mxu0
      %v5405 = vadd.f32 %v5281, %v5404
      %v5406 = vpop.f32.mrf.mxu0
      %5407 = vmatprep.mubr.bf16.mxu0 0
      %5408 = vmatmul.mubr.bf16.gmra.mxu0 %v5320
      %v5409 = vpop.f32.mrf.mxu0
      %v5410 = vadd.f32 %v5281, %v5409
      %v5411 = vpop.f32.mrf.mxu0
      %v5412 = vpop.f32.mrf.mxu0
      %v5413 = vadd.f32 %v5281, %v5412
      %v5414 = vpop.f32.mrf.mxu0
      %5415 = vmatprep.mubr.bf16.mxu0 0
      %5416 = vmatmul.mubr.bf16.gmra.mxu0 %v5323
      %v5417 = vpop.f32.mrf.mxu0
      %v5418 = vadd.f32 %v5281, %v5417
      %v5419 = vpop.f32.mrf.mxu0
      %v5420 = vpop.f32.mrf.mxu0
      %v5421 = vadd.f32 %v5281, %v5420
      %v5422 = vpop.f32.mrf.mxu0
      %5423 = vmatprep.mubr.bf16.mxu0 0
      %5424 = vmatmul.mubr.bf16.gmra.mxu0 %v5326
      %v5425 = vpop.f32.mrf.mxu0
      %v5426 = vadd.f32 %v5281, %v5425
      %v5427 = vpop.f32.mrf.mxu0
      %v5428 = vpop.f32.mrf.mxu0
      %v5429 = vadd.f32 %v5281, %v5428
      %v5430 = vpop.f32.mrf.mxu0
      %5431 = vmatprep.mubr.bf16.mxu0 0
      %5432 = vmatmul.mubr.bf16.gmra.mxu0 %v5329
      %v5433 = vpop.f32.mrf.mxu0
      %v5434 = vadd.f32 %v5281, %v5433
      %v5435 = vpop.f32.mrf.mxu0
      %v5436 = vpop.f32.mrf.mxu0
      %v5437 = vadd.f32 %v5281, %v5436
      %v5438 = vpop.f32.mrf.mxu0
      %5439 = vmatprep.mubr.bf16.mxu0 0
      %5440 = vmatmul.mubr.bf16.gmra.mxu0 %v5332
      %v5441 = vpop.f32.mrf.mxu0
      %v5442 = vadd.f32 %v5281, %v5441
      %v5443 = vpop.f32.mrf.mxu0
      %v5444 = vpop.f32.mrf.mxu0
      %v5445 = vadd.f32 %v5281, %v5444
      %v5446 = vpop.f32.mrf.mxu0
      %5447 = vmatprep.mubr.bf16.mxu0 0
      %5448 = vmatmul.mubr.bf16.gmra.mxu0 %v5335
      %v5449 = vpop.f32.mrf.mxu0
      %v5450 = vadd.f32 %v5281, %v5449
      %v5451 = vpop.f32.mrf.mxu0
      %v5452 = vpop.f32.mrf.mxu0
      %v5453 = vadd.f32 %v5281, %v5452
      %v5454 = vpop.f32.mrf.mxu0
      %5455 = vmatprep.mubr.bf16.mxu0 0
      %5456 = vmatmul.mubr.bf16.gmra.mxu0 %v5338
      %v5457 = vpop.f32.mrf.mxu0
      %v5458 = vadd.f32 %v5281, %v5457
      %v5459 = vpop.f32.mrf.mxu0
      %v5460 = vpop.f32.mrf.mxu0
      %v5461 = vadd.f32 %v5281, %v5460
      %v5462 = vpop.f32.mrf.mxu0
      %5463 = vmatprep.mubr.bf16.mxu0 0
      %5464 = vmatmul.mubr.bf16.gmra.mxu0 %v5341
      %v5465 = vpop.f32.mrf.mxu0
      %v5466 = vadd.f32 %v5281, %v5465
      %v5467 = vpop.f32.mrf.mxu0
      %v5468 = vpop.f32.mrf.mxu0
      %v5469 = vadd.f32 %v5281, %v5468
      %v5470 = vpop.f32.mrf.mxu0
      %5471 = vdwg.mxu0
      %v5472 = vmul.f32 %v5378, 0.5
      %v5473 = vmul.f32 %v5381, 0.5
      %v5474 = vmul.f32 %v5386, 0.5
      %v5475 = vmul.f32 %v5389, 0.5
      %v5476 = vmul.f32 %v5394, 0.5
      %v5477 = vmul.f32 %v5397, 0.5
      %v5478 = vmul.f32 %v5402, 0.5
      %v5479 = vmul.f32 %v5405, 0.5
      %v5480 = vmul.f32 %v5410, 0.5
      %v5481 = vmul.f32 %v5413, 0.5
      %v5482 = vmul.f32 %v5418, 0.5
      %v5483 = vmul.f32 %v5421, 0.5
      %v5484 = vmul.f32 %v5426, 0.5
      %v5485 = vmul.f32 %v5429, 0.5
      %v5486 = vmul.f32 %v5434, 0.5
      %v5487 = vmul.f32 %v5437, 0.5
      %v5488 = vmul.f32 %v5442, 0.5
      %v5489 = vmul.f32 %v5445, 0.5
      %v5490 = vmul.f32 %v5450, 0.5
      %v5491 = vmul.f32 %v5453, 0.5
      %v5492 = vmul.f32 %v5458, 0.5
      %v5493 = vmul.f32 %v5461, 0.5
      %v5494 = vmul.f32 %v5466, 0.5
      %v5495 = vmul.f32 %v5469, 0.5
      %v5496 = vtanh.pop %v5472
      %v5497 = vtanh.pop %v5473
      %v5498 = vtanh.pop %v5474
      %v5499 = vtanh.pop %v5475
      %v5500 = vtanh.pop %v5476
      %v5501 = vtanh.pop %v5477
      %v5502 = vtanh.pop %v5478
      %v5503 = vtanh.pop %v5479
      %v5504 = vtanh.pop %v5480
      %v5505 = vtanh.pop %v5481
      %v5506 = vtanh.pop %v5482
      %v5507 = vtanh.pop %v5483
      %v5508 = vtanh.pop %v5484
      %v5509 = vtanh.pop %v5485
      %v5510 = vtanh.pop %v5486
      %v5511 = vtanh.pop %v5487
      %v5512 = vtanh.pop %v5488
      %v5513 = vtanh.pop %v5489
      %v5514 = vtanh.pop %v5490
      %v5515 = vtanh.pop %v5491
      %v5516 = vtanh.pop %v5492
      %v5517 = vtanh.pop %v5493
      %v5518 = vtanh.pop %v5494
      %v5519 = vtanh.pop %v5495
      %v5520 = vmul.f32 %v5496, 0.5
      %v5521 = vmul.f32 %v5497, 0.5
      %v5522 = vmul.f32 %v5498, 0.5
      %v5523 = vmul.f32 %v5499, 0.5
      %v5524 = vmul.f32 %v5500, 0.5
      %v5525 = vmul.f32 %v5501, 0.5
      %v5526 = vmul.f32 %v5502, 0.5
      %v5527 = vmul.f32 %v5503, 0.5
      %v5528 = vmul.f32 %v5504, 0.5
      %v5529 = vmul.f32 %v5505, 0.5
      %v5530 = vmul.f32 %v5506, 0.5
      %v5531 = vmul.f32 %v5507, 0.5
      %v5532 = vmul.f32 %v5508, 0.5
      %v5533 = vmul.f32 %v5509, 0.5
      %v5534 = vmul.f32 %v5510, 0.5
      %v5535 = vmul.f32 %v5511, 0.5
      %v5536 = vmul.f32 %v5512, 0.5
      %v5537 = vmul.f32 %v5513, 0.5
      %v5538 = vmul.f32 %v5514, 0.5
      %v5539 = vmul.f32 %v5515, 0.5
      %v5540 = vmul.f32 %v5516, 0.5
      %v5541 = vmul.f32 %v5517, 0.5
      %v5542 = vmul.f32 %v5518, 0.5
      %v5543 = vmul.f32 %v5519, 0.5
      %v5544 = vadd.f32 %v5520, 0.5
      %v5545 = vadd.f32 %v5521, 0.5
      %v5546 = vadd.f32 %v5522, 0.5
      %v5547 = vadd.f32 %v5523, 0.5
      %v5548 = vadd.f32 %v5524, 0.5
      %v5549 = vadd.f32 %v5525, 0.5
      %v5550 = vadd.f32 %v5526, 0.5
      %v5551 = vadd.f32 %v5527, 0.5
      %v5552 = vadd.f32 %v5528, 0.5
      %v5553 = vadd.f32 %v5529, 0.5
      %v5554 = vadd.f32 %v5530, 0.5
      %v5555 = vadd.f32 %v5531, 0.5
      %v5556 = vadd.f32 %v5532, 0.5
      %v5557 = vadd.f32 %v5533, 0.5
      %v5558 = vadd.f32 %v5534, 0.5
      %v5559 = vadd.f32 %v5535, 0.5
      %v5560 = vadd.f32 %v5536, 0.5
      %v5561 = vadd.f32 %v5537, 0.5
      %v5562 = vadd.f32 %v5538, 0.5
      %v5563 = vadd.f32 %v5539, 0.5
      %v5564 = vadd.f32 %v5540, 0.5
      %v5565 = vadd.f32 %v5541, 0.5
      %v5566 = vadd.f32 %v5542, 0.5
      %v5567 = vadd.f32 %v5543, 0.5
      %v5568 = vmul.f32 %v5230, %v5544
      %v5569 = vmul.f32 %v5231, %v5545
      %v5570 = vmul.f32 %v5232, %v5546
      %v5571 = vmul.f32 %v5233, %v5547
      %v5572 = vmul.f32 %v5234, %v5548
      %v5573 = vmul.f32 %v5235, %v5549
      %v5574 = vmul.f32 %v5236, %v5550
      %v5575 = vmul.f32 %v5237, %v5551
      %v5576 = vmul.f32 %v5238, %v5552
      %v5577 = vmul.f32 %v5239, %v5553
      %v5578 = vmul.f32 %v5240, %v5554
      %v5579 = vmul.f32 %v5241, %v5555
      %v5580 = vmul.f32 %v5242, %v5556
      %v5581 = vmul.f32 %v5243, %v5557
      %v5582 = vmul.f32 %v5244, %v5558
      %v5583 = vmul.f32 %v5245, %v5559
      %v5584 = vmul.f32 %v5246, %v5560
      %v5585 = vmul.f32 %v5247, %v5561
      %v5586 = vmul.f32 %v5248, %v5562
      %v5587 = vmul.f32 %v5249, %v5563
      %v5588 = vmul.f32 %v5250, %v5564
      %v5589 = vmul.f32 %v5251, %v5565
      %v5590 = vmul.f32 %v5252, %v5566
      %v5591 = vmul.f32 %v5253, %v5567
      %v5592 = vpack.c.bf16 %v5569, %v5568
      %v5593 = vpack.c.bf16 %v5571, %v5570
      %v5594 = vpack.c.bf16 %v5573, %v5572
      %v5595 = vpack.c.bf16 %v5575, %v5574
      %v5596 = vpack.c.bf16 %v5577, %v5576
      %v5597 = vpack.c.bf16 %v5579, %v5578
      %v5598 = vpack.c.bf16 %v5581, %v5580
      %v5599 = vpack.c.bf16 %v5583, %v5582
      %v5600 = vpack.c.bf16 %v5585, %v5584
      %v5601 = vpack.c.bf16 %v5587, %v5586
      %v5602 = vpack.c.bf16 %v5589, %v5588
      %v5603 = vpack.c.bf16 %v5591, %v5590
      %s5604 = scalar_lea.vmem %s3, 352
      %v5605 = vld [vmem:[%s5604] sm:$0xf]
      %v5606 = vld [vmem:[%s5604 + $0x4] sm:$0xf]
      %v5607 = vld [vmem:[%s5604 + $0x8] sm:$0xf]
      %v5608 = vld [vmem:[%s5604 + $0xc] sm:$0xf]
      %v5609 = vld [vmem:[%s5604 + $0x10] sm:$0xf]
      %v5610 = vld [vmem:[%s5604 + $0x14] sm:$0xf]
      %v5611 = vld [vmem:[%s5604 + $0x18] sm:$0xf]
      %v5612 = vld [vmem:[%s5604 + $0x1c] sm:$0xf]
      %s5613 = scalar_lea.vmem %s4, 11
      %v5614 = vld [vmem:[%s5613] sm:$0x1]
      %v5616 = vlaneseq
      %v5617 = vshrl.u32 %v5616, 7
      %v5618 = vsub.s32 0, %v5617
      %v5619 = vrot.slane %v5614, %v5618
      %v5629 = vunpack.c.l.b16 %v5605
      %v5630 = vunpack.c.l.b16 %v5606
      %v5631 = vunpack.c.l.b16 %v5607
      %v5632 = vunpack.c.l.b16 %v5608
      %v5633 = vunpack.c.l.b16 %v5609
      %v5634 = vunpack.c.l.b16 %v5610
      %v5635 = vunpack.c.l.b16 %v5611
      %v5636 = vunpack.c.l.b16 %v5612
      %v5637 = vpack.c.b16 %v5630, %v5629
      %v5638 = vpack.c.b16 %v5632, %v5631
      %v5639 = vpack.c.b16 %v5634, %v5633
      %v5640 = vpack.c.b16 %v5636, %v5635
      %v5646 = vsel %vm1926, %v5592, 0
      %v5649 = vsel %vm1926, %v5593, 0
      %v5652 = vsel %vm1926, %v5594, 0
      %v5655 = vsel %vm1926, %v5595, 0
      %v5658 = vsel %vm1926, %v5596, 0
      %v5661 = vsel %vm1926, %v5597, 0
      %v5664 = vsel %vm1926, %v5598, 0
      %v5667 = vsel %vm1926, %v5599, 0
      %v5670 = vsel %vm1926, %v5600, 0
      %v5673 = vsel %vm1926, %v5601, 0
      %v5676 = vsel %vm1926, %v5602, 0
      %v5679 = vsel %vm1926, %v5603, 0
      %5681 = vmatprep.subr.bf16.mxu0 0
      %5682 = vmatpush1.bf16.msra.mxu0 0
      %5683 = vmatprep.subr.bf16.mxu0 0
      %5684 = vmatpush1.bf16.msra.mxu0 0
      %5685 = vmatprep.subr.bf16.mxu0 0
      %5686 = vmatpush1.bf16.msra.mxu0 0
      %5687 = vmatprep.subr.bf16.mxu0 0
      %5688 = vmatpush1.bf16.msra.mxu0 0
      %5689 = vmatprep.subr.bf16.mxu0 0
      %5690 = vmatpush1.bf16.msra.mxu0 %v5640
      %5691 = vmatprep.subr.bf16.mxu0 0
      %5692 = vmatpush1.bf16.msra.mxu0 %v5639
      %5693 = vmatprep.subr.bf16.mxu0 0
      %5694 = vmatpush1.bf16.msra.mxu0 %v5638
      %5695 = vmatprep.subr.bf16.mxu0 0
      %5696 = vmatpush1.bf16.msra.mxu0 %v5637
      %5697 = vmatprep.subr.bf16.mxu0 0
      %5698 = vmatpush2.bf16.msra.mxu0 0
      %5699 = vmatprep.subr.bf16.mxu0 0
      %5700 = vmatpush2.bf16.msra.mxu0 0
      %5701 = vmatprep.subr.bf16.mxu0 0
      %5702 = vmatpush2.bf16.msra.mxu0 0
      %5703 = vmatprep.subr.bf16.mxu0 0
      %5704 = vmatpush2.bf16.msra.mxu0 0
      %5705 = vmatprep.subr.bf16.mxu0 0
      %5706 = vmatpush2.bf16.msra.mxu0 0
      %5707 = vmatprep.subr.bf16.mxu0 0
      %5708 = vmatpush2.bf16.msra.mxu0 0
      %5709 = vmatprep.subr.bf16.mxu0 0
      %5710 = vmatpush2.bf16.msra.mxu0 0
      %5711 = vmatprep.subr.bf16.mxu0 0
      %5712 = vmatpush2.bf16.msra.mxu0 0
      %5713 = vmatprep.mubr.bf16.mxu0 0
      %5714 = vmatmul.mubr.bf16.gmra.mxu0 %v5646
      %v5715 = vpop.f32.mrf.mxu0
      %v5716 = vadd.f32 %v5619, %v5715
      %v5717 = vpop.f32.mrf.mxu0
      %v5718 = vpop.f32.mrf.mxu0
      %v5719 = vadd.f32 %v5619, %v5718
      %v5720 = vpop.f32.mrf.mxu0
      %5721 = vmatprep.mubr.bf16.mxu0 0
      %5722 = vmatmul.mubr.bf16.gmra.mxu0 %v5649
      %v5723 = vpop.f32.mrf.mxu0
      %v5724 = vadd.f32 %v5619, %v5723
      %v5725 = vpop.f32.mrf.mxu0
      %v5726 = vpop.f32.mrf.mxu0
      %v5727 = vadd.f32 %v5619, %v5726
      %v5728 = vpop.f32.mrf.mxu0
      %5729 = vmatprep.mubr.bf16.mxu0 0
      %5730 = vmatmul.mubr.bf16.gmra.mxu0 %v5652
      %v5731 = vpop.f32.mrf.mxu0
      %v5732 = vadd.f32 %v5619, %v5731
      %v5733 = vpop.f32.mrf.mxu0
      %v5734 = vpop.f32.mrf.mxu0
      %v5735 = vadd.f32 %v5619, %v5734
      %v5736 = vpop.f32.mrf.mxu0
      %5737 = vmatprep.mubr.bf16.mxu0 0
      %5738 = vmatmul.mubr.bf16.gmra.mxu0 %v5655
      %v5739 = vpop.f32.mrf.mxu0
      %v5740 = vadd.f32 %v5619, %v5739
      %v5741 = vpop.f32.mrf.mxu0
      %v5742 = vpop.f32.mrf.mxu0
      %v5743 = vadd.f32 %v5619, %v5742
      %v5744 = vpop.f32.mrf.mxu0
      %5745 = vmatprep.mubr.bf16.mxu0 0
      %5746 = vmatmul.mubr.bf16.gmra.mxu0 %v5658
      %v5747 = vpop.f32.mrf.mxu0
      %v5748 = vadd.f32 %v5619, %v5747
      %v5749 = vpop.f32.mrf.mxu0
      %v5750 = vpop.f32.mrf.mxu0
      %v5751 = vadd.f32 %v5619, %v5750
      %v5752 = vpop.f32.mrf.mxu0
      %5753 = vmatprep.mubr.bf16.mxu0 0
      %5754 = vmatmul.mubr.bf16.gmra.mxu0 %v5661
      %v5755 = vpop.f32.mrf.mxu0
      %v5756 = vadd.f32 %v5619, %v5755
      %v5757 = vpop.f32.mrf.mxu0
      %v5758 = vpop.f32.mrf.mxu0
      %v5759 = vadd.f32 %v5619, %v5758
      %v5760 = vpop.f32.mrf.mxu0
      %5761 = vmatprep.mubr.bf16.mxu0 0
      %5762 = vmatmul.mubr.bf16.gmra.mxu0 %v5664
      %v5763 = vpop.f32.mrf.mxu0
      %v5764 = vadd.f32 %v5619, %v5763
      %v5765 = vpop.f32.mrf.mxu0
      %v5766 = vpop.f32.mrf.mxu0
      %v5767 = vadd.f32 %v5619, %v5766
      %v5768 = vpop.f32.mrf.mxu0
      %5769 = vmatprep.mubr.bf16.mxu0 0
      %5770 = vmatmul.mubr.bf16.gmra.mxu0 %v5667
      %v5771 = vpop.f32.mrf.mxu0
      %v5772 = vadd.f32 %v5619, %v5771
      %v5773 = vpop.f32.mrf.mxu0
      %v5774 = vpop.f32.mrf.mxu0
      %v5775 = vadd.f32 %v5619, %v5774
      %v5776 = vpop.f32.mrf.mxu0
      %5777 = vmatprep.mubr.bf16.mxu0 0
      %5778 = vmatmul.mubr.bf16.gmra.mxu0 %v5670
      %v5779 = vpop.f32.mrf.mxu0
      %v5780 = vadd.f32 %v5619, %v5779
      %v5781 = vpop.f32.mrf.mxu0
      %v5782 = vpop.f32.mrf.mxu0
      %v5783 = vadd.f32 %v5619, %v5782
      %v5784 = vpop.f32.mrf.mxu0
      %5785 = vmatprep.mubr.bf16.mxu0 0
      %5786 = vmatmul.mubr.bf16.gmra.mxu0 %v5673
      %v5787 = vpop.f32.mrf.mxu0
      %v5788 = vadd.f32 %v5619, %v5787
      %v5789 = vpop.f32.mrf.mxu0
      %v5790 = vpop.f32.mrf.mxu0
      %v5791 = vadd.f32 %v5619, %v5790
      %v5792 = vpop.f32.mrf.mxu0
      %5793 = vmatprep.mubr.bf16.mxu0 0
      %5794 = vmatmul.mubr.bf16.gmra.mxu0 %v5676
      %v5795 = vpop.f32.mrf.mxu0
      %v5796 = vadd.f32 %v5619, %v5795
      %v5797 = vpop.f32.mrf.mxu0
      %v5798 = vpop.f32.mrf.mxu0
      %v5799 = vadd.f32 %v5619, %v5798
      %v5800 = vpop.f32.mrf.mxu0
      %5801 = vmatprep.mubr.bf16.mxu0 0
      %5802 = vmatmul.mubr.bf16.gmra.mxu0 %v5679
      %v5803 = vpop.f32.mrf.mxu0
      %v5804 = vadd.f32 %v5619, %v5803
      %v5805 = vpop.f32.mrf.mxu0
      %v5806 = vpop.f32.mrf.mxu0
      %v5807 = vadd.f32 %v5619, %v5806
      %v5808 = vpop.f32.mrf.mxu0
      %5809 = vdwg.mxu0
      %v5810 = vmul.f32 %v5716, 0.5
      %v5811 = vmul.f32 %v5719, 0.5
      %v5812 = vmul.f32 %v5724, 0.5
      %v5813 = vmul.f32 %v5727, 0.5
      %v5814 = vmul.f32 %v5732, 0.5
      %v5815 = vmul.f32 %v5735, 0.5
      %v5816 = vmul.f32 %v5740, 0.5
      %v5817 = vmul.f32 %v5743, 0.5
      %v5818 = vmul.f32 %v5748, 0.5
      %v5819 = vmul.f32 %v5751, 0.5
      %v5820 = vmul.f32 %v5756, 0.5
      %v5821 = vmul.f32 %v5759, 0.5
      %v5822 = vmul.f32 %v5764, 0.5
      %v5823 = vmul.f32 %v5767, 0.5
      %v5824 = vmul.f32 %v5772, 0.5
      %v5825 = vmul.f32 %v5775, 0.5
      %v5826 = vmul.f32 %v5780, 0.5
      %v5827 = vmul.f32 %v5783, 0.5
      %v5828 = vmul.f32 %v5788, 0.5
      %v5829 = vmul.f32 %v5791, 0.5
      %v5830 = vmul.f32 %v5796, 0.5
      %v5831 = vmul.f32 %v5799, 0.5
      %v5832 = vmul.f32 %v5804, 0.5
      %v5833 = vmul.f32 %v5807, 0.5
      %v5834 = vtanh.pop %v5810
      %v5835 = vtanh.pop %v5811
      %v5836 = vtanh.pop %v5812
      %v5837 = vtanh.pop %v5813
      %v5838 = vtanh.pop %v5814
      %v5839 = vtanh.pop %v5815
      %v5840 = vtanh.pop %v5816
      %v5841 = vtanh.pop %v5817
      %v5842 = vtanh.pop %v5818
      %v5843 = vtanh.pop %v5819
      %v5844 = vtanh.pop %v5820
      %v5845 = vtanh.pop %v5821
      %v5846 = vtanh.pop %v5822
      %v5847 = vtanh.pop %v5823
      %v5848 = vtanh.pop %v5824
      %v5849 = vtanh.pop %v5825
      %v5850 = vtanh.pop %v5826
      %v5851 = vtanh.pop %v5827
      %v5852 = vtanh.pop %v5828
      %v5853 = vtanh.pop %v5829
      %v5854 = vtanh.pop %v5830
      %v5855 = vtanh.pop %v5831
      %v5856 = vtanh.pop %v5832
      %v5857 = vtanh.pop %v5833
      %v5858 = vmul.f32 %v5834, 0.5
      %v5859 = vmul.f32 %v5835, 0.5
      %v5860 = vmul.f32 %v5836, 0.5
      %v5861 = vmul.f32 %v5837, 0.5
      %v5862 = vmul.f32 %v5838, 0.5
      %v5863 = vmul.f32 %v5839, 0.5
      %v5864 = vmul.f32 %v5840, 0.5
      %v5865 = vmul.f32 %v5841, 0.5
      %v5866 = vmul.f32 %v5842, 0.5
      %v5867 = vmul.f32 %v5843, 0.5
      %v5868 = vmul.f32 %v5844, 0.5
      %v5869 = vmul.f32 %v5845, 0.5
      %v5870 = vmul.f32 %v5846, 0.5
      %v5871 = vmul.f32 %v5847, 0.5
      %v5872 = vmul.f32 %v5848, 0.5
      %v5873 = vmul.f32 %v5849, 0.5
      %v5874 = vmul.f32 %v5850, 0.5
      %v5875 = vmul.f32 %v5851, 0.5
      %v5876 = vmul.f32 %v5852, 0.5
      %v5877 = vmul.f32 %v5853, 0.5
      %v5878 = vmul.f32 %v5854, 0.5
      %v5879 = vmul.f32 %v5855, 0.5
      %v5880 = vmul.f32 %v5856, 0.5
      %v5881 = vmul.f32 %v5857, 0.5
      %v5882 = vadd.f32 %v5858, 0.5
      %v5883 = vadd.f32 %v5859, 0.5
      %v5884 = vadd.f32 %v5860, 0.5
      %v5885 = vadd.f32 %v5861, 0.5
      %v5886 = vadd.f32 %v5862, 0.5
      %v5887 = vadd.f32 %v5863, 0.5
      %v5888 = vadd.f32 %v5864, 0.5
      %v5889 = vadd.f32 %v5865, 0.5
      %v5890 = vadd.f32 %v5866, 0.5
      %v5891 = vadd.f32 %v5867, 0.5
      %v5892 = vadd.f32 %v5868, 0.5
      %v5893 = vadd.f32 %v5869, 0.5
      %v5894 = vadd.f32 %v5870, 0.5
      %v5895 = vadd.f32 %v5871, 0.5
      %v5896 = vadd.f32 %v5872, 0.5
      %v5897 = vadd.f32 %v5873, 0.5
      %v5898 = vadd.f32 %v5874, 0.5
      %v5899 = vadd.f32 %v5875, 0.5
      %v5900 = vadd.f32 %v5876, 0.5
      %v5901 = vadd.f32 %v5877, 0.5
      %v5902 = vadd.f32 %v5878, 0.5
      %v5903 = vadd.f32 %v5879, 0.5
      %v5904 = vadd.f32 %v5880, 0.5
      %v5905 = vadd.f32 %v5881, 0.5
      %v5906 = vmul.f32 %v5568, %v5882
      %v5907 = vmul.f32 %v5569, %v5883
      %v5908 = vmul.f32 %v5570, %v5884
      %v5909 = vmul.f32 %v5571, %v5885
      %v5910 = vmul.f32 %v5572, %v5886
      %v5911 = vmul.f32 %v5573, %v5887
      %v5912 = vmul.f32 %v5574, %v5888
      %v5913 = vmul.f32 %v5575, %v5889
      %v5914 = vmul.f32 %v5576, %v5890
      %v5915 = vmul.f32 %v5577, %v5891
      %v5916 = vmul.f32 %v5578, %v5892
      %v5917 = vmul.f32 %v5579, %v5893
      %v5918 = vmul.f32 %v5580, %v5894
      %v5919 = vmul.f32 %v5581, %v5895
      %v5920 = vmul.f32 %v5582, %v5896
      %v5921 = vmul.f32 %v5583, %v5897
      %v5922 = vmul.f32 %v5584, %v5898
      %v5923 = vmul.f32 %v5585, %v5899
      %v5924 = vmul.f32 %v5586, %v5900
      %v5925 = vmul.f32 %v5587, %v5901
      %v5926 = vmul.f32 %v5588, %v5902
      %v5927 = vmul.f32 %v5589, %v5903
      %v5928 = vmul.f32 %v5590, %v5904
      %v5929 = vmul.f32 %v5591, %v5905
      %v5930 = vpack.c.bf16 %v5907, %v5906
      %v5931 = vpack.c.bf16 %v5909, %v5908
      %v5932 = vpack.c.bf16 %v5911, %v5910
      %v5933 = vpack.c.bf16 %v5913, %v5912
      %v5934 = vpack.c.bf16 %v5915, %v5914
      %v5935 = vpack.c.bf16 %v5917, %v5916
      %v5936 = vpack.c.bf16 %v5919, %v5918
      %v5937 = vpack.c.bf16 %v5921, %v5920
      %v5938 = vpack.c.bf16 %v5923, %v5922
      %v5939 = vpack.c.bf16 %v5925, %v5924
      %v5940 = vpack.c.bf16 %v5927, %v5926
      %v5941 = vpack.c.bf16 %v5929, %v5928
      %s5942 = scalar_lea.vmem %s3, 384
      %v5943 = vld [vmem:[%s5942] sm:$0xf]
      %v5944 = vld [vmem:[%s5942 + $0x4] sm:$0xf]
      %v5945 = vld [vmem:[%s5942 + $0x8] sm:$0xf]
      %v5946 = vld [vmem:[%s5942 + $0xc] sm:$0xf]
      %v5947 = vld [vmem:[%s5942 + $0x10] sm:$0xf]
      %v5948 = vld [vmem:[%s5942 + $0x14] sm:$0xf]
      %v5949 = vld [vmem:[%s5942 + $0x18] sm:$0xf]
      %v5950 = vld [vmem:[%s5942 + $0x1c] sm:$0xf]
      %s5951 = scalar_lea.vmem %s4, 12
      %v5952 = vld [vmem:[%s5951] sm:$0x1]
      %v5954 = vlaneseq
      %v5955 = vshrl.u32 %v5954, 7
      %v5956 = vsub.s32 0, %v5955
      %v5957 = vrot.slane %v5952, %v5956
      %v5967 = vunpack.c.l.b16 %v5943
      %v5968 = vunpack.c.l.b16 %v5944
      %v5969 = vunpack.c.l.b16 %v5945
      %v5970 = vunpack.c.l.b16 %v5946
      %v5971 = vunpack.c.l.b16 %v5947
      %v5972 = vunpack.c.l.b16 %v5948
      %v5973 = vunpack.c.l.b16 %v5949
      %v5974 = vunpack.c.l.b16 %v5950
      %v5975 = vpack.c.b16 %v5968, %v5967
      %v5976 = vpack.c.b16 %v5970, %v5969
      %v5977 = vpack.c.b16 %v5972, %v5971
      %v5978 = vpack.c.b16 %v5974, %v5973
      %v5984 = vsel %vm1926, %v5930, 0
      %v5987 = vsel %vm1926, %v5931, 0
      %v5990 = vsel %vm1926, %v5932, 0
      %v5993 = vsel %vm1926, %v5933, 0
      %v5996 = vsel %vm1926, %v5934, 0
      %v5999 = vsel %vm1926, %v5935, 0
      %v6002 = vsel %vm1926, %v5936, 0
      %v6005 = vsel %vm1926, %v5937, 0
      %v6008 = vsel %vm1926, %v5938, 0
      %v6011 = vsel %vm1926, %v5939, 0
      %v6014 = vsel %vm1926, %v5940, 0
      %v6017 = vsel %vm1926, %v5941, 0
      %6019 = vmatprep.subr.bf16.mxu0 0
      %6020 = vmatpush1.bf16.msra.mxu0 0
      %6021 = vmatprep.subr.bf16.mxu0 0
      %6022 = vmatpush1.bf16.msra.mxu0 0
      %6023 = vmatprep.subr.bf16.mxu0 0
      %6024 = vmatpush1.bf16.msra.mxu0 0
      %6025 = vmatprep.subr.bf16.mxu0 0
      %6026 = vmatpush1.bf16.msra.mxu0 0
      %6027 = vmatprep.subr.bf16.mxu0 0
      %6028 = vmatpush1.bf16.msra.mxu0 %v5978
      %6029 = vmatprep.subr.bf16.mxu0 0
      %6030 = vmatpush1.bf16.msra.mxu0 %v5977
      %6031 = vmatprep.subr.bf16.mxu0 0
      %6032 = vmatpush1.bf16.msra.mxu0 %v5976
      %6033 = vmatprep.subr.bf16.mxu0 0
      %6034 = vmatpush1.bf16.msra.mxu0 %v5975
      %6035 = vmatprep.subr.bf16.mxu0 0
      %6036 = vmatpush2.bf16.msra.mxu0 0
      %6037 = vmatprep.subr.bf16.mxu0 0
      %6038 = vmatpush2.bf16.msra.mxu0 0
      %6039 = vmatprep.subr.bf16.mxu0 0
      %6040 = vmatpush2.bf16.msra.mxu0 0
      %6041 = vmatprep.subr.bf16.mxu0 0
      %6042 = vmatpush2.bf16.msra.mxu0 0
      %6043 = vmatprep.subr.bf16.mxu0 0
      %6044 = vmatpush2.bf16.msra.mxu0 0
      %6045 = vmatprep.subr.bf16.mxu0 0
      %6046 = vmatpush2.bf16.msra.mxu0 0
      %6047 = vmatprep.subr.bf16.mxu0 0
      %6048 = vmatpush2.bf16.msra.mxu0 0
      %6049 = vmatprep.subr.bf16.mxu0 0
      %6050 = vmatpush2.bf16.msra.mxu0 0
      %6051 = vmatprep.mubr.bf16.mxu0 0
      %6052 = vmatmul.mubr.bf16.gmra.mxu0 %v5984
      %v6053 = vpop.f32.mrf.mxu0
      %v6054 = vadd.f32 %v5957, %v6053
      %v6055 = vpop.f32.mrf.mxu0
      %v6056 = vpop.f32.mrf.mxu0
      %v6057 = vadd.f32 %v5957, %v6056
      %v6058 = vpop.f32.mrf.mxu0
      %6059 = vmatprep.mubr.bf16.mxu0 0
      %6060 = vmatmul.mubr.bf16.gmra.mxu0 %v5987
      %v6061 = vpop.f32.mrf.mxu0
      %v6062 = vadd.f32 %v5957, %v6061
      %v6063 = vpop.f32.mrf.mxu0
      %v6064 = vpop.f32.mrf.mxu0
      %v6065 = vadd.f32 %v5957, %v6064
      %v6066 = vpop.f32.mrf.mxu0
      %6067 = vmatprep.mubr.bf16.mxu0 0
      %6068 = vmatmul.mubr.bf16.gmra.mxu0 %v5990
      %v6069 = vpop.f32.mrf.mxu0
      %v6070 = vadd.f32 %v5957, %v6069
      %v6071 = vpop.f32.mrf.mxu0
      %v6072 = vpop.f32.mrf.mxu0
      %v6073 = vadd.f32 %v5957, %v6072
      %v6074 = vpop.f32.mrf.mxu0
      %6075 = vmatprep.mubr.bf16.mxu0 0
      %6076 = vmatmul.mubr.bf16.gmra.mxu0 %v5993
      %v6077 = vpop.f32.mrf.mxu0
      %v6078 = vadd.f32 %v5957, %v6077
      %v6079 = vpop.f32.mrf.mxu0
      %v6080 = vpop.f32.mrf.mxu0
      %v6081 = vadd.f32 %v5957, %v6080
      %v6082 = vpop.f32.mrf.mxu0
      %6083 = vmatprep.mubr.bf16.mxu0 0
      %6084 = vmatmul.mubr.bf16.gmra.mxu0 %v5996
      %v6085 = vpop.f32.mrf.mxu0
      %v6086 = vadd.f32 %v5957, %v6085
      %v6087 = vpop.f32.mrf.mxu0
      %v6088 = vpop.f32.mrf.mxu0
      %v6089 = vadd.f32 %v5957, %v6088
      %v6090 = vpop.f32.mrf.mxu0
      %6091 = vmatprep.mubr.bf16.mxu0 0
      %6092 = vmatmul.mubr.bf16.gmra.mxu0 %v5999
      %v6093 = vpop.f32.mrf.mxu0
      %v6094 = vadd.f32 %v5957, %v6093
      %v6095 = vpop.f32.mrf.mxu0
      %v6096 = vpop.f32.mrf.mxu0
      %v6097 = vadd.f32 %v5957, %v6096
      %v6098 = vpop.f32.mrf.mxu0
      %6099 = vmatprep.mubr.bf16.mxu0 0
      %6100 = vmatmul.mubr.bf16.gmra.mxu0 %v6002
      %v6101 = vpop.f32.mrf.mxu0
      %v6102 = vadd.f32 %v5957, %v6101
      %v6103 = vpop.f32.mrf.mxu0
      %v6104 = vpop.f32.mrf.mxu0
      %v6105 = vadd.f32 %v5957, %v6104
      %v6106 = vpop.f32.mrf.mxu0
      %6107 = vmatprep.mubr.bf16.mxu0 0
      %6108 = vmatmul.mubr.bf16.gmra.mxu0 %v6005
      %v6109 = vpop.f32.mrf.mxu0
      %v6110 = vadd.f32 %v5957, %v6109
      %v6111 = vpop.f32.mrf.mxu0
      %v6112 = vpop.f32.mrf.mxu0
      %v6113 = vadd.f32 %v5957, %v6112
      %v6114 = vpop.f32.mrf.mxu0
      %6115 = vmatprep.mubr.bf16.mxu0 0
      %6116 = vmatmul.mubr.bf16.gmra.mxu0 %v6008
      %v6117 = vpop.f32.mrf.mxu0
      %v6118 = vadd.f32 %v5957, %v6117
      %v6119 = vpop.f32.mrf.mxu0
      %v6120 = vpop.f32.mrf.mxu0
      %v6121 = vadd.f32 %v5957, %v6120
      %v6122 = vpop.f32.mrf.mxu0
      %6123 = vmatprep.mubr.bf16.mxu0 0
      %6124 = vmatmul.mubr.bf16.gmra.mxu0 %v6011
      %v6125 = vpop.f32.mrf.mxu0
      %v6126 = vadd.f32 %v5957, %v6125
      %v6127 = vpop.f32.mrf.mxu0
      %v6128 = vpop.f32.mrf.mxu0
      %v6129 = vadd.f32 %v5957, %v6128
      %v6130 = vpop.f32.mrf.mxu0
      %6131 = vmatprep.mubr.bf16.mxu0 0
      %6132 = vmatmul.mubr.bf16.gmra.mxu0 %v6014
      %v6133 = vpop.f32.mrf.mxu0
      %v6134 = vadd.f32 %v5957, %v6133
      %v6135 = vpop.f32.mrf.mxu0
      %v6136 = vpop.f32.mrf.mxu0
      %v6137 = vadd.f32 %v5957, %v6136
      %v6138 = vpop.f32.mrf.mxu0
      %6139 = vmatprep.mubr.bf16.mxu0 0
      %6140 = vmatmul.mubr.bf16.gmra.mxu0 %v6017
      %v6141 = vpop.f32.mrf.mxu0
      %v6142 = vadd.f32 %v5957, %v6141
      %v6143 = vpop.f32.mrf.mxu0
      %v6144 = vpop.f32.mrf.mxu0
      %v6145 = vadd.f32 %v5957, %v6144
      %v6146 = vpop.f32.mrf.mxu0
      %6147 = vdwg.mxu0
      %v6148 = vmul.f32 %v6054, 0.5
      %v6149 = vmul.f32 %v6057, 0.5
      %v6150 = vmul.f32 %v6062, 0.5
      %v6151 = vmul.f32 %v6065, 0.5
      %v6152 = vmul.f32 %v6070, 0.5
      %v6153 = vmul.f32 %v6073, 0.5
      %v6154 = vmul.f32 %v6078, 0.5
      %v6155 = vmul.f32 %v6081, 0.5
      %v6156 = vmul.f32 %v6086, 0.5
      %v6157 = vmul.f32 %v6089, 0.5
      %v6158 = vmul.f32 %v6094, 0.5
      %v6159 = vmul.f32 %v6097, 0.5
      %v6160 = vmul.f32 %v6102, 0.5
      %v6161 = vmul.f32 %v6105, 0.5
      %v6162 = vmul.f32 %v6110, 0.5
      %v6163 = vmul.f32 %v6113, 0.5
      %v6164 = vmul.f32 %v6118, 0.5
      %v6165 = vmul.f32 %v6121, 0.5
      %v6166 = vmul.f32 %v6126, 0.5
      %v6167 = vmul.f32 %v6129, 0.5
      %v6168 = vmul.f32 %v6134, 0.5
      %v6169 = vmul.f32 %v6137, 0.5
      %v6170 = vmul.f32 %v6142, 0.5
      %v6171 = vmul.f32 %v6145, 0.5
      %v6172 = vtanh.pop %v6148
      %v6173 = vtanh.pop %v6149
      %v6174 = vtanh.pop %v6150
      %v6175 = vtanh.pop %v6151
      %v6176 = vtanh.pop %v6152
      %v6177 = vtanh.pop %v6153
      %v6178 = vtanh.pop %v6154
      %v6179 = vtanh.pop %v6155
      %v6180 = vtanh.pop %v6156
      %v6181 = vtanh.pop %v6157
      %v6182 = vtanh.pop %v6158
      %v6183 = vtanh.pop %v6159
      %v6184 = vtanh.pop %v6160
      %v6185 = vtanh.pop %v6161
      %v6186 = vtanh.pop %v6162
      %v6187 = vtanh.pop %v6163
      %v6188 = vtanh.pop %v6164
      %v6189 = vtanh.pop %v6165
      %v6190 = vtanh.pop %v6166
      %v6191 = vtanh.pop %v6167
      %v6192 = vtanh.pop %v6168
      %v6193 = vtanh.pop %v6169
      %v6194 = vtanh.pop %v6170
      %v6195 = vtanh.pop %v6171
      %v6196 = vmul.f32 %v6172, 0.5
      %v6197 = vmul.f32 %v6173, 0.5
      %v6198 = vmul.f32 %v6174, 0.5
      %v6199 = vmul.f32 %v6175, 0.5
      %v6200 = vmul.f32 %v6176, 0.5
      %v6201 = vmul.f32 %v6177, 0.5
      %v6202 = vmul.f32 %v6178, 0.5
      %v6203 = vmul.f32 %v6179, 0.5
      %v6204 = vmul.f32 %v6180, 0.5
      %v6205 = vmul.f32 %v6181, 0.5
      %v6206 = vmul.f32 %v6182, 0.5
      %v6207 = vmul.f32 %v6183, 0.5
      %v6208 = vmul.f32 %v6184, 0.5
      %v6209 = vmul.f32 %v6185, 0.5
      %v6210 = vmul.f32 %v6186, 0.5
      %v6211 = vmul.f32 %v6187, 0.5
      %v6212 = vmul.f32 %v6188, 0.5
      %v6213 = vmul.f32 %v6189, 0.5
      %v6214 = vmul.f32 %v6190, 0.5
      %v6215 = vmul.f32 %v6191, 0.5
      %v6216 = vmul.f32 %v6192, 0.5
      %v6217 = vmul.f32 %v6193, 0.5
      %v6218 = vmul.f32 %v6194, 0.5
      %v6219 = vmul.f32 %v6195, 0.5
      %v6220 = vadd.f32 %v6196, 0.5
      %v6221 = vadd.f32 %v6197, 0.5
      %v6222 = vadd.f32 %v6198, 0.5
      %v6223 = vadd.f32 %v6199, 0.5
      %v6224 = vadd.f32 %v6200, 0.5
      %v6225 = vadd.f32 %v6201, 0.5
      %v6226 = vadd.f32 %v6202, 0.5
      %v6227 = vadd.f32 %v6203, 0.5
      %v6228 = vadd.f32 %v6204, 0.5
      %v6229 = vadd.f32 %v6205, 0.5
      %v6230 = vadd.f32 %v6206, 0.5
      %v6231 = vadd.f32 %v6207, 0.5
      %v6232 = vadd.f32 %v6208, 0.5
      %v6233 = vadd.f32 %v6209, 0.5
      %v6234 = vadd.f32 %v6210, 0.5
      %v6235 = vadd.f32 %v6211, 0.5
      %v6236 = vadd.f32 %v6212, 0.5
      %v6237 = vadd.f32 %v6213, 0.5
      %v6238 = vadd.f32 %v6214, 0.5
      %v6239 = vadd.f32 %v6215, 0.5
      %v6240 = vadd.f32 %v6216, 0.5
      %v6241 = vadd.f32 %v6217, 0.5
      %v6242 = vadd.f32 %v6218, 0.5
      %v6243 = vadd.f32 %v6219, 0.5
      %v6244 = vmul.f32 %v5906, %v6220
      %v6245 = vmul.f32 %v5907, %v6221
      %v6246 = vmul.f32 %v5908, %v6222
      %v6247 = vmul.f32 %v5909, %v6223
      %v6248 = vmul.f32 %v5910, %v6224
      %v6249 = vmul.f32 %v5911, %v6225
      %v6250 = vmul.f32 %v5912, %v6226
      %v6251 = vmul.f32 %v5913, %v6227
      %v6252 = vmul.f32 %v5914, %v6228
      %v6253 = vmul.f32 %v5915, %v6229
      %v6254 = vmul.f32 %v5916, %v6230
      %v6255 = vmul.f32 %v5917, %v6231
      %v6256 = vmul.f32 %v5918, %v6232
      %v6257 = vmul.f32 %v5919, %v6233
      %v6258 = vmul.f32 %v5920, %v6234
      %v6259 = vmul.f32 %v5921, %v6235
      %v6260 = vmul.f32 %v5922, %v6236
      %v6261 = vmul.f32 %v5923, %v6237
      %v6262 = vmul.f32 %v5924, %v6238
      %v6263 = vmul.f32 %v5925, %v6239
      %v6264 = vmul.f32 %v5926, %v6240
      %v6265 = vmul.f32 %v5927, %v6241
      %v6266 = vmul.f32 %v5928, %v6242
      %v6267 = vmul.f32 %v5929, %v6243
      %v6268 = vpack.c.bf16 %v6245, %v6244
      %v6269 = vpack.c.bf16 %v6247, %v6246
      %v6270 = vpack.c.bf16 %v6249, %v6248
      %v6271 = vpack.c.bf16 %v6251, %v6250
      %v6272 = vpack.c.bf16 %v6253, %v6252
      %v6273 = vpack.c.bf16 %v6255, %v6254
      %v6274 = vpack.c.bf16 %v6257, %v6256
      %v6275 = vpack.c.bf16 %v6259, %v6258
      %v6276 = vpack.c.bf16 %v6261, %v6260
      %v6277 = vpack.c.bf16 %v6263, %v6262
      %v6278 = vpack.c.bf16 %v6265, %v6264
      %v6279 = vpack.c.bf16 %v6267, %v6266
      %s6280 = scalar_lea.vmem %s3, 416
      %v6281 = vld [vmem:[%s6280] sm:$0xf]
      %v6282 = vld [vmem:[%s6280 + $0x4] sm:$0xf]
      %v6283 = vld [vmem:[%s6280 + $0x8] sm:$0xf]
      %v6284 = vld [vmem:[%s6280 + $0xc] sm:$0xf]
      %v6285 = vld [vmem:[%s6280 + $0x10] sm:$0xf]
      %v6286 = vld [vmem:[%s6280 + $0x14] sm:$0xf]
      %v6287 = vld [vmem:[%s6280 + $0x18] sm:$0xf]
      %v6288 = vld [vmem:[%s6280 + $0x1c] sm:$0xf]
      %s6289 = scalar_lea.vmem %s4, 13
      %v6290 = vld [vmem:[%s6289] sm:$0x1]
      %v6292 = vlaneseq
      %v6293 = vshrl.u32 %v6292, 7
      %v6294 = vsub.s32 0, %v6293
      %v6295 = vrot.slane %v6290, %v6294
      %v6305 = vunpack.c.l.b16 %v6281
      %v6306 = vunpack.c.l.b16 %v6282
      %v6307 = vunpack.c.l.b16 %v6283
      %v6308 = vunpack.c.l.b16 %v6284
      %v6309 = vunpack.c.l.b16 %v6285
      %v6310 = vunpack.c.l.b16 %v6286
      %v6311 = vunpack.c.l.b16 %v6287
      %v6312 = vunpack.c.l.b16 %v6288
      %v6313 = vpack.c.b16 %v6306, %v6305
      %v6314 = vpack.c.b16 %v6308, %v6307
      %v6315 = vpack.c.b16 %v6310, %v6309
      %v6316 = vpack.c.b16 %v6312, %v6311
      %v6322 = vsel %vm1926, %v6268, 0
      %v6325 = vsel %vm1926, %v6269, 0
      %v6328 = vsel %vm1926, %v6270, 0
      %v6331 = vsel %vm1926, %v6271, 0
      %v6334 = vsel %vm1926, %v6272, 0
      %v6337 = vsel %vm1926, %v6273, 0
      %v6340 = vsel %vm1926, %v6274, 0
      %v6343 = vsel %vm1926, %v6275, 0
      %v6346 = vsel %vm1926, %v6276, 0
      %v6349 = vsel %vm1926, %v6277, 0
      %v6352 = vsel %vm1926, %v6278, 0
      %v6355 = vsel %vm1926, %v6279, 0
      %6357 = vmatprep.subr.bf16.mxu0 0
      %6358 = vmatpush1.bf16.msra.mxu0 0
      %6359 = vmatprep.subr.bf16.mxu0 0
      %6360 = vmatpush1.bf16.msra.mxu0 0
      %6361 = vmatprep.subr.bf16.mxu0 0
      %6362 = vmatpush1.bf16.msra.mxu0 0
      %6363 = vmatprep.subr.bf16.mxu0 0
      %6364 = vmatpush1.bf16.msra.mxu0 0
      %6365 = vmatprep.subr.bf16.mxu0 0
      %6366 = vmatpush1.bf16.msra.mxu0 %v6316
      %6367 = vmatprep.subr.bf16.mxu0 0
      %6368 = vmatpush1.bf16.msra.mxu0 %v6315
      %6369 = vmatprep.subr.bf16.mxu0 0
      %6370 = vmatpush1.bf16.msra.mxu0 %v6314
      %6371 = vmatprep.subr.bf16.mxu0 0
      %6372 = vmatpush1.bf16.msra.mxu0 %v6313
      %6373 = vmatprep.subr.bf16.mxu0 0
      %6374 = vmatpush2.bf16.msra.mxu0 0
      %6375 = vmatprep.subr.bf16.mxu0 0
      %6376 = vmatpush2.bf16.msra.mxu0 0
      %6377 = vmatprep.subr.bf16.mxu0 0
      %6378 = vmatpush2.bf16.msra.mxu0 0
      %6379 = vmatprep.subr.bf16.mxu0 0
      %6380 = vmatpush2.bf16.msra.mxu0 0
      %6381 = vmatprep.subr.bf16.mxu0 0
      %6382 = vmatpush2.bf16.msra.mxu0 0
      %6383 = vmatprep.subr.bf16.mxu0 0
      %6384 = vmatpush2.bf16.msra.mxu0 0
      %6385 = vmatprep.subr.bf16.mxu0 0
      %6386 = vmatpush2.bf16.msra.mxu0 0
      %6387 = vmatprep.subr.bf16.mxu0 0
      %6388 = vmatpush2.bf16.msra.mxu0 0
      %6389 = vmatprep.mubr.bf16.mxu0 0
      %6390 = vmatmul.mubr.bf16.gmra.mxu0 %v6322
      %v6391 = vpop.f32.mrf.mxu0
      %v6392 = vadd.f32 %v6295, %v6391
      %v6393 = vpop.f32.mrf.mxu0
      %v6394 = vpop.f32.mrf.mxu0
      %v6395 = vadd.f32 %v6295, %v6394
      %v6396 = vpop.f32.mrf.mxu0
      %6397 = vmatprep.mubr.bf16.mxu0 0
      %6398 = vmatmul.mubr.bf16.gmra.mxu0 %v6325
      %v6399 = vpop.f32.mrf.mxu0
      %v6400 = vadd.f32 %v6295, %v6399
      %v6401 = vpop.f32.mrf.mxu0
      %v6402 = vpop.f32.mrf.mxu0
      %v6403 = vadd.f32 %v6295, %v6402
      %v6404 = vpop.f32.mrf.mxu0
      %6405 = vmatprep.mubr.bf16.mxu0 0
      %6406 = vmatmul.mubr.bf16.gmra.mxu0 %v6328
      %v6407 = vpop.f32.mrf.mxu0
      %v6408 = vadd.f32 %v6295, %v6407
      %v6409 = vpop.f32.mrf.mxu0
      %v6410 = vpop.f32.mrf.mxu0
      %v6411 = vadd.f32 %v6295, %v6410
      %v6412 = vpop.f32.mrf.mxu0
      %6413 = vmatprep.mubr.bf16.mxu0 0
      %6414 = vmatmul.mubr.bf16.gmra.mxu0 %v6331
      %v6415 = vpop.f32.mrf.mxu0
      %v6416 = vadd.f32 %v6295, %v6415
      %v6417 = vpop.f32.mrf.mxu0
      %v6418 = vpop.f32.mrf.mxu0
      %v6419 = vadd.f32 %v6295, %v6418
      %v6420 = vpop.f32.mrf.mxu0
      %6421 = vmatprep.mubr.bf16.mxu0 0
      %6422 = vmatmul.mubr.bf16.gmra.mxu0 %v6334
      %v6423 = vpop.f32.mrf.mxu0
      %v6424 = vadd.f32 %v6295, %v6423
      %v6425 = vpop.f32.mrf.mxu0
      %v6426 = vpop.f32.mrf.mxu0
      %v6427 = vadd.f32 %v6295, %v6426
      %v6428 = vpop.f32.mrf.mxu0
      %6429 = vmatprep.mubr.bf16.mxu0 0
      %6430 = vmatmul.mubr.bf16.gmra.mxu0 %v6337
      %v6431 = vpop.f32.mrf.mxu0
      %v6432 = vadd.f32 %v6295, %v6431
      %v6433 = vpop.f32.mrf.mxu0
      %v6434 = vpop.f32.mrf.mxu0
      %v6435 = vadd.f32 %v6295, %v6434
      %v6436 = vpop.f32.mrf.mxu0
      %6437 = vmatprep.mubr.bf16.mxu0 0
      %6438 = vmatmul.mubr.bf16.gmra.mxu0 %v6340
      %v6439 = vpop.f32.mrf.mxu0
      %v6440 = vadd.f32 %v6295, %v6439
      %v6441 = vpop.f32.mrf.mxu0
      %v6442 = vpop.f32.mrf.mxu0
      %v6443 = vadd.f32 %v6295, %v6442
      %v6444 = vpop.f32.mrf.mxu0
      %6445 = vmatprep.mubr.bf16.mxu0 0
      %6446 = vmatmul.mubr.bf16.gmra.mxu0 %v6343
      %v6447 = vpop.f32.mrf.mxu0
      %v6448 = vadd.f32 %v6295, %v6447
      %v6449 = vpop.f32.mrf.mxu0
      %v6450 = vpop.f32.mrf.mxu0
      %v6451 = vadd.f32 %v6295, %v6450
      %v6452 = vpop.f32.mrf.mxu0
      %6453 = vmatprep.mubr.bf16.mxu0 0
      %6454 = vmatmul.mubr.bf16.gmra.mxu0 %v6346
      %v6455 = vpop.f32.mrf.mxu0
      %v6456 = vadd.f32 %v6295, %v6455
      %v6457 = vpop.f32.mrf.mxu0
      %v6458 = vpop.f32.mrf.mxu0
      %v6459 = vadd.f32 %v6295, %v6458
      %v6460 = vpop.f32.mrf.mxu0
      %6461 = vmatprep.mubr.bf16.mxu0 0
      %6462 = vmatmul.mubr.bf16.gmra.mxu0 %v6349
      %v6463 = vpop.f32.mrf.mxu0
      %v6464 = vadd.f32 %v6295, %v6463
      %v6465 = vpop.f32.mrf.mxu0
      %v6466 = vpop.f32.mrf.mxu0
      %v6467 = vadd.f32 %v6295, %v6466
      %v6468 = vpop.f32.mrf.mxu0
      %6469 = vmatprep.mubr.bf16.mxu0 0
      %6470 = vmatmul.mubr.bf16.gmra.mxu0 %v6352
      %v6471 = vpop.f32.mrf.mxu0
      %v6472 = vadd.f32 %v6295, %v6471
      %v6473 = vpop.f32.mrf.mxu0
      %v6474 = vpop.f32.mrf.mxu0
      %v6475 = vadd.f32 %v6295, %v6474
      %v6476 = vpop.f32.mrf.mxu0
      %6477 = vmatprep.mubr.bf16.mxu0 0
      %6478 = vmatmul.mubr.bf16.gmra.mxu0 %v6355
      %v6479 = vpop.f32.mrf.mxu0
      %v6480 = vadd.f32 %v6295, %v6479
      %v6481 = vpop.f32.mrf.mxu0
      %v6482 = vpop.f32.mrf.mxu0
      %v6483 = vadd.f32 %v6295, %v6482
      %v6484 = vpop.f32.mrf.mxu0
      %6485 = vdwg.mxu0
      %v6486 = vmul.f32 %v6392, 0.5
      %v6487 = vmul.f32 %v6395, 0.5
      %v6488 = vmul.f32 %v6400, 0.5
      %v6489 = vmul.f32 %v6403, 0.5
      %v6490 = vmul.f32 %v6408, 0.5
      %v6491 = vmul.f32 %v6411, 0.5
      %v6492 = vmul.f32 %v6416, 0.5
      %v6493 = vmul.f32 %v6419, 0.5
      %v6494 = vmul.f32 %v6424, 0.5
      %v6495 = vmul.f32 %v6427, 0.5
      %v6496 = vmul.f32 %v6432, 0.5
      %v6497 = vmul.f32 %v6435, 0.5
      %v6498 = vmul.f32 %v6440, 0.5
      %v6499 = vmul.f32 %v6443, 0.5
      %v6500 = vmul.f32 %v6448, 0.5
      %v6501 = vmul.f32 %v6451, 0.5
      %v6502 = vmul.f32 %v6456, 0.5
      %v6503 = vmul.f32 %v6459, 0.5
      %v6504 = vmul.f32 %v6464, 0.5
      %v6505 = vmul.f32 %v6467, 0.5
      %v6506 = vmul.f32 %v6472, 0.5
      %v6507 = vmul.f32 %v6475, 0.5
      %v6508 = vmul.f32 %v6480, 0.5
      %v6509 = vmul.f32 %v6483, 0.5
      %v6510 = vtanh.pop %v6486
      %v6511 = vtanh.pop %v6487
      %v6512 = vtanh.pop %v6488
      %v6513 = vtanh.pop %v6489
      %v6514 = vtanh.pop %v6490
      %v6515 = vtanh.pop %v6491
      %v6516 = vtanh.pop %v6492
      %v6517 = vtanh.pop %v6493
      %v6518 = vtanh.pop %v6494
      %v6519 = vtanh.pop %v6495
      %v6520 = vtanh.pop %v6496
      %v6521 = vtanh.pop %v6497
      %v6522 = vtanh.pop %v6498
      %v6523 = vtanh.pop %v6499
      %v6524 = vtanh.pop %v6500
      %v6525 = vtanh.pop %v6501
      %v6526 = vtanh.pop %v6502
      %v6527 = vtanh.pop %v6503
      %v6528 = vtanh.pop %v6504
      %v6529 = vtanh.pop %v6505
      %v6530 = vtanh.pop %v6506
      %v6531 = vtanh.pop %v6507
      %v6532 = vtanh.pop %v6508
      %v6533 = vtanh.pop %v6509
      %v6534 = vmul.f32 %v6510, 0.5
      %v6535 = vmul.f32 %v6511, 0.5
      %v6536 = vmul.f32 %v6512, 0.5
      %v6537 = vmul.f32 %v6513, 0.5
      %v6538 = vmul.f32 %v6514, 0.5
      %v6539 = vmul.f32 %v6515, 0.5
      %v6540 = vmul.f32 %v6516, 0.5
      %v6541 = vmul.f32 %v6517, 0.5
      %v6542 = vmul.f32 %v6518, 0.5
      %v6543 = vmul.f32 %v6519, 0.5
      %v6544 = vmul.f32 %v6520, 0.5
      %v6545 = vmul.f32 %v6521, 0.5
      %v6546 = vmul.f32 %v6522, 0.5
      %v6547 = vmul.f32 %v6523, 0.5
      %v6548 = vmul.f32 %v6524, 0.5
      %v6549 = vmul.f32 %v6525, 0.5
      %v6550 = vmul.f32 %v6526, 0.5
      %v6551 = vmul.f32 %v6527, 0.5
      %v6552 = vmul.f32 %v6528, 0.5
      %v6553 = vmul.f32 %v6529, 0.5
      %v6554 = vmul.f32 %v6530, 0.5
      %v6555 = vmul.f32 %v6531, 0.5
      %v6556 = vmul.f32 %v6532, 0.5
      %v6557 = vmul.f32 %v6533, 0.5
      %v6558 = vadd.f32 %v6534, 0.5
      %v6559 = vadd.f32 %v6535, 0.5
      %v6560 = vadd.f32 %v6536, 0.5
      %v6561 = vadd.f32 %v6537, 0.5
      %v6562 = vadd.f32 %v6538, 0.5
      %v6563 = vadd.f32 %v6539, 0.5
      %v6564 = vadd.f32 %v6540, 0.5
      %v6565 = vadd.f32 %v6541, 0.5
      %v6566 = vadd.f32 %v6542, 0.5
      %v6567 = vadd.f32 %v6543, 0.5
      %v6568 = vadd.f32 %v6544, 0.5
      %v6569 = vadd.f32 %v6545, 0.5
      %v6570 = vadd.f32 %v6546, 0.5
      %v6571 = vadd.f32 %v6547, 0.5
      %v6572 = vadd.f32 %v6548, 0.5
      %v6573 = vadd.f32 %v6549, 0.5
      %v6574 = vadd.f32 %v6550, 0.5
      %v6575 = vadd.f32 %v6551, 0.5
      %v6576 = vadd.f32 %v6552, 0.5
      %v6577 = vadd.f32 %v6553, 0.5
      %v6578 = vadd.f32 %v6554, 0.5
      %v6579 = vadd.f32 %v6555, 0.5
      %v6580 = vadd.f32 %v6556, 0.5
      %v6581 = vadd.f32 %v6557, 0.5
      %v6582 = vmul.f32 %v6244, %v6558
      %v6583 = vmul.f32 %v6245, %v6559
      %v6584 = vmul.f32 %v6246, %v6560
      %v6585 = vmul.f32 %v6247, %v6561
      %v6586 = vmul.f32 %v6248, %v6562
      %v6587 = vmul.f32 %v6249, %v6563
      %v6588 = vmul.f32 %v6250, %v6564
      %v6589 = vmul.f32 %v6251, %v6565
      %v6590 = vmul.f32 %v6252, %v6566
      %v6591 = vmul.f32 %v6253, %v6567
      %v6592 = vmul.f32 %v6254, %v6568
      %v6593 = vmul.f32 %v6255, %v6569
      %v6594 = vmul.f32 %v6256, %v6570
      %v6595 = vmul.f32 %v6257, %v6571
      %v6596 = vmul.f32 %v6258, %v6572
      %v6597 = vmul.f32 %v6259, %v6573
      %v6598 = vmul.f32 %v6260, %v6574
      %v6599 = vmul.f32 %v6261, %v6575
      %v6600 = vmul.f32 %v6262, %v6576
      %v6601 = vmul.f32 %v6263, %v6577
      %v6602 = vmul.f32 %v6264, %v6578
      %v6603 = vmul.f32 %v6265, %v6579
      %v6604 = vmul.f32 %v6266, %v6580
      %v6605 = vmul.f32 %v6267, %v6581
      %v6606 = vpack.c.bf16 %v6583, %v6582
      %v6607 = vpack.c.bf16 %v6585, %v6584
      %v6608 = vpack.c.bf16 %v6587, %v6586
      %v6609 = vpack.c.bf16 %v6589, %v6588
      %v6610 = vpack.c.bf16 %v6591, %v6590
      %v6611 = vpack.c.bf16 %v6593, %v6592
      %v6612 = vpack.c.bf16 %v6595, %v6594
      %v6613 = vpack.c.bf16 %v6597, %v6596
      %v6614 = vpack.c.bf16 %v6599, %v6598
      %v6615 = vpack.c.bf16 %v6601, %v6600
      %v6616 = vpack.c.bf16 %v6603, %v6602
      %v6617 = vpack.c.bf16 %v6605, %v6604
      %s6618 = scalar_lea.vmem %s3, 448
      %v6619 = vld [vmem:[%s6618] sm:$0xf]
      %v6620 = vld [vmem:[%s6618 + $0x4] sm:$0xf]
      %v6621 = vld [vmem:[%s6618 + $0x8] sm:$0xf]
      %v6622 = vld [vmem:[%s6618 + $0xc] sm:$0xf]
      %v6623 = vld [vmem:[%s6618 + $0x10] sm:$0xf]
      %v6624 = vld [vmem:[%s6618 + $0x14] sm:$0xf]
      %v6625 = vld [vmem:[%s6618 + $0x18] sm:$0xf]
      %v6626 = vld [vmem:[%s6618 + $0x1c] sm:$0xf]
      %s6627 = scalar_lea.vmem %s4, 14
      %v6628 = vld [vmem:[%s6627] sm:$0x1]
      %v6630 = vlaneseq
      %v6631 = vshrl.u32 %v6630, 7
      %v6632 = vsub.s32 0, %v6631
      %v6633 = vrot.slane %v6628, %v6632
      %v6643 = vunpack.c.l.b16 %v6619
      %v6644 = vunpack.c.l.b16 %v6620
      %v6645 = vunpack.c.l.b16 %v6621
      %v6646 = vunpack.c.l.b16 %v6622
      %v6647 = vunpack.c.l.b16 %v6623
      %v6648 = vunpack.c.l.b16 %v6624
      %v6649 = vunpack.c.l.b16 %v6625
      %v6650 = vunpack.c.l.b16 %v6626
      %v6651 = vpack.c.b16 %v6644, %v6643
      %v6652 = vpack.c.b16 %v6646, %v6645
      %v6653 = vpack.c.b16 %v6648, %v6647
      %v6654 = vpack.c.b16 %v6650, %v6649
      %v6660 = vsel %vm1926, %v6606, 0
      %v6663 = vsel %vm1926, %v6607, 0
      %v6666 = vsel %vm1926, %v6608, 0
      %v6669 = vsel %vm1926, %v6609, 0
      %v6672 = vsel %vm1926, %v6610, 0
      %v6675 = vsel %vm1926, %v6611, 0
      %v6678 = vsel %vm1926, %v6612, 0
      %v6681 = vsel %vm1926, %v6613, 0
      %v6684 = vsel %vm1926, %v6614, 0
      %v6687 = vsel %vm1926, %v6615, 0
      %v6690 = vsel %vm1926, %v6616, 0
      %v6693 = vsel %vm1926, %v6617, 0
      %6695 = vmatprep.subr.bf16.mxu0 0
      %6696 = vmatpush1.bf16.msra.mxu0 0
      %6697 = vmatprep.subr.bf16.mxu0 0
      %6698 = vmatpush1.bf16.msra.mxu0 0
      %6699 = vmatprep.subr.bf16.mxu0 0
      %6700 = vmatpush1.bf16.msra.mxu0 0
      %6701 = vmatprep.subr.bf16.mxu0 0
      %6702 = vmatpush1.bf16.msra.mxu0 0
      %6703 = vmatprep.subr.bf16.mxu0 0
      %6704 = vmatpush1.bf16.msra.mxu0 %v6654
      %6705 = vmatprep.subr.bf16.mxu0 0
      %6706 = vmatpush1.bf16.msra.mxu0 %v6653
      %6707 = vmatprep.subr.bf16.mxu0 0
      %6708 = vmatpush1.bf16.msra.mxu0 %v6652
      %6709 = vmatprep.subr.bf16.mxu0 0
      %6710 = vmatpush1.bf16.msra.mxu0 %v6651
      %6711 = vmatprep.subr.bf16.mxu0 0
      %6712 = vmatpush2.bf16.msra.mxu0 0
      %6713 = vmatprep.subr.bf16.mxu0 0
      %6714 = vmatpush2.bf16.msra.mxu0 0
      %6715 = vmatprep.subr.bf16.mxu0 0
      %6716 = vmatpush2.bf16.msra.mxu0 0
      %6717 = vmatprep.subr.bf16.mxu0 0
      %6718 = vmatpush2.bf16.msra.mxu0 0
      %6719 = vmatprep.subr.bf16.mxu0 0
      %6720 = vmatpush2.bf16.msra.mxu0 0
      %6721 = vmatprep.subr.bf16.mxu0 0
      %6722 = vmatpush2.bf16.msra.mxu0 0
      %6723 = vmatprep.subr.bf16.mxu0 0
      %6724 = vmatpush2.bf16.msra.mxu0 0
      %6725 = vmatprep.subr.bf16.mxu0 0
      %6726 = vmatpush2.bf16.msra.mxu0 0
      %6727 = vmatprep.mubr.bf16.mxu0 0
      %6728 = vmatmul.mubr.bf16.gmra.mxu0 %v6660
      %v6729 = vpop.f32.mrf.mxu0
      %v6730 = vadd.f32 %v6633, %v6729
      %v6731 = vpop.f32.mrf.mxu0
      %v6732 = vpop.f32.mrf.mxu0
      %v6733 = vadd.f32 %v6633, %v6732
      %v6734 = vpop.f32.mrf.mxu0
      %6735 = vmatprep.mubr.bf16.mxu0 0
      %6736 = vmatmul.mubr.bf16.gmra.mxu0 %v6663
      %v6737 = vpop.f32.mrf.mxu0
      %v6738 = vadd.f32 %v6633, %v6737
      %v6739 = vpop.f32.mrf.mxu0
      %v6740 = vpop.f32.mrf.mxu0
      %v6741 = vadd.f32 %v6633, %v6740
      %v6742 = vpop.f32.mrf.mxu0
      %6743 = vmatprep.mubr.bf16.mxu0 0
      %6744 = vmatmul.mubr.bf16.gmra.mxu0 %v6666
      %v6745 = vpop.f32.mrf.mxu0
      %v6746 = vadd.f32 %v6633, %v6745
      %v6747 = vpop.f32.mrf.mxu0
      %v6748 = vpop.f32.mrf.mxu0
      %v6749 = vadd.f32 %v6633, %v6748
      %v6750 = vpop.f32.mrf.mxu0
      %6751 = vmatprep.mubr.bf16.mxu0 0
      %6752 = vmatmul.mubr.bf16.gmra.mxu0 %v6669
      %v6753 = vpop.f32.mrf.mxu0
      %v6754 = vadd.f32 %v6633, %v6753
      %v6755 = vpop.f32.mrf.mxu0
      %v6756 = vpop.f32.mrf.mxu0
      %v6757 = vadd.f32 %v6633, %v6756
      %v6758 = vpop.f32.mrf.mxu0
      %6759 = vmatprep.mubr.bf16.mxu0 0
      %6760 = vmatmul.mubr.bf16.gmra.mxu0 %v6672
      %v6761 = vpop.f32.mrf.mxu0
      %v6762 = vadd.f32 %v6633, %v6761
      %v6763 = vpop.f32.mrf.mxu0
      %v6764 = vpop.f32.mrf.mxu0
      %v6765 = vadd.f32 %v6633, %v6764
      %v6766 = vpop.f32.mrf.mxu0
      %6767 = vmatprep.mubr.bf16.mxu0 0
      %6768 = vmatmul.mubr.bf16.gmra.mxu0 %v6675
      %v6769 = vpop.f32.mrf.mxu0
      %v6770 = vadd.f32 %v6633, %v6769
      %v6771 = vpop.f32.mrf.mxu0
      %v6772 = vpop.f32.mrf.mxu0
      %v6773 = vadd.f32 %v6633, %v6772
      %v6774 = vpop.f32.mrf.mxu0
      %6775 = vmatprep.mubr.bf16.mxu0 0
      %6776 = vmatmul.mubr.bf16.gmra.mxu0 %v6678
      %v6777 = vpop.f32.mrf.mxu0
      %v6778 = vadd.f32 %v6633, %v6777
      %v6779 = vpop.f32.mrf.mxu0
      %v6780 = vpop.f32.mrf.mxu0
      %v6781 = vadd.f32 %v6633, %v6780
      %v6782 = vpop.f32.mrf.mxu0
      %6783 = vmatprep.mubr.bf16.mxu0 0
      %6784 = vmatmul.mubr.bf16.gmra.mxu0 %v6681
      %v6785 = vpop.f32.mrf.mxu0
      %v6786 = vadd.f32 %v6633, %v6785
      %v6787 = vpop.f32.mrf.mxu0
      %v6788 = vpop.f32.mrf.mxu0
      %v6789 = vadd.f32 %v6633, %v6788
      %v6790 = vpop.f32.mrf.mxu0
      %6791 = vmatprep.mubr.bf16.mxu0 0
      %6792 = vmatmul.mubr.bf16.gmra.mxu0 %v6684
      %v6793 = vpop.f32.mrf.mxu0
      %v6794 = vadd.f32 %v6633, %v6793
      %v6795 = vpop.f32.mrf.mxu0
      %v6796 = vpop.f32.mrf.mxu0
      %v6797 = vadd.f32 %v6633, %v6796
      %v6798 = vpop.f32.mrf.mxu0
      %6799 = vmatprep.mubr.bf16.mxu0 0
      %6800 = vmatmul.mubr.bf16.gmra.mxu0 %v6687
      %v6801 = vpop.f32.mrf.mxu0
      %v6802 = vadd.f32 %v6633, %v6801
      %v6803 = vpop.f32.mrf.mxu0
      %v6804 = vpop.f32.mrf.mxu0
      %v6805 = vadd.f32 %v6633, %v6804
      %v6806 = vpop.f32.mrf.mxu0
      %6807 = vmatprep.mubr.bf16.mxu0 0
      %6808 = vmatmul.mubr.bf16.gmra.mxu0 %v6690
      %v6809 = vpop.f32.mrf.mxu0
      %v6810 = vadd.f32 %v6633, %v6809
      %v6811 = vpop.f32.mrf.mxu0
      %v6812 = vpop.f32.mrf.mxu0
      %v6813 = vadd.f32 %v6633, %v6812
      %v6814 = vpop.f32.mrf.mxu0
      %6815 = vmatprep.mubr.bf16.mxu0 0
      %6816 = vmatmul.mubr.bf16.gmra.mxu0 %v6693
      %v6817 = vpop.f32.mrf.mxu0
      %v6818 = vadd.f32 %v6633, %v6817
      %v6819 = vpop.f32.mrf.mxu0
      %v6820 = vpop.f32.mrf.mxu0
      %v6821 = vadd.f32 %v6633, %v6820
      %v6822 = vpop.f32.mrf.mxu0
      %6823 = vdwg.mxu0
      %v6824 = vmul.f32 %v6730, 0.5
      %v6825 = vmul.f32 %v6733, 0.5
      %v6826 = vmul.f32 %v6738, 0.5
      %v6827 = vmul.f32 %v6741, 0.5
      %v6828 = vmul.f32 %v6746, 0.5
      %v6829 = vmul.f32 %v6749, 0.5
      %v6830 = vmul.f32 %v6754, 0.5
      %v6831 = vmul.f32 %v6757, 0.5
      %v6832 = vmul.f32 %v6762, 0.5
      %v6833 = vmul.f32 %v6765, 0.5
      %v6834 = vmul.f32 %v6770, 0.5
      %v6835 = vmul.f32 %v6773, 0.5
      %v6836 = vmul.f32 %v6778, 0.5
      %v6837 = vmul.f32 %v6781, 0.5
      %v6838 = vmul.f32 %v6786, 0.5
      %v6839 = vmul.f32 %v6789, 0.5
      %v6840 = vmul.f32 %v6794, 0.5
      %v6841 = vmul.f32 %v6797, 0.5
      %v6842 = vmul.f32 %v6802, 0.5
      %v6843 = vmul.f32 %v6805, 0.5
      %v6844 = vmul.f32 %v6810, 0.5
      %v6845 = vmul.f32 %v6813, 0.5
      %v6846 = vmul.f32 %v6818, 0.5
      %v6847 = vmul.f32 %v6821, 0.5
      %v6848 = vtanh.pop %v6824
      %v6849 = vtanh.pop %v6825
      %v6850 = vtanh.pop %v6826
      %v6851 = vtanh.pop %v6827
      %v6852 = vtanh.pop %v6828
      %v6853 = vtanh.pop %v6829
      %v6854 = vtanh.pop %v6830
      %v6855 = vtanh.pop %v6831
      %v6856 = vtanh.pop %v6832
      %v6857 = vtanh.pop %v6833
      %v6858 = vtanh.pop %v6834
      %v6859 = vtanh.pop %v6835
      %v6860 = vtanh.pop %v6836
      %v6861 = vtanh.pop %v6837
      %v6862 = vtanh.pop %v6838
      %v6863 = vtanh.pop %v6839
      %v6864 = vtanh.pop %v6840
      %v6865 = vtanh.pop %v6841
      %v6866 = vtanh.pop %v6842
      %v6867 = vtanh.pop %v6843
      %v6868 = vtanh.pop %v6844
      %v6869 = vtanh.pop %v6845
      %v6870 = vtanh.pop %v6846
      %v6871 = vtanh.pop %v6847
      %v6872 = vmul.f32 %v6848, 0.5
      %v6873 = vmul.f32 %v6849, 0.5
      %v6874 = vmul.f32 %v6850, 0.5
      %v6875 = vmul.f32 %v6851, 0.5
      %v6876 = vmul.f32 %v6852, 0.5
      %v6877 = vmul.f32 %v6853, 0.5
      %v6878 = vmul.f32 %v6854, 0.5
      %v6879 = vmul.f32 %v6855, 0.5
      %v6880 = vmul.f32 %v6856, 0.5
      %v6881 = vmul.f32 %v6857, 0.5
      %v6882 = vmul.f32 %v6858, 0.5
      %v6883 = vmul.f32 %v6859, 0.5
      %v6884 = vmul.f32 %v6860, 0.5
      %v6885 = vmul.f32 %v6861, 0.5
      %v6886 = vmul.f32 %v6862, 0.5
      %v6887 = vmul.f32 %v6863, 0.5
      %v6888 = vmul.f32 %v6864, 0.5
      %v6889 = vmul.f32 %v6865, 0.5
      %v6890 = vmul.f32 %v6866, 0.5
      %v6891 = vmul.f32 %v6867, 0.5
      %v6892 = vmul.f32 %v6868, 0.5
      %v6893 = vmul.f32 %v6869, 0.5
      %v6894 = vmul.f32 %v6870, 0.5
      %v6895 = vmul.f32 %v6871, 0.5
      %v6896 = vadd.f32 %v6872, 0.5
      %v6897 = vadd.f32 %v6873, 0.5
      %v6898 = vadd.f32 %v6874, 0.5
      %v6899 = vadd.f32 %v6875, 0.5
      %v6900 = vadd.f32 %v6876, 0.5
      %v6901 = vadd.f32 %v6877, 0.5
      %v6902 = vadd.f32 %v6878, 0.5
      %v6903 = vadd.f32 %v6879, 0.5
      %v6904 = vadd.f32 %v6880, 0.5
      %v6905 = vadd.f32 %v6881, 0.5
      %v6906 = vadd.f32 %v6882, 0.5
      %v6907 = vadd.f32 %v6883, 0.5
      %v6908 = vadd.f32 %v6884, 0.5
      %v6909 = vadd.f32 %v6885, 0.5
      %v6910 = vadd.f32 %v6886, 0.5
      %v6911 = vadd.f32 %v6887, 0.5
      %v6912 = vadd.f32 %v6888, 0.5
      %v6913 = vadd.f32 %v6889, 0.5
      %v6914 = vadd.f32 %v6890, 0.5
      %v6915 = vadd.f32 %v6891, 0.5
      %v6916 = vadd.f32 %v6892, 0.5
      %v6917 = vadd.f32 %v6893, 0.5
      %v6918 = vadd.f32 %v6894, 0.5
      %v6919 = vadd.f32 %v6895, 0.5
      %v6920 = vmul.f32 %v6582, %v6896
      %v6921 = vmul.f32 %v6583, %v6897
      %v6922 = vmul.f32 %v6584, %v6898
      %v6923 = vmul.f32 %v6585, %v6899
      %v6924 = vmul.f32 %v6586, %v6900
      %v6925 = vmul.f32 %v6587, %v6901
      %v6926 = vmul.f32 %v6588, %v6902
      %v6927 = vmul.f32 %v6589, %v6903
      %v6928 = vmul.f32 %v6590, %v6904
      %v6929 = vmul.f32 %v6591, %v6905
      %v6930 = vmul.f32 %v6592, %v6906
      %v6931 = vmul.f32 %v6593, %v6907
      %v6932 = vmul.f32 %v6594, %v6908
      %v6933 = vmul.f32 %v6595, %v6909
      %v6934 = vmul.f32 %v6596, %v6910
      %v6935 = vmul.f32 %v6597, %v6911
      %v6936 = vmul.f32 %v6598, %v6912
      %v6937 = vmul.f32 %v6599, %v6913
      %v6938 = vmul.f32 %v6600, %v6914
      %v6939 = vmul.f32 %v6601, %v6915
      %v6940 = vmul.f32 %v6602, %v6916
      %v6941 = vmul.f32 %v6603, %v6917
      %v6942 = vmul.f32 %v6604, %v6918
      %v6943 = vmul.f32 %v6605, %v6919
      %v6944 = vpack.c.bf16 %v6921, %v6920
      %v6945 = vpack.c.bf16 %v6923, %v6922
      %v6946 = vpack.c.bf16 %v6925, %v6924
      %v6947 = vpack.c.bf16 %v6927, %v6926
      %v6948 = vpack.c.bf16 %v6929, %v6928
      %v6949 = vpack.c.bf16 %v6931, %v6930
      %v6950 = vpack.c.bf16 %v6933, %v6932
      %v6951 = vpack.c.bf16 %v6935, %v6934
      %v6952 = vpack.c.bf16 %v6937, %v6936
      %v6953 = vpack.c.bf16 %v6939, %v6938
      %v6954 = vpack.c.bf16 %v6941, %v6940
      %v6955 = vpack.c.bf16 %v6943, %v6942
      %s6956 = scalar_lea.vmem %s3, 480
      %v6957 = vld [vmem:[%s6956] sm:$0xf]
      %v6958 = vld [vmem:[%s6956 + $0x4] sm:$0xf]
      %v6959 = vld [vmem:[%s6956 + $0x8] sm:$0xf]
      %v6960 = vld [vmem:[%s6956 + $0xc] sm:$0xf]
      %v6961 = vld [vmem:[%s6956 + $0x10] sm:$0xf]
      %v6962 = vld [vmem:[%s6956 + $0x14] sm:$0xf]
      %v6963 = vld [vmem:[%s6956 + $0x18] sm:$0xf]
      %v6964 = vld [vmem:[%s6956 + $0x1c] sm:$0xf]
      %s6965 = scalar_lea.vmem %s4, 15
      %v6966 = vld [vmem:[%s6965] sm:$0x1]
      %v6968 = vlaneseq
      %v6969 = vshrl.u32 %v6968, 7
      %v6970 = vsub.s32 0, %v6969
      %v6971 = vrot.slane %v6966, %v6970
      %v6981 = vunpack.c.l.b16 %v6957
      %v6982 = vunpack.c.l.b16 %v6958
      %v6983 = vunpack.c.l.b16 %v6959
      %v6984 = vunpack.c.l.b16 %v6960
      %v6985 = vunpack.c.l.b16 %v6961
      %v6986 = vunpack.c.l.b16 %v6962
      %v6987 = vunpack.c.l.b16 %v6963
      %v6988 = vunpack.c.l.b16 %v6964
      %v6989 = vpack.c.b16 %v6982, %v6981
      %v6990 = vpack.c.b16 %v6984, %v6983
      %v6991 = vpack.c.b16 %v6986, %v6985
      %v6992 = vpack.c.b16 %v6988, %v6987
      %v6998 = vsel %vm1926, %v6944, 0
      %v7001 = vsel %vm1926, %v6945, 0
      %v7004 = vsel %vm1926, %v6946, 0
      %v7007 = vsel %vm1926, %v6947, 0
      %v7010 = vsel %vm1926, %v6948, 0
      %v7013 = vsel %vm1926, %v6949, 0
      %v7016 = vsel %vm1926, %v6950, 0
      %v7019 = vsel %vm1926, %v6951, 0
      %v7022 = vsel %vm1926, %v6952, 0
      %v7025 = vsel %vm1926, %v6953, 0
      %v7028 = vsel %vm1926, %v6954, 0
      %v7031 = vsel %vm1926, %v6955, 0
      %7033 = vmatprep.subr.bf16.mxu0 0
      %7034 = vmatpush1.bf16.msra.mxu0 0
      %7035 = vmatprep.subr.bf16.mxu0 0
      %7036 = vmatpush1.bf16.msra.mxu0 0
      %7037 = vmatprep.subr.bf16.mxu0 0
      %7038 = vmatpush1.bf16.msra.mxu0 0
      %7039 = vmatprep.subr.bf16.mxu0 0
      %7040 = vmatpush1.bf16.msra.mxu0 0
      %7041 = vmatprep.subr.bf16.mxu0 0
      %7042 = vmatpush1.bf16.msra.mxu0 %v6992
      %7043 = vmatprep.subr.bf16.mxu0 0
      %7044 = vmatpush1.bf16.msra.mxu0 %v6991
      %7045 = vmatprep.subr.bf16.mxu0 0
      %7046 = vmatpush1.bf16.msra.mxu0 %v6990
      %7047 = vmatprep.subr.bf16.mxu0 0
      %7048 = vmatpush1.bf16.msra.mxu0 %v6989
      %7049 = vmatprep.subr.bf16.mxu0 0
      %7050 = vmatpush2.bf16.msra.mxu0 0
      %7051 = vmatprep.subr.bf16.mxu0 0
      %7052 = vmatpush2.bf16.msra.mxu0 0
      %7053 = vmatprep.subr.bf16.mxu0 0
      %7054 = vmatpush2.bf16.msra.mxu0 0
      %7055 = vmatprep.subr.bf16.mxu0 0
      %7056 = vmatpush2.bf16.msra.mxu0 0
      %7057 = vmatprep.subr.bf16.mxu0 0
      %7058 = vmatpush2.bf16.msra.mxu0 0
      %7059 = vmatprep.subr.bf16.mxu0 0
      %7060 = vmatpush2.bf16.msra.mxu0 0
      %7061 = vmatprep.subr.bf16.mxu0 0
      %7062 = vmatpush2.bf16.msra.mxu0 0
      %7063 = vmatprep.subr.bf16.mxu0 0
      %7064 = vmatpush2.bf16.msra.mxu0 0
      %7065 = vmatprep.mubr.bf16.mxu0 0
      %7066 = vmatmul.mubr.bf16.gmra.mxu0 %v6998
      %v7067 = vpop.f32.mrf.mxu0
      %v7068 = vadd.f32 %v6971, %v7067
      %v7069 = vpop.f32.mrf.mxu0
      %v7070 = vpop.f32.mrf.mxu0
      %v7071 = vadd.f32 %v6971, %v7070
      %v7072 = vpop.f32.mrf.mxu0
      %7073 = vmatprep.mubr.bf16.mxu0 0
      %7074 = vmatmul.mubr.bf16.gmra.mxu0 %v7001
      %v7075 = vpop.f32.mrf.mxu0
      %v7076 = vadd.f32 %v6971, %v7075
      %v7077 = vpop.f32.mrf.mxu0
      %v7078 = vpop.f32.mrf.mxu0
      %v7079 = vadd.f32 %v6971, %v7078
      %v7080 = vpop.f32.mrf.mxu0
      %7081 = vmatprep.mubr.bf16.mxu0 0
      %7082 = vmatmul.mubr.bf16.gmra.mxu0 %v7004
      %v7083 = vpop.f32.mrf.mxu0
      %v7084 = vadd.f32 %v6971, %v7083
      %v7085 = vpop.f32.mrf.mxu0
      %v7086 = vpop.f32.mrf.mxu0
      %v7087 = vadd.f32 %v6971, %v7086
      %v7088 = vpop.f32.mrf.mxu0
      %7089 = vmatprep.mubr.bf16.mxu0 0
      %7090 = vmatmul.mubr.bf16.gmra.mxu0 %v7007
      %v7091 = vpop.f32.mrf.mxu0
      %v7092 = vadd.f32 %v6971, %v7091
      %v7093 = vpop.f32.mrf.mxu0
      %v7094 = vpop.f32.mrf.mxu0
      %v7095 = vadd.f32 %v6971, %v7094
      %v7096 = vpop.f32.mrf.mxu0
      %7097 = vmatprep.mubr.bf16.mxu0 0
      %7098 = vmatmul.mubr.bf16.gmra.mxu0 %v7010
      %v7099 = vpop.f32.mrf.mxu0
      %v7100 = vadd.f32 %v6971, %v7099
      %v7101 = vpop.f32.mrf.mxu0
      %v7102 = vpop.f32.mrf.mxu0
      %v7103 = vadd.f32 %v6971, %v7102
      %v7104 = vpop.f32.mrf.mxu0
      %7105 = vmatprep.mubr.bf16.mxu0 0
      %7106 = vmatmul.mubr.bf16.gmra.mxu0 %v7013
      %v7107 = vpop.f32.mrf.mxu0
      %v7108 = vadd.f32 %v6971, %v7107
      %v7109 = vpop.f32.mrf.mxu0
      %v7110 = vpop.f32.mrf.mxu0
      %v7111 = vadd.f32 %v6971, %v7110
      %v7112 = vpop.f32.mrf.mxu0
      %7113 = vmatprep.mubr.bf16.mxu0 0
      %7114 = vmatmul.mubr.bf16.gmra.mxu0 %v7016
      %v7115 = vpop.f32.mrf.mxu0
      %v7116 = vadd.f32 %v6971, %v7115
      %v7117 = vpop.f32.mrf.mxu0
      %v7118 = vpop.f32.mrf.mxu0
      %v7119 = vadd.f32 %v6971, %v7118
      %v7120 = vpop.f32.mrf.mxu0
      %7121 = vmatprep.mubr.bf16.mxu0 0
      %7122 = vmatmul.mubr.bf16.gmra.mxu0 %v7019
      %v7123 = vpop.f32.mrf.mxu0
      %v7124 = vadd.f32 %v6971, %v7123
      %v7125 = vpop.f32.mrf.mxu0
      %v7126 = vpop.f32.mrf.mxu0
      %v7127 = vadd.f32 %v6971, %v7126
      %v7128 = vpop.f32.mrf.mxu0
      %7129 = vmatprep.mubr.bf16.mxu0 0
      %7130 = vmatmul.mubr.bf16.gmra.mxu0 %v7022
      %v7131 = vpop.f32.mrf.mxu0
      %v7132 = vadd.f32 %v6971, %v7131
      %v7133 = vpop.f32.mrf.mxu0
      %v7134 = vpop.f32.mrf.mxu0
      %v7135 = vadd.f32 %v6971, %v7134
      %v7136 = vpop.f32.mrf.mxu0
      %7137 = vmatprep.mubr.bf16.mxu0 0
      %7138 = vmatmul.mubr.bf16.gmra.mxu0 %v7025
      %v7139 = vpop.f32.mrf.mxu0
      %v7140 = vadd.f32 %v6971, %v7139
      %v7141 = vpop.f32.mrf.mxu0
      %v7142 = vpop.f32.mrf.mxu0
      %v7143 = vadd.f32 %v6971, %v7142
      %v7144 = vpop.f32.mrf.mxu0
      %7145 = vmatprep.mubr.bf16.mxu0 0
      %7146 = vmatmul.mubr.bf16.gmra.mxu0 %v7028
      %v7147 = vpop.f32.mrf.mxu0
      %v7148 = vadd.f32 %v6971, %v7147
      %v7149 = vpop.f32.mrf.mxu0
      %v7150 = vpop.f32.mrf.mxu0
      %v7151 = vadd.f32 %v6971, %v7150
      %v7152 = vpop.f32.mrf.mxu0
      %7153 = vmatprep.mubr.bf16.mxu0 0
      %7154 = vmatmul.mubr.bf16.gmra.mxu0 %v7031
      %v7155 = vpop.f32.mrf.mxu0
      %v7156 = vadd.f32 %v6971, %v7155
      %v7157 = vpop.f32.mrf.mxu0
      %v7158 = vpop.f32.mrf.mxu0
      %v7159 = vadd.f32 %v6971, %v7158
      %v7160 = vpop.f32.mrf.mxu0
      %7161 = vdwg.mxu0
      %v7162 = vmul.f32 %v7068, 0.5
      %v7163 = vmul.f32 %v7071, 0.5
      %v7164 = vmul.f32 %v7076, 0.5
      %v7165 = vmul.f32 %v7079, 0.5
      %v7166 = vmul.f32 %v7084, 0.5
      %v7167 = vmul.f32 %v7087, 0.5
      %v7168 = vmul.f32 %v7092, 0.5
      %v7169 = vmul.f32 %v7095, 0.5
      %v7170 = vmul.f32 %v7100, 0.5
      %v7171 = vmul.f32 %v7103, 0.5
      %v7172 = vmul.f32 %v7108, 0.5
      %v7173 = vmul.f32 %v7111, 0.5
      %v7174 = vmul.f32 %v7116, 0.5
      %v7175 = vmul.f32 %v7119, 0.5
      %v7176 = vmul.f32 %v7124, 0.5
      %v7177 = vmul.f32 %v7127, 0.5
      %v7178 = vmul.f32 %v7132, 0.5
      %v7179 = vmul.f32 %v7135, 0.5
      %v7180 = vmul.f32 %v7140, 0.5
      %v7181 = vmul.f32 %v7143, 0.5
      %v7182 = vmul.f32 %v7148, 0.5
      %v7183 = vmul.f32 %v7151, 0.5
      %v7184 = vmul.f32 %v7156, 0.5
      %v7185 = vmul.f32 %v7159, 0.5
      %v7186 = vtanh.pop %v7162
      %v7187 = vtanh.pop %v7163
      %v7188 = vtanh.pop %v7164
      %v7189 = vtanh.pop %v7165
      %v7190 = vtanh.pop %v7166
      %v7191 = vtanh.pop %v7167
      %v7192 = vtanh.pop %v7168
      %v7193 = vtanh.pop %v7169
      %v7194 = vtanh.pop %v7170
      %v7195 = vtanh.pop %v7171
      %v7196 = vtanh.pop %v7172
      %v7197 = vtanh.pop %v7173
      %v7198 = vtanh.pop %v7174
      %v7199 = vtanh.pop %v7175
      %v7200 = vtanh.pop %v7176
      %v7201 = vtanh.pop %v7177
      %v7202 = vtanh.pop %v7178
      %v7203 = vtanh.pop %v7179
      %v7204 = vtanh.pop %v7180
      %v7205 = vtanh.pop %v7181
      %v7206 = vtanh.pop %v7182
      %v7207 = vtanh.pop %v7183
      %v7208 = vtanh.pop %v7184
      %v7209 = vtanh.pop %v7185
      %v7210 = vmul.f32 %v7186, 0.5
      %v7211 = vmul.f32 %v7187, 0.5
      %v7212 = vmul.f32 %v7188, 0.5
      %v7213 = vmul.f32 %v7189, 0.5
      %v7214 = vmul.f32 %v7190, 0.5
      %v7215 = vmul.f32 %v7191, 0.5
      %v7216 = vmul.f32 %v7192, 0.5
      %v7217 = vmul.f32 %v7193, 0.5
      %v7218 = vmul.f32 %v7194, 0.5
      %v7219 = vmul.f32 %v7195, 0.5
      %v7220 = vmul.f32 %v7196, 0.5
      %v7221 = vmul.f32 %v7197, 0.5
      %v7222 = vmul.f32 %v7198, 0.5
      %v7223 = vmul.f32 %v7199, 0.5
      %v7224 = vmul.f32 %v7200, 0.5
      %v7225 = vmul.f32 %v7201, 0.5
      %v7226 = vmul.f32 %v7202, 0.5
      %v7227 = vmul.f32 %v7203, 0.5
      %v7228 = vmul.f32 %v7204, 0.5
      %v7229 = vmul.f32 %v7205, 0.5
      %v7230 = vmul.f32 %v7206, 0.5
      %v7231 = vmul.f32 %v7207, 0.5
      %v7232 = vmul.f32 %v7208, 0.5
      %v7233 = vmul.f32 %v7209, 0.5
      %v7234 = vadd.f32 %v7210, 0.5
      %v7235 = vadd.f32 %v7211, 0.5
      %v7236 = vadd.f32 %v7212, 0.5
      %v7237 = vadd.f32 %v7213, 0.5
      %v7238 = vadd.f32 %v7214, 0.5
      %v7239 = vadd.f32 %v7215, 0.5
      %v7240 = vadd.f32 %v7216, 0.5
      %v7241 = vadd.f32 %v7217, 0.5
      %v7242 = vadd.f32 %v7218, 0.5
      %v7243 = vadd.f32 %v7219, 0.5
      %v7244 = vadd.f32 %v7220, 0.5
      %v7245 = vadd.f32 %v7221, 0.5
      %v7246 = vadd.f32 %v7222, 0.5
      %v7247 = vadd.f32 %v7223, 0.5
      %v7248 = vadd.f32 %v7224, 0.5
      %v7249 = vadd.f32 %v7225, 0.5
      %v7250 = vadd.f32 %v7226, 0.5
      %v7251 = vadd.f32 %v7227, 0.5
      %v7252 = vadd.f32 %v7228, 0.5
      %v7253 = vadd.f32 %v7229, 0.5
      %v7254 = vadd.f32 %v7230, 0.5
      %v7255 = vadd.f32 %v7231, 0.5
      %v7256 = vadd.f32 %v7232, 0.5
      %v7257 = vadd.f32 %v7233, 0.5
      %v7258 = vmul.f32 %v6920, %v7234
      %v7259 = vmul.f32 %v6921, %v7235
      %v7260 = vmul.f32 %v6922, %v7236
      %v7261 = vmul.f32 %v6923, %v7237
      %v7262 = vmul.f32 %v6924, %v7238
      %v7263 = vmul.f32 %v6925, %v7239
      %v7264 = vmul.f32 %v6926, %v7240
      %v7265 = vmul.f32 %v6927, %v7241
      %v7266 = vmul.f32 %v6928, %v7242
      %v7267 = vmul.f32 %v6929, %v7243
      %v7268 = vmul.f32 %v6930, %v7244
      %v7269 = vmul.f32 %v6931, %v7245
      %v7270 = vmul.f32 %v6932, %v7246
      %v7271 = vmul.f32 %v6933, %v7247
      %v7272 = vmul.f32 %v6934, %v7248
      %v7273 = vmul.f32 %v6935, %v7249
      %v7274 = vmul.f32 %v6936, %v7250
      %v7275 = vmul.f32 %v6937, %v7251
      %v7276 = vmul.f32 %v6938, %v7252
      %v7277 = vmul.f32 %v6939, %v7253
      %v7278 = vmul.f32 %v6940, %v7254
      %v7279 = vmul.f32 %v6941, %v7255
      %v7280 = vmul.f32 %v6942, %v7256
      %v7281 = vmul.f32 %v6943, %v7257
      %vm7282 = vcmask 130048
      %7283 = vst.msk [vmem:[#allocation2 + $0x1] sm:$0xff] %vm7282, %v7258
      %7284 = vst.msk [vmem:[#allocation2 + $0x9] sm:$0xff] %vm7282, %v7259
      %7285 = vst.msk [vmem:[#allocation2 + $0x19] sm:$0xff] %vm7282, %v7260
      %7286 = vst.msk [vmem:[#allocation2 + $0x21] sm:$0xff] %vm7282, %v7261
      %7287 = vst.msk [vmem:[#allocation2 + $0x31] sm:$0xff] %vm7282, %v7262
      %7288 = vst.msk [vmem:[#allocation2 + $0x39] sm:$0xff] %vm7282, %v7263
      %7289 = vst.msk [vmem:[#allocation2 + $0x49] sm:$0xff] %vm7282, %v7264
      %7290 = vst.msk [vmem:[#allocation2 + $0x51] sm:$0xff] %vm7282, %v7265
      %7291 = vst.msk [vmem:[#allocation2 + $0x61] sm:$0xff] %vm7282, %v7266
      %7292 = vst.msk [vmem:[#allocation2 + $0x69] sm:$0xff] %vm7282, %v7267
      %7293 = vst.msk [vmem:[#allocation2 + $0x79] sm:$0xff] %vm7282, %v7268
      %7294 = vst.msk [vmem:[#allocation2 + $0x81] sm:$0xff] %vm7282, %v7269
      %7295 = vst.msk [vmem:[#allocation2 + $0x91] sm:$0xff] %vm7282, %v7270
      %7296 = vst.msk [vmem:[#allocation2 + $0x99] sm:$0xff] %vm7282, %v7271
      %7297 = vst.msk [vmem:[#allocation2 + $0xa9] sm:$0xff] %vm7282, %v7272
      %7298 = vst.msk [vmem:[#allocation2 + $0xb1] sm:$0xff] %vm7282, %v7273
      %7299 = vst.msk [vmem:[#allocation2 + $0xc1] sm:$0xff] %vm7282, %v7274
      %7300 = vst.msk [vmem:[#allocation2 + $0xc9] sm:$0xff] %vm7282, %v7275
      %7301 = vst.msk [vmem:[#allocation2 + $0xd9] sm:$0xff] %vm7282, %v7276
      %7302 = vst.msk [vmem:[#allocation2 + $0xe1] sm:$0xff] %vm7282, %v7277
      %7303 = vst.msk [vmem:[#allocation2 + $0xf1] sm:$0xff] %vm7282, %v7278
      %7304 = vst.msk [vmem:[#allocation2 + $0xf9] sm:$0xff] %vm7282, %v7279
      %7305 = vst.msk [vmem:[#allocation2 + $0x109] sm:$0xff] %vm7282, %v7280
      %7306 = vst.msk [vmem:[#allocation2 + $0x111] sm:$0xff] %vm7282, %v7281
      %p7307 = scmp.eq.s32.totalorder %s26, 0
      // Predicated region
      $region61: #{pcrn_forward.1} parent=59 // pred_check
        %p7308 = pneg %p7307
      $region62: #{pcrn_forward.1} parent=59 // pred_check_branch
        %7310 = sbr.rel (%p7308) target = $region64
      $region63: #{pcrn_forward.1} parent=59 // pred_region
        %7311 = vst.msk [vmem:[#allocation2 + $0x1] sm:$0xff] %vm7282, 0.0
        %7312 = vst.msk [vmem:[#allocation2 + $0x9] sm:$0xff] %vm7282, 0.0
        %7313 = vst.msk [vmem:[#allocation2 + $0x19] sm:$0xff] %vm7282, 0.0
        %7314 = vst.msk [vmem:[#allocation2 + $0x21] sm:$0xff] %vm7282, 0.0
      $region64: #{pcrn_forward.1} parent=59 // pred_fallthru
        _
      %p7315 = scmp.eq.s32.totalorder %s26, 1
      // Predicated region
      $region65: #{pcrn_forward.1} parent=59 // pred_check
        %p7316 = pneg %p7315
      $region66: #{pcrn_forward.1} parent=59 // pred_check_branch
        %7318 = sbr.rel (%p7316) target = $region68
      $region67: #{pcrn_forward.1} parent=59 // pred_region
        %s7319 = scalar_lea.vmem [#allocation2], 240
        %7320 = vst.msk [vmem:[%s7319 + $0x1] sm:$0xff] %vm7282, 0.0
        %7321 = vst.msk [vmem:[%s7319 + $0x9] sm:$0xff] %vm7282, 0.0
        %7322 = vst.msk [vmem:[%s7319 + $0x19] sm:$0xff] %vm7282, 0.0
        %7323 = vst.msk [vmem:[%s7319 + $0x21] sm:$0xff] %vm7282, 0.0
      $region68: #{pcrn_forward.1} parent=59 // pred_fallthru
        _
      %v7324 = vld [vmem:[%s7] sm:$0x1]
      %v7326 = vlaneseq
      %v7327 = vshrl.u32 %v7326, 7
      %v7328 = vsub.s32 0, %v7327
      %v7329 = vrot.slane %v7324, %v7328
      %v7331 = vadd.f32 %v1789, %v7329
      %v7332 = vadd.f32 %v1792, %v7329
      %v7333 = vadd.f32 %v1797, %v7329
      %v7334 = vadd.f32 %v1800, %v7329
      %v7335 = vadd.f32 %v1805, %v7329
      %v7336 = vadd.f32 %v1808, %v7329
      %v7337 = vadd.f32 %v1813, %v7329
      %v7338 = vadd.f32 %v1816, %v7329
      %v7339 = vadd.f32 %v1821, %v7329
      %v7340 = vadd.f32 %v1824, %v7329
      %v7341 = vadd.f32 %v1829, %v7329
      %v7342 = vadd.f32 %v1832, %v7329
      %v7343 = vadd.f32 %v1837, %v7329
      %v7344 = vadd.f32 %v1840, %v7329
      %v7345 = vadd.f32 %v1845, %v7329
      %v7346 = vadd.f32 %v1848, %v7329
      %v7347 = vadd.f32 %v1853, %v7329
      %v7348 = vadd.f32 %v1856, %v7329
      %v7349 = vadd.f32 %v1861, %v7329
      %v7350 = vadd.f32 %v1864, %v7329
      %v7351 = vpack.c.bf16 %v7261, %v7260
      %v7352 = vpack.c.bf16 %v7263, %v7262
      %v7353 = vpack.c.bf16 %v7265, %v7264
      %v7354 = vpack.c.bf16 %v7267, %v7266
      %v7355 = vpack.c.bf16 %v7269, %v7268
      %v7356 = vpack.c.bf16 %v7271, %v7270
      %v7357 = vpack.c.bf16 %v7273, %v7272
      %v7358 = vpack.c.bf16 %v7275, %v7274
      %v7359 = vpack.c.bf16 %v7277, %v7276
      %v7360 = vpack.c.bf16 %v7279, %v7278
      %v7361 = vld [vmem:[%s6] sm:$0xf]
      %v7362 = vld [vmem:[%s6 + $0x4] sm:$0xf]
      %v7363 = vld [vmem:[%s6 + $0x8] sm:$0xf]
      %v7364 = vld [vmem:[%s6 + $0xc] sm:$0xf]
      %v7365 = vld [vmem:[%s6 + $0x10] sm:$0xf]
      %v7366 = vld [vmem:[%s6 + $0x14] sm:$0xf]
      %7377 = vrot.lane.b32.xlu0 %v7351, 112
      %v7378 = vpop.permute.xlu0 %7377
      %7379 = vrot.lane.b32.xlu0 %v7352, 112
      %v7380 = vpop.permute.xlu0 %7379
      %7381 = vrot.lane.b32.xlu0 %v7353, 112
      %v7382 = vpop.permute.xlu0 %7381
      %7383 = vrot.lane.b32.xlu0 %v7354, 112
      %v7384 = vpop.permute.xlu0 %7383
      %7385 = vrot.lane.b32.xlu0 %v7355, 112
      %v7386 = vpop.permute.xlu0 %7385
      %7387 = vrot.lane.b32.xlu0 %v7356, 112
      %v7388 = vpop.permute.xlu0 %7387
      %7389 = vrot.lane.b32.xlu0 %v7357, 112
      %v7390 = vpop.permute.xlu0 %7389
      %7391 = vrot.lane.b32.xlu0 %v7358, 112
      %v7392 = vpop.permute.xlu0 %7391
      %7393 = vrot.lane.b32.xlu0 %v7359, 112
      %v7394 = vpop.permute.xlu0 %7393
      %7395 = vrot.lane.b32.xlu0 %v7360, 112
      %v7396 = vpop.permute.xlu0 %7395
      %v7403 = vunpack.c.l.b16 %v7361
      %v7404 = vunpack.c.l.b16 %v7362
      %v7405 = vunpack.c.l.b16 %v7363
      %v7406 = vunpack.c.l.b16 %v7364
      %v7407 = vunpack.c.l.b16 %v7365
      %v7408 = vunpack.c.l.b16 %v7366
      %v7409 = vpack.c.b16 %v7404, %v7403
      %v7410 = vpack.c.b16 %v7406, %v7405
      %v7411 = vpack.c.b16 %v7408, %v7407
      %vm7415 = vcmask 392192
      %v7417 = vsel %vm7415, %v7378, 0
      %v7420 = vsel %vm7415, %v7380, 0
      %v7423 = vsel %vm7415, %v7382, 0
      %v7426 = vsel %vm7415, %v7384, 0
      %v7429 = vsel %vm7415, %v7386, 0
      %v7432 = vsel %vm7415, %v7388, 0
      %v7435 = vsel %vm7415, %v7390, 0
      %v7438 = vsel %vm7415, %v7392, 0
      %v7441 = vsel %vm7415, %v7394, 0
      %v7444 = vsel %vm7415, %v7396, 0
      %7446 = vmatprep.subr.bf16.mxu0 0
      %7447 = vmatpush1.bf16.msra.mxu0 0
      %7448 = vmatprep.subr.bf16.mxu0 0
      %7449 = vmatpush1.bf16.msra.mxu0 0
      %7450 = vmatprep.subr.bf16.mxu0 0
      %7451 = vmatpush1.bf16.msra.mxu0 0
      %7452 = vmatprep.subr.bf16.mxu0 0
      %7453 = vmatpush1.bf16.msra.mxu0 0
      %7454 = vmatprep.subr.bf16.mxu0 0
      %7455 = vmatpush1.bf16.msra.mxu0 0
      %7456 = vmatprep.subr.bf16.mxu0 0
      %7457 = vmatpush1.bf16.msra.mxu0 %v7411
      %7458 = vmatprep.subr.bf16.mxu0 0
      %7459 = vmatpush1.bf16.msra.mxu0 %v7410
      %7460 = vmatprep.subr.bf16.mxu0 0
      %7461 = vmatpush1.bf16.msra.mxu0 %v7409
      %7462 = vmatprep.subr.bf16.mxu0 0
      %7463 = vmatpush2.bf16.msra.mxu0 0
      %7464 = vmatprep.subr.bf16.mxu0 0
      %7465 = vmatpush2.bf16.msra.mxu0 0
      %7466 = vmatprep.subr.bf16.mxu0 0
      %7467 = vmatpush2.bf16.msra.mxu0 0
      %7468 = vmatprep.subr.bf16.mxu0 0
      %7469 = vmatpush2.bf16.msra.mxu0 0
      %7470 = vmatprep.subr.bf16.mxu0 0
      %7471 = vmatpush2.bf16.msra.mxu0 0
      %7472 = vmatprep.subr.bf16.mxu0 0
      %7473 = vmatpush2.bf16.msra.mxu0 0
      %7474 = vmatprep.subr.bf16.mxu0 0
      %7475 = vmatpush2.bf16.msra.mxu0 0
      %7476 = vmatprep.subr.bf16.mxu0 0
      %7477 = vmatpush2.bf16.msra.mxu0 0
      %7478 = vmatprep.mubr.bf16.mxu0 0
      %7479 = vmatmul.mubr.bf16.gmra.mxu0 %v7417
      %v7480 = vpop.f32.mrf.mxu0
      %v7481 = vadd.f32 0.0, %v7480
      %v7482 = vpop.f32.mrf.mxu0
      %v7483 = vpop.f32.mrf.mxu0
      %v7484 = vadd.f32 0.0, %v7483
      %v7485 = vpop.f32.mrf.mxu0
      %7486 = vmatprep.mubr.bf16.mxu0 0
      %7487 = vmatmul.mubr.bf16.gmra.mxu0 %v7420
      %v7488 = vpop.f32.mrf.mxu0
      %v7489 = vadd.f32 0.0, %v7488
      %v7490 = vpop.f32.mrf.mxu0
      %v7491 = vpop.f32.mrf.mxu0
      %v7492 = vadd.f32 0.0, %v7491
      %v7493 = vpop.f32.mrf.mxu0
      %7494 = vmatprep.mubr.bf16.mxu0 0
      %7495 = vmatmul.mubr.bf16.gmra.mxu0 %v7423
      %v7496 = vpop.f32.mrf.mxu0
      %v7497 = vadd.f32 0.0, %v7496
      %v7498 = vpop.f32.mrf.mxu0
      %v7499 = vpop.f32.mrf.mxu0
      %v7500 = vadd.f32 0.0, %v7499
      %v7501 = vpop.f32.mrf.mxu0
      %7502 = vmatprep.mubr.bf16.mxu0 0
      %7503 = vmatmul.mubr.bf16.gmra.mxu0 %v7426
      %v7504 = vpop.f32.mrf.mxu0
      %v7505 = vadd.f32 0.0, %v7504
      %v7506 = vpop.f32.mrf.mxu0
      %v7507 = vpop.f32.mrf.mxu0
      %v7508 = vadd.f32 0.0, %v7507
      %v7509 = vpop.f32.mrf.mxu0
      %7510 = vmatprep.mubr.bf16.mxu0 0
      %7511 = vmatmul.mubr.bf16.gmra.mxu0 %v7429
      %v7512 = vpop.f32.mrf.mxu0
      %v7513 = vadd.f32 0.0, %v7512
      %v7514 = vpop.f32.mrf.mxu0
      %v7515 = vpop.f32.mrf.mxu0
      %v7516 = vadd.f32 0.0, %v7515
      %v7517 = vpop.f32.mrf.mxu0
      %7518 = vmatprep.mubr.bf16.mxu0 0
      %7519 = vmatmul.mubr.bf16.gmra.mxu0 %v7432
      %v7520 = vpop.f32.mrf.mxu0
      %v7521 = vadd.f32 0.0, %v7520
      %v7522 = vpop.f32.mrf.mxu0
      %v7523 = vpop.f32.mrf.mxu0
      %v7524 = vadd.f32 0.0, %v7523
      %v7525 = vpop.f32.mrf.mxu0
      %7526 = vmatprep.mubr.bf16.mxu0 0
      %7527 = vmatmul.mubr.bf16.gmra.mxu0 %v7435
      %v7528 = vpop.f32.mrf.mxu0
      %v7529 = vadd.f32 0.0, %v7528
      %v7530 = vpop.f32.mrf.mxu0
      %v7531 = vpop.f32.mrf.mxu0
      %v7532 = vadd.f32 0.0, %v7531
      %v7533 = vpop.f32.mrf.mxu0
      %7534 = vmatprep.mubr.bf16.mxu0 0
      %7535 = vmatmul.mubr.bf16.gmra.mxu0 %v7438
      %v7536 = vpop.f32.mrf.mxu0
      %v7537 = vadd.f32 0.0, %v7536
      %v7538 = vpop.f32.mrf.mxu0
      %v7539 = vpop.f32.mrf.mxu0
      %v7540 = vadd.f32 0.0, %v7539
      %v7541 = vpop.f32.mrf.mxu0
      %7542 = vmatprep.mubr.bf16.mxu0 0
      %7543 = vmatmul.mubr.bf16.gmra.mxu0 %v7441
      %v7544 = vpop.f32.mrf.mxu0
      %v7545 = vadd.f32 0.0, %v7544
      %v7546 = vpop.f32.mrf.mxu0
      %v7547 = vpop.f32.mrf.mxu0
      %v7548 = vadd.f32 0.0, %v7547
      %v7549 = vpop.f32.mrf.mxu0
      %7550 = vmatprep.mubr.bf16.mxu0 0
      %7551 = vmatmul.mubr.bf16.gmra.mxu0 %v7444
      %v7552 = vpop.f32.mrf.mxu0
      %v7553 = vadd.f32 0.0, %v7552
      %v7554 = vpop.f32.mrf.mxu0
      %v7555 = vpop.f32.mrf.mxu0
      %v7556 = vadd.f32 0.0, %v7555
      %v7557 = vpop.f32.mrf.mxu0
      %7558 = vdwg.mxu0
      %v7559 = vadd.f32 %v7331, %v7481
      %v7560 = vadd.f32 %v7332, %v7484
      %v7561 = vadd.f32 %v7333, %v7489
      %v7562 = vadd.f32 %v7334, %v7492
      %v7563 = vadd.f32 %v7335, %v7497
      %v7564 = vadd.f32 %v7336, %v7500
      %v7565 = vadd.f32 %v7337, %v7505
      %v7566 = vadd.f32 %v7338, %v7508
      %v7567 = vadd.f32 %v7339, %v7513
      %v7568 = vadd.f32 %v7340, %v7516
      %v7569 = vadd.f32 %v7341, %v7521
      %v7570 = vadd.f32 %v7342, %v7524
      %v7571 = vadd.f32 %v7343, %v7529
      %v7572 = vadd.f32 %v7344, %v7532
      %v7573 = vadd.f32 %v7345, %v7537
      %v7574 = vadd.f32 %v7346, %v7540
      %v7575 = vadd.f32 %v7347, %v7545
      %v7576 = vadd.f32 %v7348, %v7548
      %v7577 = vadd.f32 %v7349, %v7553
      %v7578 = vadd.f32 %v7350, %v7556
      %v7579 = vld [vmem:[#allocation2] sm:$0xff]
      %v7580 = vld [vmem:[#allocation2 + $0x8] sm:$0xff]
      %v7581 = vld [vmem:[#allocation2 + $0x18] sm:$0xff]
      %v7582 = vld [vmem:[#allocation2 + $0x20] sm:$0xff]
      %v7583 = vld [vmem:[#allocation2 + $0x30] sm:$0xff]
      %v7584 = vld [vmem:[#allocation2 + $0x38] sm:$0xff]
      %v7585 = vld [vmem:[#allocation2 + $0x48] sm:$0xff]
      %v7586 = vld [vmem:[#allocation2 + $0x50] sm:$0xff]
      %v7587 = vld [vmem:[#allocation2 + $0x60] sm:$0xff]
      %v7588 = vld [vmem:[#allocation2 + $0x68] sm:$0xff]
      %v7589 = vld [vmem:[#allocation2 + $0x78] sm:$0xff]
      %v7590 = vld [vmem:[#allocation2 + $0x80] sm:$0xff]
      %v7591 = vld [vmem:[#allocation2 + $0x90] sm:$0xff]
      %v7592 = vld [vmem:[#allocation2 + $0x98] sm:$0xff]
      %v7593 = vld [vmem:[#allocation2 + $0xa8] sm:$0xff]
      %v7594 = vld [vmem:[#allocation2 + $0xb0] sm:$0xff]
      %v7595 = vld [vmem:[#allocation2 + $0xc0] sm:$0xff]
      %v7596 = vld [vmem:[#allocation2 + $0xc8] sm:$0xff]
      %v7597 = vld [vmem:[#allocation2 + $0xd8] sm:$0xff]
      %v7598 = vld [vmem:[#allocation2 + $0xe0] sm:$0xff]
      %v7599 = vpack.c.bf16 %v7580, %v7579
      %v7600 = vpack.c.bf16 %v7582, %v7581
      %v7601 = vpack.c.bf16 %v7584, %v7583
      %v7602 = vpack.c.bf16 %v7586, %v7585
      %v7603 = vpack.c.bf16 %v7588, %v7587
      %v7604 = vpack.c.bf16 %v7590, %v7589
      %v7605 = vpack.c.bf16 %v7592, %v7591
      %v7606 = vpack.c.bf16 %v7594, %v7593
      %v7607 = vpack.c.bf16 %v7596, %v7595
      %v7608 = vpack.c.bf16 %v7598, %v7597
      %v7609 = vld [vmem:[%s5] sm:$0xf]
      %v7610 = vld [vmem:[%s5 + $0x4] sm:$0xf]
      %v7613 = vunpack.c.l.b16 %v7609
      %v7614 = vunpack.c.l.b16 %v7610
      %v7615 = vpack.c.b16 %v7614, %v7613
      %v7618 = vsel %vm7282, %v7599, 0
      %v7621 = vsel %vm7282, %v7600, 0
      %v7624 = vsel %vm7282, %v7601, 0
      %v7627 = vsel %vm7282, %v7602, 0
      %v7630 = vsel %vm7282, %v7603, 0
      %v7633 = vsel %vm7282, %v7604, 0
      %v7636 = vsel %vm7282, %v7605, 0
      %v7639 = vsel %vm7282, %v7606, 0
      %v7642 = vsel %vm7282, %v7607, 0
      %v7645 = vsel %vm7282, %v7608, 0
      %7647 = vmatprep.subr.bf16.mxu0 0
      %7648 = vmatpush1.bf16.msra.mxu0 0
      %7649 = vmatprep.subr.bf16.mxu0 0
      %7650 = vmatpush1.bf16.msra.mxu0 0
      %7651 = vmatprep.subr.bf16.mxu0 0
      %7652 = vmatpush1.bf16.msra.mxu0 0
      %7653 = vmatprep.subr.bf16.mxu0 0
      %7654 = vmatpush1.bf16.msra.mxu0 0
      %7655 = vmatprep.subr.bf16.mxu0 0
      %7656 = vmatpush1.bf16.msra.mxu0 0
      %7657 = vmatprep.subr.bf16.mxu0 0
      %7658 = vmatpush1.bf16.msra.mxu0 0
      %7659 = vmatprep.subr.bf16.mxu0 0
      %7660 = vmatpush1.bf16.msra.mxu0 0
      %7661 = vmatprep.subr.bf16.mxu0 0
      %7662 = vmatpush1.bf16.msra.mxu0 %v7615
      %7663 = vmatprep.subr.bf16.mxu0 0
      %7664 = vmatpush2.bf16.msra.mxu0 0
      %7665 = vmatprep.subr.bf16.mxu0 0
      %7666 = vmatpush2.bf16.msra.mxu0 0
      %7667 = vmatprep.subr.bf16.mxu0 0
      %7668 = vmatpush2.bf16.msra.mxu0 0
      %7669 = vmatprep.subr.bf16.mxu0 0
      %7670 = vmatpush2.bf16.msra.mxu0 0
      %7671 = vmatprep.subr.bf16.mxu0 0
      %7672 = vmatpush2.bf16.msra.mxu0 0
      %7673 = vmatprep.subr.bf16.mxu0 0
      %7674 = vmatpush2.bf16.msra.mxu0 0
      %7675 = vmatprep.subr.bf16.mxu0 0
      %7676 = vmatpush2.bf16.msra.mxu0 0
      %7677 = vmatprep.subr.bf16.mxu0 0
      %7678 = vmatpush2.bf16.msra.mxu0 0
      %7679 = vmatprep.mubr.bf16.mxu0 0
      %7680 = vmatmul.mubr.bf16.gmra.mxu0 %v7618
      %v7681 = vpop.f32.mrf.mxu0
      %v7682 = vadd.f32 0.0, %v7681
      %v7683 = vpop.f32.mrf.mxu0
      %v7684 = vpop.f32.mrf.mxu0
      %v7685 = vadd.f32 0.0, %v7684
      %v7686 = vpop.f32.mrf.mxu0
      %7687 = vmatprep.mubr.bf16.mxu0 0
      %7688 = vmatmul.mubr.bf16.gmra.mxu0 %v7621
      %v7689 = vpop.f32.mrf.mxu0
      %v7690 = vadd.f32 0.0, %v7689
      %v7691 = vpop.f32.mrf.mxu0
      %v7692 = vpop.f32.mrf.mxu0
      %v7693 = vadd.f32 0.0, %v7692
      %v7694 = vpop.f32.mrf.mxu0
      %7695 = vmatprep.mubr.bf16.mxu0 0
      %7696 = vmatmul.mubr.bf16.gmra.mxu0 %v7624
      %v7697 = vpop.f32.mrf.mxu0
      %v7698 = vadd.f32 0.0, %v7697
      %v7699 = vpop.f32.mrf.mxu0
      %v7700 = vpop.f32.mrf.mxu0
      %v7701 = vadd.f32 0.0, %v7700
      %v7702 = vpop.f32.mrf.mxu0
      %7703 = vmatprep.mubr.bf16.mxu0 0
      %7704 = vmatmul.mubr.bf16.gmra.mxu0 %v7627
      %v7705 = vpop.f32.mrf.mxu0
      %v7706 = vadd.f32 0.0, %v7705
      %v7707 = vpop.f32.mrf.mxu0
      %v7708 = vpop.f32.mrf.mxu0
      %v7709 = vadd.f32 0.0, %v7708
      %v7710 = vpop.f32.mrf.mxu0
      %7711 = vmatprep.mubr.bf16.mxu0 0
      %7712 = vmatmul.mubr.bf16.gmra.mxu0 %v7630
      %v7713 = vpop.f32.mrf.mxu0
      %v7714 = vadd.f32 0.0, %v7713
      %v7715 = vpop.f32.mrf.mxu0
      %v7716 = vpop.f32.mrf.mxu0
      %v7717 = vadd.f32 0.0, %v7716
      %v7718 = vpop.f32.mrf.mxu0
      %7719 = vmatprep.mubr.bf16.mxu0 0
      %7720 = vmatmul.mubr.bf16.gmra.mxu0 %v7633
      %v7721 = vpop.f32.mrf.mxu0
      %v7722 = vadd.f32 0.0, %v7721
      %v7723 = vpop.f32.mrf.mxu0
      %v7724 = vpop.f32.mrf.mxu0
      %v7725 = vadd.f32 0.0, %v7724
      %v7726 = vpop.f32.mrf.mxu0
      %7727 = vmatprep.mubr.bf16.mxu0 0
      %7728 = vmatmul.mubr.bf16.gmra.mxu0 %v7636
      %v7729 = vpop.f32.mrf.mxu0
      %v7730 = vadd.f32 0.0, %v7729
      %v7731 = vpop.f32.mrf.mxu0
      %v7732 = vpop.f32.mrf.mxu0
      %v7733 = vadd.f32 0.0, %v7732
      %v7734 = vpop.f32.mrf.mxu0
      %7735 = vmatprep.mubr.bf16.mxu0 0
      %7736 = vmatmul.mubr.bf16.gmra.mxu0 %v7639
      %v7737 = vpop.f32.mrf.mxu0
      %v7738 = vadd.f32 0.0, %v7737
      %v7739 = vpop.f32.mrf.mxu0
      %v7740 = vpop.f32.mrf.mxu0
      %v7741 = vadd.f32 0.0, %v7740
      %v7742 = vpop.f32.mrf.mxu0
      %7743 = vmatprep.mubr.bf16.mxu0 0
      %7744 = vmatmul.mubr.bf16.gmra.mxu0 %v7642
      %v7745 = vpop.f32.mrf.mxu0
      %v7746 = vadd.f32 0.0, %v7745
      %v7747 = vpop.f32.mrf.mxu0
      %v7748 = vpop.f32.mrf.mxu0
      %v7749 = vadd.f32 0.0, %v7748
      %v7750 = vpop.f32.mrf.mxu0
      %7751 = vmatprep.mubr.bf16.mxu0 0
      %7752 = vmatmul.mubr.bf16.gmra.mxu0 %v7645
      %v7753 = vpop.f32.mrf.mxu0
      %v7754 = vadd.f32 0.0, %v7753
      %v7755 = vpop.f32.mrf.mxu0
      %v7756 = vpop.f32.mrf.mxu0
      %v7757 = vadd.f32 0.0, %v7756
      %v7758 = vpop.f32.mrf.mxu0
      %7759 = vdwg.mxu0
      %v7760 = vadd.f32 %v7559, %v7682
      %v7761 = vadd.f32 %v7560, %v7685
      %v7762 = vadd.f32 %v7561, %v7690
      %v7763 = vadd.f32 %v7562, %v7693
      %v7764 = vadd.f32 %v7563, %v7698
      %v7765 = vadd.f32 %v7564, %v7701
      %v7766 = vadd.f32 %v7565, %v7706
      %v7767 = vadd.f32 %v7566, %v7709
      %v7768 = vadd.f32 %v7567, %v7714
      %v7769 = vadd.f32 %v7568, %v7717
      %v7770 = vadd.f32 %v7569, %v7722
      %v7771 = vadd.f32 %v7570, %v7725
      %v7772 = vadd.f32 %v7571, %v7730
      %v7773 = vadd.f32 %v7572, %v7733
      %v7774 = vadd.f32 %v7573, %v7738
      %v7775 = vadd.f32 %v7574, %v7741
      %v7776 = vadd.f32 %v7575, %v7746
      %v7777 = vadd.f32 %v7576, %v7749
      %v7778 = vadd.f32 %v7577, %v7754
      %v7779 = vadd.f32 %v7578, %v7757
      %v7780 = vld [vmem:[#allocation2 + $0x1] sm:$0xff]
      %v7781 = vld [vmem:[#allocation2 + $0x9] sm:$0xff]
      %v7782 = vld [vmem:[#allocation2 + $0x19] sm:$0xff]
      %v7783 = vld [vmem:[#allocation2 + $0x21] sm:$0xff]
      %v7784 = vld [vmem:[#allocation2 + $0x31] sm:$0xff]
      %v7785 = vld [vmem:[#allocation2 + $0x39] sm:$0xff]
      %v7786 = vld [vmem:[#allocation2 + $0x49] sm:$0xff]
      %v7787 = vld [vmem:[#allocation2 + $0x51] sm:$0xff]
      %v7788 = vld [vmem:[#allocation2 + $0x61] sm:$0xff]
      %v7789 = vld [vmem:[#allocation2 + $0x69] sm:$0xff]
      %v7790 = vld [vmem:[#allocation2 + $0x79] sm:$0xff]
      %v7791 = vld [vmem:[#allocation2 + $0x81] sm:$0xff]
      %v7792 = vld [vmem:[#allocation2 + $0x91] sm:$0xff]
      %v7793 = vld [vmem:[#allocation2 + $0x99] sm:$0xff]
      %v7794 = vld [vmem:[#allocation2 + $0xa9] sm:$0xff]
      %v7795 = vld [vmem:[#allocation2 + $0xb1] sm:$0xff]
      %v7796 = vld [vmem:[#allocation2 + $0xc1] sm:$0xff]
      %v7797 = vld [vmem:[#allocation2 + $0xc9] sm:$0xff]
      %v7798 = vld [vmem:[#allocation2 + $0xd9] sm:$0xff]
      %v7799 = vld [vmem:[#allocation2 + $0xe1] sm:$0xff]
      %v7800 = vpack.c.bf16 %v7781, %v7780
      %v7801 = vpack.c.bf16 %v7783, %v7782
      %v7802 = vpack.c.bf16 %v7785, %v7784
      %v7803 = vpack.c.bf16 %v7787, %v7786
      %v7804 = vpack.c.bf16 %v7789, %v7788
      %v7805 = vpack.c.bf16 %v7791, %v7790
      %v7806 = vpack.c.bf16 %v7793, %v7792
      %v7807 = vpack.c.bf16 %v7795, %v7794
      %v7808 = vpack.c.bf16 %v7797, %v7796
      %v7809 = vpack.c.bf16 %v7799, %v7798
      %v7810 = vld [vmem:[%s5 + $0x8] sm:$0xf]
      %v7811 = vld [vmem:[%s5 + $0xc] sm:$0xf]
      %v7814 = vunpack.c.l.b16 %v7810
      %v7815 = vunpack.c.l.b16 %v7811
      %v7816 = vpack.c.b16 %v7815, %v7814
      %v7819 = vsel %vm7282, %v7800, 0
      %v7822 = vsel %vm7282, %v7801, 0
      %v7825 = vsel %vm7282, %v7802, 0
      %v7828 = vsel %vm7282, %v7803, 0
      %v7831 = vsel %vm7282, %v7804, 0
      %v7834 = vsel %vm7282, %v7805, 0
      %v7837 = vsel %vm7282, %v7806, 0
      %v7840 = vsel %vm7282, %v7807, 0
      %v7843 = vsel %vm7282, %v7808, 0
      %v7846 = vsel %vm7282, %v7809, 0
      %7848 = vmatprep.subr.bf16.mxu0 0
      %7849 = vmatpush1.bf16.msra.mxu0 0
      %7850 = vmatprep.subr.bf16.mxu0 0
      %7851 = vmatpush1.bf16.msra.mxu0 0
      %7852 = vmatprep.subr.bf16.mxu0 0
      %7853 = vmatpush1.bf16.msra.mxu0 0
      %7854 = vmatprep.subr.bf16.mxu0 0
      %7855 = vmatpush1.bf16.msra.mxu0 0
      %7856 = vmatprep.subr.bf16.mxu0 0
      %7857 = vmatpush1.bf16.msra.mxu0 0
      %7858 = vmatprep.subr.bf16.mxu0 0
      %7859 = vmatpush1.bf16.msra.mxu0 0
      %7860 = vmatprep.subr.bf16.mxu0 0
      %7861 = vmatpush1.bf16.msra.mxu0 0
      %7862 = vmatprep.subr.bf16.mxu0 0
      %7863 = vmatpush1.bf16.msra.mxu0 %v7816
      %7864 = vmatprep.subr.bf16.mxu0 0
      %7865 = vmatpush2.bf16.msra.mxu0 0
      %7866 = vmatprep.subr.bf16.mxu0 0
      %7867 = vmatpush2.bf16.msra.mxu0 0
      %7868 = vmatprep.subr.bf16.mxu0 0
      %7869 = vmatpush2.bf16.msra.mxu0 0
      %7870 = vmatprep.subr.bf16.mxu0 0
      %7871 = vmatpush2.bf16.msra.mxu0 0
      %7872 = vmatprep.subr.bf16.mxu0 0
      %7873 = vmatpush2.bf16.msra.mxu0 0
      %7874 = vmatprep.subr.bf16.mxu0 0
      %7875 = vmatpush2.bf16.msra.mxu0 0
      %7876 = vmatprep.subr.bf16.mxu0 0
      %7877 = vmatpush2.bf16.msra.mxu0 0
      %7878 = vmatprep.subr.bf16.mxu0 0
      %7879 = vmatpush2.bf16.msra.mxu0 0
      %7880 = vmatprep.mubr.bf16.mxu0 0
      %7881 = vmatmul.mubr.bf16.gmra.mxu0 %v7819
      %v7882 = vpop.f32.mrf.mxu0
      %v7883 = vadd.f32 0.0, %v7882
      %v7884 = vpop.f32.mrf.mxu0
      %v7885 = vpop.f32.mrf.mxu0
      %v7886 = vadd.f32 0.0, %v7885
      %v7887 = vpop.f32.mrf.mxu0
      %7888 = vmatprep.mubr.bf16.mxu0 0
      %7889 = vmatmul.mubr.bf16.gmra.mxu0 %v7822
      %v7890 = vpop.f32.mrf.mxu0
      %v7891 = vadd.f32 0.0, %v7890
      %v7892 = vpop.f32.mrf.mxu0
      %v7893 = vpop.f32.mrf.mxu0
      %v7894 = vadd.f32 0.0, %v7893
      %v7895 = vpop.f32.mrf.mxu0
      %7896 = vmatprep.mubr.bf16.mxu0 0
      %7897 = vmatmul.mubr.bf16.gmra.mxu0 %v7825
      %v7898 = vpop.f32.mrf.mxu0
      %v7899 = vadd.f32 0.0, %v7898
      %v7900 = vpop.f32.mrf.mxu0
      %v7901 = vpop.f32.mrf.mxu0
      %v7902 = vadd.f32 0.0, %v7901
      %v7903 = vpop.f32.mrf.mxu0
      %7904 = vmatprep.mubr.bf16.mxu0 0
      %7905 = vmatmul.mubr.bf16.gmra.mxu0 %v7828
      %v7906 = vpop.f32.mrf.mxu0
      %v7907 = vadd.f32 0.0, %v7906
      %v7908 = vpop.f32.mrf.mxu0
      %v7909 = vpop.f32.mrf.mxu0
      %v7910 = vadd.f32 0.0, %v7909
      %v7911 = vpop.f32.mrf.mxu0
      %7912 = vmatprep.mubr.bf16.mxu0 0
      %7913 = vmatmul.mubr.bf16.gmra.mxu0 %v7831
      %v7914 = vpop.f32.mrf.mxu0
      %v7915 = vadd.f32 0.0, %v7914
      %v7916 = vpop.f32.mrf.mxu0
      %v7917 = vpop.f32.mrf.mxu0
      %v7918 = vadd.f32 0.0, %v7917
      %v7919 = vpop.f32.mrf.mxu0
      %7920 = vmatprep.mubr.bf16.mxu0 0
      %7921 = vmatmul.mubr.bf16.gmra.mxu0 %v7834
      %v7922 = vpop.f32.mrf.mxu0
      %v7923 = vadd.f32 0.0, %v7922
      %v7924 = vpop.f32.mrf.mxu0
      %v7925 = vpop.f32.mrf.mxu0
      %v7926 = vadd.f32 0.0, %v7925
      %v7927 = vpop.f32.mrf.mxu0
      %7928 = vmatprep.mubr.bf16.mxu0 0
      %7929 = vmatmul.mubr.bf16.gmra.mxu0 %v7837
      %v7930 = vpop.f32.mrf.mxu0
      %v7931 = vadd.f32 0.0, %v7930
      %v7932 = vpop.f32.mrf.mxu0
      %v7933 = vpop.f32.mrf.mxu0
      %v7934 = vadd.f32 0.0, %v7933
      %v7935 = vpop.f32.mrf.mxu0
      %7936 = vmatprep.mubr.bf16.mxu0 0
      %7937 = vmatmul.mubr.bf16.gmra.mxu0 %v7840
      %v7938 = vpop.f32.mrf.mxu0
      %v7939 = vadd.f32 0.0, %v7938
      %v7940 = vpop.f32.mrf.mxu0
      %v7941 = vpop.f32.mrf.mxu0
      %v7942 = vadd.f32 0.0, %v7941
      %v7943 = vpop.f32.mrf.mxu0
      %7944 = vmatprep.mubr.bf16.mxu0 0
      %7945 = vmatmul.mubr.bf16.gmra.mxu0 %v7843
      %v7946 = vpop.f32.mrf.mxu0
      %v7947 = vadd.f32 0.0, %v7946
      %v7948 = vpop.f32.mrf.mxu0
      %v7949 = vpop.f32.mrf.mxu0
      %v7950 = vadd.f32 0.0, %v7949
      %v7951 = vpop.f32.mrf.mxu0
      %7952 = vmatprep.mubr.bf16.mxu0 0
      %7953 = vmatmul.mubr.bf16.gmra.mxu0 %v7846
      %v7954 = vpop.f32.mrf.mxu0
      %v7955 = vadd.f32 0.0, %v7954
      %v7956 = vpop.f32.mrf.mxu0
      %v7957 = vpop.f32.mrf.mxu0
      %v7958 = vadd.f32 0.0, %v7957
      %v7959 = vpop.f32.mrf.mxu0
      %7960 = vdwg.mxu0
      %v7961 = vadd.f32 %v7760, %v7883
      %v7962 = vadd.f32 %v7761, %v7886
      %v7963 = vadd.f32 %v7762, %v7891
      %v7964 = vadd.f32 %v7763, %v7894
      %v7965 = vadd.f32 %v7764, %v7899
      %v7966 = vadd.f32 %v7765, %v7902
      %v7967 = vadd.f32 %v7766, %v7907
      %v7968 = vadd.f32 %v7767, %v7910
      %v7969 = vadd.f32 %v7768, %v7915
      %v7970 = vadd.f32 %v7769, %v7918
      %v7971 = vadd.f32 %v7770, %v7923
      %v7972 = vadd.f32 %v7771, %v7926
      %v7973 = vadd.f32 %v7772, %v7931
      %v7974 = vadd.f32 %v7773, %v7934
      %v7975 = vadd.f32 %v7774, %v7939
      %v7976 = vadd.f32 %v7775, %v7942
      %v7977 = vadd.f32 %v7776, %v7947
      %v7978 = vadd.f32 %v7777, %v7950
      %v7979 = vadd.f32 %v7778, %v7955
      %v7980 = vadd.f32 %v7779, %v7958
      %v7981 = vld [vmem:[#allocation2 + $0x2] sm:$0xff]
      %v7982 = vld [vmem:[#allocation2 + $0xa] sm:$0xff]
      %v7983 = vld [vmem:[#allocation2 + $0x1a] sm:$0xff]
      %v7984 = vld [vmem:[#allocation2 + $0x22] sm:$0xff]
      %v7985 = vld [vmem:[#allocation2 + $0x32] sm:$0xff]
      %v7986 = vld [vmem:[#allocation2 + $0x3a] sm:$0xff]
      %v7987 = vld [vmem:[#allocation2 + $0x4a] sm:$0xff]
      %v7988 = vld [vmem:[#allocation2 + $0x52] sm:$0xff]
      %v7989 = vld [vmem:[#allocation2 + $0x62] sm:$0xff]
      %v7990 = vld [vmem:[#allocation2 + $0x6a] sm:$0xff]
      %v7991 = vld [vmem:[#allocation2 + $0x7a] sm:$0xff]
      %v7992 = vld [vmem:[#allocation2 + $0x82] sm:$0xff]
      %v7993 = vld [vmem:[#allocation2 + $0x92] sm:$0xff]
      %v7994 = vld [vmem:[#allocation2 + $0x9a] sm:$0xff]
      %v7995 = vld [vmem:[#allocation2 + $0xaa] sm:$0xff]
      %v7996 = vld [vmem:[#allocation2 + $0xb2] sm:$0xff]
      %v7997 = vld [vmem:[#allocation2 + $0xc2] sm:$0xff]
      %v7998 = vld [vmem:[#allocation2 + $0xca] sm:$0xff]
      %v7999 = vld [vmem:[#allocation2 + $0xda] sm:$0xff]
      %v8000 = vld [vmem:[#allocation2 + $0xe2] sm:$0xff]
      %v8001 = vpack.c.bf16 %v7982, %v7981
      %v8002 = vpack.c.bf16 %v7984, %v7983
      %v8003 = vpack.c.bf16 %v7986, %v7985
      %v8004 = vpack.c.bf16 %v7988, %v7987
      %v8005 = vpack.c.bf16 %v7990, %v7989
      %v8006 = vpack.c.bf16 %v7992, %v7991
      %v8007 = vpack.c.bf16 %v7994, %v7993
      %v8008 = vpack.c.bf16 %v7996, %v7995
      %v8009 = vpack.c.bf16 %v7998, %v7997
      %v8010 = vpack.c.bf16 %v8000, %v7999
      %v8011 = vld [vmem:[%s5 + $0x10] sm:$0xf]
      %v8012 = vld [vmem:[%s5 + $0x14] sm:$0xf]
      %v8015 = vunpack.c.l.b16 %v8011
      %v8016 = vunpack.c.l.b16 %v8012
      %v8017 = vpack.c.b16 %v8016, %v8015
      %v8020 = vsel %vm7282, %v8001, 0
      %v8023 = vsel %vm7282, %v8002, 0
      %v8026 = vsel %vm7282, %v8003, 0
      %v8029 = vsel %vm7282, %v8004, 0
      %v8032 = vsel %vm7282, %v8005, 0
      %v8035 = vsel %vm7282, %v8006, 0
      %v8038 = vsel %vm7282, %v8007, 0
      %v8041 = vsel %vm7282, %v8008, 0
      %v8044 = vsel %vm7282, %v8009, 0
      %v8047 = vsel %vm7282, %v8010, 0
      %8049 = vmatprep.subr.bf16.mxu0 0
      %8050 = vmatpush1.bf16.msra.mxu0 0
      %8051 = vmatprep.subr.bf16.mxu0 0
      %8052 = vmatpush1.bf16.msra.mxu0 0
      %8053 = vmatprep.subr.bf16.mxu0 0
      %8054 = vmatpush1.bf16.msra.mxu0 0
      %8055 = vmatprep.subr.bf16.mxu0 0
      %8056 = vmatpush1.bf16.msra.mxu0 0
      %8057 = vmatprep.subr.bf16.mxu0 0
      %8058 = vmatpush1.bf16.msra.mxu0 0
      %8059 = vmatprep.subr.bf16.mxu0 0
      %8060 = vmatpush1.bf16.msra.mxu0 0
      %8061 = vmatprep.subr.bf16.mxu0 0
      %8062 = vmatpush1.bf16.msra.mxu0 0
      %8063 = vmatprep.subr.bf16.mxu0 0
      %8064 = vmatpush1.bf16.msra.mxu0 %v8017
      %8065 = vmatprep.subr.bf16.mxu0 0
      %8066 = vmatpush2.bf16.msra.mxu0 0
      %8067 = vmatprep.subr.bf16.mxu0 0
      %8068 = vmatpush2.bf16.msra.mxu0 0
      %8069 = vmatprep.subr.bf16.mxu0 0
      %8070 = vmatpush2.bf16.msra.mxu0 0
      %8071 = vmatprep.subr.bf16.mxu0 0
      %8072 = vmatpush2.bf16.msra.mxu0 0
      %8073 = vmatprep.subr.bf16.mxu0 0
      %8074 = vmatpush2.bf16.msra.mxu0 0
      %8075 = vmatprep.subr.bf16.mxu0 0
      %8076 = vmatpush2.bf16.msra.mxu0 0
      %8077 = vmatprep.subr.bf16.mxu0 0
      %8078 = vmatpush2.bf16.msra.mxu0 0
      %8079 = vmatprep.subr.bf16.mxu0 0
      %8080 = vmatpush2.bf16.msra.mxu0 0
      %8081 = vmatprep.mubr.bf16.mxu0 0
      %8082 = vmatmul.mubr.bf16.gmra.mxu0 %v8020
      %v8083 = vpop.f32.mrf.mxu0
      %v8084 = vadd.f32 0.0, %v8083
      %v8085 = vpop.f32.mrf.mxu0
      %v8086 = vpop.f32.mrf.mxu0
      %v8087 = vadd.f32 0.0, %v8086
      %v8088 = vpop.f32.mrf.mxu0
      %8089 = vmatprep.mubr.bf16.mxu0 0
      %8090 = vmatmul.mubr.bf16.gmra.mxu0 %v8023
      %v8091 = vpop.f32.mrf.mxu0
      %v8092 = vadd.f32 0.0, %v8091
      %v8093 = vpop.f32.mrf.mxu0
      %v8094 = vpop.f32.mrf.mxu0
      %v8095 = vadd.f32 0.0, %v8094
      %v8096 = vpop.f32.mrf.mxu0
      %8097 = vmatprep.mubr.bf16.mxu0 0
      %8098 = vmatmul.mubr.bf16.gmra.mxu0 %v8026
      %v8099 = vpop.f32.mrf.mxu0
      %v8100 = vadd.f32 0.0, %v8099
      %v8101 = vpop.f32.mrf.mxu0
      %v8102 = vpop.f32.mrf.mxu0
      %v8103 = vadd.f32 0.0, %v8102
      %v8104 = vpop.f32.mrf.mxu0
      %8105 = vmatprep.mubr.bf16.mxu0 0
      %8106 = vmatmul.mubr.bf16.gmra.mxu0 %v8029
      %v8107 = vpop.f32.mrf.mxu0
      %v8108 = vadd.f32 0.0, %v8107
      %v8109 = vpop.f32.mrf.mxu0
      %v8110 = vpop.f32.mrf.mxu0
      %v8111 = vadd.f32 0.0, %v8110
      %v8112 = vpop.f32.mrf.mxu0
      %8113 = vmatprep.mubr.bf16.mxu0 0
      %8114 = vmatmul.mubr.bf16.gmra.mxu0 %v8032
      %v8115 = vpop.f32.mrf.mxu0
      %v8116 = vadd.f32 0.0, %v8115
      %v8117 = vpop.f32.mrf.mxu0
      %v8118 = vpop.f32.mrf.mxu0
      %v8119 = vadd.f32 0.0, %v8118
      %v8120 = vpop.f32.mrf.mxu0
      %8121 = vmatprep.mubr.bf16.mxu0 0
      %8122 = vmatmul.mubr.bf16.gmra.mxu0 %v8035
      %v8123 = vpop.f32.mrf.mxu0
      %v8124 = vadd.f32 0.0, %v8123
      %v8125 = vpop.f32.mrf.mxu0
      %v8126 = vpop.f32.mrf.mxu0
      %v8127 = vadd.f32 0.0, %v8126
      %v8128 = vpop.f32.mrf.mxu0
      %8129 = vmatprep.mubr.bf16.mxu0 0
      %8130 = vmatmul.mubr.bf16.gmra.mxu0 %v8038
      %v8131 = vpop.f32.mrf.mxu0
      %v8132 = vadd.f32 0.0, %v8131
      %v8133 = vpop.f32.mrf.mxu0
      %v8134 = vpop.f32.mrf.mxu0
      %v8135 = vadd.f32 0.0, %v8134
      %v8136 = vpop.f32.mrf.mxu0
      %8137 = vmatprep.mubr.bf16.mxu0 0
      %8138 = vmatmul.mubr.bf16.gmra.mxu0 %v8041
      %v8139 = vpop.f32.mrf.mxu0
      %v8140 = vadd.f32 0.0, %v8139
      %v8141 = vpop.f32.mrf.mxu0
      %v8142 = vpop.f32.mrf.mxu0
      %v8143 = vadd.f32 0.0, %v8142
      %v8144 = vpop.f32.mrf.mxu0
      %8145 = vmatprep.mubr.bf16.mxu0 0
      %8146 = vmatmul.mubr.bf16.gmra.mxu0 %v8044
      %v8147 = vpop.f32.mrf.mxu0
      %v8148 = vadd.f32 0.0, %v8147
      %v8149 = vpop.f32.mrf.mxu0
      %v8150 = vpop.f32.mrf.mxu0
      %v8151 = vadd.f32 0.0, %v8150
      %v8152 = vpop.f32.mrf.mxu0
      %8153 = vmatprep.mubr.bf16.mxu0 0
      %8154 = vmatmul.mubr.bf16.gmra.mxu0 %v8047
      %v8155 = vpop.f32.mrf.mxu0
      %v8156 = vadd.f32 0.0, %v8155
      %v8157 = vpop.f32.mrf.mxu0
      %v8158 = vpop.f32.mrf.mxu0
      %v8159 = vadd.f32 0.0, %v8158
      %v8160 = vpop.f32.mrf.mxu0
      %8161 = vdwg.mxu0
      %v8162 = vadd.f32 %v7961, %v8084
      %v8163 = vadd.f32 %v7962, %v8087
      %v8164 = vadd.f32 %v7963, %v8092
      %v8165 = vadd.f32 %v7964, %v8095
      %v8166 = vadd.f32 %v7965, %v8100
      %v8167 = vadd.f32 %v7966, %v8103
      %v8168 = vadd.f32 %v7967, %v8108
      %v8169 = vadd.f32 %v7968, %v8111
      %v8170 = vadd.f32 %v7969, %v8116
      %v8171 = vadd.f32 %v7970, %v8119
      %v8172 = vadd.f32 %v7971, %v8124
      %v8173 = vadd.f32 %v7972, %v8127
      %v8174 = vadd.f32 %v7973, %v8132
      %v8175 = vadd.f32 %v7974, %v8135
      %v8176 = vadd.f32 %v7975, %v8140
      %v8177 = vadd.f32 %v7976, %v8143
      %v8178 = vadd.f32 %v7977, %v8148
      %v8179 = vadd.f32 %v7978, %v8151
      %v8180 = vadd.f32 %v7979, %v8156
      %v8181 = vadd.f32 %v7980, %v8159
      %v8182 = vld [vmem:[%s555] sm:$0xff]
      %v8183 = vld [vmem:[%s555 + $0x8] sm:$0xff]
      %v8184 = vld [vmem:[%s555 + $0x18] sm:$0xff]
      %v8185 = vld [vmem:[%s555 + $0x20] sm:$0xff]
      %v8186 = vld [vmem:[%s555 + $0x30] sm:$0xff]
      %v8187 = vld [vmem:[%s555 + $0x38] sm:$0xff]
      %v8188 = vld [vmem:[%s555 + $0x48] sm:$0xff]
      %v8189 = vld [vmem:[%s555 + $0x50] sm:$0xff]
      %v8190 = vld [vmem:[%s555 + $0x60] sm:$0xff]
      %v8191 = vld [vmem:[%s555 + $0x68] sm:$0xff]
      %v8192 = vld [vmem:[%s555 + $0x78] sm:$0xff]
      %v8193 = vld [vmem:[%s555 + $0x80] sm:$0xff]
      %v8194 = vld [vmem:[%s555 + $0x90] sm:$0xff]
      %v8195 = vld [vmem:[%s555 + $0x98] sm:$0xff]
      %v8196 = vld [vmem:[%s555 + $0xa8] sm:$0xff]
      %v8197 = vld [vmem:[%s555 + $0xb0] sm:$0xff]
      %v8198 = vld [vmem:[%s555 + $0xc0] sm:$0xff]
      %v8199 = vld [vmem:[%s555 + $0xc8] sm:$0xff]
      %v8200 = vld [vmem:[%s555 + $0xd8] sm:$0xff]
      %v8201 = vld [vmem:[%s555 + $0xe0] sm:$0xff]
      %v8202 = vpack.c.bf16 %v8183, %v8182
      %v8203 = vpack.c.bf16 %v8185, %v8184
      %v8204 = vpack.c.bf16 %v8187, %v8186
      %v8205 = vpack.c.bf16 %v8189, %v8188
      %v8206 = vpack.c.bf16 %v8191, %v8190
      %v8207 = vpack.c.bf16 %v8193, %v8192
      %v8208 = vpack.c.bf16 %v8195, %v8194
      %v8209 = vpack.c.bf16 %v8197, %v8196
      %v8210 = vpack.c.bf16 %v8199, %v8198
      %v8211 = vpack.c.bf16 %v8201, %v8200
      %v8212 = vld [vmem:[%s5 + $0x18] sm:$0xf]
      %v8213 = vld [vmem:[%s5 + $0x1c] sm:$0xf]
      %v8216 = vunpack.c.l.b16 %v8212
      %v8217 = vunpack.c.l.b16 %v8213
      %v8218 = vpack.c.b16 %v8217, %v8216
      %v8221 = vsel %vm7282, %v8202, 0
      %v8224 = vsel %vm7282, %v8203, 0
      %v8227 = vsel %vm7282, %v8204, 0
      %v8230 = vsel %vm7282, %v8205, 0
      %v8233 = vsel %vm7282, %v8206, 0
      %v8236 = vsel %vm7282, %v8207, 0
      %v8239 = vsel %vm7282, %v8208, 0
      %v8242 = vsel %vm7282, %v8209, 0
      %v8245 = vsel %vm7282, %v8210, 0
      %v8248 = vsel %vm7282, %v8211, 0
      %8250 = vmatprep.subr.bf16.mxu0 0
      %8251 = vmatpush1.bf16.msra.mxu0 0
      %8252 = vmatprep.subr.bf16.mxu0 0
      %8253 = vmatpush1.bf16.msra.mxu0 0
      %8254 = vmatprep.subr.bf16.mxu0 0
      %8255 = vmatpush1.bf16.msra.mxu0 0
      %8256 = vmatprep.subr.bf16.mxu0 0
      %8257 = vmatpush1.bf16.msra.mxu0 0
      %8258 = vmatprep.subr.bf16.mxu0 0
      %8259 = vmatpush1.bf16.msra.mxu0 0
      %8260 = vmatprep.subr.bf16.mxu0 0
      %8261 = vmatpush1.bf16.msra.mxu0 0
      %8262 = vmatprep.subr.bf16.mxu0 0
      %8263 = vmatpush1.bf16.msra.mxu0 0
      %8264 = vmatprep.subr.bf16.mxu0 0
      %8265 = vmatpush1.bf16.msra.mxu0 %v8218
      %8266 = vmatprep.subr.bf16.mxu0 0
      %8267 = vmatpush2.bf16.msra.mxu0 0
      %8268 = vmatprep.subr.bf16.mxu0 0
      %8269 = vmatpush2.bf16.msra.mxu0 0
      %8270 = vmatprep.subr.bf16.mxu0 0
      %8271 = vmatpush2.bf16.msra.mxu0 0
      %8272 = vmatprep.subr.bf16.mxu0 0
      %8273 = vmatpush2.bf16.msra.mxu0 0
      %8274 = vmatprep.subr.bf16.mxu0 0
      %8275 = vmatpush2.bf16.msra.mxu0 0
      %8276 = vmatprep.subr.bf16.mxu0 0
      %8277 = vmatpush2.bf16.msra.mxu0 0
      %8278 = vmatprep.subr.bf16.mxu0 0
      %8279 = vmatpush2.bf16.msra.mxu0 0
      %8280 = vmatprep.subr.bf16.mxu0 0
      %8281 = vmatpush2.bf16.msra.mxu0 0
      %8282 = vmatprep.mubr.bf16.mxu0 0
      %8283 = vmatmul.mubr.bf16.gmra.mxu0 %v8221
      %v8284 = vpop.f32.mrf.mxu0
      %v8285 = vadd.f32 0.0, %v8284
      %v8286 = vpop.f32.mrf.mxu0
      %v8287 = vpop.f32.mrf.mxu0
      %v8288 = vadd.f32 0.0, %v8287
      %v8289 = vpop.f32.mrf.mxu0
      %8290 = vmatprep.mubr.bf16.mxu0 0
      %8291 = vmatmul.mubr.bf16.gmra.mxu0 %v8224
      %v8292 = vpop.f32.mrf.mxu0
      %v8293 = vadd.f32 0.0, %v8292
      %v8294 = vpop.f32.mrf.mxu0
      %v8295 = vpop.f32.mrf.mxu0
      %v8296 = vadd.f32 0.0, %v8295
      %v8297 = vpop.f32.mrf.mxu0
      %8298 = vmatprep.mubr.bf16.mxu0 0
      %8299 = vmatmul.mubr.bf16.gmra.mxu0 %v8227
      %v8300 = vpop.f32.mrf.mxu0
      %v8301 = vadd.f32 0.0, %v8300
      %v8302 = vpop.f32.mrf.mxu0
      %v8303 = vpop.f32.mrf.mxu0
      %v8304 = vadd.f32 0.0, %v8303
      %v8305 = vpop.f32.mrf.mxu0
      %8306 = vmatprep.mubr.bf16.mxu0 0
      %8307 = vmatmul.mubr.bf16.gmra.mxu0 %v8230
      %v8308 = vpop.f32.mrf.mxu0
      %v8309 = vadd.f32 0.0, %v8308
      %v8310 = vpop.f32.mrf.mxu0
      %v8311 = vpop.f32.mrf.mxu0
      %v8312 = vadd.f32 0.0, %v8311
      %v8313 = vpop.f32.mrf.mxu0
      %8314 = vmatprep.mubr.bf16.mxu0 0
      %8315 = vmatmul.mubr.bf16.gmra.mxu0 %v8233
      %v8316 = vpop.f32.mrf.mxu0
      %v8317 = vadd.f32 0.0, %v8316
      %v8318 = vpop.f32.mrf.mxu0
      %v8319 = vpop.f32.mrf.mxu0
      %v8320 = vadd.f32 0.0, %v8319
      %v8321 = vpop.f32.mrf.mxu0
      %8322 = vmatprep.mubr.bf16.mxu0 0
      %8323 = vmatmul.mubr.bf16.gmra.mxu0 %v8236
      %v8324 = vpop.f32.mrf.mxu0
      %v8325 = vadd.f32 0.0, %v8324
      %v8326 = vpop.f32.mrf.mxu0
      %v8327 = vpop.f32.mrf.mxu0
      %v8328 = vadd.f32 0.0, %v8327
      %v8329 = vpop.f32.mrf.mxu0
      %8330 = vmatprep.mubr.bf16.mxu0 0
      %8331 = vmatmul.mubr.bf16.gmra.mxu0 %v8239
      %v8332 = vpop.f32.mrf.mxu0
      %v8333 = vadd.f32 0.0, %v8332
      %v8334 = vpop.f32.mrf.mxu0
      %v8335 = vpop.f32.mrf.mxu0
      %v8336 = vadd.f32 0.0, %v8335
      %v8337 = vpop.f32.mrf.mxu0
      %8338 = vmatprep.mubr.bf16.mxu0 0
      %8339 = vmatmul.mubr.bf16.gmra.mxu0 %v8242
      %v8340 = vpop.f32.mrf.mxu0
      %v8341 = vadd.f32 0.0, %v8340
      %v8342 = vpop.f32.mrf.mxu0
      %v8343 = vpop.f32.mrf.mxu0
      %v8344 = vadd.f32 0.0, %v8343
      %v8345 = vpop.f32.mrf.mxu0
      %8346 = vmatprep.mubr.bf16.mxu0 0
      %8347 = vmatmul.mubr.bf16.gmra.mxu0 %v8245
      %v8348 = vpop.f32.mrf.mxu0
      %v8349 = vadd.f32 0.0, %v8348
      %v8350 = vpop.f32.mrf.mxu0
      %v8351 = vpop.f32.mrf.mxu0
      %v8352 = vadd.f32 0.0, %v8351
      %v8353 = vpop.f32.mrf.mxu0
      %8354 = vmatprep.mubr.bf16.mxu0 0
      %8355 = vmatmul.mubr.bf16.gmra.mxu0 %v8248
      %v8356 = vpop.f32.mrf.mxu0
      %v8357 = vadd.f32 0.0, %v8356
      %v8358 = vpop.f32.mrf.mxu0
      %v8359 = vpop.f32.mrf.mxu0
      %v8360 = vadd.f32 0.0, %v8359
      %v8361 = vpop.f32.mrf.mxu0
      %8362 = vdwg.mxu0
      %v8363 = vadd.f32 %v8162, %v8285
      %v8364 = vadd.f32 %v8163, %v8288
      %v8365 = vadd.f32 %v8164, %v8293
      %v8366 = vadd.f32 %v8165, %v8296
      %v8367 = vadd.f32 %v8166, %v8301
      %v8368 = vadd.f32 %v8167, %v8304
      %v8369 = vadd.f32 %v8168, %v8309
      %v8370 = vadd.f32 %v8169, %v8312
      %v8371 = vadd.f32 %v8170, %v8317
      %v8372 = vadd.f32 %v8171, %v8320
      %v8373 = vadd.f32 %v8172, %v8325
      %v8374 = vadd.f32 %v8173, %v8328
      %v8375 = vadd.f32 %v8174, %v8333
      %v8376 = vadd.f32 %v8175, %v8336
      %v8377 = vadd.f32 %v8176, %v8341
      %v8378 = vadd.f32 %v8177, %v8344
      %v8379 = vadd.f32 %v8178, %v8349
      %v8380 = vadd.f32 %v8179, %v8352
      %v8381 = vadd.f32 %v8180, %v8357
      %v8382 = vadd.f32 %v8181, %v8360
      %v8383 = vld [vmem:[%s555 + $0x1] sm:$0xff]
      %v8384 = vld [vmem:[%s555 + $0x9] sm:$0xff]
      %v8385 = vld [vmem:[%s555 + $0x19] sm:$0xff]
      %v8386 = vld [vmem:[%s555 + $0x21] sm:$0xff]
      %v8387 = vld [vmem:[%s555 + $0x31] sm:$0xff]
      %v8388 = vld [vmem:[%s555 + $0x39] sm:$0xff]
      %v8389 = vld [vmem:[%s555 + $0x49] sm:$0xff]
      %v8390 = vld [vmem:[%s555 + $0x51] sm:$0xff]
      %v8391 = vld [vmem:[%s555 + $0x61] sm:$0xff]
      %v8392 = vld [vmem:[%s555 + $0x69] sm:$0xff]
      %v8393 = vld [vmem:[%s555 + $0x79] sm:$0xff]
      %v8394 = vld [vmem:[%s555 + $0x81] sm:$0xff]
      %v8395 = vld [vmem:[%s555 + $0x91] sm:$0xff]
      %v8396 = vld [vmem:[%s555 + $0x99] sm:$0xff]
      %v8397 = vld [vmem:[%s555 + $0xa9] sm:$0xff]
      %v8398 = vld [vmem:[%s555 + $0xb1] sm:$0xff]
      %v8399 = vld [vmem:[%s555 + $0xc1] sm:$0xff]
      %v8400 = vld [vmem:[%s555 + $0xc9] sm:$0xff]
      %v8401 = vld [vmem:[%s555 + $0xd9] sm:$0xff]
      %v8402 = vld [vmem:[%s555 + $0xe1] sm:$0xff]
      %v8403 = vpack.c.bf16 %v8384, %v8383
      %v8404 = vpack.c.bf16 %v8386, %v8385
      %v8405 = vpack.c.bf16 %v8388, %v8387
      %v8406 = vpack.c.bf16 %v8390, %v8389
      %v8407 = vpack.c.bf16 %v8392, %v8391
      %v8408 = vpack.c.bf16 %v8394, %v8393
      %v8409 = vpack.c.bf16 %v8396, %v8395
      %v8410 = vpack.c.bf16 %v8398, %v8397
      %v8411 = vpack.c.bf16 %v8400, %v8399
      %v8412 = vpack.c.bf16 %v8402, %v8401
      %v8413 = vld [vmem:[%s5 + $0x20] sm:$0xf]
      %v8414 = vld [vmem:[%s5 + $0x24] sm:$0xf]
      %v8417 = vunpack.c.l.b16 %v8413
      %v8418 = vunpack.c.l.b16 %v8414
      %v8419 = vpack.c.b16 %v8418, %v8417
      %v8422 = vsel %vm7282, %v8403, 0
      %v8425 = vsel %vm7282, %v8404, 0
      %v8428 = vsel %vm7282, %v8405, 0
      %v8431 = vsel %vm7282, %v8406, 0
      %v8434 = vsel %vm7282, %v8407, 0
      %v8437 = vsel %vm7282, %v8408, 0
      %v8440 = vsel %vm7282, %v8409, 0
      %v8443 = vsel %vm7282, %v8410, 0
      %v8446 = vsel %vm7282, %v8411, 0
      %v8449 = vsel %vm7282, %v8412, 0
      %8451 = vmatprep.subr.bf16.mxu0 0
      %8452 = vmatpush1.bf16.msra.mxu0 0
      %8453 = vmatprep.subr.bf16.mxu0 0
      %8454 = vmatpush1.bf16.msra.mxu0 0
      %8455 = vmatprep.subr.bf16.mxu0 0
      %8456 = vmatpush1.bf16.msra.mxu0 0
      %8457 = vmatprep.subr.bf16.mxu0 0
      %8458 = vmatpush1.bf16.msra.mxu0 0
      %8459 = vmatprep.subr.bf16.mxu0 0
      %8460 = vmatpush1.bf16.msra.mxu0 0
      %8461 = vmatprep.subr.bf16.mxu0 0
      %8462 = vmatpush1.bf16.msra.mxu0 0
      %8463 = vmatprep.subr.bf16.mxu0 0
      %8464 = vmatpush1.bf16.msra.mxu0 0
      %8465 = vmatprep.subr.bf16.mxu0 0
      %8466 = vmatpush1.bf16.msra.mxu0 %v8419
      %8467 = vmatprep.subr.bf16.mxu0 0
      %8468 = vmatpush2.bf16.msra.mxu0 0
      %8469 = vmatprep.subr.bf16.mxu0 0
      %8470 = vmatpush2.bf16.msra.mxu0 0
      %8471 = vmatprep.subr.bf16.mxu0 0
      %8472 = vmatpush2.bf16.msra.mxu0 0
      %8473 = vmatprep.subr.bf16.mxu0 0
      %8474 = vmatpush2.bf16.msra.mxu0 0
      %8475 = vmatprep.subr.bf16.mxu0 0
      %8476 = vmatpush2.bf16.msra.mxu0 0
      %8477 = vmatprep.subr.bf16.mxu0 0
      %8478 = vmatpush2.bf16.msra.mxu0 0
      %8479 = vmatprep.subr.bf16.mxu0 0
      %8480 = vmatpush2.bf16.msra.mxu0 0
      %8481 = vmatprep.subr.bf16.mxu0 0
      %8482 = vmatpush2.bf16.msra.mxu0 0
      %8483 = vmatprep.mubr.bf16.mxu0 0
      %8484 = vmatmul.mubr.bf16.gmra.mxu0 %v8422
      %v8485 = vpop.f32.mrf.mxu0
      %v8486 = vadd.f32 0.0, %v8485
      %v8487 = vpop.f32.mrf.mxu0
      %v8488 = vpop.f32.mrf.mxu0
      %v8489 = vadd.f32 0.0, %v8488
      %v8490 = vpop.f32.mrf.mxu0
      %8491 = vmatprep.mubr.bf16.mxu0 0
      %8492 = vmatmul.mubr.bf16.gmra.mxu0 %v8425
      %v8493 = vpop.f32.mrf.mxu0
      %v8494 = vadd.f32 0.0, %v8493
      %v8495 = vpop.f32.mrf.mxu0
      %v8496 = vpop.f32.mrf.mxu0
      %v8497 = vadd.f32 0.0, %v8496
      %v8498 = vpop.f32.mrf.mxu0
      %8499 = vmatprep.mubr.bf16.mxu0 0
      %8500 = vmatmul.mubr.bf16.gmra.mxu0 %v8428
      %v8501 = vpop.f32.mrf.mxu0
      %v8502 = vadd.f32 0.0, %v8501
      %v8503 = vpop.f32.mrf.mxu0
      %v8504 = vpop.f32.mrf.mxu0
      %v8505 = vadd.f32 0.0, %v8504
      %v8506 = vpop.f32.mrf.mxu0
      %8507 = vmatprep.mubr.bf16.mxu0 0
      %8508 = vmatmul.mubr.bf16.gmra.mxu0 %v8431
      %v8509 = vpop.f32.mrf.mxu0
      %v8510 = vadd.f32 0.0, %v8509
      %v8511 = vpop.f32.mrf.mxu0
      %v8512 = vpop.f32.mrf.mxu0
      %v8513 = vadd.f32 0.0, %v8512
      %v8514 = vpop.f32.mrf.mxu0
      %8515 = vmatprep.mubr.bf16.mxu0 0
      %8516 = vmatmul.mubr.bf16.gmra.mxu0 %v8434
      %v8517 = vpop.f32.mrf.mxu0
      %v8518 = vadd.f32 0.0, %v8517
      %v8519 = vpop.f32.mrf.mxu0
      %v8520 = vpop.f32.mrf.mxu0
      %v8521 = vadd.f32 0.0, %v8520
      %v8522 = vpop.f32.mrf.mxu0
      %8523 = vmatprep.mubr.bf16.mxu0 0
      %8524 = vmatmul.mubr.bf16.gmra.mxu0 %v8437
      %v8525 = vpop.f32.mrf.mxu0
      %v8526 = vadd.f32 0.0, %v8525
      %v8527 = vpop.f32.mrf.mxu0
      %v8528 = vpop.f32.mrf.mxu0
      %v8529 = vadd.f32 0.0, %v8528
      %v8530 = vpop.f32.mrf.mxu0
      %8531 = vmatprep.mubr.bf16.mxu0 0
      %8532 = vmatmul.mubr.bf16.gmra.mxu0 %v8440
      %v8533 = vpop.f32.mrf.mxu0
      %v8534 = vadd.f32 0.0, %v8533
      %v8535 = vpop.f32.mrf.mxu0
      %v8536 = vpop.f32.mrf.mxu0
      %v8537 = vadd.f32 0.0, %v8536
      %v8538 = vpop.f32.mrf.mxu0
      %8539 = vmatprep.mubr.bf16.mxu0 0
      %8540 = vmatmul.mubr.bf16.gmra.mxu0 %v8443
      %v8541 = vpop.f32.mrf.mxu0
      %v8542 = vadd.f32 0.0, %v8541
      %v8543 = vpop.f32.mrf.mxu0
      %v8544 = vpop.f32.mrf.mxu0
      %v8545 = vadd.f32 0.0, %v8544
      %v8546 = vpop.f32.mrf.mxu0
      %8547 = vmatprep.mubr.bf16.mxu0 0
      %8548 = vmatmul.mubr.bf16.gmra.mxu0 %v8446
      %v8549 = vpop.f32.mrf.mxu0
      %v8550 = vadd.f32 0.0, %v8549
      %v8551 = vpop.f32.mrf.mxu0
      %v8552 = vpop.f32.mrf.mxu0
      %v8553 = vadd.f32 0.0, %v8552
      %v8554 = vpop.f32.mrf.mxu0
      %8555 = vmatprep.mubr.bf16.mxu0 0
      %8556 = vmatmul.mubr.bf16.gmra.mxu0 %v8449
      %v8557 = vpop.f32.mrf.mxu0
      %v8558 = vadd.f32 0.0, %v8557
      %v8559 = vpop.f32.mrf.mxu0
      %v8560 = vpop.f32.mrf.mxu0
      %v8561 = vadd.f32 0.0, %v8560
      %v8562 = vpop.f32.mrf.mxu0
      %8563 = vdwg.mxu0
      %v8564 = vadd.f32 %v8363, %v8486
      %v8565 = vadd.f32 %v8364, %v8489
      %v8566 = vadd.f32 %v8365, %v8494
      %v8567 = vadd.f32 %v8366, %v8497
      %v8568 = vadd.f32 %v8367, %v8502
      %v8569 = vadd.f32 %v8368, %v8505
      %v8570 = vadd.f32 %v8369, %v8510
      %v8571 = vadd.f32 %v8370, %v8513
      %v8572 = vadd.f32 %v8371, %v8518
      %v8573 = vadd.f32 %v8372, %v8521
      %v8574 = vadd.f32 %v8373, %v8526
      %v8575 = vadd.f32 %v8374, %v8529
      %v8576 = vadd.f32 %v8375, %v8534
      %v8577 = vadd.f32 %v8376, %v8537
      %v8578 = vadd.f32 %v8377, %v8542
      %v8579 = vadd.f32 %v8378, %v8545
      %v8580 = vadd.f32 %v8379, %v8550
      %v8581 = vadd.f32 %v8380, %v8553
      %v8582 = vadd.f32 %v8381, %v8558
      %v8583 = vadd.f32 %v8382, %v8561
      %v8584 = vld [vmem:[%s555 + $0x2] sm:$0xff]
      %v8585 = vld [vmem:[%s555 + $0xa] sm:$0xff]
      %v8586 = vld [vmem:[%s555 + $0x1a] sm:$0xff]
      %v8587 = vld [vmem:[%s555 + $0x22] sm:$0xff]
      %v8588 = vld [vmem:[%s555 + $0x32] sm:$0xff]
      %v8589 = vld [vmem:[%s555 + $0x3a] sm:$0xff]
      %v8590 = vld [vmem:[%s555 + $0x4a] sm:$0xff]
      %v8591 = vld [vmem:[%s555 + $0x52] sm:$0xff]
      %v8592 = vld [vmem:[%s555 + $0x62] sm:$0xff]
      %v8593 = vld [vmem:[%s555 + $0x6a] sm:$0xff]
      %v8594 = vld [vmem:[%s555 + $0x7a] sm:$0xff]
      %v8595 = vld [vmem:[%s555 + $0x82] sm:$0xff]
      %v8596 = vld [vmem:[%s555 + $0x92] sm:$0xff]
      %v8597 = vld [vmem:[%s555 + $0x9a] sm:$0xff]
      %v8598 = vld [vmem:[%s555 + $0xaa] sm:$0xff]
      %v8599 = vld [vmem:[%s555 + $0xb2] sm:$0xff]
      %v8600 = vld [vmem:[%s555 + $0xc2] sm:$0xff]
      %v8601 = vld [vmem:[%s555 + $0xca] sm:$0xff]
      %v8602 = vld [vmem:[%s555 + $0xda] sm:$0xff]
      %v8603 = vld [vmem:[%s555 + $0xe2] sm:$0xff]
      %v8604 = vpack.c.bf16 %v8585, %v8584
      %v8605 = vpack.c.bf16 %v8587, %v8586
      %v8606 = vpack.c.bf16 %v8589, %v8588
      %v8607 = vpack.c.bf16 %v8591, %v8590
      %v8608 = vpack.c.bf16 %v8593, %v8592
      %v8609 = vpack.c.bf16 %v8595, %v8594
      %v8610 = vpack.c.bf16 %v8597, %v8596
      %v8611 = vpack.c.bf16 %v8599, %v8598
      %v8612 = vpack.c.bf16 %v8601, %v8600
      %v8613 = vpack.c.bf16 %v8603, %v8602
      %v8614 = vld [vmem:[%s5 + $0x28] sm:$0xf]
      %v8615 = vld [vmem:[%s5 + $0x2c] sm:$0xf]
      %v8618 = vunpack.c.l.b16 %v8614
      %v8619 = vunpack.c.l.b16 %v8615
      %v8620 = vpack.c.b16 %v8619, %v8618
      %v8623 = vsel %vm7282, %v8604, 0
      %v8626 = vsel %vm7282, %v8605, 0
      %v8629 = vsel %vm7282, %v8606, 0
      %v8632 = vsel %vm7282, %v8607, 0
      %v8635 = vsel %vm7282, %v8608, 0
      %v8638 = vsel %vm7282, %v8609, 0
      %v8641 = vsel %vm7282, %v8610, 0
      %v8644 = vsel %vm7282, %v8611, 0
      %v8647 = vsel %vm7282, %v8612, 0
      %v8650 = vsel %vm7282, %v8613, 0
      %8652 = vmatprep.subr.bf16.mxu0 0
      %8653 = vmatpush1.bf16.msra.mxu0 0
      %8654 = vmatprep.subr.bf16.mxu0 0
      %8655 = vmatpush1.bf16.msra.mxu0 0
      %8656 = vmatprep.subr.bf16.mxu0 0
      %8657 = vmatpush1.bf16.msra.mxu0 0
      %8658 = vmatprep.subr.bf16.mxu0 0
      %8659 = vmatpush1.bf16.msra.mxu0 0
      %8660 = vmatprep.subr.bf16.mxu0 0
      %8661 = vmatpush1.bf16.msra.mxu0 0
      %8662 = vmatprep.subr.bf16.mxu0 0
      %8663 = vmatpush1.bf16.msra.mxu0 0
      %8664 = vmatprep.subr.bf16.mxu0 0
      %8665 = vmatpush1.bf16.msra.mxu0 0
      %8666 = vmatprep.subr.bf16.mxu0 0
      %8667 = vmatpush1.bf16.msra.mxu0 %v8620
      %8668 = vmatprep.subr.bf16.mxu0 0
      %8669 = vmatpush2.bf16.msra.mxu0 0
      %8670 = vmatprep.subr.bf16.mxu0 0
      %8671 = vmatpush2.bf16.msra.mxu0 0
      %8672 = vmatprep.subr.bf16.mxu0 0
      %8673 = vmatpush2.bf16.msra.mxu0 0
      %8674 = vmatprep.subr.bf16.mxu0 0
      %8675 = vmatpush2.bf16.msra.mxu0 0
      %8676 = vmatprep.subr.bf16.mxu0 0
      %8677 = vmatpush2.bf16.msra.mxu0 0
      %8678 = vmatprep.subr.bf16.mxu0 0
      %8679 = vmatpush2.bf16.msra.mxu0 0
      %8680 = vmatprep.subr.bf16.mxu0 0
      %8681 = vmatpush2.bf16.msra.mxu0 0
      %8682 = vmatprep.subr.bf16.mxu0 0
      %8683 = vmatpush2.bf16.msra.mxu0 0
      %8684 = vmatprep.mubr.bf16.mxu0 0
      %8685 = vmatmul.mubr.bf16.gmra.mxu0 %v8623
      %v8686 = vpop.f32.mrf.mxu0
      %v8687 = vadd.f32 0.0, %v8686
      %v8688 = vpop.f32.mrf.mxu0
      %v8689 = vpop.f32.mrf.mxu0
      %v8690 = vadd.f32 0.0, %v8689
      %v8691 = vpop.f32.mrf.mxu0
      %8692 = vmatprep.mubr.bf16.mxu0 0
      %8693 = vmatmul.mubr.bf16.gmra.mxu0 %v8626
      %v8694 = vpop.f32.mrf.mxu0
      %v8695 = vadd.f32 0.0, %v8694
      %v8696 = vpop.f32.mrf.mxu0
      %v8697 = vpop.f32.mrf.mxu0
      %v8698 = vadd.f32 0.0, %v8697
      %v8699 = vpop.f32.mrf.mxu0
      %8700 = vmatprep.mubr.bf16.mxu0 0
      %8701 = vmatmul.mubr.bf16.gmra.mxu0 %v8629
      %v8702 = vpop.f32.mrf.mxu0
      %v8703 = vadd.f32 0.0, %v8702
      %v8704 = vpop.f32.mrf.mxu0
      %v8705 = vpop.f32.mrf.mxu0
      %v8706 = vadd.f32 0.0, %v8705
      %v8707 = vpop.f32.mrf.mxu0
      %8708 = vmatprep.mubr.bf16.mxu0 0
      %8709 = vmatmul.mubr.bf16.gmra.mxu0 %v8632
      %v8710 = vpop.f32.mrf.mxu0
      %v8711 = vadd.f32 0.0, %v8710
      %v8712 = vpop.f32.mrf.mxu0
      %v8713 = vpop.f32.mrf.mxu0
      %v8714 = vadd.f32 0.0, %v8713
      %v8715 = vpop.f32.mrf.mxu0
      %8716 = vmatprep.mubr.bf16.mxu0 0
      %8717 = vmatmul.mubr.bf16.gmra.mxu0 %v8635
      %v8718 = vpop.f32.mrf.mxu0
      %v8719 = vadd.f32 0.0, %v8718
      %v8720 = vpop.f32.mrf.mxu0
      %v8721 = vpop.f32.mrf.mxu0
      %v8722 = vadd.f32 0.0, %v8721
      %v8723 = vpop.f32.mrf.mxu0
      %8724 = vmatprep.mubr.bf16.mxu0 0
      %8725 = vmatmul.mubr.bf16.gmra.mxu0 %v8638
      %v8726 = vpop.f32.mrf.mxu0
      %v8727 = vadd.f32 0.0, %v8726
      %v8728 = vpop.f32.mrf.mxu0
      %v8729 = vpop.f32.mrf.mxu0
      %v8730 = vadd.f32 0.0, %v8729
      %v8731 = vpop.f32.mrf.mxu0
      %8732 = vmatprep.mubr.bf16.mxu0 0
      %8733 = vmatmul.mubr.bf16.gmra.mxu0 %v8641
      %v8734 = vpop.f32.mrf.mxu0
      %v8735 = vadd.f32 0.0, %v8734
      %v8736 = vpop.f32.mrf.mxu0
      %v8737 = vpop.f32.mrf.mxu0
      %v8738 = vadd.f32 0.0, %v8737
      %v8739 = vpop.f32.mrf.mxu0
      %8740 = vmatprep.mubr.bf16.mxu0 0
      %8741 = vmatmul.mubr.bf16.gmra.mxu0 %v8644
      %v8742 = vpop.f32.mrf.mxu0
      %v8743 = vadd.f32 0.0, %v8742
      %v8744 = vpop.f32.mrf.mxu0
      %v8745 = vpop.f32.mrf.mxu0
      %v8746 = vadd.f32 0.0, %v8745
      %v8747 = vpop.f32.mrf.mxu0
      %8748 = vmatprep.mubr.bf16.mxu0 0
      %8749 = vmatmul.mubr.bf16.gmra.mxu0 %v8647
      %v8750 = vpop.f32.mrf.mxu0
      %v8751 = vadd.f32 0.0, %v8750
      %v8752 = vpop.f32.mrf.mxu0
      %v8753 = vpop.f32.mrf.mxu0
      %v8754 = vadd.f32 0.0, %v8753
      %v8755 = vpop.f32.mrf.mxu0
      %8756 = vmatprep.mubr.bf16.mxu0 0
      %8757 = vmatmul.mubr.bf16.gmra.mxu0 %v8650
      %v8758 = vpop.f32.mrf.mxu0
      %v8759 = vadd.f32 0.0, %v8758
      %v8760 = vpop.f32.mrf.mxu0
      %v8761 = vpop.f32.mrf.mxu0
      %v8762 = vadd.f32 0.0, %v8761
      %v8763 = vpop.f32.mrf.mxu0
      %8764 = vdwg.mxu0
      %v8765 = vadd.f32 %v8564, %v8687
      %v8766 = vadd.f32 %v8565, %v8690
      %v8767 = vadd.f32 %v8566, %v8695
      %v8768 = vadd.f32 %v8567, %v8698
      %v8769 = vadd.f32 %v8568, %v8703
      %v8770 = vadd.f32 %v8569, %v8706
      %v8771 = vadd.f32 %v8570, %v8711
      %v8772 = vadd.f32 %v8571, %v8714
      %v8773 = vadd.f32 %v8572, %v8719
      %v8774 = vadd.f32 %v8573, %v8722
      %v8775 = vadd.f32 %v8574, %v8727
      %v8776 = vadd.f32 %v8575, %v8730
      %v8777 = vadd.f32 %v8576, %v8735
      %v8778 = vadd.f32 %v8577, %v8738
      %v8779 = vadd.f32 %v8578, %v8743
      %v8780 = vadd.f32 %v8579, %v8746
      %v8781 = vadd.f32 %v8580, %v8751
      %v8782 = vadd.f32 %v8581, %v8754
      %v8783 = vadd.f32 %v8582, %v8759
      %v8784 = vadd.f32 %v8583, %v8762
      %v8785 = vld [vmem:[%s628] sm:$0xff]
      %v8786 = vld [vmem:[%s628 + $0x8] sm:$0xff]
      %v8787 = vld [vmem:[%s628 + $0x18] sm:$0xff]
      %v8788 = vld [vmem:[%s628 + $0x20] sm:$0xff]
      %v8789 = vld [vmem:[%s628 + $0x30] sm:$0xff]
      %v8790 = vld [vmem:[%s628 + $0x38] sm:$0xff]
      %v8791 = vld [vmem:[%s628 + $0x48] sm:$0xff]
      %v8792 = vld [vmem:[%s628 + $0x50] sm:$0xff]
      %v8793 = vld [vmem:[%s628 + $0x60] sm:$0xff]
      %v8794 = vld [vmem:[%s628 + $0x68] sm:$0xff]
      %v8795 = vld [vmem:[%s628 + $0x78] sm:$0xff]
      %v8796 = vld [vmem:[%s628 + $0x80] sm:$0xff]
      %v8797 = vld [vmem:[%s628 + $0x90] sm:$0xff]
      %v8798 = vld [vmem:[%s628 + $0x98] sm:$0xff]
      %v8799 = vld [vmem:[%s628 + $0xa8] sm:$0xff]
      %v8800 = vld [vmem:[%s628 + $0xb0] sm:$0xff]
      %v8801 = vld [vmem:[%s628 + $0xc0] sm:$0xff]
      %v8802 = vld [vmem:[%s628 + $0xc8] sm:$0xff]
      %v8803 = vld [vmem:[%s628 + $0xd8] sm:$0xff]
      %v8804 = vld [vmem:[%s628 + $0xe0] sm:$0xff]
      %v8805 = vpack.c.bf16 %v8786, %v8785
      %v8806 = vpack.c.bf16 %v8788, %v8787
      %v8807 = vpack.c.bf16 %v8790, %v8789
      %v8808 = vpack.c.bf16 %v8792, %v8791
      %v8809 = vpack.c.bf16 %v8794, %v8793
      %v8810 = vpack.c.bf16 %v8796, %v8795
      %v8811 = vpack.c.bf16 %v8798, %v8797
      %v8812 = vpack.c.bf16 %v8800, %v8799
      %v8813 = vpack.c.bf16 %v8802, %v8801
      %v8814 = vpack.c.bf16 %v8804, %v8803
      %v8815 = vld [vmem:[%s5 + $0x30] sm:$0xf]
      %v8816 = vld [vmem:[%s5 + $0x34] sm:$0xf]
      %v8819 = vunpack.c.l.b16 %v8815
      %v8820 = vunpack.c.l.b16 %v8816
      %v8821 = vpack.c.b16 %v8820, %v8819
      %v8824 = vsel %vm7282, %v8805, 0
      %v8827 = vsel %vm7282, %v8806, 0
      %v8830 = vsel %vm7282, %v8807, 0
      %v8833 = vsel %vm7282, %v8808, 0
      %v8836 = vsel %vm7282, %v8809, 0
      %v8839 = vsel %vm7282, %v8810, 0
      %v8842 = vsel %vm7282, %v8811, 0
      %v8845 = vsel %vm7282, %v8812, 0
      %v8848 = vsel %vm7282, %v8813, 0
      %v8851 = vsel %vm7282, %v8814, 0
      %8853 = vmatprep.subr.bf16.mxu0 0
      %8854 = vmatpush1.bf16.msra.mxu0 0
      %8855 = vmatprep.subr.bf16.mxu0 0
      %8856 = vmatpush1.bf16.msra.mxu0 0
      %8857 = vmatprep.subr.bf16.mxu0 0
      %8858 = vmatpush1.bf16.msra.mxu0 0
      %8859 = vmatprep.subr.bf16.mxu0 0
      %8860 = vmatpush1.bf16.msra.mxu0 0
      %8861 = vmatprep.subr.bf16.mxu0 0
      %8862 = vmatpush1.bf16.msra.mxu0 0
      %8863 = vmatprep.subr.bf16.mxu0 0
      %8864 = vmatpush1.bf16.msra.mxu0 0
      %8865 = vmatprep.subr.bf16.mxu0 0
      %8866 = vmatpush1.bf16.msra.mxu0 0
      %8867 = vmatprep.subr.bf16.mxu0 0
      %8868 = vmatpush1.bf16.msra.mxu0 %v8821
      %8869 = vmatprep.subr.bf16.mxu0 0
      %8870 = vmatpush2.bf16.msra.mxu0 0
      %8871 = vmatprep.subr.bf16.mxu0 0
      %8872 = vmatpush2.bf16.msra.mxu0 0
      %8873 = vmatprep.subr.bf16.mxu0 0
      %8874 = vmatpush2.bf16.msra.mxu0 0
      %8875 = vmatprep.subr.bf16.mxu0 0
      %8876 = vmatpush2.bf16.msra.mxu0 0
      %8877 = vmatprep.subr.bf16.mxu0 0
      %8878 = vmatpush2.bf16.msra.mxu0 0
      %8879 = vmatprep.subr.bf16.mxu0 0
      %8880 = vmatpush2.bf16.msra.mxu0 0
      %8881 = vmatprep.subr.bf16.mxu0 0
      %8882 = vmatpush2.bf16.msra.mxu0 0
      %8883 = vmatprep.subr.bf16.mxu0 0
      %8884 = vmatpush2.bf16.msra.mxu0 0
      %8885 = vmatprep.mubr.bf16.mxu0 0
      %8886 = vmatmul.mubr.bf16.gmra.mxu0 %v8824
      %v8887 = vpop.f32.mrf.mxu0
      %v8888 = vadd.f32 0.0, %v8887
      %v8889 = vpop.f32.mrf.mxu0
      %v8890 = vpop.f32.mrf.mxu0
      %v8891 = vadd.f32 0.0, %v8890
      %v8892 = vpop.f32.mrf.mxu0
      %8893 = vmatprep.mubr.bf16.mxu0 0
      %8894 = vmatmul.mubr.bf16.gmra.mxu0 %v8827
      %v8895 = vpop.f32.mrf.mxu0
      %v8896 = vadd.f32 0.0, %v8895
      %v8897 = vpop.f32.mrf.mxu0
      %v8898 = vpop.f32.mrf.mxu0
      %v8899 = vadd.f32 0.0, %v8898
      %v8900 = vpop.f32.mrf.mxu0
      %8901 = vmatprep.mubr.bf16.mxu0 0
      %8902 = vmatmul.mubr.bf16.gmra.mxu0 %v8830
      %v8903 = vpop.f32.mrf.mxu0
      %v8904 = vadd.f32 0.0, %v8903
      %v8905 = vpop.f32.mrf.mxu0
      %v8906 = vpop.f32.mrf.mxu0
      %v8907 = vadd.f32 0.0, %v8906
      %v8908 = vpop.f32.mrf.mxu0
      %8909 = vmatprep.mubr.bf16.mxu0 0
      %8910 = vmatmul.mubr.bf16.gmra.mxu0 %v8833
      %v8911 = vpop.f32.mrf.mxu0
      %v8912 = vadd.f32 0.0, %v8911
      %v8913 = vpop.f32.mrf.mxu0
      %v8914 = vpop.f32.mrf.mxu0
      %v8915 = vadd.f32 0.0, %v8914
      %v8916 = vpop.f32.mrf.mxu0
      %8917 = vmatprep.mubr.bf16.mxu0 0
      %8918 = vmatmul.mubr.bf16.gmra.mxu0 %v8836
      %v8919 = vpop.f32.mrf.mxu0
      %v8920 = vadd.f32 0.0, %v8919
      %v8921 = vpop.f32.mrf.mxu0
      %v8922 = vpop.f32.mrf.mxu0
      %v8923 = vadd.f32 0.0, %v8922
      %v8924 = vpop.f32.mrf.mxu0
      %8925 = vmatprep.mubr.bf16.mxu0 0
      %8926 = vmatmul.mubr.bf16.gmra.mxu0 %v8839
      %v8927 = vpop.f32.mrf.mxu0
      %v8928 = vadd.f32 0.0, %v8927
      %v8929 = vpop.f32.mrf.mxu0
      %v8930 = vpop.f32.mrf.mxu0
      %v8931 = vadd.f32 0.0, %v8930
      %v8932 = vpop.f32.mrf.mxu0
      %8933 = vmatprep.mubr.bf16.mxu0 0
      %8934 = vmatmul.mubr.bf16.gmra.mxu0 %v8842
      %v8935 = vpop.f32.mrf.mxu0
      %v8936 = vadd.f32 0.0, %v8935
      %v8937 = vpop.f32.mrf.mxu0
      %v8938 = vpop.f32.mrf.mxu0
      %v8939 = vadd.f32 0.0, %v8938
      %v8940 = vpop.f32.mrf.mxu0
      %8941 = vmatprep.mubr.bf16.mxu0 0
      %8942 = vmatmul.mubr.bf16.gmra.mxu0 %v8845
      %v8943 = vpop.f32.mrf.mxu0
      %v8944 = vadd.f32 0.0, %v8943
      %v8945 = vpop.f32.mrf.mxu0
      %v8946 = vpop.f32.mrf.mxu0
      %v8947 = vadd.f32 0.0, %v8946
      %v8948 = vpop.f32.mrf.mxu0
      %8949 = vmatprep.mubr.bf16.mxu0 0
      %8950 = vmatmul.mubr.bf16.gmra.mxu0 %v8848
      %v8951 = vpop.f32.mrf.mxu0
      %v8952 = vadd.f32 0.0, %v8951
      %v8953 = vpop.f32.mrf.mxu0
      %v8954 = vpop.f32.mrf.mxu0
      %v8955 = vadd.f32 0.0, %v8954
      %v8956 = vpop.f32.mrf.mxu0
      %8957 = vmatprep.mubr.bf16.mxu0 0
      %8958 = vmatmul.mubr.bf16.gmra.mxu0 %v8851
      %v8959 = vpop.f32.mrf.mxu0
      %v8960 = vadd.f32 0.0, %v8959
      %v8961 = vpop.f32.mrf.mxu0
      %v8962 = vpop.f32.mrf.mxu0
      %v8963 = vadd.f32 0.0, %v8962
      %v8964 = vpop.f32.mrf.mxu0
      %8965 = vdwg.mxu0
      %v8966 = vadd.f32 %v8765, %v8888
      %v8967 = vadd.f32 %v8766, %v8891
      %v8968 = vadd.f32 %v8767, %v8896
      %v8969 = vadd.f32 %v8768, %v8899
      %v8970 = vadd.f32 %v8769, %v8904
      %v8971 = vadd.f32 %v8770, %v8907
      %v8972 = vadd.f32 %v8771, %v8912
      %v8973 = vadd.f32 %v8772, %v8915
      %v8974 = vadd.f32 %v8773, %v8920
      %v8975 = vadd.f32 %v8774, %v8923
      %v8976 = vadd.f32 %v8775, %v8928
      %v8977 = vadd.f32 %v8776, %v8931
      %v8978 = vadd.f32 %v8777, %v8936
      %v8979 = vadd.f32 %v8778, %v8939
      %v8980 = vadd.f32 %v8779, %v8944
      %v8981 = vadd.f32 %v8780, %v8947
      %v8982 = vadd.f32 %v8781, %v8952
      %v8983 = vadd.f32 %v8782, %v8955
      %v8984 = vadd.f32 %v8783, %v8960
      %v8985 = vadd.f32 %v8784, %v8963
      %v8986 = vld [vmem:[%s628 + $0x1] sm:$0xff]
      %v8987 = vld [vmem:[%s628 + $0x9] sm:$0xff]
      %v8988 = vld [vmem:[%s628 + $0x19] sm:$0xff]
      %v8989 = vld [vmem:[%s628 + $0x21] sm:$0xff]
      %v8990 = vld [vmem:[%s628 + $0x31] sm:$0xff]
      %v8991 = vld [vmem:[%s628 + $0x39] sm:$0xff]
      %v8992 = vld [vmem:[%s628 + $0x49] sm:$0xff]
      %v8993 = vld [vmem:[%s628 + $0x51] sm:$0xff]
      %v8994 = vld [vmem:[%s628 + $0x61] sm:$0xff]
      %v8995 = vld [vmem:[%s628 + $0x69] sm:$0xff]
      %v8996 = vld [vmem:[%s628 + $0x79] sm:$0xff]
      %v8997 = vld [vmem:[%s628 + $0x81] sm:$0xff]
      %v8998 = vld [vmem:[%s628 + $0x91] sm:$0xff]
      %v8999 = vld [vmem:[%s628 + $0x99] sm:$0xff]
      %v9000 = vld [vmem:[%s628 + $0xa9] sm:$0xff]
      %v9001 = vld [vmem:[%s628 + $0xb1] sm:$0xff]
      %v9002 = vld [vmem:[%s628 + $0xc1] sm:$0xff]
      %v9003 = vld [vmem:[%s628 + $0xc9] sm:$0xff]
      %v9004 = vld [vmem:[%s628 + $0xd9] sm:$0xff]
      %v9005 = vld [vmem:[%s628 + $0xe1] sm:$0xff]
      %v9006 = vpack.c.bf16 %v8987, %v8986
      %v9007 = vpack.c.bf16 %v8989, %v8988
      %v9008 = vpack.c.bf16 %v8991, %v8990
      %v9009 = vpack.c.bf16 %v8993, %v8992
      %v9010 = vpack.c.bf16 %v8995, %v8994
      %v9011 = vpack.c.bf16 %v8997, %v8996
      %v9012 = vpack.c.bf16 %v8999, %v8998
      %v9013 = vpack.c.bf16 %v9001, %v9000
      %v9014 = vpack.c.bf16 %v9003, %v9002
      %v9015 = vpack.c.bf16 %v9005, %v9004
      %v9016 = vld [vmem:[%s5 + $0x38] sm:$0xf]
      %v9017 = vld [vmem:[%s5 + $0x3c] sm:$0xf]
      %v9020 = vunpack.c.l.b16 %v9016
      %v9021 = vunpack.c.l.b16 %v9017
      %v9022 = vpack.c.b16 %v9021, %v9020
      %v9025 = vsel %vm7282, %v9006, 0
      %v9028 = vsel %vm7282, %v9007, 0
      %v9031 = vsel %vm7282, %v9008, 0
      %v9034 = vsel %vm7282, %v9009, 0
      %v9037 = vsel %vm7282, %v9010, 0
      %v9040 = vsel %vm7282, %v9011, 0
      %v9043 = vsel %vm7282, %v9012, 0
      %v9046 = vsel %vm7282, %v9013, 0
      %v9049 = vsel %vm7282, %v9014, 0
      %v9052 = vsel %vm7282, %v9015, 0
      %9054 = vmatprep.subr.bf16.mxu0 0
      %9055 = vmatpush1.bf16.msra.mxu0 0
      %9056 = vmatprep.subr.bf16.mxu0 0
      %9057 = vmatpush1.bf16.msra.mxu0 0
      %9058 = vmatprep.subr.bf16.mxu0 0
      %9059 = vmatpush1.bf16.msra.mxu0 0
      %9060 = vmatprep.subr.bf16.mxu0 0
      %9061 = vmatpush1.bf16.msra.mxu0 0
      %9062 = vmatprep.subr.bf16.mxu0 0
      %9063 = vmatpush1.bf16.msra.mxu0 0
      %9064 = vmatprep.subr.bf16.mxu0 0
      %9065 = vmatpush1.bf16.msra.mxu0 0
      %9066 = vmatprep.subr.bf16.mxu0 0
      %9067 = vmatpush1.bf16.msra.mxu0 0
      %9068 = vmatprep.subr.bf16.mxu0 0
      %9069 = vmatpush1.bf16.msra.mxu0 %v9022
      %9070 = vmatprep.subr.bf16.mxu0 0
      %9071 = vmatpush2.bf16.msra.mxu0 0
      %9072 = vmatprep.subr.bf16.mxu0 0
      %9073 = vmatpush2.bf16.msra.mxu0 0
      %9074 = vmatprep.subr.bf16.mxu0 0
      %9075 = vmatpush2.bf16.msra.mxu0 0
      %9076 = vmatprep.subr.bf16.mxu0 0
      %9077 = vmatpush2.bf16.msra.mxu0 0
      %9078 = vmatprep.subr.bf16.mxu0 0
      %9079 = vmatpush2.bf16.msra.mxu0 0
      %9080 = vmatprep.subr.bf16.mxu0 0
      %9081 = vmatpush2.bf16.msra.mxu0 0
      %9082 = vmatprep.subr.bf16.mxu0 0
      %9083 = vmatpush2.bf16.msra.mxu0 0
      %9084 = vmatprep.subr.bf16.mxu0 0
      %9085 = vmatpush2.bf16.msra.mxu0 0
      %9086 = vmatprep.mubr.bf16.mxu0 0
      %9087 = vmatmul.mubr.bf16.gmra.mxu0 %v9025
      %v9088 = vpop.f32.mrf.mxu0
      %v9089 = vadd.f32 0.0, %v9088
      %v9090 = vpop.f32.mrf.mxu0
      %v9091 = vpop.f32.mrf.mxu0
      %v9092 = vadd.f32 0.0, %v9091
      %v9093 = vpop.f32.mrf.mxu0
      %9094 = vmatprep.mubr.bf16.mxu0 0
      %9095 = vmatmul.mubr.bf16.gmra.mxu0 %v9028
      %v9096 = vpop.f32.mrf.mxu0
      %v9097 = vadd.f32 0.0, %v9096
      %v9098 = vpop.f32.mrf.mxu0
      %v9099 = vpop.f32.mrf.mxu0
      %v9100 = vadd.f32 0.0, %v9099
      %v9101 = vpop.f32.mrf.mxu0
      %9102 = vmatprep.mubr.bf16.mxu0 0
      %9103 = vmatmul.mubr.bf16.gmra.mxu0 %v9031
      %v9104 = vpop.f32.mrf.mxu0
      %v9105 = vadd.f32 0.0, %v9104
      %v9106 = vpop.f32.mrf.mxu0
      %v9107 = vpop.f32.mrf.mxu0
      %v9108 = vadd.f32 0.0, %v9107
      %v9109 = vpop.f32.mrf.mxu0
      %9110 = vmatprep.mubr.bf16.mxu0 0
      %9111 = vmatmul.mubr.bf16.gmra.mxu0 %v9034
      %v9112 = vpop.f32.mrf.mxu0
      %v9113 = vadd.f32 0.0, %v9112
      %v9114 = vpop.f32.mrf.mxu0
      %v9115 = vpop.f32.mrf.mxu0
      %v9116 = vadd.f32 0.0, %v9115
      %v9117 = vpop.f32.mrf.mxu0
      %9118 = vmatprep.mubr.bf16.mxu0 0
      %9119 = vmatmul.mubr.bf16.gmra.mxu0 %v9037
      %v9120 = vpop.f32.mrf.mxu0
      %v9121 = vadd.f32 0.0, %v9120
      %v9122 = vpop.f32.mrf.mxu0
      %v9123 = vpop.f32.mrf.mxu0
      %v9124 = vadd.f32 0.0, %v9123
      %v9125 = vpop.f32.mrf.mxu0
      %9126 = vmatprep.mubr.bf16.mxu0 0
      %9127 = vmatmul.mubr.bf16.gmra.mxu0 %v9040
      %v9128 = vpop.f32.mrf.mxu0
      %v9129 = vadd.f32 0.0, %v9128
      %v9130 = vpop.f32.mrf.mxu0
      %v9131 = vpop.f32.mrf.mxu0
      %v9132 = vadd.f32 0.0, %v9131
      %v9133 = vpop.f32.mrf.mxu0
      %9134 = vmatprep.mubr.bf16.mxu0 0
      %9135 = vmatmul.mubr.bf16.gmra.mxu0 %v9043
      %v9136 = vpop.f32.mrf.mxu0
      %v9137 = vadd.f32 0.0, %v9136
      %v9138 = vpop.f32.mrf.mxu0
      %v9139 = vpop.f32.mrf.mxu0
      %v9140 = vadd.f32 0.0, %v9139
      %v9141 = vpop.f32.mrf.mxu0
      %9142 = vmatprep.mubr.bf16.mxu0 0
      %9143 = vmatmul.mubr.bf16.gmra.mxu0 %v9046
      %v9144 = vpop.f32.mrf.mxu0
      %v9145 = vadd.f32 0.0, %v9144
      %v9146 = vpop.f32.mrf.mxu0
      %v9147 = vpop.f32.mrf.mxu0
      %v9148 = vadd.f32 0.0, %v9147
      %v9149 = vpop.f32.mrf.mxu0
      %9150 = vmatprep.mubr.bf16.mxu0 0
      %9151 = vmatmul.mubr.bf16.gmra.mxu0 %v9049
      %v9152 = vpop.f32.mrf.mxu0
      %v9153 = vadd.f32 0.0, %v9152
      %v9154 = vpop.f32.mrf.mxu0
      %v9155 = vpop.f32.mrf.mxu0
      %v9156 = vadd.f32 0.0, %v9155
      %v9157 = vpop.f32.mrf.mxu0
      %9158 = vmatprep.mubr.bf16.mxu0 0
      %9159 = vmatmul.mubr.bf16.gmra.mxu0 %v9052
      %v9160 = vpop.f32.mrf.mxu0
      %v9161 = vadd.f32 0.0, %v9160
      %v9162 = vpop.f32.mrf.mxu0
      %v9163 = vpop.f32.mrf.mxu0
      %v9164 = vadd.f32 0.0, %v9163
      %v9165 = vpop.f32.mrf.mxu0
      %9166 = vdwg.mxu0
      %v9167 = vadd.f32 %v8966, %v9089
      %v9168 = vadd.f32 %v8967, %v9092
      %v9169 = vadd.f32 %v8968, %v9097
      %v9170 = vadd.f32 %v8969, %v9100
      %v9171 = vadd.f32 %v8970, %v9105
      %v9172 = vadd.f32 %v8971, %v9108
      %v9173 = vadd.f32 %v8972, %v9113
      %v9174 = vadd.f32 %v8973, %v9116
      %v9175 = vadd.f32 %v8974, %v9121
      %v9176 = vadd.f32 %v8975, %v9124
      %v9177 = vadd.f32 %v8976, %v9129
      %v9178 = vadd.f32 %v8977, %v9132
      %v9179 = vadd.f32 %v8978, %v9137
      %v9180 = vadd.f32 %v8979, %v9140
      %v9181 = vadd.f32 %v8980, %v9145
      %v9182 = vadd.f32 %v8981, %v9148
      %v9183 = vadd.f32 %v8982, %v9153
      %v9184 = vadd.f32 %v8983, %v9156
      %v9185 = vadd.f32 %v8984, %v9161
      %v9186 = vadd.f32 %v8985, %v9164
      %v9187 = vld [vmem:[%s628 + $0x2] sm:$0xff]
      %v9188 = vld [vmem:[%s628 + $0xa] sm:$0xff]
      %v9189 = vld [vmem:[%s628 + $0x1a] sm:$0xff]
      %v9190 = vld [vmem:[%s628 + $0x22] sm:$0xff]
      %v9191 = vld [vmem:[%s628 + $0x32] sm:$0xff]
      %v9192 = vld [vmem:[%s628 + $0x3a] sm:$0xff]
      %v9193 = vld [vmem:[%s628 + $0x4a] sm:$0xff]
      %v9194 = vld [vmem:[%s628 + $0x52] sm:$0xff]
      %v9195 = vld [vmem:[%s628 + $0x62] sm:$0xff]
      %v9196 = vld [vmem:[%s628 + $0x6a] sm:$0xff]
      %v9197 = vld [vmem:[%s628 + $0x7a] sm:$0xff]
      %v9198 = vld [vmem:[%s628 + $0x82] sm:$0xff]
      %v9199 = vld [vmem:[%s628 + $0x92] sm:$0xff]
      %v9200 = vld [vmem:[%s628 + $0x9a] sm:$0xff]
      %v9201 = vld [vmem:[%s628 + $0xaa] sm:$0xff]
      %v9202 = vld [vmem:[%s628 + $0xb2] sm:$0xff]
      %v9203 = vld [vmem:[%s628 + $0xc2] sm:$0xff]
      %v9204 = vld [vmem:[%s628 + $0xca] sm:$0xff]
      %v9205 = vld [vmem:[%s628 + $0xda] sm:$0xff]
      %v9206 = vld [vmem:[%s628 + $0xe2] sm:$0xff]
      %v9207 = vpack.c.bf16 %v9188, %v9187
      %v9208 = vpack.c.bf16 %v9190, %v9189
      %v9209 = vpack.c.bf16 %v9192, %v9191
      %v9210 = vpack.c.bf16 %v9194, %v9193
      %v9211 = vpack.c.bf16 %v9196, %v9195
      %v9212 = vpack.c.bf16 %v9198, %v9197
      %v9213 = vpack.c.bf16 %v9200, %v9199
      %v9214 = vpack.c.bf16 %v9202, %v9201
      %v9215 = vpack.c.bf16 %v9204, %v9203
      %v9216 = vpack.c.bf16 %v9206, %v9205
      %v9217 = vld [vmem:[%s5 + $0x40] sm:$0xf]
      %v9218 = vld [vmem:[%s5 + $0x44] sm:$0xf]
      %v9221 = vunpack.c.l.b16 %v9217
      %v9222 = vunpack.c.l.b16 %v9218
      %v9223 = vpack.c.b16 %v9222, %v9221
      %v9226 = vsel %vm7282, %v9207, 0
      %v9229 = vsel %vm7282, %v9208, 0
      %v9232 = vsel %vm7282, %v9209, 0
      %v9235 = vsel %vm7282, %v9210, 0
      %v9238 = vsel %vm7282, %v9211, 0
      %v9241 = vsel %vm7282, %v9212, 0
      %v9244 = vsel %vm7282, %v9213, 0
      %v9247 = vsel %vm7282, %v9214, 0
      %v9250 = vsel %vm7282, %v9215, 0
      %v9253 = vsel %vm7282, %v9216, 0
      %9255 = vmatprep.subr.bf16.mxu0 0
      %9256 = vmatpush1.bf16.msra.mxu0 0
      %9257 = vmatprep.subr.bf16.mxu0 0
      %9258 = vmatpush1.bf16.msra.mxu0 0
      %9259 = vmatprep.subr.bf16.mxu0 0
      %9260 = vmatpush1.bf16.msra.mxu0 0
      %9261 = vmatprep.subr.bf16.mxu0 0
      %9262 = vmatpush1.bf16.msra.mxu0 0
      %9263 = vmatprep.subr.bf16.mxu0 0
      %9264 = vmatpush1.bf16.msra.mxu0 0
      %9265 = vmatprep.subr.bf16.mxu0 0
      %9266 = vmatpush1.bf16.msra.mxu0 0
      %9267 = vmatprep.subr.bf16.mxu0 0
      %9268 = vmatpush1.bf16.msra.mxu0 0
      %9269 = vmatprep.subr.bf16.mxu0 0
      %9270 = vmatpush1.bf16.msra.mxu0 %v9223
      %9271 = vmatprep.subr.bf16.mxu0 0
      %9272 = vmatpush2.bf16.msra.mxu0 0
      %9273 = vmatprep.subr.bf16.mxu0 0
      %9274 = vmatpush2.bf16.msra.mxu0 0
      %9275 = vmatprep.subr.bf16.mxu0 0
      %9276 = vmatpush2.bf16.msra.mxu0 0
      %9277 = vmatprep.subr.bf16.mxu0 0
      %9278 = vmatpush2.bf16.msra.mxu0 0
      %9279 = vmatprep.subr.bf16.mxu0 0
      %9280 = vmatpush2.bf16.msra.mxu0 0
      %9281 = vmatprep.subr.bf16.mxu0 0
      %9282 = vmatpush2.bf16.msra.mxu0 0
      %9283 = vmatprep.subr.bf16.mxu0 0
      %9284 = vmatpush2.bf16.msra.mxu0 0
      %9285 = vmatprep.subr.bf16.mxu0 0
      %9286 = vmatpush2.bf16.msra.mxu0 0
      %9287 = vmatprep.mubr.bf16.mxu0 0
      %9288 = vmatmul.mubr.bf16.gmra.mxu0 %v9226
      %v9289 = vpop.f32.mrf.mxu0
      %v9290 = vadd.f32 0.0, %v9289
      %v9291 = vpop.f32.mrf.mxu0
      %v9292 = vpop.f32.mrf.mxu0
      %v9293 = vadd.f32 0.0, %v9292
      %v9294 = vpop.f32.mrf.mxu0
      %9295 = vmatprep.mubr.bf16.mxu0 0
      %9296 = vmatmul.mubr.bf16.gmra.mxu0 %v9229
      %v9297 = vpop.f32.mrf.mxu0
      %v9298 = vadd.f32 0.0, %v9297
      %v9299 = vpop.f32.mrf.mxu0
      %v9300 = vpop.f32.mrf.mxu0
      %v9301 = vadd.f32 0.0, %v9300
      %v9302 = vpop.f32.mrf.mxu0
      %9303 = vmatprep.mubr.bf16.mxu0 0
      %9304 = vmatmul.mubr.bf16.gmra.mxu0 %v9232
      %v9305 = vpop.f32.mrf.mxu0
      %v9306 = vadd.f32 0.0, %v9305
      %v9307 = vpop.f32.mrf.mxu0
      %v9308 = vpop.f32.mrf.mxu0
      %v9309 = vadd.f32 0.0, %v9308
      %v9310 = vpop.f32.mrf.mxu0
      %9311 = vmatprep.mubr.bf16.mxu0 0
      %9312 = vmatmul.mubr.bf16.gmra.mxu0 %v9235
      %v9313 = vpop.f32.mrf.mxu0
      %v9314 = vadd.f32 0.0, %v9313
      %v9315 = vpop.f32.mrf.mxu0
      %v9316 = vpop.f32.mrf.mxu0
      %v9317 = vadd.f32 0.0, %v9316
      %v9318 = vpop.f32.mrf.mxu0
      %9319 = vmatprep.mubr.bf16.mxu0 0
      %9320 = vmatmul.mubr.bf16.gmra.mxu0 %v9238
      %v9321 = vpop.f32.mrf.mxu0
      %v9322 = vadd.f32 0.0, %v9321
      %v9323 = vpop.f32.mrf.mxu0
      %v9324 = vpop.f32.mrf.mxu0
      %v9325 = vadd.f32 0.0, %v9324
      %v9326 = vpop.f32.mrf.mxu0
      %9327 = vmatprep.mubr.bf16.mxu0 0
      %9328 = vmatmul.mubr.bf16.gmra.mxu0 %v9241
      %v9329 = vpop.f32.mrf.mxu0
      %v9330 = vadd.f32 0.0, %v9329
      %v9331 = vpop.f32.mrf.mxu0
      %v9332 = vpop.f32.mrf.mxu0
      %v9333 = vadd.f32 0.0, %v9332
      %v9334 = vpop.f32.mrf.mxu0
      %9335 = vmatprep.mubr.bf16.mxu0 0
      %9336 = vmatmul.mubr.bf16.gmra.mxu0 %v9244
      %v9337 = vpop.f32.mrf.mxu0
      %v9338 = vadd.f32 0.0, %v9337
      %v9339 = vpop.f32.mrf.mxu0
      %v9340 = vpop.f32.mrf.mxu0
      %v9341 = vadd.f32 0.0, %v9340
      %v9342 = vpop.f32.mrf.mxu0
      %9343 = vmatprep.mubr.bf16.mxu0 0
      %9344 = vmatmul.mubr.bf16.gmra.mxu0 %v9247
      %v9345 = vpop.f32.mrf.mxu0
      %v9346 = vadd.f32 0.0, %v9345
      %v9347 = vpop.f32.mrf.mxu0
      %v9348 = vpop.f32.mrf.mxu0
      %v9349 = vadd.f32 0.0, %v9348
      %v9350 = vpop.f32.mrf.mxu0
      %9351 = vmatprep.mubr.bf16.mxu0 0
      %9352 = vmatmul.mubr.bf16.gmra.mxu0 %v9250
      %v9353 = vpop.f32.mrf.mxu0
      %v9354 = vadd.f32 0.0, %v9353
      %v9355 = vpop.f32.mrf.mxu0
      %v9356 = vpop.f32.mrf.mxu0
      %v9357 = vadd.f32 0.0, %v9356
      %v9358 = vpop.f32.mrf.mxu0
      %9359 = vmatprep.mubr.bf16.mxu0 0
      %9360 = vmatmul.mubr.bf16.gmra.mxu0 %v9253
      %v9361 = vpop.f32.mrf.mxu0
      %v9362 = vadd.f32 0.0, %v9361
      %v9363 = vpop.f32.mrf.mxu0
      %v9364 = vpop.f32.mrf.mxu0
      %v9365 = vadd.f32 0.0, %v9364
      %v9366 = vpop.f32.mrf.mxu0
      %9367 = vdwg.mxu0
      %v9368 = vadd.f32 %v9167, %v9290
      %v9369 = vadd.f32 %v9168, %v9293
      %v9370 = vadd.f32 %v9169, %v9298
      %v9371 = vadd.f32 %v9170, %v9301
      %v9372 = vadd.f32 %v9171, %v9306
      %v9373 = vadd.f32 %v9172, %v9309
      %v9374 = vadd.f32 %v9173, %v9314
      %v9375 = vadd.f32 %v9174, %v9317
      %v9376 = vadd.f32 %v9175, %v9322
      %v9377 = vadd.f32 %v9176, %v9325
      %v9378 = vadd.f32 %v9177, %v9330
      %v9379 = vadd.f32 %v9178, %v9333
      %v9380 = vadd.f32 %v9179, %v9338
      %v9381 = vadd.f32 %v9180, %v9341
      %v9382 = vadd.f32 %v9181, %v9346
      %v9383 = vadd.f32 %v9182, %v9349
      %v9384 = vadd.f32 %v9183, %v9354
      %v9385 = vadd.f32 %v9184, %v9357
      %v9386 = vadd.f32 %v9185, %v9362
      %v9387 = vadd.f32 %v9186, %v9365
      %9388 = vst.msk [vmem:[#allocation2 + $0x1] sm:$0xff] %vm1926, %v9368
      %9389 = vst.msk [vmem:[#allocation2 + $0x9] sm:$0xff] %vm1926, %v9369
      %9390 = vst.msk [vmem:[#allocation2 + $0x19] sm:$0xff] %vm1926, %v9370
      %9391 = vst.msk [vmem:[#allocation2 + $0x21] sm:$0xff] %vm1926, %v9371
      %9392 = vst.msk [vmem:[#allocation2 + $0x31] sm:$0xff] %vm1926, %v9372
      %9393 = vst.msk [vmem:[#allocation2 + $0x39] sm:$0xff] %vm1926, %v9373
      %9394 = vst.msk [vmem:[#allocation2 + $0x49] sm:$0xff] %vm1926, %v9374
      %9395 = vst.msk [vmem:[#allocation2 + $0x51] sm:$0xff] %vm1926, %v9375
      %9396 = vst.msk [vmem:[#allocation2 + $0x61] sm:$0xff] %vm1926, %v9376
      %9397 = vst.msk [vmem:[#allocation2 + $0x69] sm:$0xff] %vm1926, %v9377
      %9398 = vst.msk [vmem:[#allocation2 + $0x79] sm:$0xff] %vm1926, %v9378
      %9399 = vst.msk [vmem:[#allocation2 + $0x81] sm:$0xff] %vm1926, %v9379
      %9400 = vst.msk [vmem:[#allocation2 + $0x91] sm:$0xff] %vm1926, %v9380
      %9401 = vst.msk [vmem:[#allocation2 + $0x99] sm:$0xff] %vm1926, %v9381
      %9402 = vst.msk [vmem:[#allocation2 + $0xa9] sm:$0xff] %vm1926, %v9382
      %9403 = vst.msk [vmem:[#allocation2 + $0xb1] sm:$0xff] %vm1926, %v9383
      %9404 = vst.msk [vmem:[#allocation2 + $0xc1] sm:$0xff] %vm1926, %v9384
      %9405 = vst.msk [vmem:[#allocation2 + $0xc9] sm:$0xff] %vm1926, %v9385
      %9406 = vst.msk [vmem:[#allocation2 + $0xd9] sm:$0xff] %vm1926, %v9386
      %9407 = vst.msk [vmem:[#allocation2 + $0xe1] sm:$0xff] %vm1926, %v9387
      // Predicated region
      $region69: #{pcrn_forward.1} parent=59 // pred_check
        %p9408 = pneg %p7307
      $region70: #{pcrn_forward.1} parent=59 // pred_check_branch
        %9410 = sbr.rel (%p9408) target = $region72
      $region71: #{pcrn_forward.1} parent=59 // pred_region
        %9411 = vst.msk [vmem:[#allocation2 + $0x1] sm:$0xff] %vm1926, 0.0
        %9412 = vst.msk [vmem:[#allocation2 + $0x9] sm:$0xff] %vm1926, 0.0
      $region72: #{pcrn_forward.1} parent=59 // pred_fallthru
        _
      // Predicated region
      $region73: #{pcrn_forward.1} parent=59 // pred_check
        %p9413 = pneg %p7315
      $region74: #{pcrn_forward.1} parent=59 // pred_check_branch
        %9415 = sbr.rel (%p9413) target = $region76
      $region75: #{pcrn_forward.1} parent=59 // pred_region
        %s9416 = scalar_lea.vmem [#allocation2], 216
        %9417 = vst.msk [vmem:[%s9416 + $0x1] sm:$0xff] %vm1926, 0.0
        %9418 = vst.msk [vmem:[%s9416 + $0x9] sm:$0xff] %vm1926, 0.0
      $region76: #{pcrn_forward.1} parent=59 // pred_fallthru
        _
      %v9419 = vld [vmem:[%s9] sm:$0x1]
      %v9420 = vld [vmem:[#allocation2] sm:$0xff]
      %v9421 = vld [vmem:[#allocation2 + $0x8] sm:$0xff]
      %v9422 = vld [vmem:[#allocation2 + $0x18] sm:$0xff]
      %v9423 = vld [vmem:[#allocation2 + $0x20] sm:$0xff]
      %v9424 = vld [vmem:[#allocation2 + $0x30] sm:$0xff]
      %v9425 = vld [vmem:[#allocation2 + $0x38] sm:$0xff]
      %v9426 = vld [vmem:[#allocation2 + $0x48] sm:$0xff]
      %v9427 = vld [vmem:[#allocation2 + $0x50] sm:$0xff]
      %v9428 = vld [vmem:[#allocation2 + $0x60] sm:$0xff]
      %v9429 = vld [vmem:[#allocation2 + $0x68] sm:$0xff]
      %v9430 = vld [vmem:[#allocation2 + $0x78] sm:$0xff]
      %v9431 = vld [vmem:[#allocation2 + $0x80] sm:$0xff]
      %v9432 = vld [vmem:[#allocation2 + $0x90] sm:$0xff]
      %v9433 = vld [vmem:[#allocation2 + $0x98] sm:$0xff]
      %v9434 = vld [vmem:[#allocation2 + $0xa8] sm:$0xff]
      %v9435 = vld [vmem:[#allocation2 + $0xb0] sm:$0xff]
      %v9436 = vpack.c.bf16 %v9421, %v9420
      %v9437 = vpack.c.bf16 %v9423, %v9422
      %v9438 = vpack.c.bf16 %v9425, %v9424
      %v9439 = vpack.c.bf16 %v9427, %v9426
      %v9440 = vpack.c.bf16 %v9429, %v9428
      %v9441 = vpack.c.bf16 %v9431, %v9430
      %v9442 = vpack.c.bf16 %v9433, %v9432
      %v9443 = vpack.c.bf16 %v9435, %v9434
      %v9444 = vld [vmem:[%s8] sm:$0xf]
      %v9445 = vld [vmem:[%s8 + $0x4] sm:$0xf]
      %v9446 = vld [vmem:[%s8 + $0x8] sm:$0xf]
      %v9447 = vld [vmem:[%s8 + $0xc] sm:$0xf]
      %v9448 = vld [vmem:[%s8 + $0x10] sm:$0xf]
      %v9449 = vld [vmem:[%s8 + $0x14] sm:$0xf]
      %v9450 = vld [vmem:[%s8 + $0x18] sm:$0xf]
      %v9451 = vld [vmem:[%s8 + $0x1c] sm:$0xf]
      %v9460 = vunpack.c.l.b16 %v9444
      %v9461 = vunpack.c.l.b16 %v9445
      %v9462 = vunpack.c.l.b16 %v9446
      %v9463 = vunpack.c.l.b16 %v9447
      %v9464 = vunpack.c.l.b16 %v9448
      %v9465 = vunpack.c.l.b16 %v9449
      %v9466 = vunpack.c.l.b16 %v9450
      %v9467 = vunpack.c.l.b16 %v9451
      %v9468 = vpack.c.b16 %v9461, %v9460
      %v9469 = vpack.c.b16 %v9463, %v9462
      %v9470 = vpack.c.b16 %v9465, %v9464
      %v9471 = vpack.c.b16 %v9467, %v9466
      %v9477 = vsel %vm1926, %v9436, 0
      %v9480 = vsel %vm1926, %v9437, 0
      %v9483 = vsel %vm1926, %v9438, 0
      %v9486 = vsel %vm1926, %v9439, 0
      %v9489 = vsel %vm1926, %v9440, 0
      %v9492 = vsel %vm1926, %v9441, 0
      %v9495 = vsel %vm1926, %v9442, 0
      %v9498 = vsel %vm1926, %v9443, 0
      %9500 = vmatprep.subr.bf16.mxu0 0
      %9501 = vmatpush1.bf16.msra.mxu0 0
      %9502 = vmatprep.subr.bf16.mxu0 0
      %9503 = vmatpush1.bf16.msra.mxu0 0
      %9504 = vmatprep.subr.bf16.mxu0 0
      %9505 = vmatpush1.bf16.msra.mxu0 0
      %9506 = vmatprep.subr.bf16.mxu0 0
      %9507 = vmatpush1.bf16.msra.mxu0 0
      %9508 = vmatprep.subr.bf16.mxu0 0
      %9509 = vmatpush1.bf16.msra.mxu0 %v9471
      %9510 = vmatprep.subr.bf16.mxu0 0
      %9511 = vmatpush1.bf16.msra.mxu0 %v9470
      %9512 = vmatprep.subr.bf16.mxu0 0
      %9513 = vmatpush1.bf16.msra.mxu0 %v9469
      %9514 = vmatprep.subr.bf16.mxu0 0
      %9515 = vmatpush1.bf16.msra.mxu0 %v9468
      %9516 = vmatprep.subr.bf16.mxu0 0
      %9517 = vmatpush2.bf16.msra.mxu0 0
      %9518 = vmatprep.subr.bf16.mxu0 0
      %9519 = vmatpush2.bf16.msra.mxu0 0
      %9520 = vmatprep.subr.bf16.mxu0 0
      %9521 = vmatpush2.bf16.msra.mxu0 0
      %9522 = vmatprep.subr.bf16.mxu0 0
      %9523 = vmatpush2.bf16.msra.mxu0 0
      %9524 = vmatprep.subr.bf16.mxu0 0
      %9525 = vmatpush2.bf16.msra.mxu0 0
      %9526 = vmatprep.subr.bf16.mxu0 0
      %9527 = vmatpush2.bf16.msra.mxu0 0
      %9528 = vmatprep.subr.bf16.mxu0 0
      %9529 = vmatpush2.bf16.msra.mxu0 0
      %9530 = vmatprep.subr.bf16.mxu0 0
      %9531 = vmatpush2.bf16.msra.mxu0 0
      %9532 = vmatprep.mubr.bf16.mxu0 0
      %9533 = vmatmul.mubr.bf16.gmra.mxu0 %v9477
      %v9534 = vpop.f32.mrf.mxu0
      %v9535 = vadd.f32 0.0, %v9534
      %v9536 = vpop.f32.mrf.mxu0
      %v9537 = vpop.f32.mrf.mxu0
      %v9538 = vadd.f32 0.0, %v9537
      %v9539 = vpop.f32.mrf.mxu0
      %9540 = vmatprep.mubr.bf16.mxu0 0
      %9541 = vmatmul.mubr.bf16.gmra.mxu0 %v9480
      %v9542 = vpop.f32.mrf.mxu0
      %v9543 = vadd.f32 0.0, %v9542
      %v9544 = vpop.f32.mrf.mxu0
      %v9545 = vpop.f32.mrf.mxu0
      %v9546 = vadd.f32 0.0, %v9545
      %v9547 = vpop.f32.mrf.mxu0
      %9548 = vmatprep.mubr.bf16.mxu0 0
      %9549 = vmatmul.mubr.bf16.gmra.mxu0 %v9483
      %v9550 = vpop.f32.mrf.mxu0
      %v9551 = vadd.f32 0.0, %v9550
      %v9552 = vpop.f32.mrf.mxu0
      %v9553 = vpop.f32.mrf.mxu0
      %v9554 = vadd.f32 0.0, %v9553
      %v9555 = vpop.f32.mrf.mxu0
      %9556 = vmatprep.mubr.bf16.mxu0 0
      %9557 = vmatmul.mubr.bf16.gmra.mxu0 %v9486
      %v9558 = vpop.f32.mrf.mxu0
      %v9559 = vadd.f32 0.0, %v9558
      %v9560 = vpop.f32.mrf.mxu0
      %v9561 = vpop.f32.mrf.mxu0
      %v9562 = vadd.f32 0.0, %v9561
      %v9563 = vpop.f32.mrf.mxu0
      %9564 = vmatprep.mubr.bf16.mxu0 0
      %9565 = vmatmul.mubr.bf16.gmra.mxu0 %v9489
      %v9566 = vpop.f32.mrf.mxu0
      %v9567 = vadd.f32 0.0, %v9566
      %v9568 = vpop.f32.mrf.mxu0
      %v9569 = vpop.f32.mrf.mxu0
      %v9570 = vadd.f32 0.0, %v9569
      %v9571 = vpop.f32.mrf.mxu0
      %9572 = vmatprep.mubr.bf16.mxu0 0
      %9573 = vmatmul.mubr.bf16.gmra.mxu0 %v9492
      %v9574 = vpop.f32.mrf.mxu0
      %v9575 = vadd.f32 0.0, %v9574
      %v9576 = vpop.f32.mrf.mxu0
      %v9577 = vpop.f32.mrf.mxu0
      %v9578 = vadd.f32 0.0, %v9577
      %v9579 = vpop.f32.mrf.mxu0
      %9580 = vmatprep.mubr.bf16.mxu0 0
      %9581 = vmatmul.mubr.bf16.gmra.mxu0 %v9495
      %v9582 = vpop.f32.mrf.mxu0
      %v9583 = vadd.f32 0.0, %v9582
      %v9584 = vpop.f32.mrf.mxu0
      %v9585 = vpop.f32.mrf.mxu0
      %v9586 = vadd.f32 0.0, %v9585
      %v9587 = vpop.f32.mrf.mxu0
      %9588 = vmatprep.mubr.bf16.mxu0 0
      %9589 = vmatmul.mubr.bf16.gmra.mxu0 %v9498
      %v9590 = vpop.f32.mrf.mxu0
      %v9591 = vadd.f32 0.0, %v9590
      %v9592 = vpop.f32.mrf.mxu0
      %v9593 = vpop.f32.mrf.mxu0
      %v9594 = vadd.f32 0.0, %v9593
      %v9595 = vpop.f32.mrf.mxu0
      %9596 = vdwg.mxu0
      %v9598 = vlaneseq
      %v9599 = vshrl.u32 %v9598, 7
      %v9600 = vsub.s32 0, %v9599
      %v9601 = vrot.slane %v9419, %v9600
      %v9603 = vadd.f32 %v9601, %v9535
      %v9604 = vadd.f32 %v9601, %v9538
      %v9605 = vadd.f32 %v9601, %v9543
      %v9606 = vadd.f32 %v9601, %v9546
      %v9607 = vadd.f32 %v9601, %v9551
      %v9608 = vadd.f32 %v9601, %v9554
      %v9609 = vadd.f32 %v9601, %v9559
      %v9610 = vadd.f32 %v9601, %v9562
      %v9611 = vadd.f32 %v9601, %v9567
      %v9612 = vadd.f32 %v9601, %v9570
      %v9613 = vadd.f32 %v9601, %v9575
      %v9614 = vadd.f32 %v9601, %v9578
      %v9615 = vadd.f32 %v9601, %v9583
      %v9616 = vadd.f32 %v9601, %v9586
      %v9617 = vadd.f32 %v9601, %v9591
      %v9618 = vadd.f32 %v9601, %v9594
      %v9619 = vld [vmem:[#allocation2 + $0x1] sm:$0xff]
      %v9620 = vld [vmem:[#allocation2 + $0x9] sm:$0xff]
      %v9621 = vld [vmem:[#allocation2 + $0x19] sm:$0xff]
      %v9622 = vld [vmem:[#allocation2 + $0x21] sm:$0xff]
      %v9623 = vld [vmem:[#allocation2 + $0x31] sm:$0xff]
      %v9624 = vld [vmem:[#allocation2 + $0x39] sm:$0xff]
      %v9625 = vld [vmem:[#allocation2 + $0x49] sm:$0xff]
      %v9626 = vld [vmem:[#allocation2 + $0x51] sm:$0xff]
      %v9627 = vld [vmem:[#allocation2 + $0x61] sm:$0xff]
      %v9628 = vld [vmem:[#allocation2 + $0x69] sm:$0xff]
      %v9629 = vld [vmem:[#allocation2 + $0x79] sm:$0xff]
      %v9630 = vld [vmem:[#allocation2 + $0x81] sm:$0xff]
      %v9631 = vld [vmem:[#allocation2 + $0x91] sm:$0xff]
      %v9632 = vld [vmem:[#allocation2 + $0x99] sm:$0xff]
      %v9633 = vld [vmem:[#allocation2 + $0xa9] sm:$0xff]
      %v9634 = vld [vmem:[#allocation2 + $0xb1] sm:$0xff]
      %v9635 = vpack.c.bf16 %v9620, %v9619
      %v9636 = vpack.c.bf16 %v9622, %v9621
      %v9637 = vpack.c.bf16 %v9624, %v9623
      %v9638 = vpack.c.bf16 %v9626, %v9625
      %v9639 = vpack.c.bf16 %v9628, %v9627
      %v9640 = vpack.c.bf16 %v9630, %v9629
      %v9641 = vpack.c.bf16 %v9632, %v9631
      %v9642 = vpack.c.bf16 %v9634, %v9633
      %v9643 = vld [vmem:[%s8 + $0x20] sm:$0xf]
      %v9644 = vld [vmem:[%s8 + $0x24] sm:$0xf]
      %v9645 = vld [vmem:[%s8 + $0x28] sm:$0xf]
      %v9646 = vld [vmem:[%s8 + $0x2c] sm:$0xf]
      %v9647 = vld [vmem:[%s8 + $0x30] sm:$0xf]
      %v9648 = vld [vmem:[%s8 + $0x34] sm:$0xf]
      %v9649 = vld [vmem:[%s8 + $0x38] sm:$0xf]
      %v9650 = vld [vmem:[%s8 + $0x3c] sm:$0xf]
      %v9659 = vunpack.c.l.b16 %v9643
      %v9660 = vunpack.c.l.b16 %v9644
      %v9661 = vunpack.c.l.b16 %v9645
      %v9662 = vunpack.c.l.b16 %v9646
      %v9663 = vunpack.c.l.b16 %v9647
      %v9664 = vunpack.c.l.b16 %v9648
      %v9665 = vunpack.c.l.b16 %v9649
      %v9666 = vunpack.c.l.b16 %v9650
      %v9667 = vpack.c.b16 %v9660, %v9659
      %v9668 = vpack.c.b16 %v9662, %v9661
      %v9669 = vpack.c.b16 %v9664, %v9663
      %v9670 = vpack.c.b16 %v9666, %v9665
      %v9676 = vsel %vm1926, %v9635, 0
      %v9679 = vsel %vm1926, %v9636, 0
      %v9682 = vsel %vm1926, %v9637, 0
      %v9685 = vsel %vm1926, %v9638, 0
      %v9688 = vsel %vm1926, %v9639, 0
      %v9691 = vsel %vm1926, %v9640, 0
      %v9694 = vsel %vm1926, %v9641, 0
      %v9697 = vsel %vm1926, %v9642, 0
      %9699 = vmatprep.subr.bf16.mxu0 0
      %9700 = vmatpush1.bf16.msra.mxu0 0
      %9701 = vmatprep.subr.bf16.mxu0 0
      %9702 = vmatpush1.bf16.msra.mxu0 0
      %9703 = vmatprep.subr.bf16.mxu0 0
      %9704 = vmatpush1.bf16.msra.mxu0 0
      %9705 = vmatprep.subr.bf16.mxu0 0
      %9706 = vmatpush1.bf16.msra.mxu0 0
      %9707 = vmatprep.subr.bf16.mxu0 0
      %9708 = vmatpush1.bf16.msra.mxu0 %v9670
      %9709 = vmatprep.subr.bf16.mxu0 0
      %9710 = vmatpush1.bf16.msra.mxu0 %v9669
      %9711 = vmatprep.subr.bf16.mxu0 0
      %9712 = vmatpush1.bf16.msra.mxu0 %v9668
      %9713 = vmatprep.subr.bf16.mxu0 0
      %9714 = vmatpush1.bf16.msra.mxu0 %v9667
      %9715 = vmatprep.subr.bf16.mxu0 0
      %9716 = vmatpush2.bf16.msra.mxu0 0
      %9717 = vmatprep.subr.bf16.mxu0 0
      %9718 = vmatpush2.bf16.msra.mxu0 0
      %9719 = vmatprep.subr.bf16.mxu0 0
      %9720 = vmatpush2.bf16.msra.mxu0 0
      %9721 = vmatprep.subr.bf16.mxu0 0
      %9722 = vmatpush2.bf16.msra.mxu0 0
      %9723 = vmatprep.subr.bf16.mxu0 0
      %9724 = vmatpush2.bf16.msra.mxu0 0
      %9725 = vmatprep.subr.bf16.mxu0 0
      %9726 = vmatpush2.bf16.msra.mxu0 0
      %9727 = vmatprep.subr.bf16.mxu0 0
      %9728 = vmatpush2.bf16.msra.mxu0 0
      %9729 = vmatprep.subr.bf16.mxu0 0
      %9730 = vmatpush2.bf16.msra.mxu0 0
      %9731 = vmatprep.mubr.bf16.mxu0 0
      %9732 = vmatmul.mubr.bf16.gmra.mxu0 %v9676
      %v9733 = vpop.f32.mrf.mxu0
      %v9734 = vadd.f32 0.0, %v9733
      %v9735 = vpop.f32.mrf.mxu0
      %v9736 = vpop.f32.mrf.mxu0
      %v9737 = vadd.f32 0.0, %v9736
      %v9738 = vpop.f32.mrf.mxu0
      %9739 = vmatprep.mubr.bf16.mxu0 0
      %9740 = vmatmul.mubr.bf16.gmra.mxu0 %v9679
      %v9741 = vpop.f32.mrf.mxu0
      %v9742 = vadd.f32 0.0, %v9741
      %v9743 = vpop.f32.mrf.mxu0
      %v9744 = vpop.f32.mrf.mxu0
      %v9745 = vadd.f32 0.0, %v9744
      %v9746 = vpop.f32.mrf.mxu0
      %9747 = vmatprep.mubr.bf16.mxu0 0
      %9748 = vmatmul.mubr.bf16.gmra.mxu0 %v9682
      %v9749 = vpop.f32.mrf.mxu0
      %v9750 = vadd.f32 0.0, %v9749
      %v9751 = vpop.f32.mrf.mxu0
      %v9752 = vpop.f32.mrf.mxu0
      %v9753 = vadd.f32 0.0, %v9752
      %v9754 = vpop.f32.mrf.mxu0
      %9755 = vmatprep.mubr.bf16.mxu0 0
      %9756 = vmatmul.mubr.bf16.gmra.mxu0 %v9685
      %v9757 = vpop.f32.mrf.mxu0
      %v9758 = vadd.f32 0.0, %v9757
      %v9759 = vpop.f32.mrf.mxu0
      %v9760 = vpop.f32.mrf.mxu0
      %v9761 = vadd.f32 0.0, %v9760
      %v9762 = vpop.f32.mrf.mxu0
      %9763 = vmatprep.mubr.bf16.mxu0 0
      %9764 = vmatmul.mubr.bf16.gmra.mxu0 %v9688
      %v9765 = vpop.f32.mrf.mxu0
      %v9766 = vadd.f32 0.0, %v9765
      %v9767 = vpop.f32.mrf.mxu0
      %v9768 = vpop.f32.mrf.mxu0
      %v9769 = vadd.f32 0.0, %v9768
      %v9770 = vpop.f32.mrf.mxu0
      %9771 = vmatprep.mubr.bf16.mxu0 0
      %9772 = vmatmul.mubr.bf16.gmra.mxu0 %v9691
      %v9773 = vpop.f32.mrf.mxu0
      %v9774 = vadd.f32 0.0, %v9773
      %v9775 = vpop.f32.mrf.mxu0
      %v9776 = vpop.f32.mrf.mxu0
      %v9777 = vadd.f32 0.0, %v9776
      %v9778 = vpop.f32.mrf.mxu0
      %9779 = vmatprep.mubr.bf16.mxu0 0
      %9780 = vmatmul.mubr.bf16.gmra.mxu0 %v9694
      %v9781 = vpop.f32.mrf.mxu0
      %v9782 = vadd.f32 0.0, %v9781
      %v9783 = vpop.f32.mrf.mxu0
      %v9784 = vpop.f32.mrf.mxu0
      %v9785 = vadd.f32 0.0, %v9784
      %v9786 = vpop.f32.mrf.mxu0
      %9787 = vmatprep.mubr.bf16.mxu0 0
      %9788 = vmatmul.mubr.bf16.gmra.mxu0 %v9697
      %v9789 = vpop.f32.mrf.mxu0
      %v9790 = vadd.f32 0.0, %v9789
      %v9791 = vpop.f32.mrf.mxu0
      %v9792 = vpop.f32.mrf.mxu0
      %v9793 = vadd.f32 0.0, %v9792
      %v9794 = vpop.f32.mrf.mxu0
      %9795 = vdwg.mxu0
      %v9796 = vadd.f32 %v9603, %v9734
      %v9797 = vadd.f32 %v9604, %v9737
      %v9798 = vadd.f32 %v9605, %v9742
      %v9799 = vadd.f32 %v9606, %v9745
      %v9800 = vadd.f32 %v9607, %v9750
      %v9801 = vadd.f32 %v9608, %v9753
      %v9802 = vadd.f32 %v9609, %v9758
      %v9803 = vadd.f32 %v9610, %v9761
      %v9804 = vadd.f32 %v9611, %v9766
      %v9805 = vadd.f32 %v9612, %v9769
      %v9806 = vadd.f32 %v9613, %v9774
      %v9807 = vadd.f32 %v9614, %v9777
      %v9808 = vadd.f32 %v9615, %v9782
      %v9809 = vadd.f32 %v9616, %v9785
      %v9810 = vadd.f32 %v9617, %v9790
      %v9811 = vadd.f32 %v9618, %v9793
      %v9812 = vld [vmem:[#allocation2 + $0x2] sm:$0xff]
      %v9813 = vld [vmem:[#allocation2 + $0xa] sm:$0xff]
      %v9814 = vld [vmem:[#allocation2 + $0x1a] sm:$0xff]
      %v9815 = vld [vmem:[#allocation2 + $0x22] sm:$0xff]
      %v9816 = vld [vmem:[#allocation2 + $0x32] sm:$0xff]
      %v9817 = vld [vmem:[#allocation2 + $0x3a] sm:$0xff]
      %v9818 = vld [vmem:[#allocation2 + $0x4a] sm:$0xff]
      %v9819 = vld [vmem:[#allocation2 + $0x52] sm:$0xff]
      %v9820 = vld [vmem:[#allocation2 + $0x62] sm:$0xff]
      %v9821 = vld [vmem:[#allocation2 + $0x6a] sm:$0xff]
      %v9822 = vld [vmem:[#allocation2 + $0x7a] sm:$0xff]
      %v9823 = vld [vmem:[#allocation2 + $0x82] sm:$0xff]
      %v9824 = vld [vmem:[#allocation2 + $0x92] sm:$0xff]
      %v9825 = vld [vmem:[#allocation2 + $0x9a] sm:$0xff]
      %v9826 = vld [vmem:[#allocation2 + $0xaa] sm:$0xff]
      %v9827 = vld [vmem:[#allocation2 + $0xb2] sm:$0xff]
      %v9828 = vpack.c.bf16 %v9813, %v9812
      %v9829 = vpack.c.bf16 %v9815, %v9814
      %v9830 = vpack.c.bf16 %v9817, %v9816
      %v9831 = vpack.c.bf16 %v9819, %v9818
      %v9832 = vpack.c.bf16 %v9821, %v9820
      %v9833 = vpack.c.bf16 %v9823, %v9822
      %v9834 = vpack.c.bf16 %v9825, %v9824
      %v9835 = vpack.c.bf16 %v9827, %v9826
      %v9836 = vld [vmem:[%s8 + $0x40] sm:$0xf]
      %v9837 = vld [vmem:[%s8 + $0x44] sm:$0xf]
      %v9838 = vld [vmem:[%s8 + $0x48] sm:$0xf]
      %v9839 = vld [vmem:[%s8 + $0x4c] sm:$0xf]
      %v9840 = vld [vmem:[%s8 + $0x50] sm:$0xf]
      %v9841 = vld [vmem:[%s8 + $0x54] sm:$0xf]
      %v9842 = vld [vmem:[%s8 + $0x58] sm:$0xf]
      %v9843 = vld [vmem:[%s8 + $0x5c] sm:$0xf]
      %v9852 = vunpack.c.l.b16 %v9836
      %v9853 = vunpack.c.l.b16 %v9837
      %v9854 = vunpack.c.l.b16 %v9838
      %v9855 = vunpack.c.l.b16 %v9839
      %v9856 = vunpack.c.l.b16 %v9840
      %v9857 = vunpack.c.l.b16 %v9841
      %v9858 = vunpack.c.l.b16 %v9842
      %v9859 = vunpack.c.l.b16 %v9843
      %v9860 = vpack.c.b16 %v9853, %v9852
      %v9861 = vpack.c.b16 %v9855, %v9854
      %v9862 = vpack.c.b16 %v9857, %v9856
      %v9863 = vpack.c.b16 %v9859, %v9858
      %v9869 = vsel %vm1926, %v9828, 0
      %v9872 = vsel %vm1926, %v9829, 0
      %v9875 = vsel %vm1926, %v9830, 0
      %v9878 = vsel %vm1926, %v9831, 0
      %v9881 = vsel %vm1926, %v9832, 0
      %v9884 = vsel %vm1926, %v9833, 0
      %v9887 = vsel %vm1926, %v9834, 0
      %v9890 = vsel %vm1926, %v9835, 0
      %9892 = vmatprep.subr.bf16.mxu0 0
      %9893 = vmatpush1.bf16.msra.mxu0 0
      %9894 = vmatprep.subr.bf16.mxu0 0
      %9895 = vmatpush1.bf16.msra.mxu0 0
      %9896 = vmatprep.subr.bf16.mxu0 0
      %9897 = vmatpush1.bf16.msra.mxu0 0
      %9898 = vmatprep.subr.bf16.mxu0 0
      %9899 = vmatpush1.bf16.msra.mxu0 0
      %9900 = vmatprep.subr.bf16.mxu0 0
      %9901 = vmatpush1.bf16.msra.mxu0 %v9863
      %9902 = vmatprep.subr.bf16.mxu0 0
      %9903 = vmatpush1.bf16.msra.mxu0 %v9862
      %9904 = vmatprep.subr.bf16.mxu0 0
      %9905 = vmatpush1.bf16.msra.mxu0 %v9861
      %9906 = vmatprep.subr.bf16.mxu0 0
      %9907 = vmatpush1.bf16.msra.mxu0 %v9860
      %9908 = vmatprep.subr.bf16.mxu0 0
      %9909 = vmatpush2.bf16.msra.mxu0 0
      %9910 = vmatprep.subr.bf16.mxu0 0
      %9911 = vmatpush2.bf16.msra.mxu0 0
      %9912 = vmatprep.subr.bf16.mxu0 0
      %9913 = vmatpush2.bf16.msra.mxu0 0
      %9914 = vmatprep.subr.bf16.mxu0 0
      %9915 = vmatpush2.bf16.msra.mxu0 0
      %9916 = vmatprep.subr.bf16.mxu0 0
      %9917 = vmatpush2.bf16.msra.mxu0 0
      %9918 = vmatprep.subr.bf16.mxu0 0
      %9919 = vmatpush2.bf16.msra.mxu0 0
      %9920 = vmatprep.subr.bf16.mxu0 0
      %9921 = vmatpush2.bf16.msra.mxu0 0
      %9922 = vmatprep.subr.bf16.mxu0 0
      %9923 = vmatpush2.bf16.msra.mxu0 0
      %9924 = vmatprep.mubr.bf16.mxu0 0
      %9925 = vmatmul.mubr.bf16.gmra.mxu0 %v9869
      %v9926 = vpop.f32.mrf.mxu0
      %v9927 = vadd.f32 0.0, %v9926
      %v9928 = vpop.f32.mrf.mxu0
      %v9929 = vpop.f32.mrf.mxu0
      %v9930 = vadd.f32 0.0, %v9929
      %v9931 = vpop.f32.mrf.mxu0
      %9932 = vmatprep.mubr.bf16.mxu0 0
      %9933 = vmatmul.mubr.bf16.gmra.mxu0 %v9872
      %v9934 = vpop.f32.mrf.mxu0
      %v9935 = vadd.f32 0.0, %v9934
      %v9936 = vpop.f32.mrf.mxu0
      %v9937 = vpop.f32.mrf.mxu0
      %v9938 = vadd.f32 0.0, %v9937
      %v9939 = vpop.f32.mrf.mxu0
      %9940 = vmatprep.mubr.bf16.mxu0 0
      %9941 = vmatmul.mubr.bf16.gmra.mxu0 %v9875
      %v9942 = vpop.f32.mrf.mxu0
      %v9943 = vadd.f32 0.0, %v9942
      %v9944 = vpop.f32.mrf.mxu0
      %v9945 = vpop.f32.mrf.mxu0
      %v9946 = vadd.f32 0.0, %v9945
      %v9947 = vpop.f32.mrf.mxu0
      %9948 = vmatprep.mubr.bf16.mxu0 0
      %9949 = vmatmul.mubr.bf16.gmra.mxu0 %v9878
      %v9950 = vpop.f32.mrf.mxu0
      %v9951 = vadd.f32 0.0, %v9950
      %v9952 = vpop.f32.mrf.mxu0
      %v9953 = vpop.f32.mrf.mxu0
      %v9954 = vadd.f32 0.0, %v9953
      %v9955 = vpop.f32.mrf.mxu0
      %9956 = vmatprep.mubr.bf16.mxu0 0
      %9957 = vmatmul.mubr.bf16.gmra.mxu0 %v9881
      %v9958 = vpop.f32.mrf.mxu0
      %v9959 = vadd.f32 0.0, %v9958
      %v9960 = vpop.f32.mrf.mxu0
      %v9961 = vpop.f32.mrf.mxu0
      %v9962 = vadd.f32 0.0, %v9961
      %v9963 = vpop.f32.mrf.mxu0
      %9964 = vmatprep.mubr.bf16.mxu0 0
      %9965 = vmatmul.mubr.bf16.gmra.mxu0 %v9884
      %v9966 = vpop.f32.mrf.mxu0
      %v9967 = vadd.f32 0.0, %v9966
      %v9968 = vpop.f32.mrf.mxu0
      %v9969 = vpop.f32.mrf.mxu0
      %v9970 = vadd.f32 0.0, %v9969
      %v9971 = vpop.f32.mrf.mxu0
      %9972 = vmatprep.mubr.bf16.mxu0 0
      %9973 = vmatmul.mubr.bf16.gmra.mxu0 %v9887
      %v9974 = vpop.f32.mrf.mxu0
      %v9975 = vadd.f32 0.0, %v9974
      %v9976 = vpop.f32.mrf.mxu0
      %v9977 = vpop.f32.mrf.mxu0
      %v9978 = vadd.f32 0.0, %v9977
      %v9979 = vpop.f32.mrf.mxu0
      %9980 = vmatprep.mubr.bf16.mxu0 0
      %9981 = vmatmul.mubr.bf16.gmra.mxu0 %v9890
      %v9982 = vpop.f32.mrf.mxu0
      %v9983 = vadd.f32 0.0, %v9982
      %v9984 = vpop.f32.mrf.mxu0
      %v9985 = vpop.f32.mrf.mxu0
      %v9986 = vadd.f32 0.0, %v9985
      %v9987 = vpop.f32.mrf.mxu0
      %9988 = vdwg.mxu0
      %v9989 = vadd.f32 %v9796, %v9927
      %v9990 = vadd.f32 %v9797, %v9930
      %v9991 = vadd.f32 %v9798, %v9935
      %v9992 = vadd.f32 %v9799, %v9938
      %v9993 = vadd.f32 %v9800, %v9943
      %v9994 = vadd.f32 %v9801, %v9946
      %v9995 = vadd.f32 %v9802, %v9951
      %v9996 = vadd.f32 %v9803, %v9954
      %v9997 = vadd.f32 %v9804, %v9959
      %v9998 = vadd.f32 %v9805, %v9962
      %v9999 = vadd.f32 %v9806, %v9967
      %v10000 = vadd.f32 %v9807, %v9970
      %v10001 = vadd.f32 %v9808, %v9975
      %v10002 = vadd.f32 %v9809, %v9978
      %v10003 = vadd.f32 %v9810, %v9983
      %v10004 = vadd.f32 %v9811, %v9986
      %v10005 = vld [vmem:[%s555] sm:$0xff]
      %v10006 = vld [vmem:[%s555 + $0x8] sm:$0xff]
      %v10007 = vld [vmem:[%s555 + $0x18] sm:$0xff]
      %v10008 = vld [vmem:[%s555 + $0x20] sm:$0xff]
      %v10009 = vld [vmem:[%s555 + $0x30] sm:$0xff]
      %v10010 = vld [vmem:[%s555 + $0x38] sm:$0xff]
      %v10011 = vld [vmem:[%s555 + $0x48] sm:$0xff]
      %v10012 = vld [vmem:[%s555 + $0x50] sm:$0xff]
      %v10013 = vld [vmem:[%s555 + $0x60] sm:$0xff]
      %v10014 = vld [vmem:[%s555 + $0x68] sm:$0xff]
      %v10015 = vld [vmem:[%s555 + $0x78] sm:$0xff]
      %v10016 = vld [vmem:[%s555 + $0x80] sm:$0xff]
      %v10017 = vld [vmem:[%s555 + $0x90] sm:$0xff]
      %v10018 = vld [vmem:[%s555 + $0x98] sm:$0xff]
      %v10019 = vld [vmem:[%s555 + $0xa8] sm:$0xff]
      %v10020 = vld [vmem:[%s555 + $0xb0] sm:$0xff]
      %v10021 = vpack.c.bf16 %v10006, %v10005
      %v10022 = vpack.c.bf16 %v10008, %v10007
      %v10023 = vpack.c.bf16 %v10010, %v10009
      %v10024 = vpack.c.bf16 %v10012, %v10011
      %v10025 = vpack.c.bf16 %v10014, %v10013
      %v10026 = vpack.c.bf16 %v10016, %v10015
      %v10027 = vpack.c.bf16 %v10018, %v10017
      %v10028 = vpack.c.bf16 %v10020, %v10019
      %v10029 = vld [vmem:[%s8 + $0x60] sm:$0xf]
      %v10030 = vld [vmem:[%s8 + $0x64] sm:$0xf]
      %v10031 = vld [vmem:[%s8 + $0x68] sm:$0xf]
      %v10032 = vld [vmem:[%s8 + $0x6c] sm:$0xf]
      %v10033 = vld [vmem:[%s8 + $0x70] sm:$0xf]
      %v10034 = vld [vmem:[%s8 + $0x74] sm:$0xf]
      %v10035 = vld [vmem:[%s8 + $0x78] sm:$0xf]
      %v10036 = vld [vmem:[%s8 + $0x7c] sm:$0xf]
      %v10045 = vunpack.c.l.b16 %v10029
      %v10046 = vunpack.c.l.b16 %v10030
      %v10047 = vunpack.c.l.b16 %v10031
      %v10048 = vunpack.c.l.b16 %v10032
      %v10049 = vunpack.c.l.b16 %v10033
      %v10050 = vunpack.c.l.b16 %v10034
      %v10051 = vunpack.c.l.b16 %v10035
      %v10052 = vunpack.c.l.b16 %v10036
      %v10053 = vpack.c.b16 %v10046, %v10045
      %v10054 = vpack.c.b16 %v10048, %v10047
      %v10055 = vpack.c.b16 %v10050, %v10049
      %v10056 = vpack.c.b16 %v10052, %v10051
      %v10062 = vsel %vm1926, %v10021, 0
      %v10065 = vsel %vm1926, %v10022, 0
      %v10068 = vsel %vm1926, %v10023, 0
      %v10071 = vsel %vm1926, %v10024, 0
      %v10074 = vsel %vm1926, %v10025, 0
      %v10077 = vsel %vm1926, %v10026, 0
      %v10080 = vsel %vm1926, %v10027, 0
      %v10083 = vsel %vm1926, %v10028, 0
      %10085 = vmatprep.subr.bf16.mxu0 0
      %10086 = vmatpush1.bf16.msra.mxu0 0
      %10087 = vmatprep.subr.bf16.mxu0 0
      %10088 = vmatpush1.bf16.msra.mxu0 0
      %10089 = vmatprep.subr.bf16.mxu0 0
      %10090 = vmatpush1.bf16.msra.mxu0 0
      %10091 = vmatprep.subr.bf16.mxu0 0
      %10092 = vmatpush1.bf16.msra.mxu0 0
      %10093 = vmatprep.subr.bf16.mxu0 0
      %10094 = vmatpush1.bf16.msra.mxu0 %v10056
      %10095 = vmatprep.subr.bf16.mxu0 0
      %10096 = vmatpush1.bf16.msra.mxu0 %v10055
      %10097 = vmatprep.subr.bf16.mxu0 0
      %10098 = vmatpush1.bf16.msra.mxu0 %v10054
      %10099 = vmatprep.subr.bf16.mxu0 0
      %10100 = vmatpush1.bf16.msra.mxu0 %v10053
      %10101 = vmatprep.subr.bf16.mxu0 0
      %10102 = vmatpush2.bf16.msra.mxu0 0
      %10103 = vmatprep.subr.bf16.mxu0 0
      %10104 = vmatpush2.bf16.msra.mxu0 0
      %10105 = vmatprep.subr.bf16.mxu0 0
      %10106 = vmatpush2.bf16.msra.mxu0 0
      %10107 = vmatprep.subr.bf16.mxu0 0
      %10108 = vmatpush2.bf16.msra.mxu0 0
      %10109 = vmatprep.subr.bf16.mxu0 0
      %10110 = vmatpush2.bf16.msra.mxu0 0
      %10111 = vmatprep.subr.bf16.mxu0 0
      %10112 = vmatpush2.bf16.msra.mxu0 0
      %10113 = vmatprep.subr.bf16.mxu0 0
      %10114 = vmatpush2.bf16.msra.mxu0 0
      %10115 = vmatprep.subr.bf16.mxu0 0
      %10116 = vmatpush2.bf16.msra.mxu0 0
      %10117 = vmatprep.mubr.bf16.mxu0 0
      %10118 = vmatmul.mubr.bf16.gmra.mxu0 %v10062
      %v10119 = vpop.f32.mrf.mxu0
      %v10120 = vadd.f32 0.0, %v10119
      %v10121 = vpop.f32.mrf.mxu0
      %v10122 = vpop.f32.mrf.mxu0
      %v10123 = vadd.f32 0.0, %v10122
      %v10124 = vpop.f32.mrf.mxu0
      %10125 = vmatprep.mubr.bf16.mxu0 0
      %10126 = vmatmul.mubr.bf16.gmra.mxu0 %v10065
      %v10127 = vpop.f32.mrf.mxu0
      %v10128 = vadd.f32 0.0, %v10127
      %v10129 = vpop.f32.mrf.mxu0
      %v10130 = vpop.f32.mrf.mxu0
      %v10131 = vadd.f32 0.0, %v10130
      %v10132 = vpop.f32.mrf.mxu0
      %10133 = vmatprep.mubr.bf16.mxu0 0
      %10134 = vmatmul.mubr.bf16.gmra.mxu0 %v10068
      %v10135 = vpop.f32.mrf.mxu0
      %v10136 = vadd.f32 0.0, %v10135
      %v10137 = vpop.f32.mrf.mxu0
      %v10138 = vpop.f32.mrf.mxu0
      %v10139 = vadd.f32 0.0, %v10138
      %v10140 = vpop.f32.mrf.mxu0
      %10141 = vmatprep.mubr.bf16.mxu0 0
      %10142 = vmatmul.mubr.bf16.gmra.mxu0 %v10071
      %v10143 = vpop.f32.mrf.mxu0
      %v10144 = vadd.f32 0.0, %v10143
      %v10145 = vpop.f32.mrf.mxu0
      %v10146 = vpop.f32.mrf.mxu0
      %v10147 = vadd.f32 0.0, %v10146
      %v10148 = vpop.f32.mrf.mxu0
      %10149 = vmatprep.mubr.bf16.mxu0 0
      %10150 = vmatmul.mubr.bf16.gmra.mxu0 %v10074
      %v10151 = vpop.f32.mrf.mxu0
      %v10152 = vadd.f32 0.0, %v10151
      %v10153 = vpop.f32.mrf.mxu0
      %v10154 = vpop.f32.mrf.mxu0
      %v10155 = vadd.f32 0.0, %v10154
      %v10156 = vpop.f32.mrf.mxu0
      %10157 = vmatprep.mubr.bf16.mxu0 0
      %10158 = vmatmul.mubr.bf16.gmra.mxu0 %v10077
      %v10159 = vpop.f32.mrf.mxu0
      %v10160 = vadd.f32 0.0, %v10159
      %v10161 = vpop.f32.mrf.mxu0
      %v10162 = vpop.f32.mrf.mxu0
      %v10163 = vadd.f32 0.0, %v10162
      %v10164 = vpop.f32.mrf.mxu0
      %10165 = vmatprep.mubr.bf16.mxu0 0
      %10166 = vmatmul.mubr.bf16.gmra.mxu0 %v10080
      %v10167 = vpop.f32.mrf.mxu0
      %v10168 = vadd.f32 0.0, %v10167
      %v10169 = vpop.f32.mrf.mxu0
      %v10170 = vpop.f32.mrf.mxu0
      %v10171 = vadd.f32 0.0, %v10170
      %v10172 = vpop.f32.mrf.mxu0
      %10173 = vmatprep.mubr.bf16.mxu0 0
      %10174 = vmatmul.mubr.bf16.gmra.mxu0 %v10083
      %v10175 = vpop.f32.mrf.mxu0
      %v10176 = vadd.f32 0.0, %v10175
      %v10177 = vpop.f32.mrf.mxu0
      %v10178 = vpop.f32.mrf.mxu0
      %v10179 = vadd.f32 0.0, %v10178
      %v10180 = vpop.f32.mrf.mxu0
      %10181 = vdwg.mxu0
      %v10182 = vadd.f32 %v9989, %v10120
      %v10183 = vadd.f32 %v9990, %v10123
      %v10184 = vadd.f32 %v9991, %v10128
      %v10185 = vadd.f32 %v9992, %v10131
      %v10186 = vadd.f32 %v9993, %v10136
      %v10187 = vadd.f32 %v9994, %v10139
      %v10188 = vadd.f32 %v9995, %v10144
      %v10189 = vadd.f32 %v9996, %v10147
      %v10190 = vadd.f32 %v9997, %v10152
      %v10191 = vadd.f32 %v9998, %v10155
      %v10192 = vadd.f32 %v9999, %v10160
      %v10193 = vadd.f32 %v10000, %v10163
      %v10194 = vadd.f32 %v10001, %v10168
      %v10195 = vadd.f32 %v10002, %v10171
      %v10196 = vadd.f32 %v10003, %v10176
      %v10197 = vadd.f32 %v10004, %v10179
      %v10198 = vld [vmem:[%s555 + $0x1] sm:$0xff]
      %v10199 = vld [vmem:[%s555 + $0x9] sm:$0xff]
      %v10200 = vld [vmem:[%s555 + $0x19] sm:$0xff]
      %v10201 = vld [vmem:[%s555 + $0x21] sm:$0xff]
      %v10202 = vld [vmem:[%s555 + $0x31] sm:$0xff]
      %v10203 = vld [vmem:[%s555 + $0x39] sm:$0xff]
      %v10204 = vld [vmem:[%s555 + $0x49] sm:$0xff]
      %v10205 = vld [vmem:[%s555 + $0x51] sm:$0xff]
      %v10206 = vld [vmem:[%s555 + $0x61] sm:$0xff]
      %v10207 = vld [vmem:[%s555 + $0x69] sm:$0xff]
      %v10208 = vld [vmem:[%s555 + $0x79] sm:$0xff]
      %v10209 = vld [vmem:[%s555 + $0x81] sm:$0xff]
      %v10210 = vld [vmem:[%s555 + $0x91] sm:$0xff]
      %v10211 = vld [vmem:[%s555 + $0x99] sm:$0xff]
      %v10212 = vld [vmem:[%s555 + $0xa9] sm:$0xff]
      %v10213 = vld [vmem:[%s555 + $0xb1] sm:$0xff]
      %v10214 = vpack.c.bf16 %v10199, %v10198
      %v10215 = vpack.c.bf16 %v10201, %v10200
      %v10216 = vpack.c.bf16 %v10203, %v10202
      %v10217 = vpack.c.bf16 %v10205, %v10204
      %v10218 = vpack.c.bf16 %v10207, %v10206
      %v10219 = vpack.c.bf16 %v10209, %v10208
      %v10220 = vpack.c.bf16 %v10211, %v10210
      %v10221 = vpack.c.bf16 %v10213, %v10212
      %v10222 = vld [vmem:[%s8 + $0x80] sm:$0xf]
      %v10223 = vld [vmem:[%s8 + $0x84] sm:$0xf]
      %v10224 = vld [vmem:[%s8 + $0x88] sm:$0xf]
      %v10225 = vld [vmem:[%s8 + $0x8c] sm:$0xf]
      %v10226 = vld [vmem:[%s8 + $0x90] sm:$0xf]
      %v10227 = vld [vmem:[%s8 + $0x94] sm:$0xf]
      %v10228 = vld [vmem:[%s8 + $0x98] sm:$0xf]
      %v10229 = vld [vmem:[%s8 + $0x9c] sm:$0xf]
      %v10238 = vunpack.c.l.b16 %v10222
      %v10239 = vunpack.c.l.b16 %v10223
      %v10240 = vunpack.c.l.b16 %v10224
      %v10241 = vunpack.c.l.b16 %v10225
      %v10242 = vunpack.c.l.b16 %v10226
      %v10243 = vunpack.c.l.b16 %v10227
      %v10244 = vunpack.c.l.b16 %v10228
      %v10245 = vunpack.c.l.b16 %v10229
      %v10246 = vpack.c.b16 %v10239, %v10238
      %v10247 = vpack.c.b16 %v10241, %v10240
      %v10248 = vpack.c.b16 %v10243, %v10242
      %v10249 = vpack.c.b16 %v10245, %v10244
      %v10255 = vsel %vm1926, %v10214, 0
      %v10258 = vsel %vm1926, %v10215, 0
      %v10261 = vsel %vm1926, %v10216, 0
      %v10264 = vsel %vm1926, %v10217, 0
      %v10267 = vsel %vm1926, %v10218, 0
      %v10270 = vsel %vm1926, %v10219, 0
      %v10273 = vsel %vm1926, %v10220, 0
      %v10276 = vsel %vm1926, %v10221, 0
      %10278 = vmatprep.subr.bf16.mxu0 0
      %10279 = vmatpush1.bf16.msra.mxu0 0
      %10280 = vmatprep.subr.bf16.mxu0 0
      %10281 = vmatpush1.bf16.msra.mxu0 0
      %10282 = vmatprep.subr.bf16.mxu0 0
      %10283 = vmatpush1.bf16.msra.mxu0 0
      %10284 = vmatprep.subr.bf16.mxu0 0
      %10285 = vmatpush1.bf16.msra.mxu0 0
      %10286 = vmatprep.subr.bf16.mxu0 0
      %10287 = vmatpush1.bf16.msra.mxu0 %v10249
      %10288 = vmatprep.subr.bf16.mxu0 0
      %10289 = vmatpush1.bf16.msra.mxu0 %v10248
      %10290 = vmatprep.subr.bf16.mxu0 0
      %10291 = vmatpush1.bf16.msra.mxu0 %v10247
      %10292 = vmatprep.subr.bf16.mxu0 0
      %10293 = vmatpush1.bf16.msra.mxu0 %v10246
      %10294 = vmatprep.subr.bf16.mxu0 0
      %10295 = vmatpush2.bf16.msra.mxu0 0
      %10296 = vmatprep.subr.bf16.mxu0 0
      %10297 = vmatpush2.bf16.msra.mxu0 0
      %10298 = vmatprep.subr.bf16.mxu0 0
      %10299 = vmatpush2.bf16.msra.mxu0 0
      %10300 = vmatprep.subr.bf16.mxu0 0
      %10301 = vmatpush2.bf16.msra.mxu0 0
      %10302 = vmatprep.subr.bf16.mxu0 0
      %10303 = vmatpush2.bf16.msra.mxu0 0
      %10304 = vmatprep.subr.bf16.mxu0 0
      %10305 = vmatpush2.bf16.msra.mxu0 0
      %10306 = vmatprep.subr.bf16.mxu0 0
      %10307 = vmatpush2.bf16.msra.mxu0 0
      %10308 = vmatprep.subr.bf16.mxu0 0
      %10309 = vmatpush2.bf16.msra.mxu0 0
      %10310 = vmatprep.mubr.bf16.mxu0 0
      %10311 = vmatmul.mubr.bf16.gmra.mxu0 %v10255
      %v10312 = vpop.f32.mrf.mxu0
      %v10313 = vadd.f32 0.0, %v10312
      %v10314 = vpop.f32.mrf.mxu0
      %v10315 = vpop.f32.mrf.mxu0
      %v10316 = vadd.f32 0.0, %v10315
      %v10317 = vpop.f32.mrf.mxu0
      %10318 = vmatprep.mubr.bf16.mxu0 0
      %10319 = vmatmul.mubr.bf16.gmra.mxu0 %v10258
      %v10320 = vpop.f32.mrf.mxu0
      %v10321 = vadd.f32 0.0, %v10320
      %v10322 = vpop.f32.mrf.mxu0
      %v10323 = vpop.f32.mrf.mxu0
      %v10324 = vadd.f32 0.0, %v10323
      %v10325 = vpop.f32.mrf.mxu0
      %10326 = vmatprep.mubr.bf16.mxu0 0
      %10327 = vmatmul.mubr.bf16.gmra.mxu0 %v10261
      %v10328 = vpop.f32.mrf.mxu0
      %v10329 = vadd.f32 0.0, %v10328
      %v10330 = vpop.f32.mrf.mxu0
      %v10331 = vpop.f32.mrf.mxu0
      %v10332 = vadd.f32 0.0, %v10331
      %v10333 = vpop.f32.mrf.mxu0
      %10334 = vmatprep.mubr.bf16.mxu0 0
      %10335 = vmatmul.mubr.bf16.gmra.mxu0 %v10264
      %v10336 = vpop.f32.mrf.mxu0
      %v10337 = vadd.f32 0.0, %v10336
      %v10338 = vpop.f32.mrf.mxu0
      %v10339 = vpop.f32.mrf.mxu0
      %v10340 = vadd.f32 0.0, %v10339
      %v10341 = vpop.f32.mrf.mxu0
      %10342 = vmatprep.mubr.bf16.mxu0 0
      %10343 = vmatmul.mubr.bf16.gmra.mxu0 %v10267
      %v10344 = vpop.f32.mrf.mxu0
      %v10345 = vadd.f32 0.0, %v10344
      %v10346 = vpop.f32.mrf.mxu0
      %v10347 = vpop.f32.mrf.mxu0
      %v10348 = vadd.f32 0.0, %v10347
      %v10349 = vpop.f32.mrf.mxu0
      %10350 = vmatprep.mubr.bf16.mxu0 0
      %10351 = vmatmul.mubr.bf16.gmra.mxu0 %v10270
      %v10352 = vpop.f32.mrf.mxu0
      %v10353 = vadd.f32 0.0, %v10352
      %v10354 = vpop.f32.mrf.mxu0
      %v10355 = vpop.f32.mrf.mxu0
      %v10356 = vadd.f32 0.0, %v10355
      %v10357 = vpop.f32.mrf.mxu0
      %10358 = vmatprep.mubr.bf16.mxu0 0
      %10359 = vmatmul.mubr.bf16.gmra.mxu0 %v10273
      %v10360 = vpop.f32.mrf.mxu0
      %v10361 = vadd.f32 0.0, %v10360
      %v10362 = vpop.f32.mrf.mxu0
      %v10363 = vpop.f32.mrf.mxu0
      %v10364 = vadd.f32 0.0, %v10363
      %v10365 = vpop.f32.mrf.mxu0
      %10366 = vmatprep.mubr.bf16.mxu0 0
      %10367 = vmatmul.mubr.bf16.gmra.mxu0 %v10276
      %v10368 = vpop.f32.mrf.mxu0
      %v10369 = vadd.f32 0.0, %v10368
      %v10370 = vpop.f32.mrf.mxu0
      %v10371 = vpop.f32.mrf.mxu0
      %v10372 = vadd.f32 0.0, %v10371
      %v10373 = vpop.f32.mrf.mxu0
      %10374 = vdwg.mxu0
      %v10375 = vadd.f32 %v10182, %v10313
      %v10376 = vadd.f32 %v10183, %v10316
      %v10377 = vadd.f32 %v10184, %v10321
      %v10378 = vadd.f32 %v10185, %v10324
      %v10379 = vadd.f32 %v10186, %v10329
      %v10380 = vadd.f32 %v10187, %v10332
      %v10381 = vadd.f32 %v10188, %v10337
      %v10382 = vadd.f32 %v10189, %v10340
      %v10383 = vadd.f32 %v10190, %v10345
      %v10384 = vadd.f32 %v10191, %v10348
      %v10385 = vadd.f32 %v10192, %v10353
      %v10386 = vadd.f32 %v10193, %v10356
      %v10387 = vadd.f32 %v10194, %v10361
      %v10388 = vadd.f32 %v10195, %v10364
      %v10389 = vadd.f32 %v10196, %v10369
      %v10390 = vadd.f32 %v10197, %v10372
      %v10391 = vld [vmem:[%s555 + $0x2] sm:$0xff]
      %v10392 = vld [vmem:[%s555 + $0xa] sm:$0xff]
      %v10393 = vld [vmem:[%s555 + $0x1a] sm:$0xff]
      %v10394 = vld [vmem:[%s555 + $0x22] sm:$0xff]
      %v10395 = vld [vmem:[%s555 + $0x32] sm:$0xff]
      %v10396 = vld [vmem:[%s555 + $0x3a] sm:$0xff]
      %v10397 = vld [vmem:[%s555 + $0x4a] sm:$0xff]
      %v10398 = vld [vmem:[%s555 + $0x52] sm:$0xff]
      %v10399 = vld [vmem:[%s555 + $0x62] sm:$0xff]
      %v10400 = vld [vmem:[%s555 + $0x6a] sm:$0xff]
      %v10401 = vld [vmem:[%s555 + $0x7a] sm:$0xff]
      %v10402 = vld [vmem:[%s555 + $0x82] sm:$0xff]
      %v10403 = vld [vmem:[%s555 + $0x92] sm:$0xff]
      %v10404 = vld [vmem:[%s555 + $0x9a] sm:$0xff]
      %v10405 = vld [vmem:[%s555 + $0xaa] sm:$0xff]
      %v10406 = vld [vmem:[%s555 + $0xb2] sm:$0xff]
      %v10407 = vpack.c.bf16 %v10392, %v10391
      %v10408 = vpack.c.bf16 %v10394, %v10393
      %v10409 = vpack.c.bf16 %v10396, %v10395
      %v10410 = vpack.c.bf16 %v10398, %v10397
      %v10411 = vpack.c.bf16 %v10400, %v10399
      %v10412 = vpack.c.bf16 %v10402, %v10401
      %v10413 = vpack.c.bf16 %v10404, %v10403
      %v10414 = vpack.c.bf16 %v10406, %v10405
      %v10415 = vld [vmem:[%s8 + $0xa0] sm:$0xf]
      %v10416 = vld [vmem:[%s8 + $0xa4] sm:$0xf]
      %v10417 = vld [vmem:[%s8 + $0xa8] sm:$0xf]
      %v10418 = vld [vmem:[%s8 + $0xac] sm:$0xf]
      %v10419 = vld [vmem:[%s8 + $0xb0] sm:$0xf]
      %v10420 = vld [vmem:[%s8 + $0xb4] sm:$0xf]
      %v10421 = vld [vmem:[%s8 + $0xb8] sm:$0xf]
      %v10422 = vld [vmem:[%s8 + $0xbc] sm:$0xf]
      %v10431 = vunpack.c.l.b16 %v10415
      %v10432 = vunpack.c.l.b16 %v10416
      %v10433 = vunpack.c.l.b16 %v10417
      %v10434 = vunpack.c.l.b16 %v10418
      %v10435 = vunpack.c.l.b16 %v10419
      %v10436 = vunpack.c.l.b16 %v10420
      %v10437 = vunpack.c.l.b16 %v10421
      %v10438 = vunpack.c.l.b16 %v10422
      %v10439 = vpack.c.b16 %v10432, %v10431
      %v10440 = vpack.c.b16 %v10434, %v10433
      %v10441 = vpack.c.b16 %v10436, %v10435
      %v10442 = vpack.c.b16 %v10438, %v10437
      %v10448 = vsel %vm1926, %v10407, 0
      %v10451 = vsel %vm1926, %v10408, 0
      %v10454 = vsel %vm1926, %v10409, 0
      %v10457 = vsel %vm1926, %v10410, 0
      %v10460 = vsel %vm1926, %v10411, 0
      %v10463 = vsel %vm1926, %v10412, 0
      %v10466 = vsel %vm1926, %v10413, 0
      %v10469 = vsel %vm1926, %v10414, 0
      %10471 = vmatprep.subr.bf16.mxu0 0
      %10472 = vmatpush1.bf16.msra.mxu0 0
      %10473 = vmatprep.subr.bf16.mxu0 0
      %10474 = vmatpush1.bf16.msra.mxu0 0
      %10475 = vmatprep.subr.bf16.mxu0 0
      %10476 = vmatpush1.bf16.msra.mxu0 0
      %10477 = vmatprep.subr.bf16.mxu0 0
      %10478 = vmatpush1.bf16.msra.mxu0 0
      %10479 = vmatprep.subr.bf16.mxu0 0
      %10480 = vmatpush1.bf16.msra.mxu0 %v10442
      %10481 = vmatprep.subr.bf16.mxu0 0
      %10482 = vmatpush1.bf16.msra.mxu0 %v10441
      %10483 = vmatprep.subr.bf16.mxu0 0
      %10484 = vmatpush1.bf16.msra.mxu0 %v10440
      %10485 = vmatprep.subr.bf16.mxu0 0
      %10486 = vmatpush1.bf16.msra.mxu0 %v10439
      %10487 = vmatprep.subr.bf16.mxu0 0
      %10488 = vmatpush2.bf16.msra.mxu0 0
      %10489 = vmatprep.subr.bf16.mxu0 0
      %10490 = vmatpush2.bf16.msra.mxu0 0
      %10491 = vmatprep.subr.bf16.mxu0 0
      %10492 = vmatpush2.bf16.msra.mxu0 0
      %10493 = vmatprep.subr.bf16.mxu0 0
      %10494 = vmatpush2.bf16.msra.mxu0 0
      %10495 = vmatprep.subr.bf16.mxu0 0
      %10496 = vmatpush2.bf16.msra.mxu0 0
      %10497 = vmatprep.subr.bf16.mxu0 0
      %10498 = vmatpush2.bf16.msra.mxu0 0
      %10499 = vmatprep.subr.bf16.mxu0 0
      %10500 = vmatpush2.bf16.msra.mxu0 0
      %10501 = vmatprep.subr.bf16.mxu0 0
      %10502 = vmatpush2.bf16.msra.mxu0 0
      %10503 = vmatprep.mubr.bf16.mxu0 0
      %10504 = vmatmul.mubr.bf16.gmra.mxu0 %v10448
      %v10505 = vpop.f32.mrf.mxu0
      %v10506 = vadd.f32 0.0, %v10505
      %v10507 = vpop.f32.mrf.mxu0
      %v10508 = vpop.f32.mrf.mxu0
      %v10509 = vadd.f32 0.0, %v10508
      %v10510 = vpop.f32.mrf.mxu0
      %10511 = vmatprep.mubr.bf16.mxu0 0
      %10512 = vmatmul.mubr.bf16.gmra.mxu0 %v10451
      %v10513 = vpop.f32.mrf.mxu0
      %v10514 = vadd.f32 0.0, %v10513
      %v10515 = vpop.f32.mrf.mxu0
      %v10516 = vpop.f32.mrf.mxu0
      %v10517 = vadd.f32 0.0, %v10516
      %v10518 = vpop.f32.mrf.mxu0
      %10519 = vmatprep.mubr.bf16.mxu0 0
      %10520 = vmatmul.mubr.bf16.gmra.mxu0 %v10454
      %v10521 = vpop.f32.mrf.mxu0
      %v10522 = vadd.f32 0.0, %v10521
      %v10523 = vpop.f32.mrf.mxu0
      %v10524 = vpop.f32.mrf.mxu0
      %v10525 = vadd.f32 0.0, %v10524
      %v10526 = vpop.f32.mrf.mxu0
      %10527 = vmatprep.mubr.bf16.mxu0 0
      %10528 = vmatmul.mubr.bf16.gmra.mxu0 %v10457
      %v10529 = vpop.f32.mrf.mxu0
      %v10530 = vadd.f32 0.0, %v10529
      %v10531 = vpop.f32.mrf.mxu0
      %v10532 = vpop.f32.mrf.mxu0
      %v10533 = vadd.f32 0.0, %v10532
      %v10534 = vpop.f32.mrf.mxu0
      %10535 = vmatprep.mubr.bf16.mxu0 0
      %10536 = vmatmul.mubr.bf16.gmra.mxu0 %v10460
      %v10537 = vpop.f32.mrf.mxu0
      %v10538 = vadd.f32 0.0, %v10537
      %v10539 = vpop.f32.mrf.mxu0
      %v10540 = vpop.f32.mrf.mxu0
      %v10541 = vadd.f32 0.0, %v10540
      %v10542 = vpop.f32.mrf.mxu0
      %10543 = vmatprep.mubr.bf16.mxu0 0
      %10544 = vmatmul.mubr.bf16.gmra.mxu0 %v10463
      %v10545 = vpop.f32.mrf.mxu0
      %v10546 = vadd.f32 0.0, %v10545
      %v10547 = vpop.f32.mrf.mxu0
      %v10548 = vpop.f32.mrf.mxu0
      %v10549 = vadd.f32 0.0, %v10548
      %v10550 = vpop.f32.mrf.mxu0
      %10551 = vmatprep.mubr.bf16.mxu0 0
      %10552 = vmatmul.mubr.bf16.gmra.mxu0 %v10466
      %v10553 = vpop.f32.mrf.mxu0
      %v10554 = vadd.f32 0.0, %v10553
      %v10555 = vpop.f32.mrf.mxu0
      %v10556 = vpop.f32.mrf.mxu0
      %v10557 = vadd.f32 0.0, %v10556
      %v10558 = vpop.f32.mrf.mxu0
      %10559 = vmatprep.mubr.bf16.mxu0 0
      %10560 = vmatmul.mubr.bf16.gmra.mxu0 %v10469
      %v10561 = vpop.f32.mrf.mxu0
      %v10562 = vadd.f32 0.0, %v10561
      %v10563 = vpop.f32.mrf.mxu0
      %v10564 = vpop.f32.mrf.mxu0
      %v10565 = vadd.f32 0.0, %v10564
      %v10566 = vpop.f32.mrf.mxu0
      %10567 = vdwg.mxu0
      %v10568 = vadd.f32 %v10375, %v10506
      %v10569 = vadd.f32 %v10376, %v10509
      %v10570 = vadd.f32 %v10377, %v10514
      %v10571 = vadd.f32 %v10378, %v10517
      %v10572 = vadd.f32 %v10379, %v10522
      %v10573 = vadd.f32 %v10380, %v10525
      %v10574 = vadd.f32 %v10381, %v10530
      %v10575 = vadd.f32 %v10382, %v10533
      %v10576 = vadd.f32 %v10383, %v10538
      %v10577 = vadd.f32 %v10384, %v10541
      %v10578 = vadd.f32 %v10385, %v10546
      %v10579 = vadd.f32 %v10386, %v10549
      %v10580 = vadd.f32 %v10387, %v10554
      %v10581 = vadd.f32 %v10388, %v10557
      %v10582 = vadd.f32 %v10389, %v10562
      %v10583 = vadd.f32 %v10390, %v10565
      %v10584 = vld [vmem:[%s628] sm:$0xff]
      %v10585 = vld [vmem:[%s628 + $0x8] sm:$0xff]
      %v10586 = vld [vmem:[%s628 + $0x18] sm:$0xff]
      %v10587 = vld [vmem:[%s628 + $0x20] sm:$0xff]
      %v10588 = vld [vmem:[%s628 + $0x30] sm:$0xff]
      %v10589 = vld [vmem:[%s628 + $0x38] sm:$0xff]
      %v10590 = vld [vmem:[%s628 + $0x48] sm:$0xff]
      %v10591 = vld [vmem:[%s628 + $0x50] sm:$0xff]
      %v10592 = vld [vmem:[%s628 + $0x60] sm:$0xff]
      %v10593 = vld [vmem:[%s628 + $0x68] sm:$0xff]
      %v10594 = vld [vmem:[%s628 + $0x78] sm:$0xff]
      %v10595 = vld [vmem:[%s628 + $0x80] sm:$0xff]
      %v10596 = vld [vmem:[%s628 + $0x90] sm:$0xff]
      %v10597 = vld [vmem:[%s628 + $0x98] sm:$0xff]
      %v10598 = vld [vmem:[%s628 + $0xa8] sm:$0xff]
      %v10599 = vld [vmem:[%s628 + $0xb0] sm:$0xff]
      %v10600 = vpack.c.bf16 %v10585, %v10584
      %v10601 = vpack.c.bf16 %v10587, %v10586
      %v10602 = vpack.c.bf16 %v10589, %v10588
      %v10603 = vpack.c.bf16 %v10591, %v10590
      %v10604 = vpack.c.bf16 %v10593, %v10592
      %v10605 = vpack.c.bf16 %v10595, %v10594
      %v10606 = vpack.c.bf16 %v10597, %v10596
      %v10607 = vpack.c.bf16 %v10599, %v10598
      %v10608 = vld [vmem:[%s8 + $0xc0] sm:$0xf]
      %v10609 = vld [vmem:[%s8 + $0xc4] sm:$0xf]
      %v10610 = vld [vmem:[%s8 + $0xc8] sm:$0xf]
      %v10611 = vld [vmem:[%s8 + $0xcc] sm:$0xf]
      %v10612 = vld [vmem:[%s8 + $0xd0] sm:$0xf]
      %v10613 = vld [vmem:[%s8 + $0xd4] sm:$0xf]
      %v10614 = vld [vmem:[%s8 + $0xd8] sm:$0xf]
      %v10615 = vld [vmem:[%s8 + $0xdc] sm:$0xf]
      %v10624 = vunpack.c.l.b16 %v10608
      %v10625 = vunpack.c.l.b16 %v10609
      %v10626 = vunpack.c.l.b16 %v10610
      %v10627 = vunpack.c.l.b16 %v10611
      %v10628 = vunpack.c.l.b16 %v10612
      %v10629 = vunpack.c.l.b16 %v10613
      %v10630 = vunpack.c.l.b16 %v10614
      %v10631 = vunpack.c.l.b16 %v10615
      %v10632 = vpack.c.b16 %v10625, %v10624
      %v10633 = vpack.c.b16 %v10627, %v10626
      %v10634 = vpack.c.b16 %v10629, %v10628
      %v10635 = vpack.c.b16 %v10631, %v10630
      %v10641 = vsel %vm1926, %v10600, 0
      %v10644 = vsel %vm1926, %v10601, 0
      %v10647 = vsel %vm1926, %v10602, 0
      %v10650 = vsel %vm1926, %v10603, 0
      %v10653 = vsel %vm1926, %v10604, 0
      %v10656 = vsel %vm1926, %v10605, 0
      %v10659 = vsel %vm1926, %v10606, 0
      %v10662 = vsel %vm1926, %v10607, 0
      %10664 = vmatprep.subr.bf16.mxu0 0
      %10665 = vmatpush1.bf16.msra.mxu0 0
      %10666 = vmatprep.subr.bf16.mxu0 0
      %10667 = vmatpush1.bf16.msra.mxu0 0
      %10668 = vmatprep.subr.bf16.mxu0 0
      %10669 = vmatpush1.bf16.msra.mxu0 0
      %10670 = vmatprep.subr.bf16.mxu0 0
      %10671 = vmatpush1.bf16.msra.mxu0 0
      %10672 = vmatprep.subr.bf16.mxu0 0
      %10673 = vmatpush1.bf16.msra.mxu0 %v10635
      %10674 = vmatprep.subr.bf16.mxu0 0
      %10675 = vmatpush1.bf16.msra.mxu0 %v10634
      %10676 = vmatprep.subr.bf16.mxu0 0
      %10677 = vmatpush1.bf16.msra.mxu0 %v10633
      %10678 = vmatprep.subr.bf16.mxu0 0
      %10679 = vmatpush1.bf16.msra.mxu0 %v10632
      %10680 = vmatprep.subr.bf16.mxu0 0
      %10681 = vmatpush2.bf16.msra.mxu0 0
      %10682 = vmatprep.subr.bf16.mxu0 0
      %10683 = vmatpush2.bf16.msra.mxu0 0
      %10684 = vmatprep.subr.bf16.mxu0 0
      %10685 = vmatpush2.bf16.msra.mxu0 0
      %10686 = vmatprep.subr.bf16.mxu0 0
      %10687 = vmatpush2.bf16.msra.mxu0 0
      %10688 = vmatprep.subr.bf16.mxu0 0
      %10689 = vmatpush2.bf16.msra.mxu0 0
      %10690 = vmatprep.subr.bf16.mxu0 0
      %10691 = vmatpush2.bf16.msra.mxu0 0
      %10692 = vmatprep.subr.bf16.mxu0 0
      %10693 = vmatpush2.bf16.msra.mxu0 0
      %10694 = vmatprep.subr.bf16.mxu0 0
      %10695 = vmatpush2.bf16.msra.mxu0 0
      %10696 = vmatprep.mubr.bf16.mxu0 0
      %10697 = vmatmul.mubr.bf16.gmra.mxu0 %v10641
      %v10698 = vpop.f32.mrf.mxu0
      %v10699 = vadd.f32 0.0, %v10698
      %v10700 = vpop.f32.mrf.mxu0
      %v10701 = vpop.f32.mrf.mxu0
      %v10702 = vadd.f32 0.0, %v10701
      %v10703 = vpop.f32.mrf.mxu0
      %10704 = vmatprep.mubr.bf16.mxu0 0
      %10705 = vmatmul.mubr.bf16.gmra.mxu0 %v10644
      %v10706 = vpop.f32.mrf.mxu0
      %v10707 = vadd.f32 0.0, %v10706
      %v10708 = vpop.f32.mrf.mxu0
      %v10709 = vpop.f32.mrf.mxu0
      %v10710 = vadd.f32 0.0, %v10709
      %v10711 = vpop.f32.mrf.mxu0
      %10712 = vmatprep.mubr.bf16.mxu0 0
      %10713 = vmatmul.mubr.bf16.gmra.mxu0 %v10647
      %v10714 = vpop.f32.mrf.mxu0
      %v10715 = vadd.f32 0.0, %v10714
      %v10716 = vpop.f32.mrf.mxu0
      %v10717 = vpop.f32.mrf.mxu0
      %v10718 = vadd.f32 0.0, %v10717
      %v10719 = vpop.f32.mrf.mxu0
      %10720 = vmatprep.mubr.bf16.mxu0 0
      %10721 = vmatmul.mubr.bf16.gmra.mxu0 %v10650
      %v10722 = vpop.f32.mrf.mxu0
      %v10723 = vadd.f32 0.0, %v10722
      %v10724 = vpop.f32.mrf.mxu0
      %v10725 = vpop.f32.mrf.mxu0
      %v10726 = vadd.f32 0.0, %v10725
      %v10727 = vpop.f32.mrf.mxu0
      %10728 = vmatprep.mubr.bf16.mxu0 0
      %10729 = vmatmul.mubr.bf16.gmra.mxu0 %v10653
      %v10730 = vpop.f32.mrf.mxu0
      %v10731 = vadd.f32 0.0, %v10730
      %v10732 = vpop.f32.mrf.mxu0
      %v10733 = vpop.f32.mrf.mxu0
      %v10734 = vadd.f32 0.0, %v10733
      %v10735 = vpop.f32.mrf.mxu0
      %10736 = vmatprep.mubr.bf16.mxu0 0
      %10737 = vmatmul.mubr.bf16.gmra.mxu0 %v10656
      %v10738 = vpop.f32.mrf.mxu0
      %v10739 = vadd.f32 0.0, %v10738
      %v10740 = vpop.f32.mrf.mxu0
      %v10741 = vpop.f32.mrf.mxu0
      %v10742 = vadd.f32 0.0, %v10741
      %v10743 = vpop.f32.mrf.mxu0
      %10744 = vmatprep.mubr.bf16.mxu0 0
      %10745 = vmatmul.mubr.bf16.gmra.mxu0 %v10659
      %v10746 = vpop.f32.mrf.mxu0
      %v10747 = vadd.f32 0.0, %v10746
      %v10748 = vpop.f32.mrf.mxu0
      %v10749 = vpop.f32.mrf.mxu0
      %v10750 = vadd.f32 0.0, %v10749
      %v10751 = vpop.f32.mrf.mxu0
      %10752 = vmatprep.mubr.bf16.mxu0 0
      %10753 = vmatmul.mubr.bf16.gmra.mxu0 %v10662
      %v10754 = vpop.f32.mrf.mxu0
      %v10755 = vadd.f32 0.0, %v10754
      %v10756 = vpop.f32.mrf.mxu0
      %v10757 = vpop.f32.mrf.mxu0
      %v10758 = vadd.f32 0.0, %v10757
      %v10759 = vpop.f32.mrf.mxu0
      %10760 = vdwg.mxu0
      %v10761 = vadd.f32 %v10568, %v10699
      %v10762 = vadd.f32 %v10569, %v10702
      %v10763 = vadd.f32 %v10570, %v10707
      %v10764 = vadd.f32 %v10571, %v10710
      %v10765 = vadd.f32 %v10572, %v10715
      %v10766 = vadd.f32 %v10573, %v10718
      %v10767 = vadd.f32 %v10574, %v10723
      %v10768 = vadd.f32 %v10575, %v10726
      %v10769 = vadd.f32 %v10576, %v10731
      %v10770 = vadd.f32 %v10577, %v10734
      %v10771 = vadd.f32 %v10578, %v10739
      %v10772 = vadd.f32 %v10579, %v10742
      %v10773 = vadd.f32 %v10580, %v10747
      %v10774 = vadd.f32 %v10581, %v10750
      %v10775 = vadd.f32 %v10582, %v10755
      %v10776 = vadd.f32 %v10583, %v10758
      %v10777 = vld [vmem:[%s628 + $0x1] sm:$0xff]
      %v10778 = vld [vmem:[%s628 + $0x9] sm:$0xff]
      %v10779 = vld [vmem:[%s628 + $0x19] sm:$0xff]
      %v10780 = vld [vmem:[%s628 + $0x21] sm:$0xff]
      %v10781 = vld [vmem:[%s628 + $0x31] sm:$0xff]
      %v10782 = vld [vmem:[%s628 + $0x39] sm:$0xff]
      %v10783 = vld [vmem:[%s628 + $0x49] sm:$0xff]
      %v10784 = vld [vmem:[%s628 + $0x51] sm:$0xff]
      %v10785 = vld [vmem:[%s628 + $0x61] sm:$0xff]
      %v10786 = vld [vmem:[%s628 + $0x69] sm:$0xff]
      %v10787 = vld [vmem:[%s628 + $0x79] sm:$0xff]
      %v10788 = vld [vmem:[%s628 + $0x81] sm:$0xff]
      %v10789 = vld [vmem:[%s628 + $0x91] sm:$0xff]
      %v10790 = vld [vmem:[%s628 + $0x99] sm:$0xff]
      %v10791 = vld [vmem:[%s628 + $0xa9] sm:$0xff]
      %v10792 = vld [vmem:[%s628 + $0xb1] sm:$0xff]
      %v10793 = vpack.c.bf16 %v10778, %v10777
      %v10794 = vpack.c.bf16 %v10780, %v10779
      %v10795 = vpack.c.bf16 %v10782, %v10781
      %v10796 = vpack.c.bf16 %v10784, %v10783
      %v10797 = vpack.c.bf16 %v10786, %v10785
      %v10798 = vpack.c.bf16 %v10788, %v10787
      %v10799 = vpack.c.bf16 %v10790, %v10789
      %v10800 = vpack.c.bf16 %v10792, %v10791
      %v10801 = vld [vmem:[%s8 + $0xe0] sm:$0xf]
      %v10802 = vld [vmem:[%s8 + $0xe4] sm:$0xf]
      %v10803 = vld [vmem:[%s8 + $0xe8] sm:$0xf]
      %v10804 = vld [vmem:[%s8 + $0xec] sm:$0xf]
      %v10805 = vld [vmem:[%s8 + $0xf0] sm:$0xf]
      %v10806 = vld [vmem:[%s8 + $0xf4] sm:$0xf]
      %v10807 = vld [vmem:[%s8 + $0xf8] sm:$0xf]
      %v10808 = vld [vmem:[%s8 + $0xfc] sm:$0xf]
      %v10817 = vunpack.c.l.b16 %v10801
      %v10818 = vunpack.c.l.b16 %v10802
      %v10819 = vunpack.c.l.b16 %v10803
      %v10820 = vunpack.c.l.b16 %v10804
      %v10821 = vunpack.c.l.b16 %v10805
      %v10822 = vunpack.c.l.b16 %v10806
      %v10823 = vunpack.c.l.b16 %v10807
      %v10824 = vunpack.c.l.b16 %v10808
      %v10825 = vpack.c.b16 %v10818, %v10817
      %v10826 = vpack.c.b16 %v10820, %v10819
      %v10827 = vpack.c.b16 %v10822, %v10821
      %v10828 = vpack.c.b16 %v10824, %v10823
      %v10834 = vsel %vm1926, %v10793, 0
      %v10837 = vsel %vm1926, %v10794, 0
      %v10840 = vsel %vm1926, %v10795, 0
      %v10843 = vsel %vm1926, %v10796, 0
      %v10846 = vsel %vm1926, %v10797, 0
      %v10849 = vsel %vm1926, %v10798, 0
      %v10852 = vsel %vm1926, %v10799, 0
      %v10855 = vsel %vm1926, %v10800, 0
      %10857 = vmatprep.subr.bf16.mxu0 0
      %10858 = vmatpush1.bf16.msra.mxu0 0
      %10859 = vmatprep.subr.bf16.mxu0 0
      %10860 = vmatpush1.bf16.msra.mxu0 0
      %10861 = vmatprep.subr.bf16.mxu0 0
      %10862 = vmatpush1.bf16.msra.mxu0 0
      %10863 = vmatprep.subr.bf16.mxu0 0
      %10864 = vmatpush1.bf16.msra.mxu0 0
      %10865 = vmatprep.subr.bf16.mxu0 0
      %10866 = vmatpush1.bf16.msra.mxu0 %v10828
      %10867 = vmatprep.subr.bf16.mxu0 0
      %10868 = vmatpush1.bf16.msra.mxu0 %v10827
      %10869 = vmatprep.subr.bf16.mxu0 0
      %10870 = vmatpush1.bf16.msra.mxu0 %v10826
      %10871 = vmatprep.subr.bf16.mxu0 0
      %10872 = vmatpush1.bf16.msra.mxu0 %v10825
      %10873 = vmatprep.subr.bf16.mxu0 0
      %10874 = vmatpush2.bf16.msra.mxu0 0
      %10875 = vmatprep.subr.bf16.mxu0 0
      %10876 = vmatpush2.bf16.msra.mxu0 0
      %10877 = vmatprep.subr.bf16.mxu0 0
      %10878 = vmatpush2.bf16.msra.mxu0 0
      %10879 = vmatprep.subr.bf16.mxu0 0
      %10880 = vmatpush2.bf16.msra.mxu0 0
      %10881 = vmatprep.subr.bf16.mxu0 0
      %10882 = vmatpush2.bf16.msra.mxu0 0
      %10883 = vmatprep.subr.bf16.mxu0 0
      %10884 = vmatpush2.bf16.msra.mxu0 0
      %10885 = vmatprep.subr.bf16.mxu0 0
      %10886 = vmatpush2.bf16.msra.mxu0 0
      %10887 = vmatprep.subr.bf16.mxu0 0
      %10888 = vmatpush2.bf16.msra.mxu0 0
      %10889 = vmatprep.mubr.bf16.mxu0 0
      %10890 = vmatmul.mubr.bf16.gmra.mxu0 %v10834
      %v10891 = vpop.f32.mrf.mxu0
      %v10892 = vadd.f32 0.0, %v10891
      %v10893 = vpop.f32.mrf.mxu0
      %v10894 = vpop.f32.mrf.mxu0
      %v10895 = vadd.f32 0.0, %v10894
      %v10896 = vpop.f32.mrf.mxu0
      %10897 = vmatprep.mubr.bf16.mxu0 0
      %10898 = vmatmul.mubr.bf16.gmra.mxu0 %v10837
      %v10899 = vpop.f32.mrf.mxu0
      %v10900 = vadd.f32 0.0, %v10899
      %v10901 = vpop.f32.mrf.mxu0
      %v10902 = vpop.f32.mrf.mxu0
      %v10903 = vadd.f32 0.0, %v10902
      %v10904 = vpop.f32.mrf.mxu0
      %10905 = vmatprep.mubr.bf16.mxu0 0
      %10906 = vmatmul.mubr.bf16.gmra.mxu0 %v10840
      %v10907 = vpop.f32.mrf.mxu0
      %v10908 = vadd.f32 0.0, %v10907
      %v10909 = vpop.f32.mrf.mxu0
      %v10910 = vpop.f32.mrf.mxu0
      %v10911 = vadd.f32 0.0, %v10910
      %v10912 = vpop.f32.mrf.mxu0
      %10913 = vmatprep.mubr.bf16.mxu0 0
      %10914 = vmatmul.mubr.bf16.gmra.mxu0 %v10843
      %v10915 = vpop.f32.mrf.mxu0
      %v10916 = vadd.f32 0.0, %v10915
      %v10917 = vpop.f32.mrf.mxu0
      %v10918 = vpop.f32.mrf.mxu0
      %v10919 = vadd.f32 0.0, %v10918
      %v10920 = vpop.f32.mrf.mxu0
      %10921 = vmatprep.mubr.bf16.mxu0 0
      %10922 = vmatmul.mubr.bf16.gmra.mxu0 %v10846
      %v10923 = vpop.f32.mrf.mxu0
      %v10924 = vadd.f32 0.0, %v10923
      %v10925 = vpop.f32.mrf.mxu0
      %v10926 = vpop.f32.mrf.mxu0
      %v10927 = vadd.f32 0.0, %v10926
      %v10928 = vpop.f32.mrf.mxu0
      %10929 = vmatprep.mubr.bf16.mxu0 0
      %10930 = vmatmul.mubr.bf16.gmra.mxu0 %v10849
      %v10931 = vpop.f32.mrf.mxu0
      %v10932 = vadd.f32 0.0, %v10931
      %v10933 = vpop.f32.mrf.mxu0
      %v10934 = vpop.f32.mrf.mxu0
      %v10935 = vadd.f32 0.0, %v10934
      %v10936 = vpop.f32.mrf.mxu0
      %10937 = vmatprep.mubr.bf16.mxu0 0
      %10938 = vmatmul.mubr.bf16.gmra.mxu0 %v10852
      %v10939 = vpop.f32.mrf.mxu0
      %v10940 = vadd.f32 0.0, %v10939
      %v10941 = vpop.f32.mrf.mxu0
      %v10942 = vpop.f32.mrf.mxu0
      %v10943 = vadd.f32 0.0, %v10942
      %v10944 = vpop.f32.mrf.mxu0
      %10945 = vmatprep.mubr.bf16.mxu0 0
      %10946 = vmatmul.mubr.bf16.gmra.mxu0 %v10855
      %v10947 = vpop.f32.mrf.mxu0
      %v10948 = vadd.f32 0.0, %v10947
      %v10949 = vpop.f32.mrf.mxu0
      %v10950 = vpop.f32.mrf.mxu0
      %v10951 = vadd.f32 0.0, %v10950
      %v10952 = vpop.f32.mrf.mxu0
      %10953 = vdwg.mxu0
      %v10954 = vadd.f32 %v10761, %v10892
      %v10955 = vadd.f32 %v10762, %v10895
      %v10956 = vadd.f32 %v10763, %v10900
      %v10957 = vadd.f32 %v10764, %v10903
      %v10958 = vadd.f32 %v10765, %v10908
      %v10959 = vadd.f32 %v10766, %v10911
      %v10960 = vadd.f32 %v10767, %v10916
      %v10961 = vadd.f32 %v10768, %v10919
      %v10962 = vadd.f32 %v10769, %v10924
      %v10963 = vadd.f32 %v10770, %v10927
      %v10964 = vadd.f32 %v10771, %v10932
      %v10965 = vadd.f32 %v10772, %v10935
      %v10966 = vadd.f32 %v10773, %v10940
      %v10967 = vadd.f32 %v10774, %v10943
      %v10968 = vadd.f32 %v10775, %v10948
      %v10969 = vadd.f32 %v10776, %v10951
      %v10970 = vld [vmem:[%s628 + $0x2] sm:$0xff]
      %v10971 = vld [vmem:[%s628 + $0xa] sm:$0xff]
      %v10972 = vld [vmem:[%s628 + $0x1a] sm:$0xff]
      %v10973 = vld [vmem:[%s628 + $0x22] sm:$0xff]
      %v10974 = vld [vmem:[%s628 + $0x32] sm:$0xff]
      %v10975 = vld [vmem:[%s628 + $0x3a] sm:$0xff]
      %v10976 = vld [vmem:[%s628 + $0x4a] sm:$0xff]
      %v10977 = vld [vmem:[%s628 + $0x52] sm:$0xff]
      %v10978 = vld [vmem:[%s628 + $0x62] sm:$0xff]
      %v10979 = vld [vmem:[%s628 + $0x6a] sm:$0xff]
      %v10980 = vld [vmem:[%s628 + $0x7a] sm:$0xff]
      %v10981 = vld [vmem:[%s628 + $0x82] sm:$0xff]
      %v10982 = vld [vmem:[%s628 + $0x92] sm:$0xff]
      %v10983 = vld [vmem:[%s628 + $0x9a] sm:$0xff]
      %v10984 = vld [vmem:[%s628 + $0xaa] sm:$0xff]
      %v10985 = vld [vmem:[%s628 + $0xb2] sm:$0xff]
      %v10986 = vpack.c.bf16 %v10971, %v10970
      %v10987 = vpack.c.bf16 %v10973, %v10972
      %v10988 = vpack.c.bf16 %v10975, %v10974
      %v10989 = vpack.c.bf16 %v10977, %v10976
      %v10990 = vpack.c.bf16 %v10979, %v10978
      %v10991 = vpack.c.bf16 %v10981, %v10980
      %v10992 = vpack.c.bf16 %v10983, %v10982
      %v10993 = vpack.c.bf16 %v10985, %v10984
      %v10994 = vld [vmem:[%s8 + $0x100] sm:$0xf]
      %v10995 = vld [vmem:[%s8 + $0x104] sm:$0xf]
      %v10996 = vld [vmem:[%s8 + $0x108] sm:$0xf]
      %v10997 = vld [vmem:[%s8 + $0x10c] sm:$0xf]
      %v10998 = vld [vmem:[%s8 + $0x110] sm:$0xf]
      %v10999 = vld [vmem:[%s8 + $0x114] sm:$0xf]
      %v11000 = vld [vmem:[%s8 + $0x118] sm:$0xf]
      %v11001 = vld [vmem:[%s8 + $0x11c] sm:$0xf]
      %v11010 = vunpack.c.l.b16 %v10994
      %v11011 = vunpack.c.l.b16 %v10995
      %v11012 = vunpack.c.l.b16 %v10996
      %v11013 = vunpack.c.l.b16 %v10997
      %v11014 = vunpack.c.l.b16 %v10998
      %v11015 = vunpack.c.l.b16 %v10999
      %v11016 = vunpack.c.l.b16 %v11000
      %v11017 = vunpack.c.l.b16 %v11001
      %v11018 = vpack.c.b16 %v11011, %v11010
      %v11019 = vpack.c.b16 %v11013, %v11012
      %v11020 = vpack.c.b16 %v11015, %v11014
      %v11021 = vpack.c.b16 %v11017, %v11016
      %v11027 = vsel %vm1926, %v10986, 0
      %v11030 = vsel %vm1926, %v10987, 0
      %v11033 = vsel %vm1926, %v10988, 0
      %v11036 = vsel %vm1926, %v10989, 0
      %v11039 = vsel %vm1926, %v10990, 0
      %v11042 = vsel %vm1926, %v10991, 0
      %v11045 = vsel %vm1926, %v10992, 0
      %v11048 = vsel %vm1926, %v10993, 0
      %11050 = vmatprep.subr.bf16.mxu0 0
      %11051 = vmatpush1.bf16.msra.mxu0 0
      %11052 = vmatprep.subr.bf16.mxu0 0
      %11053 = vmatpush1.bf16.msra.mxu0 0
      %11054 = vmatprep.subr.bf16.mxu0 0
      %11055 = vmatpush1.bf16.msra.mxu0 0
      %11056 = vmatprep.subr.bf16.mxu0 0
      %11057 = vmatpush1.bf16.msra.mxu0 0
      %11058 = vmatprep.subr.bf16.mxu0 0
      %11059 = vmatpush1.bf16.msra.mxu0 %v11021
      %11060 = vmatprep.subr.bf16.mxu0 0
      %11061 = vmatpush1.bf16.msra.mxu0 %v11020
      %11062 = vmatprep.subr.bf16.mxu0 0
      %11063 = vmatpush1.bf16.msra.mxu0 %v11019
      %11064 = vmatprep.subr.bf16.mxu0 0
      %11065 = vmatpush1.bf16.msra.mxu0 %v11018
      %11066 = vmatprep.subr.bf16.mxu0 0
      %11067 = vmatpush2.bf16.msra.mxu0 0
      %11068 = vmatprep.subr.bf16.mxu0 0
      %11069 = vmatpush2.bf16.msra.mxu0 0
      %11070 = vmatprep.subr.bf16.mxu0 0
      %11071 = vmatpush2.bf16.msra.mxu0 0
      %11072 = vmatprep.subr.bf16.mxu0 0
      %11073 = vmatpush2.bf16.msra.mxu0 0
      %11074 = vmatprep.subr.bf16.mxu0 0
      %11075 = vmatpush2.bf16.msra.mxu0 0
      %11076 = vmatprep.subr.bf16.mxu0 0
      %11077 = vmatpush2.bf16.msra.mxu0 0
      %11078 = vmatprep.subr.bf16.mxu0 0
      %11079 = vmatpush2.bf16.msra.mxu0 0
      %11080 = vmatprep.subr.bf16.mxu0 0
      %11081 = vmatpush2.bf16.msra.mxu0 0
      %11082 = vmatprep.mubr.bf16.mxu0 0
      %11083 = vmatmul.mubr.bf16.gmra.mxu0 %v11027
      %v11084 = vpop.f32.mrf.mxu0
      %v11085 = vadd.f32 0.0, %v11084
      %v11086 = vpop.f32.mrf.mxu0
      %v11087 = vpop.f32.mrf.mxu0
      %v11088 = vadd.f32 0.0, %v11087
      %v11089 = vpop.f32.mrf.mxu0
      %11090 = vmatprep.mubr.bf16.mxu0 0
      %11091 = vmatmul.mubr.bf16.gmra.mxu0 %v11030
      %v11092 = vpop.f32.mrf.mxu0
      %v11093 = vadd.f32 0.0, %v11092
      %v11094 = vpop.f32.mrf.mxu0
      %v11095 = vpop.f32.mrf.mxu0
      %v11096 = vadd.f32 0.0, %v11095
      %v11097 = vpop.f32.mrf.mxu0
      %11098 = vmatprep.mubr.bf16.mxu0 0
      %11099 = vmatmul.mubr.bf16.gmra.mxu0 %v11033
      %v11100 = vpop.f32.mrf.mxu0
      %v11101 = vadd.f32 0.0, %v11100
      %v11102 = vpop.f32.mrf.mxu0
      %v11103 = vpop.f32.mrf.mxu0
      %v11104 = vadd.f32 0.0, %v11103
      %v11105 = vpop.f32.mrf.mxu0
      %11106 = vmatprep.mubr.bf16.mxu0 0
      %11107 = vmatmul.mubr.bf16.gmra.mxu0 %v11036
      %v11108 = vpop.f32.mrf.mxu0
      %v11109 = vadd.f32 0.0, %v11108
      %v11110 = vpop.f32.mrf.mxu0
      %v11111 = vpop.f32.mrf.mxu0
      %v11112 = vadd.f32 0.0, %v11111
      %v11113 = vpop.f32.mrf.mxu0
      %11114 = vmatprep.mubr.bf16.mxu0 0
      %11115 = vmatmul.mubr.bf16.gmra.mxu0 %v11039
      %v11116 = vpop.f32.mrf.mxu0
      %v11117 = vadd.f32 0.0, %v11116
      %v11118 = vpop.f32.mrf.mxu0
      %v11119 = vpop.f32.mrf.mxu0
      %v11120 = vadd.f32 0.0, %v11119
      %v11121 = vpop.f32.mrf.mxu0
      %11122 = vmatprep.mubr.bf16.mxu0 0
      %11123 = vmatmul.mubr.bf16.gmra.mxu0 %v11042
      %v11124 = vpop.f32.mrf.mxu0
      %v11125 = vadd.f32 0.0, %v11124
      %v11126 = vpop.f32.mrf.mxu0
      %v11127 = vpop.f32.mrf.mxu0
      %v11128 = vadd.f32 0.0, %v11127
      %v11129 = vpop.f32.mrf.mxu0
      %11130 = vmatprep.mubr.bf16.mxu0 0
      %11131 = vmatmul.mubr.bf16.gmra.mxu0 %v11045
      %v11132 = vpop.f32.mrf.mxu0
      %v11133 = vadd.f32 0.0, %v11132
      %v11134 = vpop.f32.mrf.mxu0
      %v11135 = vpop.f32.mrf.mxu0
      %v11136 = vadd.f32 0.0, %v11135
      %v11137 = vpop.f32.mrf.mxu0
      %11138 = vmatprep.mubr.bf16.mxu0 0
      %11139 = vmatmul.mubr.bf16.gmra.mxu0 %v11048
      %v11140 = vpop.f32.mrf.mxu0
      %v11141 = vadd.f32 0.0, %v11140
      %v11142 = vpop.f32.mrf.mxu0
      %v11143 = vpop.f32.mrf.mxu0
      %v11144 = vadd.f32 0.0, %v11143
      %v11145 = vpop.f32.mrf.mxu0
      %11146 = vdwg.mxu0
      %v11147 = vadd.f32 %v10954, %v11085
      %v11148 = vadd.f32 %v10955, %v11088
      %v11149 = vadd.f32 %v10956, %v11093
      %v11150 = vadd.f32 %v10957, %v11096
      %v11151 = vadd.f32 %v10958, %v11101
      %v11152 = vadd.f32 %v10959, %v11104
      %v11153 = vadd.f32 %v10960, %v11109
      %v11154 = vadd.f32 %v10961, %v11112
      %v11155 = vadd.f32 %v10962, %v11117
      %v11156 = vadd.f32 %v10963, %v11120
      %v11157 = vadd.f32 %v10964, %v11125
      %v11158 = vadd.f32 %v10965, %v11128
      %v11159 = vadd.f32 %v10966, %v11133
      %v11160 = vadd.f32 %v10967, %v11136
      %v11161 = vadd.f32 %v10968, %v11141
      %v11162 = vadd.f32 %v10969, %v11144
      %11163 = vst.msk [vmem:[%s395] sm:$0xff] %vm1543, %v11147
      %11164 = vst.msk [vmem:[%s395 + $0x8] sm:$0xff] %vm1543, %v11148
      %11165 = vst.msk [vmem:[%s395 + $0x10] sm:$0xff] %vm1543, %v11149
      %11166 = vst.msk [vmem:[%s395 + $0x18] sm:$0xff] %vm1543, %v11150
      %11167 = vst.msk [vmem:[%s395 + $0x20] sm:$0xff] %vm1543, %v11151
      %11168 = vst.msk [vmem:[%s395 + $0x28] sm:$0xff] %vm1543, %v11152
      %11169 = vst.msk [vmem:[%s395 + $0x30] sm:$0xff] %vm1543, %v11153
      %11170 = vst.msk [vmem:[%s395 + $0x38] sm:$0xff] %vm1543, %v11154
      %11171 = vst.msk [vmem:[%s395 + $0x40] sm:$0xff] %vm1543, %v11155
      %11172 = vst.msk [vmem:[%s395 + $0x48] sm:$0xff] %vm1543, %v11156
      %11173 = vst.msk [vmem:[%s395 + $0x50] sm:$0xff] %vm1543, %v11157
      %11174 = vst.msk [vmem:[%s395 + $0x58] sm:$0xff] %vm1543, %v11158
      %11175 = vst.msk [vmem:[%s395 + $0x60] sm:$0xff] %vm1543, %v11159
      %11176 = vst.msk [vmem:[%s395 + $0x68] sm:$0xff] %vm1543, %v11160
      %11177 = vst.msk [vmem:[%s395 + $0x70] sm:$0xff] %vm1543, %v11161
      %11178 = vst.msk [vmem:[%s395 + $0x78] sm:$0xff] %vm1543, %v11162
      %p11179 = scmp.lt.s32.totalorder %s25, 1
      %s11180 = scalar_select %p11179, %s25, 1
      %p11181 = scmp.lt.s32.totalorder %s26, 1
      %s11182 = scalar_select %p11181, %s26, 1
      %s11183 = smul.addr %s11182, 16
      %s11184 = smul.addr %s11180, 32
      %s11185 = sadd.s32 %s11183, %s11184
      %s11186 = smul.addr %s11185, 8
      %s11187 = scalar_lea.vmem %s10, %s11186
      // Predicated region
      $region77: #{pcrn_forward.1} parent=59 // pred_check
        %p11188 = pneg %p270
      $region78: #{pcrn_forward.1} parent=59 // pred_check_branch
        %11190 = sbr.rel (%p11188) target = $region80
      $region79: #{pcrn_forward.1} parent=59 // pred_region
        _
      $region80: #{pcrn_forward.1} parent=59 // pred_fallthru
        _
    $region60: #{pcrn_forward.1} parent=5 // pred_fallthru
      _
    %p11191 = scmp.le.s32.totalorder 2, %s16
    // Predicated region
    $region81: #{pcrn_forward.1} parent=5 // pred_check
      %p11192 = pneg %p11191
    $region82: #{pcrn_forward.1} parent=5 // pred_check_branch
      %11194 = sbr.rel (%p11192) target = $region84
    $region83: #{pcrn_forward.1} parent=5 // pred_region
      %s11195 = ssub.s32 %s16, 2
      // Predicated region
      $region85: #{pcrn_forward.1} parent=83 // pred_check
        %p11196 = pneg %p276
      $region86: #{pcrn_forward.1} parent=83 // pred_check_branch
        %11198 = sbr.rel (%p11196) target = $region88
      $region87: #{pcrn_forward.1} parent=83 // pred_region
        %p11199 = scmp.lt.s32.totalorder %s27, 1
        %s11200 = scalar_select %p11199, %s27, 1
        %p11201 = scmp.lt.s32.totalorder %s28, 1
        %s11202 = scalar_select %p11201, %s28, 1
        %s11203 = smul.addr %s11202, 16
        %s11204 = smul.addr %s11200, 32
        %s11205 = sadd.s32 %s11203, %s11204
        %s11206 = smul.addr %s11205, 8
        %s11207 = scalar_lea.vmem %s10, %s11206
      $region88: #{pcrn_forward.1} parent=83 // pred_fallthru
        _
    $region84: #{pcrn_forward.1} parent=5 // pred_fallthru
      _
  $region6: #{pcrn_forward.1} parent=0 // loop_footer
    %s20 = sadd.s32 1, %s16
  $region7: #{pcrn_forward.1} parent=0 // loop_footer_branch
    %15 = sbr.rel target = $region3
  $region8: #{pcrn_forward.1} parent=0 // loop_exit
    _

</llo_original>
